<compile_context>
chip_gen: v7x
topology: tpu7x:2x2x1
jax: 0.10.0
libtpu: 0.0.40
codegen_flags: <defaults>
</compile_context>

<pallas_src>
import functools

import numpy as np

import jax
import jax.numpy as jnp
from jax import lax
from jax.experimental import pallas as pl
from jax.experimental.pallas import tpu as pltpu

D_MODEL = 32
NUM_EXPERT = 4
TOP_K = 2
BATCH = 512            # tokens (batch*seq flattened, as FMoE.forward does)
LANES = 128            # TPU lane width


# ----------------------------- Fused Pallas kernel ------------------------- #

def _fmoe_fused_kernel(x_ref, wcat_ref, bcat_ref, out_ref, *, num_expert, top_k):
    """One tile of packed tokens through gate + experts + weighted combine.

    x_ref:    (tmp, 128)          4 tokens of d_model=32 packed per 128-lane row
    wcat_ref: (128, 2*E*128)      [block-diag expert weights | broadcast gate weights]
    bcat_ref: (1,   2*E*128)      [tiled expert biases       | broadcast gate biases ]
    out_ref:  (tmp, 128)          combined outputs, same packed layout as x
    """
    E, K = num_expert, top_k
    lw = x_ref.shape[-1]                                 # 128 (one token-slot group)

    x = x_ref[...]
    # Single MXU pass (N = 2*E*128): expert outputs AND gate logits together.
    z = jnp.dot(x, wcat_ref[...],
                precision=lax.Precision.HIGHEST,
                preferred_element_type=jnp.float32) + bcat_ref[...]

    # 128-aligned lane slices (free vreg selections):
    #   y[e][r, t*D + d] = (x_token(r,t) @ W_e + b_e)[d]
    #   g[e][r, t*D + d] = gate logit of token (r,t) for expert e (broadcast over d)
    y = [z[:, e * lw:(e + 1) * lw] for e in range(E)]
    g = [z[:, (E + e) * lw:(E + e + 1) * lw] for e in range(E)]

    # --- NaiveGate top-k (first occurrence on ties, matching lax.top_k) ---
    # The expert axis lives across separate full vregs, so max / select are pure
    # elementwise VPU ops — no cross-lane (XLU) reductions anywhere.
    # TODO(synk): NaN or <= -1e30 logits would diverge from lax.top_k semantics.
    neg = jnp.float32(-1e30)
    remaining = list(g)
    sel = []    # sel[k][e]: bool, expert e chosen at rank k (broadcast over d lanes)
    vals = []   # vals[k]  : rank-k logit value (broadcast over d lanes)
    for _ in range(K):                                   # K is tiny -> static unroll
        m = remaining[0]
        for e in range(1, E):
            m = jnp.maximum(m, remaining[e])
        found = jnp.zeros_like(m, dtype=jnp.bool_)
        sel_k = []
        for e in range(E):                               # first-occurrence tie-break
            s = jnp.logical_and(remaining[e] == m, jnp.logical_not(found))
            found = jnp.logical_or(found, s)
            remaining[e] = jnp.where(s, neg, remaining[e])
            sel_k.append(s)
        sel.append(sel_k)
        vals.append(m)

    # --- softmax over the K selected logits (vals[0] is the max -> stable) ---
    exps = [jnp.exp(v - vals[0]) for v in vals]
    denom = exps[0]
    for t in exps[1:]:
        denom = denom + t
    # Exact reciprocal: approx (~2^-12 rel. error) is too coarse for the 1e-4 check.
    inv_denom = pl.reciprocal(denom, approx=False)
    gs = [t * inv_denom for t in exps]                   # gate scores, broadcast over d

    # --- combine: out = sum_e cw_e * (x W_e + b_e); full-vreg FMAs only ---
    acc = jnp.zeros_like(y[0])
    for e in range(E):
        cw_e = jnp.zeros_like(y[0])
        for k in range(K):
            cw_e = cw_e + jnp.where(sel[k][e], gs[k], 0.0)
        acc = acc + cw_e * y[e]

    out_ref[...] = acc.astype(out_ref.dtype)             # lane-dense (tmp,128) store


# ------------------------- One-time parameter packing ---------------------- #

def pack_fmoe_params(params, d_model=D_MODEL, num_expert=NUM_EXPERT):
    """Hoisted out of the per-forward path (param-init-time repack).

    Builds
      w_cat (128, 2*E*128):
        cols [e*128 + t*D : e*128 + (t+1)*D], rows [t*D:(t+1)*D]  = W_e   (expert block-diag)
        cols [(E+e)*128 + t*D : ... + D],     rows [t*D:(t+1)*D]  = Wg[:, e] broadcast over D
      b_cat (1, 2*E*128): matching expert-bias / gate-bias row,
    so z = x_packed @ w_cat + b_cat yields expert outputs and lane-broadcast gate
    logits in one lane-dense MXU matmul.
    """
    D, E = d_model, num_expert
    assert LANES % D == 0, "d_model must divide 128 for the packed layout"
    P = LANES // D                                        # tokens packed per row
    wg = np.asarray(params["wg"], np.float32)             # (D, E)
    bg = np.asarray(params["bg"], np.float32)             # (1, E)
    w = np.asarray(params["w"], np.float32)               # (E, D, D)
    b = np.asarray(params["b"], np.float32)[:, 0, :]      # (E, D)

    w_cat = np.zeros((LANES, 2 * E * LANES), np.float32)
    b_cat = np.zeros((1, 2 * E * LANES), np.float32)
    for e in range(E):
        for t in range(P):
            r0 = t * D
            c0 = e * LANES + t * D                        # expert block
            w_cat[r0:r0 + D, c0:c0 + D] = w[e]
            b_cat[0, c0:c0 + D] = b[e]
            g0 = (E + e) * LANES + t * D                  # gate broadcast block
            w_cat[r0:r0 + D, g0:g0 + D] = wg[:, e:e + 1]
            b_cat[0, g0:g0 + D] = bg[0, e]
    return {"w_cat": jnp.asarray(w_cat), "b_cat": jnp.asarray(b_cat)}


# -------------------------- Device-aware grid sizing ------------------------ #

def _num_tensorcores():
    """Best-effort TensorCore count per chip (1 on v5e/v6e, 2 on v7x)."""
    try:
        info = pltpu.get_tpu_info()
        for attr in ("num_tensorcores", "tensorcore_count", "num_cores", "core_count"):
            n = getattr(info, attr, None)
            if isinstance(n, int) and n > 0:
                return n
    except Exception:
        pass
    try:
        dev = jax.devices()[0]
        for attr in ("num_cores", "core_count"):
            n = getattr(dev, attr, None)
            if isinstance(n, int) and n > 0:
                return n
        kind = str(getattr(dev, "device_kind", "")).lower()
        if "v7" in kind or "tpu7" in kind:
            return 2
    except Exception:
        pass
    return 1


def _pick_block_rows(total_rows, n_cores):
    """Packed rows per grid step: 1 step on single-TC chips (fixed-overhead bound),
    n_cores steps on multi-TC chips so the 'parallel' axis shards across cores."""
    if total_rows <= 8:
        return total_rows
    steps = max(1, min(n_cores, total_rows // 8))
    rows = max(8, (total_rows // steps) // 8 * 8)
    while total_rows % rows != 0 and rows > 8:
        rows -= 8
    if total_rows % rows != 0:
        rows = total_rows
    return rows


# --------------------------------- Wrapper ---------------------------------- #

def fmoe_forward(x, packed_params, *, num_expert=NUM_EXPERT, top_k=TOP_K):
    """FMoE.forward for world_size=1, no mask, no slice group — fully fused."""
    B, D = x.shape
    assert LANES % D == 0, "d_model must divide 128 for the packed layout"
    P = LANES // D
    assert B % P == 0, "token count must be a multiple of 128 // d_model"
    rows = B // P
    x_packed = x.reshape(rows, LANES)                     # free: row-major contiguous

    n_out = 2 * num_expert * LANES
    w_cat, b_cat = packed_params["w_cat"], packed_params["b_cat"]
    assert w_cat.shape == (LANES, n_out) and b_cat.shape == (1, n_out)

    block_rows = _pick_block_rows(rows, _num_tensorcores())
    kernel = functools.partial(_fmoe_fused_kernel,
                               num_expert=num_expert, top_k=top_k)

    out_packed = pl.pallas_call(
        kernel,
        out_shape=jax.ShapeDtypeStruct((rows, LANES), x.dtype),
        grid_spec=pltpu.PrefetchScalarGridSpec(
            num_scalar_prefetch=0,
            grid=(rows // block_rows,),
            in_specs=[
                pl.BlockSpec((block_rows, LANES), lambda i: (i, 0)),   # packed tokens
                pl.BlockSpec((LANES, n_out), lambda i: (0, 0)),        # W_cat (resident)
                pl.BlockSpec((1, n_out), lambda i: (0, 0)),            # b_cat (resident)
            ],
            out_specs=pl.BlockSpec((block_rows, LANES), lambda i: (i, 0)),
        ),
        compiler_params=pltpu.CompilerParams(
            # TODO(synk): on v7x, consider pltpu.CORE_PARALLEL / core_map to guarantee
            # the single parallel axis shards across both TensorCores.
            dimension_semantics=("parallel",),
            # Explicit VMEM budget: resident W_cat is ~0.5 MiB here; keep a guard so
            # a larger d_model fails loudly instead of silently OOM-ing v7x (64 MiB).
            vmem_limit_bytes=32 * 1024 * 1024,
        ),
    )(x_packed, w_cat, b_cat)

    return out_packed.reshape(B, D)


# -------------------------------- Reference --------------------------------- #

def combine_weights(top_k_idx, gate_score, num_expert):
    onehot = jax.nn.one_hot(top_k_idx, num_expert, dtype=gate_score.dtype)  # (B,K,E)
    return jnp.einsum("bk,bke->be", gate_score, onehot)


def fmoe_reference(x, params, top_k=TOP_K):
    wg, bg, w, b = params["wg"], params["bg"], params["w"], params["b"]
    E = w.shape[0]
    hi = jax.lax.Precision.HIGHEST
    logits = jnp.dot(x, wg, precision=hi) + bg
    top_vals, top_idx = jax.lax.top_k(logits, top_k)
    gate_score = jax.nn.softmax(top_vals, axis=-1)
    expert_out = (jnp.einsum("bd,edh->beh", x, w, precision=hi)
                  + b[:, 0, :][None])                                   # (B, E, D)
    cw = combine_weights(top_idx, gate_score, E)
    return jnp.einsum("be,bed->bd", cw, expert_out, precision=hi)


def init_params(key, d_model=D_MODEL, num_expert=NUM_EXPERT):
    k1, k2, k3, _ = jax.random.split(key, 4)
    scale = 1.0 / jnp.sqrt(d_model)
    return {
        "wg": jax.random.normal(k1, (d_model, num_expert), jnp.float32) * scale,
        "bg": jnp.zeros((1, num_expert), jnp.float32),
        "w": jax.random.normal(k2, (num_expert, d_model, d_model), jnp.float32) * scale,
        "b": jax.random.normal(k3, (num_expert, 1, d_model), jnp.float32) * 0.01,
    }


if __name__ == "__main__":
    key = jax.random.PRNGKey(0)
    pkey, xkey = jax.random.split(key)
    params = init_params(pkey)
    packed = pack_fmoe_params(params)          # one-time pack (param-init time)
    x = jax.random.normal(xkey, (BATCH, D_MODEL), jnp.float32)

    out = jax.block_until_ready(fmoe_forward(x, packed))
    ref = jax.block_until_ready(fmoe_reference(x, params))

    assert out.shape == (BATCH, D_MODEL), out.shape
    max_err = float(jnp.abs(out - ref).max())
    assert jnp.allclose(out, ref, atol=1e-4, rtol=1e-4), max_err
    print("KERNEL_OK")
</pallas_src>

<mosaic_0001>
module attributes {stable_mosaic.version = 11 : i64} {
  func.func @_fmoe_fused_kernel(%arg0: i32, %arg1: memref<128x128xf32, #tpu.memory_space<vmem>>, %arg2: memref<128x1024xf32, #tpu.memory_space<vmem>>, %arg3: memref<1x1024xf32, #tpu.memory_space<vmem>>, %arg4: memref<128x128xf32, #tpu.memory_space<vmem>>) attributes {dimension_semantics = [#tpu.dimension_semantics<parallel>], iteration_bounds = array<i64: 1>, scalar_prefetch = 0 : i64, scratch_operands = 0 : i64, tpu.core_type = #tpu.core_type<tc>, window_params = [{transform_indices = @transform_0, window_bounds = array<i64: 128, 128>}, {pipeline_mode = #tpu.pipeline_mode<synchronous>, transform_indices = @transform_1, window_bounds = array<i64: 128, 1024>}, {pipeline_mode = #tpu.pipeline_mode<synchronous>, transform_indices = @transform_2, window_bounds = array<i64: 1, 1024>}, {transform_indices = @transform_3, window_bounds = array<i64: 128, 128>}]} {
    %c0 = arith.constant 0 : index
    %c0_0 = arith.constant 0 : index
    %0 = vector.load %arg1[%c0, %c0_0] : memref<128x128xf32, #tpu.memory_space<vmem>>, vector<128x128xf32>
    %c0_1 = arith.constant 0 : index
    %c0_2 = arith.constant 0 : index
    %1 = vector.load %arg2[%c0_1, %c0_2] : memref<128x1024xf32, #tpu.memory_space<vmem>>, vector<128x1024xf32>
    %cst = arith.constant dense<0.000000e+00> : vector<128x1024xf32>
    %2 = tpu.matmul %0, %1, %cst {dimension_numbers = #tpu.dot_dimension_numbers<[1], [0], [0], [1], [0, 0, 1, 1], [], []>, precision = #tpu.contract_precision<fp32>} : vector<128x128xf32>, vector<128x1024xf32>, vector<128x1024xf32> -> vector<128x1024xf32>
    %c0_3 = arith.constant 0 : index
    %c0_4 = arith.constant 0 : index
    %3 = vector.load %arg3[%c0_3, %c0_4] : memref<1x1024xf32, #tpu.memory_space<vmem>>, vector<1x1024xf32>
    %4 = vector.broadcast %3 : vector<1x1024xf32> to vector<128x1024xf32>
    %5 = arith.addf %2, %4 : vector<128x1024xf32>
    %6 = vector.extract_strided_slice %5 {offsets = [0, 0], sizes = [128, 128], strides = [1, 1]} : vector<128x1024xf32> to vector<128x128xf32>
    %7 = vector.extract_strided_slice %5 {offsets = [0, 128], sizes = [128, 128], strides = [1, 1]} : vector<128x1024xf32> to vector<128x128xf32>
    %8 = vector.extract_strided_slice %5 {offsets = [0, 256], sizes = [128, 128], strides = [1, 1]} : vector<128x1024xf32> to vector<128x128xf32>
    %9 = vector.extract_strided_slice %5 {offsets = [0, 384], sizes = [128, 128], strides = [1, 1]} : vector<128x1024xf32> to vector<128x128xf32>
    %10 = vector.extract_strided_slice %5 {offsets = [0, 512], sizes = [128, 128], strides = [1, 1]} : vector<128x1024xf32> to vector<128x128xf32>
    %11 = vector.extract_strided_slice %5 {offsets = [0, 640], sizes = [128, 128], strides = [1, 1]} : vector<128x1024xf32> to vector<128x128xf32>
    %12 = vector.extract_strided_slice %5 {offsets = [0, 768], sizes = [128, 128], strides = [1, 1]} : vector<128x1024xf32> to vector<128x128xf32>
    %13 = vector.extract_strided_slice %5 {offsets = [0, 896], sizes = [128, 128], strides = [1, 1]} : vector<128x1024xf32> to vector<128x128xf32>
    %14 = arith.maximumf %10, %11 : vector<128x128xf32>
    %15 = arith.maximumf %14, %12 : vector<128x128xf32>
    %16 = arith.maximumf %15, %13 : vector<128x128xf32>
    %false = arith.constant false
    %17 = vector.broadcast %false : i1 to vector<128x128xi1>
    %18 = arith.cmpf oeq, %10, %16 : vector<128x128xf32>
    %cst_5 = arith.constant dense<true> : vector<128x128xi1>
    %19 = arith.xori %17, %cst_5 : vector<128x128xi1>
    %20 = arith.andi %18, %19 : vector<128x128xi1>
    %21 = arith.ori %17, %20 : vector<128x128xi1>
    %cst_6 = arith.constant -1.000000e+30 : f32
    %22 = vector.broadcast %cst_6 : f32 to vector<128x128xf32>
    %23 = arith.select %20, %22, %10 : vector<128x128xi1>, vector<128x128xf32>
    %24 = arith.cmpf oeq, %11, %16 : vector<128x128xf32>
    %cst_7 = arith.constant dense<true> : vector<128x128xi1>
    %25 = arith.xori %21, %cst_7 : vector<128x128xi1>
    %26 = arith.andi %24, %25 : vector<128x128xi1>
    %27 = arith.ori %21, %26 : vector<128x128xi1>
    %cst_8 = arith.constant -1.000000e+30 : f32
    %28 = vector.broadcast %cst_8 : f32 to vector<128x128xf32>
    %29 = arith.select %26, %28, %11 : vector<128x128xi1>, vector<128x128xf32>
    %30 = arith.cmpf oeq, %12, %16 : vector<128x128xf32>
    %cst_9 = arith.constant dense<true> : vector<128x128xi1>
    %31 = arith.xori %27, %cst_9 : vector<128x128xi1>
    %32 = arith.andi %30, %31 : vector<128x128xi1>
    %33 = arith.ori %27, %32 : vector<128x128xi1>
    %cst_10 = arith.constant -1.000000e+30 : f32
    %34 = vector.broadcast %cst_10 : f32 to vector<128x128xf32>
    %35 = arith.select %32, %34, %12 : vector<128x128xi1>, vector<128x128xf32>
    %36 = arith.cmpf oeq, %13, %16 : vector<128x128xf32>
    %cst_11 = arith.constant dense<true> : vector<128x128xi1>
    %37 = arith.xori %33, %cst_11 : vector<128x128xi1>
    %38 = arith.andi %36, %37 : vector<128x128xi1>
    %cst_12 = arith.constant -1.000000e+30 : f32
    %39 = vector.broadcast %cst_12 : f32 to vector<128x128xf32>
    %40 = arith.select %38, %39, %13 : vector<128x128xi1>, vector<128x128xf32>
    %41 = arith.maximumf %23, %29 : vector<128x128xf32>
    %42 = arith.maximumf %41, %35 : vector<128x128xf32>
    %43 = arith.maximumf %42, %40 : vector<128x128xf32>
    %false_13 = arith.constant false
    %44 = vector.broadcast %false_13 : i1 to vector<128x128xi1>
    %45 = arith.cmpf oeq, %23, %43 : vector<128x128xf32>
    %cst_14 = arith.constant dense<true> : vector<128x128xi1>
    %46 = arith.xori %44, %cst_14 : vector<128x128xi1>
    %47 = arith.andi %45, %46 : vector<128x128xi1>
    %48 = arith.ori %44, %47 : vector<128x128xi1>
    %49 = arith.cmpf oeq, %29, %43 : vector<128x128xf32>
    %cst_15 = arith.constant dense<true> : vector<128x128xi1>
    %50 = arith.xori %48, %cst_15 : vector<128x128xi1>
    %51 = arith.andi %49, %50 : vector<128x128xi1>
    %52 = arith.ori %48, %51 : vector<128x128xi1>
    %53 = arith.cmpf oeq, %35, %43 : vector<128x128xf32>
    %cst_16 = arith.constant dense<true> : vector<128x128xi1>
    %54 = arith.xori %52, %cst_16 : vector<128x128xi1>
    %55 = arith.andi %53, %54 : vector<128x128xi1>
    %56 = arith.ori %52, %55 : vector<128x128xi1>
    %57 = arith.cmpf oeq, %40, %43 : vector<128x128xf32>
    %cst_17 = arith.constant dense<true> : vector<128x128xi1>
    %58 = arith.xori %56, %cst_17 : vector<128x128xi1>
    %59 = arith.andi %57, %58 : vector<128x128xi1>
    %60 = arith.subf %16, %16 : vector<128x128xf32>
    %61 = math.exp %60 : vector<128x128xf32>
    %62 = arith.subf %43, %16 : vector<128x128xf32>
    %63 = math.exp %62 : vector<128x128xf32>
    %64 = arith.addf %61, %63 : vector<128x128xf32>
    %65 = tpu.reciprocal %64 : vector<128x128xf32> -> vector<128x128xf32>
    %66 = arith.mulf %61, %65 : vector<128x128xf32>
    %67 = arith.mulf %63, %65 : vector<128x128xf32>
    %cst_18 = arith.constant 0.000000e+00 : f32
    %68 = vector.broadcast %cst_18 : f32 to vector<128x128xf32>
    %cst_19 = arith.constant 0.000000e+00 : f32
    %69 = vector.broadcast %cst_19 : f32 to vector<128x128xf32>
    %cst_20 = arith.constant 0.000000e+00 : f32
    %70 = vector.broadcast %cst_20 : f32 to vector<128x128xf32>
    %71 = arith.select %20, %66, %70 : vector<128x128xi1>, vector<128x128xf32>
    %72 = arith.addf %69, %71 : vector<128x128xf32>
    %cst_21 = arith.constant 0.000000e+00 : f32
    %73 = vector.broadcast %cst_21 : f32 to vector<128x128xf32>
    %74 = arith.select %47, %67, %73 : vector<128x128xi1>, vector<128x128xf32>
    %75 = arith.addf %72, %74 : vector<128x128xf32>
    %76 = arith.mulf %75, %6 : vector<128x128xf32>
    %77 = arith.addf %68, %76 : vector<128x128xf32>
    %cst_22 = arith.constant 0.000000e+00 : f32
    %78 = vector.broadcast %cst_22 : f32 to vector<128x128xf32>
    %cst_23 = arith.constant 0.000000e+00 : f32
    %79 = vector.broadcast %cst_23 : f32 to vector<128x128xf32>
    %80 = arith.select %26, %66, %79 : vector<128x128xi1>, vector<128x128xf32>
    %81 = arith.addf %78, %80 : vector<128x128xf32>
    %cst_24 = arith.constant 0.000000e+00 : f32
    %82 = vector.broadcast %cst_24 : f32 to vector<128x128xf32>
    %83 = arith.select %51, %67, %82 : vector<128x128xi1>, vector<128x128xf32>
    %84 = arith.addf %81, %83 : vector<128x128xf32>
    %85 = arith.mulf %84, %7 : vector<128x128xf32>
    %86 = arith.addf %77, %85 : vector<128x128xf32>
    %cst_25 = arith.constant 0.000000e+00 : f32
    %87 = vector.broadcast %cst_25 : f32 to vector<128x128xf32>
    %cst_26 = arith.constant 0.000000e+00 : f32
    %88 = vector.broadcast %cst_26 : f32 to vector<128x128xf32>
    %89 = arith.select %32, %66, %88 : vector<128x128xi1>, vector<128x128xf32>
    %90 = arith.addf %87, %89 : vector<128x128xf32>
    %cst_27 = arith.constant 0.000000e+00 : f32
    %91 = vector.broadcast %cst_27 : f32 to vector<128x128xf32>
    %92 = arith.select %55, %67, %91 : vector<128x128xi1>, vector<128x128xf32>
    %93 = arith.addf %90, %92 : vector<128x128xf32>
    %94 = arith.mulf %93, %8 : vector<128x128xf32>
    %95 = arith.addf %86, %94 : vector<128x128xf32>
    %cst_28 = arith.constant 0.000000e+00 : f32
    %96 = vector.broadcast %cst_28 : f32 to vector<128x128xf32>
    %cst_29 = arith.constant 0.000000e+00 : f32
    %97 = vector.broadcast %cst_29 : f32 to vector<128x128xf32>
    %98 = arith.select %38, %66, %97 : vector<128x128xi1>, vector<128x128xf32>
    %99 = arith.addf %96, %98 : vector<128x128xf32>
    %cst_30 = arith.constant 0.000000e+00 : f32
    %100 = vector.broadcast %cst_30 : f32 to vector<128x128xf32>
    %101 = arith.select %59, %67, %100 : vector<128x128xi1>, vector<128x128xf32>
    %102 = arith.addf %99, %101 : vector<128x128xf32>
    %103 = arith.mulf %102, %9 : vector<128x128xf32>
    %104 = arith.addf %95, %103 : vector<128x128xf32>
    %c0_31 = arith.constant 0 : index
    %c0_32 = arith.constant 0 : index
    %105 = vector.load %arg4[%c0_31, %c0_32] : memref<128x128xf32, #tpu.memory_space<vmem>>, vector<128x128xf32>
    tpu.vector_store %arg4[%c0_31, %c0_32], %104 {strides = array<i32>} : memref<128x128xf32, #tpu.memory_space<vmem>>, vector<128x128xf32>,
    return
  }
  func.func @transform_0(%arg0: i32) -> (i32, i32) {
    %c0_i32 = arith.constant 0 : i32
    %c0_i32_0 = arith.constant 0 : i32
    return %arg0, %c0_i32 : i32, i32
  }
  func.func @transform_1(%arg0: i32) -> (i32, i32) {
    %c0_i32 = arith.constant 0 : i32
    %c0_i32_0 = arith.constant 0 : i32
    %c0_i32_1 = arith.constant 0 : i32
    return %c0_i32, %c0_i32_0 : i32, i32
  }
  func.func @transform_2(%arg0: i32) -> (i32, i32) {
    %c0_i32 = arith.constant 0 : i32
    %c0_i32_0 = arith.constant 0 : i32
    %c0_i32_1 = arith.constant 0 : i32
    return %c0_i32, %c0_i32_0 : i32, i32
  }
  func.func @transform_3(%arg0: i32) -> (i32, i32) {
    %c0_i32 = arith.constant 0 : i32
    %c0_i32_0 = arith.constant 0 : i32
    return %arg0, %c0_i32 : i32, i32
  }
}

</mosaic_0001>

<llo_original>
// kernel: tpu_custom_call.1
$region0: #{tpu_custom_call.1}
  #allocation0 [shape = 'u32[]', space=smem, size = 0x4, offset = 0x4, fixed_abs, tag = 'smem constant byte address 0x4 - core index']
  #allocation1 [shape = 'u32[144,128]{1,0:T(1,128)}', space=vmem, size = 0x12000, scoped, tag = 'internal scratch']
  %s0 = inlined_call_operand.hbm [shape: f32[128,128], index: 0, kind: input, shape index: {}]
  %s1 = inlined_call_operand.hbm [shape: f32[128,1024], index: 1, kind: input, shape index: {}]
  %s2 = inlined_call_operand.hbm [shape: f32[1,1024], index: 2, kind: input, shape index: {}]
  %s3 = inlined_call_operand.hbm [shape: f32[128,128], index: 3, kind: output, shape index: {}]
  %s4 = sld [smem:[#allocation0]]
  $region34: #{tpu_custom_call.1} parent=0
    _
  %s6 = ssub.s32 1, %s4
  %s7 = scalar_select 0, %s6, %s4
  $region1: #{tpu_custom_call.1} parent=0
    #allocation2 [shape = 'u8[65536]{0}', space=vmem, size = 0x10000, scoped, tag = 'input window, operand 0, single buffered']
    #allocation3 [shape = 's32[1]{0}', space=sflag, size = 0x4, scoped, tag = 'scoped memory for tpu_custom_call.1']
    #allocation4 [shape = 's32[1]{0}', space=sflag, size = 0x4, scoped, tag = 'scoped memory for tpu_custom_call.1']
    #allocation5 [shape = 'u8[524288]{0}', space=vmem, size = 0x80000, scoped, tag = 'input window, operand 1, single buffered']
    #allocation6 [shape = 's32[1]{0}', space=sflag, size = 0x4, scoped, tag = 'scoped memory for tpu_custom_call.1']
    #allocation7 [shape = 'u8[4096]{0}', space=vmem, size = 0x1000, scoped, tag = 'input window, operand 2, single buffered']
    #allocation8 [shape = 'u8[65536]{0}', space=vmem, size = 0x10000, scoped, tag = 'output window, operand 0, single buffered']
    %8 = vsyncpa [#allocation3], 0
    %9 = vsyncpa [#allocation6], 0
    %10 = vsyncpa [#allocation4], 0
    // Predicated region
    $region2: #{tpu_custom_call.1} parent=1 // pred_check
      _
    $region3: #{tpu_custom_call.1} parent=1 // pred_check_branch
      %12 = sbr.rel (0) target = $region5
    $region4: #{tpu_custom_call.1} parent=1 // pred_region
      %s14 = ssub.s32 2048, 2048
      %15 = vsyncadd [#allocation3], %s14
      %s16 = sshll.u32 [#allocation2], 4
      %s17 = int_to_ptr.vmem [resolvable:$true] %s16
      %22 = dma.hbm_to_vmem [thread:$0]  %s0, 2048, %s17, [#allocation3], 128, 128, 8
    $region5: #{tpu_custom_call.1} parent=1 // pred_fallthru
      _
    // Predicated region
    $region6: #{tpu_custom_call.1} parent=1 // pred_check
      _
    $region7: #{tpu_custom_call.1} parent=1 // pred_check_branch
      %24 = sbr.rel (0) target = $region9
    $region8: #{tpu_custom_call.1} parent=1 // pred_region
      %s26 = ssub.s32 16384, 16384
      %27 = vsyncadd [#allocation6], %s26
      %s28 = sshll.u32 [#allocation5], 4
      %s29 = int_to_ptr.vmem [resolvable:$true] %s28
      %34 = dma.hbm_to_vmem [thread:$0]  %s1, 16384, %s29, [#allocation6], 1024, 1024, 64
    $region9: #{tpu_custom_call.1} parent=1 // pred_fallthru
      _
    // Predicated region
    $region10: #{tpu_custom_call.1} parent=1 // pred_check
      _
    $region11: #{tpu_custom_call.1} parent=1 // pred_check_branch
      %36 = sbr.rel (0) target = $region13
    $region12: #{tpu_custom_call.1} parent=1 // pred_region
      %s38 = ssub.s32 128, 128
      %39 = vsyncadd [#allocation6], %s38
      %s41 = sshll.u32 [#allocation7], 4
      %s42 = int_to_ptr.vmem [resolvable:$true] %s41
      %44 = dma.hbm_to_vmem [thread:$0]  %s2, 128, %s42, [#allocation6]
    $region13: #{tpu_custom_call.1} parent=1 // pred_fallthru
      _
    // Predicated region
    $region14: #{tpu_custom_call.1} parent=1 // pred_check
      _
    $region15: #{tpu_custom_call.1} parent=1 // pred_check_branch
      %46 = sbr.rel (0) target = $region17
    $region16: #{tpu_custom_call.1} parent=1 // pred_region
      %47 = dma.done [#allocation3], 2048
    $region17: #{tpu_custom_call.1} parent=1 // pred_fallthru
      _
    // Predicated region
    $region18: #{tpu_custom_call.1} parent=1 // pred_check
      _
    $region19: #{tpu_custom_call.1} parent=1 // pred_check_branch
      %49 = sbr.rel (0) target = $region21
    $region20: #{tpu_custom_call.1} parent=1 // pred_region
      %50 = dma.done [#allocation6], 16384
    $region21: #{tpu_custom_call.1} parent=1 // pred_fallthru
      _
    // Predicated region
    $region22: #{tpu_custom_call.1} parent=1 // pred_check
      _
    $region23: #{tpu_custom_call.1} parent=1 // pred_check_branch
      %52 = sbr.rel (0) target = $region25
    $region24: #{tpu_custom_call.1} parent=1 // pred_region
      %53 = dma.done [#allocation6], 128
    $region25: #{tpu_custom_call.1} parent=1 // pred_fallthru
      _
    %v54 = vld [vmem:[#allocation2] sm:$0xff]
    %v55 = vld [vmem:[#allocation2 + $0x8] sm:$0xff]
    %v56 = vld [vmem:[#allocation2 + $0x10] sm:$0xff]
    %v57 = vld [vmem:[#allocation2 + $0x18] sm:$0xff]
    %v58 = vld [vmem:[#allocation2 + $0x20] sm:$0xff]
    %v59 = vld [vmem:[#allocation2 + $0x28] sm:$0xff]
    %v60 = vld [vmem:[#allocation2 + $0x30] sm:$0xff]
    %v61 = vld [vmem:[#allocation2 + $0x38] sm:$0xff]
    %v62 = vld [vmem:[#allocation2 + $0x40] sm:$0xff]
    %v63 = vld [vmem:[#allocation2 + $0x48] sm:$0xff]
    %v64 = vld [vmem:[#allocation2 + $0x50] sm:$0xff]
    %v65 = vld [vmem:[#allocation2 + $0x58] sm:$0xff]
    %v66 = vld [vmem:[#allocation2 + $0x60] sm:$0xff]
    %v67 = vld [vmem:[#allocation2 + $0x68] sm:$0xff]
    %v68 = vld [vmem:[#allocation2 + $0x70] sm:$0xff]
    %v69 = vld [vmem:[#allocation2 + $0x78] sm:$0xff]
    %v70 = vld [vmem:[#allocation5] sm:$0xff]
    %v71 = vld [vmem:[#allocation5 + $0x8] sm:$0xff]
    %v72 = vld [vmem:[#allocation5 + $0x10] sm:$0xff]
    %v73 = vld [vmem:[#allocation5 + $0x18] sm:$0xff]
    %v74 = vld [vmem:[#allocation5 + $0x20] sm:$0xff]
    %v75 = vld [vmem:[#allocation5 + $0x28] sm:$0xff]
    %v76 = vld [vmem:[#allocation5 + $0x30] sm:$0xff]
    %v77 = vld [vmem:[#allocation5 + $0x38] sm:$0xff]
    %v78 = vld [vmem:[#allocation5 + $0x40] sm:$0xff]
    %v79 = vld [vmem:[#allocation5 + $0x48] sm:$0xff]
    %v80 = vld [vmem:[#allocation5 + $0x50] sm:$0xff]
    %v81 = vld [vmem:[#allocation5 + $0x58] sm:$0xff]
    %v82 = vld [vmem:[#allocation5 + $0x60] sm:$0xff]
    %v83 = vld [vmem:[#allocation5 + $0x68] sm:$0xff]
    %v84 = vld [vmem:[#allocation5 + $0x70] sm:$0xff]
    %v85 = vld [vmem:[#allocation5 + $0x78] sm:$0xff]
    %v86 = vld [vmem:[#allocation5 + $0x80] sm:$0xff]
    %v87 = vld [vmem:[#allocation5 + $0x88] sm:$0xff]
    %v88 = vld [vmem:[#allocation5 + $0x90] sm:$0xff]
    %v89 = vld [vmem:[#allocation5 + $0x98] sm:$0xff]
    %v90 = vld [vmem:[#allocation5 + $0xa0] sm:$0xff]
    %v91 = vld [vmem:[#allocation5 + $0xa8] sm:$0xff]
    %v92 = vld [vmem:[#allocation5 + $0xb0] sm:$0xff]
    %v93 = vld [vmem:[#allocation5 + $0xb8] sm:$0xff]
    %v94 = vld [vmem:[#allocation5 + $0xc0] sm:$0xff]
    %v95 = vld [vmem:[#allocation5 + $0xc8] sm:$0xff]
    %v96 = vld [vmem:[#allocation5 + $0xd0] sm:$0xff]
    %v97 = vld [vmem:[#allocation5 + $0xd8] sm:$0xff]
    %v98 = vld [vmem:[#allocation5 + $0xe0] sm:$0xff]
    %v99 = vld [vmem:[#allocation5 + $0xe8] sm:$0xff]
    %v100 = vld [vmem:[#allocation5 + $0xf0] sm:$0xff]
    %v101 = vld [vmem:[#allocation5 + $0xf8] sm:$0xff]
    %v102 = vld [vmem:[#allocation5 + $0x100] sm:$0xff]
    %v103 = vld [vmem:[#allocation5 + $0x108] sm:$0xff]
    %v104 = vld [vmem:[#allocation5 + $0x110] sm:$0xff]
    %v105 = vld [vmem:[#allocation5 + $0x118] sm:$0xff]
    %v106 = vld [vmem:[#allocation5 + $0x120] sm:$0xff]
    %v107 = vld [vmem:[#allocation5 + $0x128] sm:$0xff]
    %v108 = vld [vmem:[#allocation5 + $0x130] sm:$0xff]
    %v109 = vld [vmem:[#allocation5 + $0x138] sm:$0xff]
    %v110 = vld [vmem:[#allocation5 + $0x140] sm:$0xff]
    %v111 = vld [vmem:[#allocation5 + $0x148] sm:$0xff]
    %v112 = vld [vmem:[#allocation5 + $0x150] sm:$0xff]
    %v113 = vld [vmem:[#allocation5 + $0x158] sm:$0xff]
    %v114 = vld [vmem:[#allocation5 + $0x160] sm:$0xff]
    %v115 = vld [vmem:[#allocation5 + $0x168] sm:$0xff]
    %v116 = vld [vmem:[#allocation5 + $0x170] sm:$0xff]
    %v117 = vld [vmem:[#allocation5 + $0x178] sm:$0xff]
    %v118 = vld [vmem:[#allocation5 + $0x180] sm:$0xff]
    %v119 = vld [vmem:[#allocation5 + $0x188] sm:$0xff]
    %v120 = vld [vmem:[#allocation5 + $0x190] sm:$0xff]
    %v121 = vld [vmem:[#allocation5 + $0x198] sm:$0xff]
    %v122 = vld [vmem:[#allocation5 + $0x1a0] sm:$0xff]
    %v123 = vld [vmem:[#allocation5 + $0x1a8] sm:$0xff]
    %v124 = vld [vmem:[#allocation5 + $0x1b0] sm:$0xff]
    %v125 = vld [vmem:[#allocation5 + $0x1b8] sm:$0xff]
    %v126 = vld [vmem:[#allocation5 + $0x1c0] sm:$0xff]
    %v127 = vld [vmem:[#allocation5 + $0x1c8] sm:$0xff]
    %v128 = vld [vmem:[#allocation5 + $0x1d0] sm:$0xff]
    %v129 = vld [vmem:[#allocation5 + $0x1d8] sm:$0xff]
    %v130 = vld [vmem:[#allocation5 + $0x1e0] sm:$0xff]
    %v131 = vld [vmem:[#allocation5 + $0x1e8] sm:$0xff]
    %v132 = vld [vmem:[#allocation5 + $0x1f0] sm:$0xff]
    %v133 = vld [vmem:[#allocation5 + $0x1f8] sm:$0xff]
    %v134 = vld [vmem:[#allocation5 + $0x200] sm:$0xff]
    %v135 = vld [vmem:[#allocation5 + $0x208] sm:$0xff]
    %v136 = vld [vmem:[#allocation5 + $0x210] sm:$0xff]
    %v137 = vld [vmem:[#allocation5 + $0x218] sm:$0xff]
    %v138 = vld [vmem:[#allocation5 + $0x220] sm:$0xff]
    %v139 = vld [vmem:[#allocation5 + $0x228] sm:$0xff]
    %v140 = vld [vmem:[#allocation5 + $0x230] sm:$0xff]
    %v141 = vld [vmem:[#allocation5 + $0x238] sm:$0xff]
    %v142 = vld [vmem:[#allocation5 + $0x240] sm:$0xff]
    %v143 = vld [vmem:[#allocation5 + $0x248] sm:$0xff]
    %v144 = vld [vmem:[#allocation5 + $0x250] sm:$0xff]
    %v145 = vld [vmem:[#allocation5 + $0x258] sm:$0xff]
    %v146 = vld [vmem:[#allocation5 + $0x260] sm:$0xff]
    %v147 = vld [vmem:[#allocation5 + $0x268] sm:$0xff]
    %v148 = vld [vmem:[#allocation5 + $0x270] sm:$0xff]
    %v149 = vld [vmem:[#allocation5 + $0x278] sm:$0xff]
    %v150 = vld [vmem:[#allocation5 + $0x280] sm:$0xff]
    %v151 = vld [vmem:[#allocation5 + $0x288] sm:$0xff]
    %v152 = vld [vmem:[#allocation5 + $0x290] sm:$0xff]
    %v153 = vld [vmem:[#allocation5 + $0x298] sm:$0xff]
    %v154 = vld [vmem:[#allocation5 + $0x2a0] sm:$0xff]
    %v155 = vld [vmem:[#allocation5 + $0x2a8] sm:$0xff]
    %v156 = vld [vmem:[#allocation5 + $0x2b0] sm:$0xff]
    %v157 = vld [vmem:[#allocation5 + $0x2b8] sm:$0xff]
    %v158 = vld [vmem:[#allocation5 + $0x2c0] sm:$0xff]
    %v159 = vld [vmem:[#allocation5 + $0x2c8] sm:$0xff]
    %v160 = vld [vmem:[#allocation5 + $0x2d0] sm:$0xff]
    %v161 = vld [vmem:[#allocation5 + $0x2d8] sm:$0xff]
    %v162 = vld [vmem:[#allocation5 + $0x2e0] sm:$0xff]
    %v163 = vld [vmem:[#allocation5 + $0x2e8] sm:$0xff]
    %v164 = vld [vmem:[#allocation5 + $0x2f0] sm:$0xff]
    %v165 = vld [vmem:[#allocation5 + $0x2f8] sm:$0xff]
    %v166 = vld [vmem:[#allocation5 + $0x300] sm:$0xff]
    %v167 = vld [vmem:[#allocation5 + $0x308] sm:$0xff]
    %v168 = vld [vmem:[#allocation5 + $0x310] sm:$0xff]
    %v169 = vld [vmem:[#allocation5 + $0x318] sm:$0xff]
    %v170 = vld [vmem:[#allocation5 + $0x320] sm:$0xff]
    %v171 = vld [vmem:[#allocation5 + $0x328] sm:$0xff]
    %v172 = vld [vmem:[#allocation5 + $0x330] sm:$0xff]
    %v173 = vld [vmem:[#allocation5 + $0x338] sm:$0xff]
    %v174 = vld [vmem:[#allocation5 + $0x340] sm:$0xff]
    %v175 = vld [vmem:[#allocation5 + $0x348] sm:$0xff]
    %v176 = vld [vmem:[#allocation5 + $0x350] sm:$0xff]
    %v177 = vld [vmem:[#allocation5 + $0x358] sm:$0xff]
    %v178 = vld [vmem:[#allocation5 + $0x360] sm:$0xff]
    %v179 = vld [vmem:[#allocation5 + $0x368] sm:$0xff]
    %v180 = vld [vmem:[#allocation5 + $0x370] sm:$0xff]
    %v181 = vld [vmem:[#allocation5 + $0x378] sm:$0xff]
    %v182 = vld [vmem:[#allocation5 + $0x380] sm:$0xff]
    %v183 = vld [vmem:[#allocation5 + $0x388] sm:$0xff]
    %v184 = vld [vmem:[#allocation5 + $0x390] sm:$0xff]
    %v185 = vld [vmem:[#allocation5 + $0x398] sm:$0xff]
    %v186 = vld [vmem:[#allocation5 + $0x3a0] sm:$0xff]
    %v187 = vld [vmem:[#allocation5 + $0x3a8] sm:$0xff]
    %v188 = vld [vmem:[#allocation5 + $0x3b0] sm:$0xff]
    %v189 = vld [vmem:[#allocation5 + $0x3b8] sm:$0xff]
    %v190 = vld [vmem:[#allocation5 + $0x3c0] sm:$0xff]
    %v191 = vld [vmem:[#allocation5 + $0x3c8] sm:$0xff]
    %v192 = vld [vmem:[#allocation5 + $0x3d0] sm:$0xff]
    %v193 = vld [vmem:[#allocation5 + $0x3d8] sm:$0xff]
    %v194 = vld [vmem:[#allocation5 + $0x3e0] sm:$0xff]
    %v195 = vld [vmem:[#allocation5 + $0x3e8] sm:$0xff]
    %v196 = vld [vmem:[#allocation5 + $0x3f0] sm:$0xff]
    %v197 = vld [vmem:[#allocation5 + $0x3f8] sm:$0xff]
    %v198 = vld [vmem:[#allocation7] sm:$0xff]
    %v200 = vlaneseq
    %v201 = vshrl.u32 %v200, 7
    %v202 = vsub.s32 0, %v201
    %v203 = vrot.slane %v198, %v202
    %v204 = vlaneseq
    %v205 = vshrl.u32 %v204, 7
    %v206 = vsub.s32 1, %v205
    %v207 = vrot.slane %v198, %v206
    %v208 = vlaneseq
    %v209 = vshrl.u32 %v208, 7
    %v210 = vsub.s32 2, %v209
    %v211 = vrot.slane %v198, %v210
    %v212 = vlaneseq
    %v213 = vshrl.u32 %v212, 7
    %v214 = vsub.s32 3, %v213
    %v215 = vrot.slane %v198, %v214
    %v216 = vlaneseq
    %v217 = vshrl.u32 %v216, 7
    %v218 = vsub.s32 4, %v217
    %v219 = vrot.slane %v198, %v218
    %v220 = vlaneseq
    %v221 = vshrl.u32 %v220, 7
    %v222 = vsub.s32 5, %v221
    %v223 = vrot.slane %v198, %v222
    %v224 = vlaneseq
    %v225 = vshrl.u32 %v224, 7
    %v226 = vsub.s32 6, %v225
    %v227 = vrot.slane %v198, %v226
    %v228 = vlaneseq
    %v229 = vshrl.u32 %v228, 7
    %v230 = vsub.s32 7, %v229
    %v231 = vrot.slane %v198, %v230
    %v240 = vand.u32 %v71, 4294901760
    %241 = vmatprep.subr.mxu0 %v240
    %v242 = vand.u32 %v70, 4294901760
    %243 = vmatpush1.msra.mxu0 %v242
    %v244 = vand.u32 %v79, 4294901760
    %245 = vmatprep.subr.mxu0 %v244
    %v246 = vand.u32 %v78, 4294901760
    %247 = vmatpush1.msra.mxu0 %v246
    %v248 = vand.u32 %v87, 4294901760
    %249 = vmatprep.subr.mxu0 %v248
    %v250 = vand.u32 %v86, 4294901760
    %251 = vmatpush1.msra.mxu0 %v250
    %v252 = vand.u32 %v95, 4294901760
    %253 = vmatprep.subr.mxu0 %v252
    %v254 = vand.u32 %v94, 4294901760
    %255 = vmatpush1.msra.mxu0 %v254
    %v256 = vand.u32 %v103, 4294901760
    %257 = vmatprep.subr.mxu0 %v256
    %v258 = vand.u32 %v102, 4294901760
    %259 = vmatpush1.msra.mxu0 %v258
    %v260 = vand.u32 %v111, 4294901760
    %261 = vmatprep.subr.mxu0 %v260
    %v262 = vand.u32 %v110, 4294901760
    %263 = vmatpush1.msra.mxu0 %v262
    %v264 = vand.u32 %v119, 4294901760
    %265 = vmatprep.subr.mxu0 %v264
    %v266 = vand.u32 %v118, 4294901760
    %267 = vmatpush1.msra.mxu0 %v266
    %v268 = vand.u32 %v127, 4294901760
    %269 = vmatprep.subr.mxu0 %v268
    %v270 = vand.u32 %v126, 4294901760
    %271 = vmatpush1.msra.mxu0 %v270
    %v272 = vand.u32 %v135, 4294901760
    %273 = vmatprep.subr.mxu0 %v272
    %v274 = vand.u32 %v134, 4294901760
    %275 = vmatpush1.msra.mxu0 %v274
    %v276 = vand.u32 %v143, 4294901760
    %277 = vmatprep.subr.mxu0 %v276
    %v278 = vand.u32 %v142, 4294901760
    %279 = vmatpush1.msra.mxu0 %v278
    %v280 = vand.u32 %v151, 4294901760
    %281 = vmatprep.subr.mxu0 %v280
    %v282 = vand.u32 %v150, 4294901760
    %283 = vmatpush1.msra.mxu0 %v282
    %v284 = vand.u32 %v159, 4294901760
    %285 = vmatprep.subr.mxu0 %v284
    %v286 = vand.u32 %v158, 4294901760
    %287 = vmatpush1.msra.mxu0 %v286
    %v288 = vand.u32 %v167, 4294901760
    %289 = vmatprep.subr.mxu0 %v288
    %v290 = vand.u32 %v166, 4294901760
    %291 = vmatpush1.msra.mxu0 %v290
    %v292 = vand.u32 %v175, 4294901760
    %293 = vmatprep.subr.mxu0 %v292
    %v294 = vand.u32 %v174, 4294901760
    %295 = vmatpush1.msra.mxu0 %v294
    %v296 = vand.u32 %v183, 4294901760
    %297 = vmatprep.subr.mxu0 %v296
    %v298 = vand.u32 %v182, 4294901760
    %299 = vmatpush1.msra.mxu0 %v298
    %v300 = vand.u32 %v191, 4294901760
    %301 = vmatprep.subr.mxu0 %v300
    %v302 = vand.u32 %v190, 4294901760
    %303 = vmatpush1.msra.mxu0 %v302
    %304 = vmatprep.subr.mxu0 0.0
    %305 = vmatpush1.msra.mxu0 0.0
    %306 = vmatprep.subr.mxu0 0.0
    %307 = vmatpush1.msra.mxu0 0.0
    %308 = vmatprep.subr.mxu0 0.0
    %309 = vmatpush1.msra.mxu0 0.0
    %310 = vmatprep.subr.mxu0 0.0
    %311 = vmatpush1.msra.mxu0 0.0
    %312 = vmatprep.subr.mxu0 0.0
    %313 = vmatpush1.msra.mxu0 0.0
    %314 = vmatprep.subr.mxu0 0.0
    %315 = vmatpush1.msra.mxu0 0.0
    %316 = vmatprep.subr.mxu0 0.0
    %317 = vmatpush1.msra.mxu0 0.0
    %318 = vmatprep.subr.mxu0 0.0
    %319 = vmatpush1.msra.mxu0 0.0
    %320 = vmatprep.subr.mxu0 0.0
    %321 = vmatpush1.msra.mxu0 0.0
    %322 = vmatprep.subr.mxu0 0.0
    %323 = vmatpush1.msra.mxu0 0.0
    %324 = vmatprep.subr.mxu0 0.0
    %325 = vmatpush1.msra.mxu0 0.0
    %326 = vmatprep.subr.mxu0 0.0
    %327 = vmatpush1.msra.mxu0 0.0
    %328 = vmatprep.subr.mxu0 0.0
    %329 = vmatpush1.msra.mxu0 0.0
    %330 = vmatprep.subr.mxu0 0.0
    %331 = vmatpush1.msra.mxu0 0.0
    %332 = vmatprep.subr.mxu0 0.0
    %333 = vmatpush1.msra.mxu0 0.0
    %334 = vmatprep.subr.mxu0 0.0
    %335 = vmatpush1.msra.mxu0 0.0
    %336 = vmatprep.mubr.f32.mxu0 0.0
    %v337 = vand.u32 %v54, 4294901760
    %v338 = vsub.f32 %v54, %v337
    %v339 = vand.u32 %v338, 4294901760
    %v340 = vsub.f32 %v338, %v339
    %v341 = vand.u32 %v340, 4294901760
    %342 = vmatmul.mubr.f32.gmra.mrb[0].mxu0 %v341
    %v343 = vpop.f32.mrb[0].mxu0
    %v344 = vadd.f32 %v203, %v343
    %v345 = vpop.f32.mrb[0].mxu0
    %v346 = vadd.f32 %v207, %v345
    %347 = vmatprep.mubr.f32.mxu0 0.0
    %v348 = vand.u32 %v55, 4294901760
    %v349 = vsub.f32 %v55, %v348
    %v350 = vand.u32 %v349, 4294901760
    %v351 = vsub.f32 %v349, %v350
    %v352 = vand.u32 %v351, 4294901760
    %353 = vmatmul.mubr.f32.gmra.mrb[0].mxu0 %v352
    %v354 = vpop.f32.mrb[0].mxu0
    %v355 = vadd.f32 %v203, %v354
    %v356 = vpop.f32.mrb[0].mxu0
    %v357 = vadd.f32 %v207, %v356
    %358 = vmatprep.mubr.f32.mxu0 0.0
    %v359 = vand.u32 %v56, 4294901760
    %v360 = vsub.f32 %v56, %v359
    %v361 = vand.u32 %v360, 4294901760
    %v362 = vsub.f32 %v360, %v361
    %v363 = vand.u32 %v362, 4294901760
    %364 = vmatmul.mubr.f32.gmra.mrb[0].mxu0 %v363
    %v365 = vpop.f32.mrb[0].mxu0
    %v366 = vadd.f32 %v203, %v365
    %v367 = vpop.f32.mrb[0].mxu0
    %v368 = vadd.f32 %v207, %v367
    %369 = vmatprep.mubr.f32.mxu0 0.0
    %v370 = vand.u32 %v57, 4294901760
    %v371 = vsub.f32 %v57, %v370
    %v372 = vand.u32 %v371, 4294901760
    %v373 = vsub.f32 %v371, %v372
    %v374 = vand.u32 %v373, 4294901760
    %375 = vmatmul.mubr.f32.gmra.mrb[0].mxu0 %v374
    %v376 = vpop.f32.mrb[0].mxu0
    %v377 = vadd.f32 %v203, %v376
    %v378 = vpop.f32.mrb[0].mxu0
    %v379 = vadd.f32 %v207, %v378
    %380 = vmatprep.mubr.f32.mxu0 0.0
    %v381 = vand.u32 %v58, 4294901760
    %v382 = vsub.f32 %v58, %v381
    %v383 = vand.u32 %v382, 4294901760
    %v384 = vsub.f32 %v382, %v383
    %v385 = vand.u32 %v384, 4294901760
    %386 = vmatmul.mubr.f32.gmra.mrb[0].mxu0 %v385
    %v387 = vpop.f32.mrb[0].mxu0
    %v388 = vadd.f32 %v203, %v387
    %v389 = vpop.f32.mrb[0].mxu0
    %v390 = vadd.f32 %v207, %v389
    %391 = vmatprep.mubr.f32.mxu0 0.0
    %v392 = vand.u32 %v59, 4294901760
    %v393 = vsub.f32 %v59, %v392
    %v394 = vand.u32 %v393, 4294901760
    %v395 = vsub.f32 %v393, %v394
    %v396 = vand.u32 %v395, 4294901760
    %397 = vmatmul.mubr.f32.gmra.mrb[0].mxu0 %v396
    %v398 = vpop.f32.mrb[0].mxu0
    %v399 = vadd.f32 %v203, %v398
    %v400 = vpop.f32.mrb[0].mxu0
    %v401 = vadd.f32 %v207, %v400
    %402 = vmatprep.mubr.f32.mxu0 0.0
    %v403 = vand.u32 %v60, 4294901760
    %v404 = vsub.f32 %v60, %v403
    %v405 = vand.u32 %v404, 4294901760
    %v406 = vsub.f32 %v404, %v405
    %v407 = vand.u32 %v406, 4294901760
    %408 = vmatmul.mubr.f32.gmra.mrb[0].mxu0 %v407
    %v409 = vpop.f32.mrb[0].mxu0
    %v410 = vadd.f32 %v203, %v409
    %v411 = vpop.f32.mrb[0].mxu0
    %v412 = vadd.f32 %v207, %v411
    %413 = vmatprep.mubr.f32.mxu0 0.0
    %v414 = vand.u32 %v61, 4294901760
    %v415 = vsub.f32 %v61, %v414
    %v416 = vand.u32 %v415, 4294901760
    %v417 = vsub.f32 %v415, %v416
    %v418 = vand.u32 %v417, 4294901760
    %419 = vmatmul.mubr.f32.gmra.mrb[0].mxu0 %v418
    %v420 = vpop.f32.mrb[0].mxu0
    %v421 = vadd.f32 %v203, %v420
    %v422 = vpop.f32.mrb[0].mxu0
    %v423 = vadd.f32 %v207, %v422
    %424 = vmatprep.mubr.f32.mxu0 0.0
    %v425 = vand.u32 %v62, 4294901760
    %v426 = vsub.f32 %v62, %v425
    %v427 = vand.u32 %v426, 4294901760
    %v428 = vsub.f32 %v426, %v427
    %v429 = vand.u32 %v428, 4294901760
    %430 = vmatmul.mubr.f32.gmra.mrb[0].mxu0 %v429
    %v431 = vpop.f32.mrb[0].mxu0
    %v432 = vadd.f32 %v203, %v431
    %v433 = vpop.f32.mrb[0].mxu0
    %v434 = vadd.f32 %v207, %v433
    %435 = vmatprep.mubr.f32.mxu0 0.0
    %v436 = vand.u32 %v63, 4294901760
    %v437 = vsub.f32 %v63, %v436
    %v438 = vand.u32 %v437, 4294901760
    %v439 = vsub.f32 %v437, %v438
    %v440 = vand.u32 %v439, 4294901760
    %441 = vmatmul.mubr.f32.gmra.mrb[0].mxu0 %v440
    %v442 = vpop.f32.mrb[0].mxu0
    %v443 = vadd.f32 %v203, %v442
    %v444 = vpop.f32.mrb[0].mxu0
    %v445 = vadd.f32 %v207, %v444
    %446 = vmatprep.mubr.f32.mxu0 0.0
    %v447 = vand.u32 %v64, 4294901760
    %v448 = vsub.f32 %v64, %v447
    %v449 = vand.u32 %v448, 4294901760
    %v450 = vsub.f32 %v448, %v449
    %v451 = vand.u32 %v450, 4294901760
    %452 = vmatmul.mubr.f32.gmra.mrb[0].mxu0 %v451
    %v453 = vpop.f32.mrb[0].mxu0
    %v454 = vadd.f32 %v203, %v453
    %v455 = vpop.f32.mrb[0].mxu0
    %v456 = vadd.f32 %v207, %v455
    %457 = vmatprep.mubr.f32.mxu0 0.0
    %v458 = vand.u32 %v65, 4294901760
    %v459 = vsub.f32 %v65, %v458
    %v460 = vand.u32 %v459, 4294901760
    %v461 = vsub.f32 %v459, %v460
    %v462 = vand.u32 %v461, 4294901760
    %463 = vmatmul.mubr.f32.gmra.mrb[0].mxu0 %v462
    %v464 = vpop.f32.mrb[0].mxu0
    %v465 = vadd.f32 %v203, %v464
    %v466 = vpop.f32.mrb[0].mxu0
    %v467 = vadd.f32 %v207, %v466
    %468 = vmatprep.mubr.f32.mxu0 0.0
    %v469 = vand.u32 %v66, 4294901760
    %v470 = vsub.f32 %v66, %v469
    %v471 = vand.u32 %v470, 4294901760
    %v472 = vsub.f32 %v470, %v471
    %v473 = vand.u32 %v472, 4294901760
    %474 = vmatmul.mubr.f32.gmra.mrb[0].mxu0 %v473
    %v475 = vpop.f32.mrb[0].mxu0
    %v476 = vadd.f32 %v203, %v475
    %v477 = vpop.f32.mrb[0].mxu0
    %v478 = vadd.f32 %v207, %v477
    %479 = vmatprep.mubr.f32.mxu0 0.0
    %v480 = vand.u32 %v67, 4294901760
    %v481 = vsub.f32 %v67, %v480
    %v482 = vand.u32 %v481, 4294901760
    %v483 = vsub.f32 %v481, %v482
    %v484 = vand.u32 %v483, 4294901760
    %485 = vmatmul.mubr.f32.gmra.mrb[0].mxu0 %v484
    %v486 = vpop.f32.mrb[0].mxu0
    %v487 = vadd.f32 %v203, %v486
    %v488 = vpop.f32.mrb[0].mxu0
    %v489 = vadd.f32 %v207, %v488
    %490 = vmatprep.mubr.f32.mxu0 0.0
    %v491 = vand.u32 %v68, 4294901760
    %v492 = vsub.f32 %v68, %v491
    %v493 = vand.u32 %v492, 4294901760
    %v494 = vsub.f32 %v492, %v493
    %v495 = vand.u32 %v494, 4294901760
    %496 = vmatmul.mubr.f32.gmra.mrb[0].mxu0 %v495
    %v497 = vpop.f32.mrb[0].mxu0
    %v498 = vadd.f32 %v203, %v497
    %v499 = vpop.f32.mrb[0].mxu0
    %v500 = vadd.f32 %v207, %v499
    %501 = vmatprep.mubr.f32.mxu0 0.0
    %v502 = vand.u32 %v69, 4294901760
    %v503 = vsub.f32 %v69, %v502
    %v504 = vand.u32 %v503, 4294901760
    %v505 = vsub.f32 %v503, %v504
    %v506 = vand.u32 %v505, 4294901760
    %507 = vmatmul.mubr.f32.gmra.mrb[0].mxu0 %v506
    %v508 = vpop.f32.mrb[0].mxu0
    %v509 = vadd.f32 %v203, %v508
    %v510 = vpop.f32.mrb[0].mxu0
    %v511 = vadd.f32 %v207, %v510
    %512 = vdwg.mxu0
    %v513 = vand.u32 %v71, 4294901760
    %v514 = vsub.f32 %v71, %v513
    %v515 = vand.u32 %v514, 4294901760
    %v516 = vsub.f32 %v514, %v515
    %v517 = vand.u32 %v516, 4294901760
    %518 = vmatprep.subr.mxu0 %v517
    %v519 = vand.u32 %v70, 4294901760
    %v520 = vsub.f32 %v70, %v519
    %v521 = vand.u32 %v520, 4294901760
    %v522 = vsub.f32 %v520, %v521
    %v523 = vand.u32 %v522, 4294901760
    %524 = vmatpush1.msra.mxu0 %v523
    %v525 = vand.u32 %v79, 4294901760
    %v526 = vsub.f32 %v79, %v525
    %v527 = vand.u32 %v526, 4294901760
    %v528 = vsub.f32 %v526, %v527
    %v529 = vand.u32 %v528, 4294901760
    %530 = vmatprep.subr.mxu0 %v529
    %v531 = vand.u32 %v78, 4294901760
    %v532 = vsub.f32 %v78, %v531
    %v533 = vand.u32 %v532, 4294901760
    %v534 = vsub.f32 %v532, %v533
    %v535 = vand.u32 %v534, 4294901760
    %536 = vmatpush1.msra.mxu0 %v535
    %v537 = vand.u32 %v87, 4294901760
    %v538 = vsub.f32 %v87, %v537
    %v539 = vand.u32 %v538, 4294901760
    %v540 = vsub.f32 %v538, %v539
    %v541 = vand.u32 %v540, 4294901760
    %542 = vmatprep.subr.mxu0 %v541
    %v543 = vand.u32 %v86, 4294901760
    %v544 = vsub.f32 %v86, %v543
    %v545 = vand.u32 %v544, 4294901760
    %v546 = vsub.f32 %v544, %v545
    %v547 = vand.u32 %v546, 4294901760
    %548 = vmatpush1.msra.mxu0 %v547
    %v549 = vand.u32 %v95, 4294901760
    %v550 = vsub.f32 %v95, %v549
    %v551 = vand.u32 %v550, 4294901760
    %v552 = vsub.f32 %v550, %v551
    %v553 = vand.u32 %v552, 4294901760
    %554 = vmatprep.subr.mxu0 %v553
    %v555 = vand.u32 %v94, 4294901760
    %v556 = vsub.f32 %v94, %v555
    %v557 = vand.u32 %v556, 4294901760
    %v558 = vsub.f32 %v556, %v557
    %v559 = vand.u32 %v558, 4294901760
    %560 = vmatpush1.msra.mxu0 %v559
    %v561 = vand.u32 %v103, 4294901760
    %v562 = vsub.f32 %v103, %v561
    %v563 = vand.u32 %v562, 4294901760
    %v564 = vsub.f32 %v562, %v563
    %v565 = vand.u32 %v564, 4294901760
    %566 = vmatprep.subr.mxu0 %v565
    %v567 = vand.u32 %v102, 4294901760
    %v568 = vsub.f32 %v102, %v567
    %v569 = vand.u32 %v568, 4294901760
    %v570 = vsub.f32 %v568, %v569
    %v571 = vand.u32 %v570, 4294901760
    %572 = vmatpush1.msra.mxu0 %v571
    %v573 = vand.u32 %v111, 4294901760
    %v574 = vsub.f32 %v111, %v573
    %v575 = vand.u32 %v574, 4294901760
    %v576 = vsub.f32 %v574, %v575
    %v577 = vand.u32 %v576, 4294901760
    %578 = vmatprep.subr.mxu0 %v577
    %v579 = vand.u32 %v110, 4294901760
    %v580 = vsub.f32 %v110, %v579
    %v581 = vand.u32 %v580, 4294901760
    %v582 = vsub.f32 %v580, %v581
    %v583 = vand.u32 %v582, 4294901760
    %584 = vmatpush1.msra.mxu0 %v583
    %v585 = vand.u32 %v119, 4294901760
    %v586 = vsub.f32 %v119, %v585
    %v587 = vand.u32 %v586, 4294901760
    %v588 = vsub.f32 %v586, %v587
    %v589 = vand.u32 %v588, 4294901760
    %590 = vmatprep.subr.mxu0 %v589
    %v591 = vand.u32 %v118, 4294901760
    %v592 = vsub.f32 %v118, %v591
    %v593 = vand.u32 %v592, 4294901760
    %v594 = vsub.f32 %v592, %v593
    %v595 = vand.u32 %v594, 4294901760
    %596 = vmatpush1.msra.mxu0 %v595
    %v597 = vand.u32 %v127, 4294901760
    %v598 = vsub.f32 %v127, %v597
    %v599 = vand.u32 %v598, 4294901760
    %v600 = vsub.f32 %v598, %v599
    %v601 = vand.u32 %v600, 4294901760
    %602 = vmatprep.subr.mxu0 %v601
    %v603 = vand.u32 %v126, 4294901760
    %v604 = vsub.f32 %v126, %v603
    %v605 = vand.u32 %v604, 4294901760
    %v606 = vsub.f32 %v604, %v605
    %v607 = vand.u32 %v606, 4294901760
    %608 = vmatpush1.msra.mxu0 %v607
    %v609 = vand.u32 %v135, 4294901760
    %v610 = vsub.f32 %v135, %v609
    %v611 = vand.u32 %v610, 4294901760
    %v612 = vsub.f32 %v610, %v611
    %v613 = vand.u32 %v612, 4294901760
    %614 = vmatprep.subr.mxu0 %v613
    %v615 = vand.u32 %v134, 4294901760
    %v616 = vsub.f32 %v134, %v615
    %v617 = vand.u32 %v616, 4294901760
    %v618 = vsub.f32 %v616, %v617
    %v619 = vand.u32 %v618, 4294901760
    %620 = vmatpush1.msra.mxu0 %v619
    %v621 = vand.u32 %v143, 4294901760
    %v622 = vsub.f32 %v143, %v621
    %v623 = vand.u32 %v622, 4294901760
    %v624 = vsub.f32 %v622, %v623
    %v625 = vand.u32 %v624, 4294901760
    %626 = vmatprep.subr.mxu0 %v625
    %v627 = vand.u32 %v142, 4294901760
    %v628 = vsub.f32 %v142, %v627
    %v629 = vand.u32 %v628, 4294901760
    %v630 = vsub.f32 %v628, %v629
    %v631 = vand.u32 %v630, 4294901760
    %632 = vmatpush1.msra.mxu0 %v631
    %v633 = vand.u32 %v151, 4294901760
    %v634 = vsub.f32 %v151, %v633
    %v635 = vand.u32 %v634, 4294901760
    %v636 = vsub.f32 %v634, %v635
    %v637 = vand.u32 %v636, 4294901760
    %638 = vmatprep.subr.mxu0 %v637
    %v639 = vand.u32 %v150, 4294901760
    %v640 = vsub.f32 %v150, %v639
    %v641 = vand.u32 %v640, 4294901760
    %v642 = vsub.f32 %v640, %v641
    %v643 = vand.u32 %v642, 4294901760
    %644 = vmatpush1.msra.mxu0 %v643
    %v645 = vand.u32 %v159, 4294901760
    %v646 = vsub.f32 %v159, %v645
    %v647 = vand.u32 %v646, 4294901760
    %v648 = vsub.f32 %v646, %v647
    %v649 = vand.u32 %v648, 4294901760
    %650 = vmatprep.subr.mxu0 %v649
    %v651 = vand.u32 %v158, 4294901760
    %v652 = vsub.f32 %v158, %v651
    %v653 = vand.u32 %v652, 4294901760
    %v654 = vsub.f32 %v652, %v653
    %v655 = vand.u32 %v654, 4294901760
    %656 = vmatpush1.msra.mxu0 %v655
    %v657 = vand.u32 %v167, 4294901760
    %v658 = vsub.f32 %v167, %v657
    %v659 = vand.u32 %v658, 4294901760
    %v660 = vsub.f32 %v658, %v659
    %v661 = vand.u32 %v660, 4294901760
    %662 = vmatprep.subr.mxu0 %v661
    %v663 = vand.u32 %v166, 4294901760
    %v664 = vsub.f32 %v166, %v663
    %v665 = vand.u32 %v664, 4294901760
    %v666 = vsub.f32 %v664, %v665
    %v667 = vand.u32 %v666, 4294901760
    %668 = vmatpush1.msra.mxu0 %v667
    %v669 = vand.u32 %v175, 4294901760
    %v670 = vsub.f32 %v175, %v669
    %v671 = vand.u32 %v670, 4294901760
    %v672 = vsub.f32 %v670, %v671
    %v673 = vand.u32 %v672, 4294901760
    %674 = vmatprep.subr.mxu0 %v673
    %v675 = vand.u32 %v174, 4294901760
    %v676 = vsub.f32 %v174, %v675
    %v677 = vand.u32 %v676, 4294901760
    %v678 = vsub.f32 %v676, %v677
    %v679 = vand.u32 %v678, 4294901760
    %680 = vmatpush1.msra.mxu0 %v679
    %v681 = vand.u32 %v183, 4294901760
    %v682 = vsub.f32 %v183, %v681
    %v683 = vand.u32 %v682, 4294901760
    %v684 = vsub.f32 %v682, %v683
    %v685 = vand.u32 %v684, 4294901760
    %686 = vmatprep.subr.mxu0 %v685
    %v687 = vand.u32 %v182, 4294901760
    %v688 = vsub.f32 %v182, %v687
    %v689 = vand.u32 %v688, 4294901760
    %v690 = vsub.f32 %v688, %v689
    %v691 = vand.u32 %v690, 4294901760
    %692 = vmatpush1.msra.mxu0 %v691
    %v693 = vand.u32 %v191, 4294901760
    %v694 = vsub.f32 %v191, %v693
    %v695 = vand.u32 %v694, 4294901760
    %v696 = vsub.f32 %v694, %v695
    %v697 = vand.u32 %v696, 4294901760
    %698 = vmatprep.subr.mxu0 %v697
    %v699 = vand.u32 %v190, 4294901760
    %v700 = vsub.f32 %v190, %v699
    %v701 = vand.u32 %v700, 4294901760
    %v702 = vsub.f32 %v700, %v701
    %v703 = vand.u32 %v702, 4294901760
    %704 = vmatpush1.msra.mxu0 %v703
    %705 = vmatprep.subr.mxu0 0.0
    %706 = vmatpush1.msra.mxu0 0.0
    %707 = vmatprep.subr.mxu0 0.0
    %708 = vmatpush1.msra.mxu0 0.0
    %709 = vmatprep.subr.mxu0 0.0
    %710 = vmatpush1.msra.mxu0 0.0
    %711 = vmatprep.subr.mxu0 0.0
    %712 = vmatpush1.msra.mxu0 0.0
    %713 = vmatprep.subr.mxu0 0.0
    %714 = vmatpush1.msra.mxu0 0.0
    %715 = vmatprep.subr.mxu0 0.0
    %716 = vmatpush1.msra.mxu0 0.0
    %717 = vmatprep.subr.mxu0 0.0
    %718 = vmatpush1.msra.mxu0 0.0
    %719 = vmatprep.subr.mxu0 0.0
    %720 = vmatpush1.msra.mxu0 0.0
    %721 = vmatprep.subr.mxu0 0.0
    %722 = vmatpush1.msra.mxu0 0.0
    %723 = vmatprep.subr.mxu0 0.0
    %724 = vmatpush1.msra.mxu0 0.0
    %725 = vmatprep.subr.mxu0 0.0
    %726 = vmatpush1.msra.mxu0 0.0
    %727 = vmatprep.subr.mxu0 0.0
    %728 = vmatpush1.msra.mxu0 0.0
    %729 = vmatprep.subr.mxu0 0.0
    %730 = vmatpush1.msra.mxu0 0.0
    %731 = vmatprep.subr.mxu0 0.0
    %732 = vmatpush1.msra.mxu0 0.0
    %733 = vmatprep.subr.mxu0 0.0
    %734 = vmatpush1.msra.mxu0 0.0
    %735 = vmatprep.subr.mxu0 0.0
    %736 = vmatpush1.msra.mxu0 0.0
    %737 = vmatprep.mubr.f32.mxu0 0.0
    %v738 = vand.u32 %v54, 4294901760
    %739 = vmatmul.mubr.f32.gmra.mrb[0].mxu0 %v738
    %v740 = vpop.f32.mrb[0].mxu0
    %v741 = vadd.f32 %v344, %v740
    %v742 = vpop.f32.mrb[0].mxu0
    %v743 = vadd.f32 %v346, %v742
    %744 = vmatprep.mubr.f32.mxu0 0.0
    %v745 = vand.u32 %v55, 4294901760
    %746 = vmatmul.mubr.f32.gmra.mrb[0].mxu0 %v745
    %v747 = vpop.f32.mrb[0].mxu0
    %v748 = vadd.f32 %v355, %v747
    %v749 = vpop.f32.mrb[0].mxu0
    %v750 = vadd.f32 %v357, %v749
    %751 = vmatprep.mubr.f32.mxu0 0.0
    %v752 = vand.u32 %v56, 4294901760
    %753 = vmatmul.mubr.f32.gmra.mrb[0].mxu0 %v752
    %v754 = vpop.f32.mrb[0].mxu0
    %v755 = vadd.f32 %v366, %v754
    %v756 = vpop.f32.mrb[0].mxu0
    %v757 = vadd.f32 %v368, %v756
    %758 = vmatprep.mubr.f32.mxu0 0.0
    %v759 = vand.u32 %v57, 4294901760
    %760 = vmatmul.mubr.f32.gmra.mrb[0].mxu0 %v759
    %v761 = vpop.f32.mrb[0].mxu0
    %v762 = vadd.f32 %v377, %v761
    %v763 = vpop.f32.mrb[0].mxu0
    %v764 = vadd.f32 %v379, %v763
    %765 = vmatprep.mubr.f32.mxu0 0.0
    %v766 = vand.u32 %v58, 4294901760
    %767 = vmatmul.mubr.f32.gmra.mrb[0].mxu0 %v766
    %v768 = vpop.f32.mrb[0].mxu0
    %v769 = vadd.f32 %v388, %v768
    %v770 = vpop.f32.mrb[0].mxu0
    %v771 = vadd.f32 %v390, %v770
    %772 = vmatprep.mubr.f32.mxu0 0.0
    %v773 = vand.u32 %v59, 4294901760
    %774 = vmatmul.mubr.f32.gmra.mrb[0].mxu0 %v773
    %v775 = vpop.f32.mrb[0].mxu0
    %v776 = vadd.f32 %v399, %v775
    %v777 = vpop.f32.mrb[0].mxu0
    %v778 = vadd.f32 %v401, %v777
    %779 = vmatprep.mubr.f32.mxu0 0.0
    %v780 = vand.u32 %v60, 4294901760
    %781 = vmatmul.mubr.f32.gmra.mrb[0].mxu0 %v780
    %v782 = vpop.f32.mrb[0].mxu0
    %v783 = vadd.f32 %v410, %v782
    %v784 = vpop.f32.mrb[0].mxu0
    %v785 = vadd.f32 %v412, %v784
    %786 = vmatprep.mubr.f32.mxu0 0.0
    %v787 = vand.u32 %v61, 4294901760
    %788 = vmatmul.mubr.f32.gmra.mrb[0].mxu0 %v787
    %v789 = vpop.f32.mrb[0].mxu0
    %v790 = vadd.f32 %v421, %v789
    %v791 = vpop.f32.mrb[0].mxu0
    %v792 = vadd.f32 %v423, %v791
    %793 = vmatprep.mubr.f32.mxu0 0.0
    %v794 = vand.u32 %v62, 4294901760
    %795 = vmatmul.mubr.f32.gmra.mrb[0].mxu0 %v794
    %v796 = vpop.f32.mrb[0].mxu0
    %v797 = vadd.f32 %v432, %v796
    %v798 = vpop.f32.mrb[0].mxu0
    %v799 = vadd.f32 %v434, %v798
    %800 = vmatprep.mubr.f32.mxu0 0.0
    %v801 = vand.u32 %v63, 4294901760
    %802 = vmatmul.mubr.f32.gmra.mrb[0].mxu0 %v801
    %v803 = vpop.f32.mrb[0].mxu0
    %v804 = vadd.f32 %v443, %v803
    %v805 = vpop.f32.mrb[0].mxu0
    %v806 = vadd.f32 %v445, %v805
    %807 = vmatprep.mubr.f32.mxu0 0.0
    %v808 = vand.u32 %v64, 4294901760
    %809 = vmatmul.mubr.f32.gmra.mrb[0].mxu0 %v808
    %v810 = vpop.f32.mrb[0].mxu0
    %v811 = vadd.f32 %v454, %v810
    %v812 = vpop.f32.mrb[0].mxu0
    %v813 = vadd.f32 %v456, %v812
    %814 = vmatprep.mubr.f32.mxu0 0.0
    %v815 = vand.u32 %v65, 4294901760
    %816 = vmatmul.mubr.f32.gmra.mrb[0].mxu0 %v815
    %v817 = vpop.f32.mrb[0].mxu0
    %v818 = vadd.f32 %v465, %v817
    %v819 = vpop.f32.mrb[0].mxu0
    %v820 = vadd.f32 %v467, %v819
    %821 = vmatprep.mubr.f32.mxu0 0.0
    %v822 = vand.u32 %v66, 4294901760
    %823 = vmatmul.mubr.f32.gmra.mrb[0].mxu0 %v822
    %v824 = vpop.f32.mrb[0].mxu0
    %v825 = vadd.f32 %v476, %v824
    %v826 = vpop.f32.mrb[0].mxu0
    %v827 = vadd.f32 %v478, %v826
    %828 = vmatprep.mubr.f32.mxu0 0.0
    %v829 = vand.u32 %v67, 4294901760
    %830 = vmatmul.mubr.f32.gmra.mrb[0].mxu0 %v829
    %v831 = vpop.f32.mrb[0].mxu0
    %v832 = vadd.f32 %v487, %v831
    %v833 = vpop.f32.mrb[0].mxu0
    %v834 = vadd.f32 %v489, %v833
    %835 = vmatprep.mubr.f32.mxu0 0.0
    %v836 = vand.u32 %v68, 4294901760
    %837 = vmatmul.mubr.f32.gmra.mrb[0].mxu0 %v836
    %v838 = vpop.f32.mrb[0].mxu0
    %v839 = vadd.f32 %v498, %v838
    %v840 = vpop.f32.mrb[0].mxu0
    %v841 = vadd.f32 %v500, %v840
    %842 = vmatprep.mubr.f32.mxu0 0.0
    %v843 = vand.u32 %v69, 4294901760
    %844 = vmatmul.mubr.f32.gmra.mrb[0].mxu0 %v843
    %v845 = vpop.f32.mrb[0].mxu0
    %v846 = vadd.f32 %v509, %v845
    %v847 = vpop.f32.mrb[0].mxu0
    %v848 = vadd.f32 %v511, %v847
    %849 = vdwg.mxu0
    %v850 = vand.u32 %v71, 4294901760
    %v851 = vsub.f32 %v71, %v850
    %852 = vmatprep.subr.mxu0 %v851
    %v853 = vand.u32 %v70, 4294901760
    %v854 = vsub.f32 %v70, %v853
    %855 = vmatpush1.msra.mxu0 %v854
    %v856 = vand.u32 %v79, 4294901760
    %v857 = vsub.f32 %v79, %v856
    %858 = vmatprep.subr.mxu0 %v857
    %v859 = vand.u32 %v78, 4294901760
    %v860 = vsub.f32 %v78, %v859
    %861 = vmatpush1.msra.mxu0 %v860
    %v862 = vand.u32 %v87, 4294901760
    %v863 = vsub.f32 %v87, %v862
    %864 = vmatprep.subr.mxu0 %v863
    %v865 = vand.u32 %v86, 4294901760
    %v866 = vsub.f32 %v86, %v865
    %867 = vmatpush1.msra.mxu0 %v866
    %v868 = vand.u32 %v95, 4294901760
    %v869 = vsub.f32 %v95, %v868
    %870 = vmatprep.subr.mxu0 %v869
    %v871 = vand.u32 %v94, 4294901760
    %v872 = vsub.f32 %v94, %v871
    %873 = vmatpush1.msra.mxu0 %v872
    %v874 = vand.u32 %v103, 4294901760
    %v875 = vsub.f32 %v103, %v874
    %876 = vmatprep.subr.mxu0 %v875
    %v877 = vand.u32 %v102, 4294901760
    %v878 = vsub.f32 %v102, %v877
    %879 = vmatpush1.msra.mxu0 %v878
    %v880 = vand.u32 %v111, 4294901760
    %v881 = vsub.f32 %v111, %v880
    %882 = vmatprep.subr.mxu0 %v881
    %v883 = vand.u32 %v110, 4294901760
    %v884 = vsub.f32 %v110, %v883
    %885 = vmatpush1.msra.mxu0 %v884
    %v886 = vand.u32 %v119, 4294901760
    %v887 = vsub.f32 %v119, %v886
    %888 = vmatprep.subr.mxu0 %v887
    %v889 = vand.u32 %v118, 4294901760
    %v890 = vsub.f32 %v118, %v889
    %891 = vmatpush1.msra.mxu0 %v890
    %v892 = vand.u32 %v127, 4294901760
    %v893 = vsub.f32 %v127, %v892
    %894 = vmatprep.subr.mxu0 %v893
    %v895 = vand.u32 %v126, 4294901760
    %v896 = vsub.f32 %v126, %v895
    %897 = vmatpush1.msra.mxu0 %v896
    %v898 = vand.u32 %v135, 4294901760
    %v899 = vsub.f32 %v135, %v898
    %900 = vmatprep.subr.mxu0 %v899
    %v901 = vand.u32 %v134, 4294901760
    %v902 = vsub.f32 %v134, %v901
    %903 = vmatpush1.msra.mxu0 %v902
    %v904 = vand.u32 %v143, 4294901760
    %v905 = vsub.f32 %v143, %v904
    %906 = vmatprep.subr.mxu0 %v905
    %v907 = vand.u32 %v142, 4294901760
    %v908 = vsub.f32 %v142, %v907
    %909 = vmatpush1.msra.mxu0 %v908
    %v910 = vand.u32 %v151, 4294901760
    %v911 = vsub.f32 %v151, %v910
    %912 = vmatprep.subr.mxu0 %v911
    %v913 = vand.u32 %v150, 4294901760
    %v914 = vsub.f32 %v150, %v913
    %915 = vmatpush1.msra.mxu0 %v914
    %v916 = vand.u32 %v159, 4294901760
    %v917 = vsub.f32 %v159, %v916
    %918 = vmatprep.subr.mxu0 %v917
    %v919 = vand.u32 %v158, 4294901760
    %v920 = vsub.f32 %v158, %v919
    %921 = vmatpush1.msra.mxu0 %v920
    %v922 = vand.u32 %v167, 4294901760
    %v923 = vsub.f32 %v167, %v922
    %924 = vmatprep.subr.mxu0 %v923
    %v925 = vand.u32 %v166, 4294901760
    %v926 = vsub.f32 %v166, %v925
    %927 = vmatpush1.msra.mxu0 %v926
    %v928 = vand.u32 %v175, 4294901760
    %v929 = vsub.f32 %v175, %v928
    %930 = vmatprep.subr.mxu0 %v929
    %v931 = vand.u32 %v174, 4294901760
    %v932 = vsub.f32 %v174, %v931
    %933 = vmatpush1.msra.mxu0 %v932
    %v934 = vand.u32 %v183, 4294901760
    %v935 = vsub.f32 %v183, %v934
    %936 = vmatprep.subr.mxu0 %v935
    %v937 = vand.u32 %v182, 4294901760
    %v938 = vsub.f32 %v182, %v937
    %939 = vmatpush1.msra.mxu0 %v938
    %v940 = vand.u32 %v191, 4294901760
    %v941 = vsub.f32 %v191, %v940
    %942 = vmatprep.subr.mxu0 %v941
    %v943 = vand.u32 %v190, 4294901760
    %v944 = vsub.f32 %v190, %v943
    %945 = vmatpush1.msra.mxu0 %v944
    %946 = vmatprep.subr.mxu0 0.0
    %947 = vmatpush1.msra.mxu0 0.0
    %948 = vmatprep.subr.mxu0 0.0
    %949 = vmatpush1.msra.mxu0 0.0
    %950 = vmatprep.subr.mxu0 0.0
    %951 = vmatpush1.msra.mxu0 0.0
    %952 = vmatprep.subr.mxu0 0.0
    %953 = vmatpush1.msra.mxu0 0.0
    %954 = vmatprep.subr.mxu0 0.0
    %955 = vmatpush1.msra.mxu0 0.0
    %956 = vmatprep.subr.mxu0 0.0
    %957 = vmatpush1.msra.mxu0 0.0
    %958 = vmatprep.subr.mxu0 0.0
    %959 = vmatpush1.msra.mxu0 0.0
    %960 = vmatprep.subr.mxu0 0.0
    %961 = vmatpush1.msra.mxu0 0.0
    %962 = vmatprep.subr.mxu0 0.0
    %963 = vmatpush1.msra.mxu0 0.0
    %964 = vmatprep.subr.mxu0 0.0
    %965 = vmatpush1.msra.mxu0 0.0
    %966 = vmatprep.subr.mxu0 0.0
    %967 = vmatpush1.msra.mxu0 0.0
    %968 = vmatprep.subr.mxu0 0.0
    %969 = vmatpush1.msra.mxu0 0.0
    %970 = vmatprep.subr.mxu0 0.0
    %971 = vmatpush1.msra.mxu0 0.0
    %972 = vmatprep.subr.mxu0 0.0
    %973 = vmatpush1.msra.mxu0 0.0
    %974 = vmatprep.subr.mxu0 0.0
    %975 = vmatpush1.msra.mxu0 0.0
    %976 = vmatprep.subr.mxu0 0.0
    %977 = vmatpush1.msra.mxu0 0.0
    %978 = vmatprep.mubr.f32.mxu0 0.0
    %v979 = vand.u32 %v54, 4294901760
    %v980 = vsub.f32 %v54, %v979
    %981 = vmatmul.mubr.f32.gmra.mrb[0].mxu0 %v980
    %v982 = vpop.f32.mrb[0].mxu0
    %v983 = vadd.f32 %v741, %v982
    %v984 = vpop.f32.mrb[0].mxu0
    %v985 = vadd.f32 %v743, %v984
    %986 = vmatprep.mubr.f32.mxu0 0.0
    %v987 = vand.u32 %v55, 4294901760
    %v988 = vsub.f32 %v55, %v987
    %989 = vmatmul.mubr.f32.gmra.mrb[0].mxu0 %v988
    %v990 = vpop.f32.mrb[0].mxu0
    %v991 = vadd.f32 %v748, %v990
    %v992 = vpop.f32.mrb[0].mxu0
    %v993 = vadd.f32 %v750, %v992
    %994 = vmatprep.mubr.f32.mxu0 0.0
    %v995 = vand.u32 %v56, 4294901760
    %v996 = vsub.f32 %v56, %v995
    %997 = vmatmul.mubr.f32.gmra.mrb[0].mxu0 %v996
    %v998 = vpop.f32.mrb[0].mxu0
    %v999 = vadd.f32 %v755, %v998
    %v1000 = vpop.f32.mrb[0].mxu0
    %v1001 = vadd.f32 %v757, %v1000
    %1002 = vmatprep.mubr.f32.mxu0 0.0
    %v1003 = vand.u32 %v57, 4294901760
    %v1004 = vsub.f32 %v57, %v1003
    %1005 = vmatmul.mubr.f32.gmra.mrb[0].mxu0 %v1004
    %v1006 = vpop.f32.mrb[0].mxu0
    %v1007 = vadd.f32 %v762, %v1006
    %v1008 = vpop.f32.mrb[0].mxu0
    %v1009 = vadd.f32 %v764, %v1008
    %1010 = vmatprep.mubr.f32.mxu0 0.0
    %v1011 = vand.u32 %v58, 4294901760
    %v1012 = vsub.f32 %v58, %v1011
    %1013 = vmatmul.mubr.f32.gmra.mrb[0].mxu0 %v1012
    %v1014 = vpop.f32.mrb[0].mxu0
    %v1015 = vadd.f32 %v769, %v1014
    %v1016 = vpop.f32.mrb[0].mxu0
    %v1017 = vadd.f32 %v771, %v1016
    %1018 = vmatprep.mubr.f32.mxu0 0.0
    %v1019 = vand.u32 %v59, 4294901760
    %v1020 = vsub.f32 %v59, %v1019
    %1021 = vmatmul.mubr.f32.gmra.mrb[0].mxu0 %v1020
    %v1022 = vpop.f32.mrb[0].mxu0
    %v1023 = vadd.f32 %v776, %v1022
    %v1024 = vpop.f32.mrb[0].mxu0
    %v1025 = vadd.f32 %v778, %v1024
    %1026 = vmatprep.mubr.f32.mxu0 0.0
    %v1027 = vand.u32 %v60, 4294901760
    %v1028 = vsub.f32 %v60, %v1027
    %1029 = vmatmul.mubr.f32.gmra.mrb[0].mxu0 %v1028
    %v1030 = vpop.f32.mrb[0].mxu0
    %v1031 = vadd.f32 %v783, %v1030
    %v1032 = vpop.f32.mrb[0].mxu0
    %v1033 = vadd.f32 %v785, %v1032
    %1034 = vmatprep.mubr.f32.mxu0 0.0
    %v1035 = vand.u32 %v61, 4294901760
    %v1036 = vsub.f32 %v61, %v1035
    %1037 = vmatmul.mubr.f32.gmra.mrb[0].mxu0 %v1036
    %v1038 = vpop.f32.mrb[0].mxu0
    %v1039 = vadd.f32 %v790, %v1038
    %v1040 = vpop.f32.mrb[0].mxu0
    %v1041 = vadd.f32 %v792, %v1040
    %1042 = vmatprep.mubr.f32.mxu0 0.0
    %v1043 = vand.u32 %v62, 4294901760
    %v1044 = vsub.f32 %v62, %v1043
    %1045 = vmatmul.mubr.f32.gmra.mrb[0].mxu0 %v1044
    %v1046 = vpop.f32.mrb[0].mxu0
    %v1047 = vadd.f32 %v797, %v1046
    %v1048 = vpop.f32.mrb[0].mxu0
    %v1049 = vadd.f32 %v799, %v1048
    %1050 = vmatprep.mubr.f32.mxu0 0.0
    %v1051 = vand.u32 %v63, 4294901760
    %v1052 = vsub.f32 %v63, %v1051
    %1053 = vmatmul.mubr.f32.gmra.mrb[0].mxu0 %v1052
    %v1054 = vpop.f32.mrb[0].mxu0
    %v1055 = vadd.f32 %v804, %v1054
    %v1056 = vpop.f32.mrb[0].mxu0
    %v1057 = vadd.f32 %v806, %v1056
    %1058 = vmatprep.mubr.f32.mxu0 0.0
    %v1059 = vand.u32 %v64, 4294901760
    %v1060 = vsub.f32 %v64, %v1059
    %1061 = vmatmul.mubr.f32.gmra.mrb[0].mxu0 %v1060
    %v1062 = vpop.f32.mrb[0].mxu0
    %v1063 = vadd.f32 %v811, %v1062
    %v1064 = vpop.f32.mrb[0].mxu0
    %v1065 = vadd.f32 %v813, %v1064
    %1066 = vmatprep.mubr.f32.mxu0 0.0
    %v1067 = vand.u32 %v65, 4294901760
    %v1068 = vsub.f32 %v65, %v1067
    %1069 = vmatmul.mubr.f32.gmra.mrb[0].mxu0 %v1068
    %v1070 = vpop.f32.mrb[0].mxu0
    %v1071 = vadd.f32 %v818, %v1070
    %v1072 = vpop.f32.mrb[0].mxu0
    %v1073 = vadd.f32 %v820, %v1072
    %1074 = vmatprep.mubr.f32.mxu0 0.0
    %v1075 = vand.u32 %v66, 4294901760
    %v1076 = vsub.f32 %v66, %v1075
    %1077 = vmatmul.mubr.f32.gmra.mrb[0].mxu0 %v1076
    %v1078 = vpop.f32.mrb[0].mxu0
    %v1079 = vadd.f32 %v825, %v1078
    %v1080 = vpop.f32.mrb[0].mxu0
    %v1081 = vadd.f32 %v827, %v1080
    %1082 = vmatprep.mubr.f32.mxu0 0.0
    %v1083 = vand.u32 %v67, 4294901760
    %v1084 = vsub.f32 %v67, %v1083
    %1085 = vmatmul.mubr.f32.gmra.mrb[0].mxu0 %v1084
    %v1086 = vpop.f32.mrb[0].mxu0
    %v1087 = vadd.f32 %v832, %v1086
    %v1088 = vpop.f32.mrb[0].mxu0
    %v1089 = vadd.f32 %v834, %v1088
    %1090 = vmatprep.mubr.f32.mxu0 0.0
    %v1091 = vand.u32 %v68, 4294901760
    %v1092 = vsub.f32 %v68, %v1091
    %1093 = vmatmul.mubr.f32.gmra.mrb[0].mxu0 %v1092
    %v1094 = vpop.f32.mrb[0].mxu0
    %v1095 = vadd.f32 %v839, %v1094
    %v1096 = vpop.f32.mrb[0].mxu0
    %v1097 = vadd.f32 %v841, %v1096
    %1098 = vmatprep.mubr.f32.mxu0 0.0
    %v1099 = vand.u32 %v69, 4294901760
    %v1100 = vsub.f32 %v69, %v1099
    %1101 = vmatmul.mubr.f32.gmra.mrb[0].mxu0 %v1100
    %v1102 = vpop.f32.mrb[0].mxu0
    %v1103 = vadd.f32 %v846, %v1102
    %v1104 = vpop.f32.mrb[0].mxu0
    %v1105 = vadd.f32 %v848, %v1104
    %1106 = vdwg.mxu0
    %v1107 = vand.u32 %v71, 4294901760
    %1108 = vmatprep.subr.mxu0 %v1107
    %v1109 = vand.u32 %v70, 4294901760
    %1110 = vmatpush1.msra.mxu0 %v1109
    %v1111 = vand.u32 %v79, 4294901760
    %1112 = vmatprep.subr.mxu0 %v1111
    %v1113 = vand.u32 %v78, 4294901760
    %1114 = vmatpush1.msra.mxu0 %v1113
    %v1115 = vand.u32 %v87, 4294901760
    %1116 = vmatprep.subr.mxu0 %v1115
    %v1117 = vand.u32 %v86, 4294901760
    %1118 = vmatpush1.msra.mxu0 %v1117
    %v1119 = vand.u32 %v95, 4294901760
    %1120 = vmatprep.subr.mxu0 %v1119
    %v1121 = vand.u32 %v94, 4294901760
    %1122 = vmatpush1.msra.mxu0 %v1121
    %v1123 = vand.u32 %v103, 4294901760
    %1124 = vmatprep.subr.mxu0 %v1123
    %v1125 = vand.u32 %v102, 4294901760
    %1126 = vmatpush1.msra.mxu0 %v1125
    %v1127 = vand.u32 %v111, 4294901760
    %1128 = vmatprep.subr.mxu0 %v1127
    %v1129 = vand.u32 %v110, 4294901760
    %1130 = vmatpush1.msra.mxu0 %v1129
    %v1131 = vand.u32 %v119, 4294901760
    %1132 = vmatprep.subr.mxu0 %v1131
    %v1133 = vand.u32 %v118, 4294901760
    %1134 = vmatpush1.msra.mxu0 %v1133
    %v1135 = vand.u32 %v127, 4294901760
    %1136 = vmatprep.subr.mxu0 %v1135
    %v1137 = vand.u32 %v126, 4294901760
    %1138 = vmatpush1.msra.mxu0 %v1137
    %v1139 = vand.u32 %v135, 4294901760
    %1140 = vmatprep.subr.mxu0 %v1139
    %v1141 = vand.u32 %v134, 4294901760
    %1142 = vmatpush1.msra.mxu0 %v1141
    %v1143 = vand.u32 %v143, 4294901760
    %1144 = vmatprep.subr.mxu0 %v1143
    %v1145 = vand.u32 %v142, 4294901760
    %1146 = vmatpush1.msra.mxu0 %v1145
    %v1147 = vand.u32 %v151, 4294901760
    %1148 = vmatprep.subr.mxu0 %v1147
    %v1149 = vand.u32 %v150, 4294901760
    %1150 = vmatpush1.msra.mxu0 %v1149
    %v1151 = vand.u32 %v159, 4294901760
    %1152 = vmatprep.subr.mxu0 %v1151
    %v1153 = vand.u32 %v158, 4294901760
    %1154 = vmatpush1.msra.mxu0 %v1153
    %v1155 = vand.u32 %v167, 4294901760
    %1156 = vmatprep.subr.mxu0 %v1155
    %v1157 = vand.u32 %v166, 4294901760
    %1158 = vmatpush1.msra.mxu0 %v1157
    %v1159 = vand.u32 %v175, 4294901760
    %1160 = vmatprep.subr.mxu0 %v1159
    %v1161 = vand.u32 %v174, 4294901760
    %1162 = vmatpush1.msra.mxu0 %v1161
    %v1163 = vand.u32 %v183, 4294901760
    %1164 = vmatprep.subr.mxu0 %v1163
    %v1165 = vand.u32 %v182, 4294901760
    %1166 = vmatpush1.msra.mxu0 %v1165
    %v1167 = vand.u32 %v191, 4294901760
    %1168 = vmatprep.subr.mxu0 %v1167
    %v1169 = vand.u32 %v190, 4294901760
    %1170 = vmatpush1.msra.mxu0 %v1169
    %1171 = vmatprep.subr.mxu0 0.0
    %1172 = vmatpush1.msra.mxu0 0.0
    %1173 = vmatprep.subr.mxu0 0.0
    %1174 = vmatpush1.msra.mxu0 0.0
    %1175 = vmatprep.subr.mxu0 0.0
    %1176 = vmatpush1.msra.mxu0 0.0
    %1177 = vmatprep.subr.mxu0 0.0
    %1178 = vmatpush1.msra.mxu0 0.0
    %1179 = vmatprep.subr.mxu0 0.0
    %1180 = vmatpush1.msra.mxu0 0.0
    %1181 = vmatprep.subr.mxu0 0.0
    %1182 = vmatpush1.msra.mxu0 0.0
    %1183 = vmatprep.subr.mxu0 0.0
    %1184 = vmatpush1.msra.mxu0 0.0
    %1185 = vmatprep.subr.mxu0 0.0
    %1186 = vmatpush1.msra.mxu0 0.0
    %1187 = vmatprep.subr.mxu0 0.0
    %1188 = vmatpush1.msra.mxu0 0.0
    %1189 = vmatprep.subr.mxu0 0.0
    %1190 = vmatpush1.msra.mxu0 0.0
    %1191 = vmatprep.subr.mxu0 0.0
    %1192 = vmatpush1.msra.mxu0 0.0
    %1193 = vmatprep.subr.mxu0 0.0
    %1194 = vmatpush1.msra.mxu0 0.0
    %1195 = vmatprep.subr.mxu0 0.0
    %1196 = vmatpush1.msra.mxu0 0.0
    %1197 = vmatprep.subr.mxu0 0.0
    %1198 = vmatpush1.msra.mxu0 0.0
    %1199 = vmatprep.subr.mxu0 0.0
    %1200 = vmatpush1.msra.mxu0 0.0
    %1201 = vmatprep.subr.mxu0 0.0
    %1202 = vmatpush1.msra.mxu0 0.0
    %1203 = vmatprep.mubr.f32.mxu0 0.0
    %v1204 = vand.u32 %v54, 4294901760
    %v1205 = vsub.f32 %v54, %v1204
    %v1206 = vand.u32 %v1205, 4294901760
    %1207 = vmatmul.mubr.f32.gmra.mrb[0].mxu0 %v1206
    %v1208 = vpop.f32.mrb[0].mxu0
    %v1209 = vadd.f32 %v983, %v1208
    %v1210 = vpop.f32.mrb[0].mxu0
    %v1211 = vadd.f32 %v985, %v1210
    %1212 = vmatprep.mubr.f32.mxu0 0.0
    %v1213 = vand.u32 %v55, 4294901760
    %v1214 = vsub.f32 %v55, %v1213
    %v1215 = vand.u32 %v1214, 4294901760
    %1216 = vmatmul.mubr.f32.gmra.mrb[0].mxu0 %v1215
    %v1217 = vpop.f32.mrb[0].mxu0
    %v1218 = vadd.f32 %v991, %v1217
    %v1219 = vpop.f32.mrb[0].mxu0
    %v1220 = vadd.f32 %v993, %v1219
    %1221 = vmatprep.mubr.f32.mxu0 0.0
    %v1222 = vand.u32 %v56, 4294901760
    %v1223 = vsub.f32 %v56, %v1222
    %v1224 = vand.u32 %v1223, 4294901760
    %1225 = vmatmul.mubr.f32.gmra.mrb[0].mxu0 %v1224
    %v1226 = vpop.f32.mrb[0].mxu0
    %v1227 = vadd.f32 %v999, %v1226
    %v1228 = vpop.f32.mrb[0].mxu0
    %v1229 = vadd.f32 %v1001, %v1228
    %1230 = vmatprep.mubr.f32.mxu0 0.0
    %v1231 = vand.u32 %v57, 4294901760
    %v1232 = vsub.f32 %v57, %v1231
    %v1233 = vand.u32 %v1232, 4294901760
    %1234 = vmatmul.mubr.f32.gmra.mrb[0].mxu0 %v1233
    %v1235 = vpop.f32.mrb[0].mxu0
    %v1236 = vadd.f32 %v1007, %v1235
    %v1237 = vpop.f32.mrb[0].mxu0
    %v1238 = vadd.f32 %v1009, %v1237
    %1239 = vmatprep.mubr.f32.mxu0 0.0
    %v1240 = vand.u32 %v58, 4294901760
    %v1241 = vsub.f32 %v58, %v1240
    %v1242 = vand.u32 %v1241, 4294901760
    %1243 = vmatmul.mubr.f32.gmra.mrb[0].mxu0 %v1242
    %v1244 = vpop.f32.mrb[0].mxu0
    %v1245 = vadd.f32 %v1015, %v1244
    %v1246 = vpop.f32.mrb[0].mxu0
    %v1247 = vadd.f32 %v1017, %v1246
    %1248 = vmatprep.mubr.f32.mxu0 0.0
    %v1249 = vand.u32 %v59, 4294901760
    %v1250 = vsub.f32 %v59, %v1249
    %v1251 = vand.u32 %v1250, 4294901760
    %1252 = vmatmul.mubr.f32.gmra.mrb[0].mxu0 %v1251
    %v1253 = vpop.f32.mrb[0].mxu0
    %v1254 = vadd.f32 %v1023, %v1253
    %v1255 = vpop.f32.mrb[0].mxu0
    %v1256 = vadd.f32 %v1025, %v1255
    %1257 = vmatprep.mubr.f32.mxu0 0.0
    %v1258 = vand.u32 %v60, 4294901760
    %v1259 = vsub.f32 %v60, %v1258
    %v1260 = vand.u32 %v1259, 4294901760
    %1261 = vmatmul.mubr.f32.gmra.mrb[0].mxu0 %v1260
    %v1262 = vpop.f32.mrb[0].mxu0
    %v1263 = vadd.f32 %v1031, %v1262
    %v1264 = vpop.f32.mrb[0].mxu0
    %v1265 = vadd.f32 %v1033, %v1264
    %1266 = vmatprep.mubr.f32.mxu0 0.0
    %v1267 = vand.u32 %v61, 4294901760
    %v1268 = vsub.f32 %v61, %v1267
    %v1269 = vand.u32 %v1268, 4294901760
    %1270 = vmatmul.mubr.f32.gmra.mrb[0].mxu0 %v1269
    %v1271 = vpop.f32.mrb[0].mxu0
    %v1272 = vadd.f32 %v1039, %v1271
    %v1273 = vpop.f32.mrb[0].mxu0
    %v1274 = vadd.f32 %v1041, %v1273
    %1275 = vmatprep.mubr.f32.mxu0 0.0
    %v1276 = vand.u32 %v62, 4294901760
    %v1277 = vsub.f32 %v62, %v1276
    %v1278 = vand.u32 %v1277, 4294901760
    %1279 = vmatmul.mubr.f32.gmra.mrb[0].mxu0 %v1278
    %v1280 = vpop.f32.mrb[0].mxu0
    %v1281 = vadd.f32 %v1047, %v1280
    %v1282 = vpop.f32.mrb[0].mxu0
    %v1283 = vadd.f32 %v1049, %v1282
    %1284 = vmatprep.mubr.f32.mxu0 0.0
    %v1285 = vand.u32 %v63, 4294901760
    %v1286 = vsub.f32 %v63, %v1285
    %v1287 = vand.u32 %v1286, 4294901760
    %1288 = vmatmul.mubr.f32.gmra.mrb[0].mxu0 %v1287
    %v1289 = vpop.f32.mrb[0].mxu0
    %v1290 = vadd.f32 %v1055, %v1289
    %v1291 = vpop.f32.mrb[0].mxu0
    %v1292 = vadd.f32 %v1057, %v1291
    %1293 = vmatprep.mubr.f32.mxu0 0.0
    %v1294 = vand.u32 %v64, 4294901760
    %v1295 = vsub.f32 %v64, %v1294
    %v1296 = vand.u32 %v1295, 4294901760
    %1297 = vmatmul.mubr.f32.gmra.mrb[0].mxu0 %v1296
    %v1298 = vpop.f32.mrb[0].mxu0
    %v1299 = vadd.f32 %v1063, %v1298
    %v1300 = vpop.f32.mrb[0].mxu0
    %v1301 = vadd.f32 %v1065, %v1300
    %1302 = vmatprep.mubr.f32.mxu0 0.0
    %v1303 = vand.u32 %v65, 4294901760
    %v1304 = vsub.f32 %v65, %v1303
    %v1305 = vand.u32 %v1304, 4294901760
    %1306 = vmatmul.mubr.f32.gmra.mrb[0].mxu0 %v1305
    %v1307 = vpop.f32.mrb[0].mxu0
    %v1308 = vadd.f32 %v1071, %v1307
    %v1309 = vpop.f32.mrb[0].mxu0
    %v1310 = vadd.f32 %v1073, %v1309
    %1311 = vmatprep.mubr.f32.mxu0 0.0
    %v1312 = vand.u32 %v66, 4294901760
    %v1313 = vsub.f32 %v66, %v1312
    %v1314 = vand.u32 %v1313, 4294901760
    %1315 = vmatmul.mubr.f32.gmra.mrb[0].mxu0 %v1314
    %v1316 = vpop.f32.mrb[0].mxu0
    %v1317 = vadd.f32 %v1079, %v1316
    %v1318 = vpop.f32.mrb[0].mxu0
    %v1319 = vadd.f32 %v1081, %v1318
    %1320 = vmatprep.mubr.f32.mxu0 0.0
    %v1321 = vand.u32 %v67, 4294901760
    %v1322 = vsub.f32 %v67, %v1321
    %v1323 = vand.u32 %v1322, 4294901760
    %1324 = vmatmul.mubr.f32.gmra.mrb[0].mxu0 %v1323
    %v1325 = vpop.f32.mrb[0].mxu0
    %v1326 = vadd.f32 %v1087, %v1325
    %v1327 = vpop.f32.mrb[0].mxu0
    %v1328 = vadd.f32 %v1089, %v1327
    %1329 = vmatprep.mubr.f32.mxu0 0.0
    %v1330 = vand.u32 %v68, 4294901760
    %v1331 = vsub.f32 %v68, %v1330
    %v1332 = vand.u32 %v1331, 4294901760
    %1333 = vmatmul.mubr.f32.gmra.mrb[0].mxu0 %v1332
    %v1334 = vpop.f32.mrb[0].mxu0
    %v1335 = vadd.f32 %v1095, %v1334
    %v1336 = vpop.f32.mrb[0].mxu0
    %v1337 = vadd.f32 %v1097, %v1336
    %1338 = vmatprep.mubr.f32.mxu0 0.0
    %v1339 = vand.u32 %v69, 4294901760
    %v1340 = vsub.f32 %v69, %v1339
    %v1341 = vand.u32 %v1340, 4294901760
    %1342 = vmatmul.mubr.f32.gmra.mrb[0].mxu0 %v1341
    %v1343 = vpop.f32.mrb[0].mxu0
    %v1344 = vadd.f32 %v1103, %v1343
    %v1345 = vpop.f32.mrb[0].mxu0
    %v1346 = vadd.f32 %v1105, %v1345
    %1347 = vdwg.mxu0
    %v1348 = vand.u32 %v71, 4294901760
    %v1349 = vsub.f32 %v71, %v1348
    %v1350 = vand.u32 %v1349, 4294901760
    %1351 = vmatprep.subr.mxu0 %v1350
    %v1352 = vand.u32 %v70, 4294901760
    %v1353 = vsub.f32 %v70, %v1352
    %v1354 = vand.u32 %v1353, 4294901760
    %1355 = vmatpush1.msra.mxu0 %v1354
    %v1356 = vand.u32 %v79, 4294901760
    %v1357 = vsub.f32 %v79, %v1356
    %v1358 = vand.u32 %v1357, 4294901760
    %1359 = vmatprep.subr.mxu0 %v1358
    %v1360 = vand.u32 %v78, 4294901760
    %v1361 = vsub.f32 %v78, %v1360
    %v1362 = vand.u32 %v1361, 4294901760
    %1363 = vmatpush1.msra.mxu0 %v1362
    %v1364 = vand.u32 %v87, 4294901760
    %v1365 = vsub.f32 %v87, %v1364
    %v1366 = vand.u32 %v1365, 4294901760
    %1367 = vmatprep.subr.mxu0 %v1366
    %v1368 = vand.u32 %v86, 4294901760
    %v1369 = vsub.f32 %v86, %v1368
    %v1370 = vand.u32 %v1369, 4294901760
    %1371 = vmatpush1.msra.mxu0 %v1370
    %v1372 = vand.u32 %v95, 4294901760
    %v1373 = vsub.f32 %v95, %v1372
    %v1374 = vand.u32 %v1373, 4294901760
    %1375 = vmatprep.subr.mxu0 %v1374
    %v1376 = vand.u32 %v94, 4294901760
    %v1377 = vsub.f32 %v94, %v1376
    %v1378 = vand.u32 %v1377, 4294901760
    %1379 = vmatpush1.msra.mxu0 %v1378
    %v1380 = vand.u32 %v103, 4294901760
    %v1381 = vsub.f32 %v103, %v1380
    %v1382 = vand.u32 %v1381, 4294901760
    %1383 = vmatprep.subr.mxu0 %v1382
    %v1384 = vand.u32 %v102, 4294901760
    %v1385 = vsub.f32 %v102, %v1384
    %v1386 = vand.u32 %v1385, 4294901760
    %1387 = vmatpush1.msra.mxu0 %v1386
    %v1388 = vand.u32 %v111, 4294901760
    %v1389 = vsub.f32 %v111, %v1388
    %v1390 = vand.u32 %v1389, 4294901760
    %1391 = vmatprep.subr.mxu0 %v1390
    %v1392 = vand.u32 %v110, 4294901760
    %v1393 = vsub.f32 %v110, %v1392
    %v1394 = vand.u32 %v1393, 4294901760
    %1395 = vmatpush1.msra.mxu0 %v1394
    %v1396 = vand.u32 %v119, 4294901760
    %v1397 = vsub.f32 %v119, %v1396
    %v1398 = vand.u32 %v1397, 4294901760
    %1399 = vmatprep.subr.mxu0 %v1398
    %v1400 = vand.u32 %v118, 4294901760
    %v1401 = vsub.f32 %v118, %v1400
    %v1402 = vand.u32 %v1401, 4294901760
    %1403 = vmatpush1.msra.mxu0 %v1402
    %v1404 = vand.u32 %v127, 4294901760
    %v1405 = vsub.f32 %v127, %v1404
    %v1406 = vand.u32 %v1405, 4294901760
    %1407 = vmatprep.subr.mxu0 %v1406
    %v1408 = vand.u32 %v126, 4294901760
    %v1409 = vsub.f32 %v126, %v1408
    %v1410 = vand.u32 %v1409, 4294901760
    %1411 = vmatpush1.msra.mxu0 %v1410
    %v1412 = vand.u32 %v135, 4294901760
    %v1413 = vsub.f32 %v135, %v1412
    %v1414 = vand.u32 %v1413, 4294901760
    %1415 = vmatprep.subr.mxu0 %v1414
    %v1416 = vand.u32 %v134, 4294901760
    %v1417 = vsub.f32 %v134, %v1416
    %v1418 = vand.u32 %v1417, 4294901760
    %1419 = vmatpush1.msra.mxu0 %v1418
    %v1420 = vand.u32 %v143, 4294901760
    %v1421 = vsub.f32 %v143, %v1420
    %v1422 = vand.u32 %v1421, 4294901760
    %1423 = vmatprep.subr.mxu0 %v1422
    %v1424 = vand.u32 %v142, 4294901760
    %v1425 = vsub.f32 %v142, %v1424
    %v1426 = vand.u32 %v1425, 4294901760
    %1427 = vmatpush1.msra.mxu0 %v1426
    %v1428 = vand.u32 %v151, 4294901760
    %v1429 = vsub.f32 %v151, %v1428
    %v1430 = vand.u32 %v1429, 4294901760
    %1431 = vmatprep.subr.mxu0 %v1430
    %v1432 = vand.u32 %v150, 4294901760
    %v1433 = vsub.f32 %v150, %v1432
    %v1434 = vand.u32 %v1433, 4294901760
    %1435 = vmatpush1.msra.mxu0 %v1434
    %v1436 = vand.u32 %v159, 4294901760
    %v1437 = vsub.f32 %v159, %v1436
    %v1438 = vand.u32 %v1437, 4294901760
    %1439 = vmatprep.subr.mxu0 %v1438
    %v1440 = vand.u32 %v158, 4294901760
    %v1441 = vsub.f32 %v158, %v1440
    %v1442 = vand.u32 %v1441, 4294901760
    %1443 = vmatpush1.msra.mxu0 %v1442
    %v1444 = vand.u32 %v167, 4294901760
    %v1445 = vsub.f32 %v167, %v1444
    %v1446 = vand.u32 %v1445, 4294901760
    %1447 = vmatprep.subr.mxu0 %v1446
    %v1448 = vand.u32 %v166, 4294901760
    %v1449 = vsub.f32 %v166, %v1448
    %v1450 = vand.u32 %v1449, 4294901760
    %1451 = vmatpush1.msra.mxu0 %v1450
    %v1452 = vand.u32 %v175, 4294901760
    %v1453 = vsub.f32 %v175, %v1452
    %v1454 = vand.u32 %v1453, 4294901760
    %1455 = vmatprep.subr.mxu0 %v1454
    %v1456 = vand.u32 %v174, 4294901760
    %v1457 = vsub.f32 %v174, %v1456
    %v1458 = vand.u32 %v1457, 4294901760
    %1459 = vmatpush1.msra.mxu0 %v1458
    %v1460 = vand.u32 %v183, 4294901760
    %v1461 = vsub.f32 %v183, %v1460
    %v1462 = vand.u32 %v1461, 4294901760
    %1463 = vmatprep.subr.mxu0 %v1462
    %v1464 = vand.u32 %v182, 4294901760
    %v1465 = vsub.f32 %v182, %v1464
    %v1466 = vand.u32 %v1465, 4294901760
    %1467 = vmatpush1.msra.mxu0 %v1466
    %v1468 = vand.u32 %v191, 4294901760
    %v1469 = vsub.f32 %v191, %v1468
    %v1470 = vand.u32 %v1469, 4294901760
    %1471 = vmatprep.subr.mxu0 %v1470
    %v1472 = vand.u32 %v190, 4294901760
    %v1473 = vsub.f32 %v190, %v1472
    %v1474 = vand.u32 %v1473, 4294901760
    %1475 = vmatpush1.msra.mxu0 %v1474
    %1476 = vmatprep.subr.mxu0 0.0
    %1477 = vmatpush1.msra.mxu0 0.0
    %1478 = vmatprep.subr.mxu0 0.0
    %1479 = vmatpush1.msra.mxu0 0.0
    %1480 = vmatprep.subr.mxu0 0.0
    %1481 = vmatpush1.msra.mxu0 0.0
    %1482 = vmatprep.subr.mxu0 0.0
    %1483 = vmatpush1.msra.mxu0 0.0
    %1484 = vmatprep.subr.mxu0 0.0
    %1485 = vmatpush1.msra.mxu0 0.0
    %1486 = vmatprep.subr.mxu0 0.0
    %1487 = vmatpush1.msra.mxu0 0.0
    %1488 = vmatprep.subr.mxu0 0.0
    %1489 = vmatpush1.msra.mxu0 0.0
    %1490 = vmatprep.subr.mxu0 0.0
    %1491 = vmatpush1.msra.mxu0 0.0
    %1492 = vmatprep.subr.mxu0 0.0
    %1493 = vmatpush1.msra.mxu0 0.0
    %1494 = vmatprep.subr.mxu0 0.0
    %1495 = vmatpush1.msra.mxu0 0.0
    %1496 = vmatprep.subr.mxu0 0.0
    %1497 = vmatpush1.msra.mxu0 0.0
    %1498 = vmatprep.subr.mxu0 0.0
    %1499 = vmatpush1.msra.mxu0 0.0
    %1500 = vmatprep.subr.mxu0 0.0
    %1501 = vmatpush1.msra.mxu0 0.0
    %1502 = vmatprep.subr.mxu0 0.0
    %1503 = vmatpush1.msra.mxu0 0.0
    %1504 = vmatprep.subr.mxu0 0.0
    %1505 = vmatpush1.msra.mxu0 0.0
    %1506 = vmatprep.subr.mxu0 0.0
    %1507 = vmatpush1.msra.mxu0 0.0
    %1508 = vmatprep.mubr.f32.mxu0 0.0
    %v1509 = vand.u32 %v54, 4294901760
    %1510 = vmatmul.mubr.f32.gmra.mrb[0].mxu0 %v1509
    %v1511 = vpop.f32.mrb[0].mxu0
    %v1512 = vadd.f32 %v1209, %v1511
    %v1513 = vpop.f32.mrb[0].mxu0
    %v1514 = vadd.f32 %v1211, %v1513
    %1515 = vmatprep.mubr.f32.mxu0 0.0
    %v1516 = vand.u32 %v55, 4294901760
    %1517 = vmatmul.mubr.f32.gmra.mrb[0].mxu0 %v1516
    %v1518 = vpop.f32.mrb[0].mxu0
    %v1519 = vadd.f32 %v1218, %v1518
    %v1520 = vpop.f32.mrb[0].mxu0
    %v1521 = vadd.f32 %v1220, %v1520
    %1522 = vmatprep.mubr.f32.mxu0 0.0
    %v1523 = vand.u32 %v56, 4294901760
    %1524 = vmatmul.mubr.f32.gmra.mrb[0].mxu0 %v1523
    %v1525 = vpop.f32.mrb[0].mxu0
    %v1526 = vadd.f32 %v1227, %v1525
    %v1527 = vpop.f32.mrb[0].mxu0
    %v1528 = vadd.f32 %v1229, %v1527
    %1529 = vmatprep.mubr.f32.mxu0 0.0
    %v1530 = vand.u32 %v57, 4294901760
    %1531 = vmatmul.mubr.f32.gmra.mrb[0].mxu0 %v1530
    %v1532 = vpop.f32.mrb[0].mxu0
    %v1533 = vadd.f32 %v1236, %v1532
    %v1534 = vpop.f32.mrb[0].mxu0
    %v1535 = vadd.f32 %v1238, %v1534
    %1536 = vmatprep.mubr.f32.mxu0 0.0
    %v1537 = vand.u32 %v58, 4294901760
    %1538 = vmatmul.mubr.f32.gmra.mrb[0].mxu0 %v1537
    %v1539 = vpop.f32.mrb[0].mxu0
    %v1540 = vadd.f32 %v1245, %v1539
    %v1541 = vpop.f32.mrb[0].mxu0
    %v1542 = vadd.f32 %v1247, %v1541
    %1543 = vmatprep.mubr.f32.mxu0 0.0
    %v1544 = vand.u32 %v59, 4294901760
    %1545 = vmatmul.mubr.f32.gmra.mrb[0].mxu0 %v1544
    %v1546 = vpop.f32.mrb[0].mxu0
    %v1547 = vadd.f32 %v1254, %v1546
    %v1548 = vpop.f32.mrb[0].mxu0
    %v1549 = vadd.f32 %v1256, %v1548
    %1550 = vmatprep.mubr.f32.mxu0 0.0
    %v1551 = vand.u32 %v60, 4294901760
    %1552 = vmatmul.mubr.f32.gmra.mrb[0].mxu0 %v1551
    %v1553 = vpop.f32.mrb[0].mxu0
    %v1554 = vadd.f32 %v1263, %v1553
    %v1555 = vpop.f32.mrb[0].mxu0
    %v1556 = vadd.f32 %v1265, %v1555
    %1557 = vmatprep.mubr.f32.mxu0 0.0
    %v1558 = vand.u32 %v61, 4294901760
    %1559 = vmatmul.mubr.f32.gmra.mrb[0].mxu0 %v1558
    %v1560 = vpop.f32.mrb[0].mxu0
    %v1561 = vadd.f32 %v1272, %v1560
    %v1562 = vpop.f32.mrb[0].mxu0
    %v1563 = vadd.f32 %v1274, %v1562
    %1564 = vmatprep.mubr.f32.mxu0 0.0
    %v1565 = vand.u32 %v62, 4294901760
    %1566 = vmatmul.mubr.f32.gmra.mrb[0].mxu0 %v1565
    %v1567 = vpop.f32.mrb[0].mxu0
    %v1568 = vadd.f32 %v1281, %v1567
    %v1569 = vpop.f32.mrb[0].mxu0
    %v1570 = vadd.f32 %v1283, %v1569
    %1571 = vmatprep.mubr.f32.mxu0 0.0
    %v1572 = vand.u32 %v63, 4294901760
    %1573 = vmatmul.mubr.f32.gmra.mrb[0].mxu0 %v1572
    %v1574 = vpop.f32.mrb[0].mxu0
    %v1575 = vadd.f32 %v1290, %v1574
    %v1576 = vpop.f32.mrb[0].mxu0
    %v1577 = vadd.f32 %v1292, %v1576
    %1578 = vmatprep.mubr.f32.mxu0 0.0
    %v1579 = vand.u32 %v64, 4294901760
    %1580 = vmatmul.mubr.f32.gmra.mrb[0].mxu0 %v1579
    %v1581 = vpop.f32.mrb[0].mxu0
    %v1582 = vadd.f32 %v1299, %v1581
    %v1583 = vpop.f32.mrb[0].mxu0
    %v1584 = vadd.f32 %v1301, %v1583
    %1585 = vmatprep.mubr.f32.mxu0 0.0
    %v1586 = vand.u32 %v65, 4294901760
    %1587 = vmatmul.mubr.f32.gmra.mrb[0].mxu0 %v1586
    %v1588 = vpop.f32.mrb[0].mxu0
    %v1589 = vadd.f32 %v1308, %v1588
    %v1590 = vpop.f32.mrb[0].mxu0
    %v1591 = vadd.f32 %v1310, %v1590
    %1592 = vmatprep.mubr.f32.mxu0 0.0
    %v1593 = vand.u32 %v66, 4294901760
    %1594 = vmatmul.mubr.f32.gmra.mrb[0].mxu0 %v1593
    %v1595 = vpop.f32.mrb[0].mxu0
    %v1596 = vadd.f32 %v1317, %v1595
    %v1597 = vpop.f32.mrb[0].mxu0
    %v1598 = vadd.f32 %v1319, %v1597
    %1599 = vmatprep.mubr.f32.mxu0 0.0
    %v1600 = vand.u32 %v67, 4294901760
    %1601 = vmatmul.mubr.f32.gmra.mrb[0].mxu0 %v1600
    %v1602 = vpop.f32.mrb[0].mxu0
    %v1603 = vadd.f32 %v1326, %v1602
    %v1604 = vpop.f32.mrb[0].mxu0
    %v1605 = vadd.f32 %v1328, %v1604
    %1606 = vmatprep.mubr.f32.mxu0 0.0
    %v1607 = vand.u32 %v68, 4294901760
    %1608 = vmatmul.mubr.f32.gmra.mrb[0].mxu0 %v1607
    %v1609 = vpop.f32.mrb[0].mxu0
    %v1610 = vadd.f32 %v1335, %v1609
    %v1611 = vpop.f32.mrb[0].mxu0
    %v1612 = vadd.f32 %v1337, %v1611
    %1613 = vmatprep.mubr.f32.mxu0 0.0
    %v1614 = vand.u32 %v69, 4294901760
    %1615 = vmatmul.mubr.f32.gmra.mrb[0].mxu0 %v1614
    %v1616 = vpop.f32.mrb[0].mxu0
    %v1617 = vadd.f32 %v1344, %v1616
    %v1618 = vpop.f32.mrb[0].mxu0
    %v1619 = vadd.f32 %v1346, %v1618
    %1620 = vdwg.mxu0
    %v1621 = vand.u32 %v71, 4294901760
    %1622 = vmatprep.subr.mxu0 %v1621
    %v1623 = vand.u32 %v70, 4294901760
    %1624 = vmatpush1.msra.mxu0 %v1623
    %v1625 = vand.u32 %v79, 4294901760
    %1626 = vmatprep.subr.mxu0 %v1625
    %v1627 = vand.u32 %v78, 4294901760
    %1628 = vmatpush1.msra.mxu0 %v1627
    %v1629 = vand.u32 %v87, 4294901760
    %1630 = vmatprep.subr.mxu0 %v1629
    %v1631 = vand.u32 %v86, 4294901760
    %1632 = vmatpush1.msra.mxu0 %v1631
    %v1633 = vand.u32 %v95, 4294901760
    %1634 = vmatprep.subr.mxu0 %v1633
    %v1635 = vand.u32 %v94, 4294901760
    %1636 = vmatpush1.msra.mxu0 %v1635
    %v1637 = vand.u32 %v103, 4294901760
    %1638 = vmatprep.subr.mxu0 %v1637
    %v1639 = vand.u32 %v102, 4294901760
    %1640 = vmatpush1.msra.mxu0 %v1639
    %v1641 = vand.u32 %v111, 4294901760
    %1642 = vmatprep.subr.mxu0 %v1641
    %v1643 = vand.u32 %v110, 4294901760
    %1644 = vmatpush1.msra.mxu0 %v1643
    %v1645 = vand.u32 %v119, 4294901760
    %1646 = vmatprep.subr.mxu0 %v1645
    %v1647 = vand.u32 %v118, 4294901760
    %1648 = vmatpush1.msra.mxu0 %v1647
    %v1649 = vand.u32 %v127, 4294901760
    %1650 = vmatprep.subr.mxu0 %v1649
    %v1651 = vand.u32 %v126, 4294901760
    %1652 = vmatpush1.msra.mxu0 %v1651
    %v1653 = vand.u32 %v135, 4294901760
    %1654 = vmatprep.subr.mxu0 %v1653
    %v1655 = vand.u32 %v134, 4294901760
    %1656 = vmatpush1.msra.mxu0 %v1655
    %v1657 = vand.u32 %v143, 4294901760
    %1658 = vmatprep.subr.mxu0 %v1657
    %v1659 = vand.u32 %v142, 4294901760
    %1660 = vmatpush1.msra.mxu0 %v1659
    %v1661 = vand.u32 %v151, 4294901760
    %1662 = vmatprep.subr.mxu0 %v1661
    %v1663 = vand.u32 %v150, 4294901760
    %1664 = vmatpush1.msra.mxu0 %v1663
    %v1665 = vand.u32 %v159, 4294901760
    %1666 = vmatprep.subr.mxu0 %v1665
    %v1667 = vand.u32 %v158, 4294901760
    %1668 = vmatpush1.msra.mxu0 %v1667
    %v1669 = vand.u32 %v167, 4294901760
    %1670 = vmatprep.subr.mxu0 %v1669
    %v1671 = vand.u32 %v166, 4294901760
    %1672 = vmatpush1.msra.mxu0 %v1671
    %v1673 = vand.u32 %v175, 4294901760
    %1674 = vmatprep.subr.mxu0 %v1673
    %v1675 = vand.u32 %v174, 4294901760
    %1676 = vmatpush1.msra.mxu0 %v1675
    %v1677 = vand.u32 %v183, 4294901760
    %1678 = vmatprep.subr.mxu0 %v1677
    %v1679 = vand.u32 %v182, 4294901760
    %1680 = vmatpush1.msra.mxu0 %v1679
    %v1681 = vand.u32 %v191, 4294901760
    %1682 = vmatprep.subr.mxu0 %v1681
    %v1683 = vand.u32 %v190, 4294901760
    %1684 = vmatpush1.msra.mxu0 %v1683
    %1685 = vmatprep.subr.mxu0 0.0
    %1686 = vmatpush1.msra.mxu0 0.0
    %1687 = vmatprep.subr.mxu0 0.0
    %1688 = vmatpush1.msra.mxu0 0.0
    %1689 = vmatprep.subr.mxu0 0.0
    %1690 = vmatpush1.msra.mxu0 0.0
    %1691 = vmatprep.subr.mxu0 0.0
    %1692 = vmatpush1.msra.mxu0 0.0
    %1693 = vmatprep.subr.mxu0 0.0
    %1694 = vmatpush1.msra.mxu0 0.0
    %1695 = vmatprep.subr.mxu0 0.0
    %1696 = vmatpush1.msra.mxu0 0.0
    %1697 = vmatprep.subr.mxu0 0.0
    %1698 = vmatpush1.msra.mxu0 0.0
    %1699 = vmatprep.subr.mxu0 0.0
    %1700 = vmatpush1.msra.mxu0 0.0
    %1701 = vmatprep.subr.mxu0 0.0
    %1702 = vmatpush1.msra.mxu0 0.0
    %1703 = vmatprep.subr.mxu0 0.0
    %1704 = vmatpush1.msra.mxu0 0.0
    %1705 = vmatprep.subr.mxu0 0.0
    %1706 = vmatpush1.msra.mxu0 0.0
    %1707 = vmatprep.subr.mxu0 0.0
    %1708 = vmatpush1.msra.mxu0 0.0
    %1709 = vmatprep.subr.mxu0 0.0
    %1710 = vmatpush1.msra.mxu0 0.0
    %1711 = vmatprep.subr.mxu0 0.0
    %1712 = vmatpush1.msra.mxu0 0.0
    %1713 = vmatprep.subr.mxu0 0.0
    %1714 = vmatpush1.msra.mxu0 0.0
    %1715 = vmatprep.subr.mxu0 0.0
    %1716 = vmatpush1.msra.mxu0 0.0
    %1717 = vmatprep.mubr.f32.mxu0 0.0
    %v1718 = vand.u32 %v54, 4294901760
    %1719 = vmatmul.mubr.f32.gmra.mrb[0].mxu0 %v1718
    %v1720 = vpop.f32.mrb[0].mxu0
    %v1721 = vadd.f32 %v1512, %v1720
    %v1722 = vpop.f32.mrb[0].mxu0
    %v1723 = vadd.f32 %v1514, %v1722
    %1724 = vmatprep.mubr.f32.mxu0 0.0
    %v1725 = vand.u32 %v55, 4294901760
    %1726 = vmatmul.mubr.f32.gmra.mrb[0].mxu0 %v1725
    %v1727 = vpop.f32.mrb[0].mxu0
    %v1728 = vadd.f32 %v1519, %v1727
    %v1729 = vpop.f32.mrb[0].mxu0
    %v1730 = vadd.f32 %v1521, %v1729
    %1731 = vmatprep.mubr.f32.mxu0 0.0
    %v1732 = vand.u32 %v56, 4294901760
    %1733 = vmatmul.mubr.f32.gmra.mrb[0].mxu0 %v1732
    %v1734 = vpop.f32.mrb[0].mxu0
    %v1735 = vadd.f32 %v1526, %v1734
    %v1736 = vpop.f32.mrb[0].mxu0
    %v1737 = vadd.f32 %v1528, %v1736
    %1738 = vmatprep.mubr.f32.mxu0 0.0
    %v1739 = vand.u32 %v57, 4294901760
    %1740 = vmatmul.mubr.f32.gmra.mrb[0].mxu0 %v1739
    %v1741 = vpop.f32.mrb[0].mxu0
    %v1742 = vadd.f32 %v1533, %v1741
    %v1743 = vpop.f32.mrb[0].mxu0
    %v1744 = vadd.f32 %v1535, %v1743
    %1745 = vmatprep.mubr.f32.mxu0 0.0
    %v1746 = vand.u32 %v58, 4294901760
    %1747 = vmatmul.mubr.f32.gmra.mrb[0].mxu0 %v1746
    %v1748 = vpop.f32.mrb[0].mxu0
    %v1749 = vadd.f32 %v1540, %v1748
    %v1750 = vpop.f32.mrb[0].mxu0
    %v1751 = vadd.f32 %v1542, %v1750
    %1752 = vmatprep.mubr.f32.mxu0 0.0
    %v1753 = vand.u32 %v59, 4294901760
    %1754 = vmatmul.mubr.f32.gmra.mrb[0].mxu0 %v1753
    %v1755 = vpop.f32.mrb[0].mxu0
    %v1756 = vadd.f32 %v1547, %v1755
    %v1757 = vpop.f32.mrb[0].mxu0
    %v1758 = vadd.f32 %v1549, %v1757
    %1759 = vmatprep.mubr.f32.mxu0 0.0
    %v1760 = vand.u32 %v60, 4294901760
    %1761 = vmatmul.mubr.f32.gmra.mrb[0].mxu0 %v1760
    %v1762 = vpop.f32.mrb[0].mxu0
    %v1763 = vadd.f32 %v1554, %v1762
    %v1764 = vpop.f32.mrb[0].mxu0
    %v1765 = vadd.f32 %v1556, %v1764
    %1766 = vmatprep.mubr.f32.mxu0 0.0
    %v1767 = vand.u32 %v61, 4294901760
    %1768 = vmatmul.mubr.f32.gmra.mrb[0].mxu0 %v1767
    %v1769 = vpop.f32.mrb[0].mxu0
    %v1770 = vadd.f32 %v1561, %v1769
    %v1771 = vpop.f32.mrb[0].mxu0
    %v1772 = vadd.f32 %v1563, %v1771
    %1773 = vmatprep.mubr.f32.mxu0 0.0
    %v1774 = vand.u32 %v62, 4294901760
    %1775 = vmatmul.mubr.f32.gmra.mrb[0].mxu0 %v1774
    %v1776 = vpop.f32.mrb[0].mxu0
    %v1777 = vadd.f32 %v1568, %v1776
    %v1778 = vpop.f32.mrb[0].mxu0
    %v1779 = vadd.f32 %v1570, %v1778
    %1780 = vmatprep.mubr.f32.mxu0 0.0
    %v1781 = vand.u32 %v63, 4294901760
    %1782 = vmatmul.mubr.f32.gmra.mrb[0].mxu0 %v1781
    %v1783 = vpop.f32.mrb[0].mxu0
    %v1784 = vadd.f32 %v1575, %v1783
    %v1785 = vpop.f32.mrb[0].mxu0
    %v1786 = vadd.f32 %v1577, %v1785
    %1787 = vmatprep.mubr.f32.mxu0 0.0
    %v1788 = vand.u32 %v64, 4294901760
    %1789 = vmatmul.mubr.f32.gmra.mrb[0].mxu0 %v1788
    %v1790 = vpop.f32.mrb[0].mxu0
    %v1791 = vadd.f32 %v1582, %v1790
    %v1792 = vpop.f32.mrb[0].mxu0
    %v1793 = vadd.f32 %v1584, %v1792
    %1794 = vmatprep.mubr.f32.mxu0 0.0
    %v1795 = vand.u32 %v65, 4294901760
    %1796 = vmatmul.mubr.f32.gmra.mrb[0].mxu0 %v1795
    %v1797 = vpop.f32.mrb[0].mxu0
    %v1798 = vadd.f32 %v1589, %v1797
    %v1799 = vpop.f32.mrb[0].mxu0
    %v1800 = vadd.f32 %v1591, %v1799
    %1801 = vmatprep.mubr.f32.mxu0 0.0
    %v1802 = vand.u32 %v66, 4294901760
    %1803 = vmatmul.mubr.f32.gmra.mrb[0].mxu0 %v1802
    %v1804 = vpop.f32.mrb[0].mxu0
    %v1805 = vadd.f32 %v1596, %v1804
    %v1806 = vpop.f32.mrb[0].mxu0
    %v1807 = vadd.f32 %v1598, %v1806
    %1808 = vmatprep.mubr.f32.mxu0 0.0
    %v1809 = vand.u32 %v67, 4294901760
    %1810 = vmatmul.mubr.f32.gmra.mrb[0].mxu0 %v1809
    %v1811 = vpop.f32.mrb[0].mxu0
    %v1812 = vadd.f32 %v1603, %v1811
    %v1813 = vpop.f32.mrb[0].mxu0
    %v1814 = vadd.f32 %v1605, %v1813
    %1815 = vmatprep.mubr.f32.mxu0 0.0
    %v1816 = vand.u32 %v68, 4294901760
    %1817 = vmatmul.mubr.f32.gmra.mrb[0].mxu0 %v1816
    %v1818 = vpop.f32.mrb[0].mxu0
    %v1819 = vadd.f32 %v1610, %v1818
    %v1820 = vpop.f32.mrb[0].mxu0
    %v1821 = vadd.f32 %v1612, %v1820
    %1822 = vmatprep.mubr.f32.mxu0 0.0
    %v1823 = vand.u32 %v69, 4294901760
    %1824 = vmatmul.mubr.f32.gmra.mrb[0].mxu0 %v1823
    %v1825 = vpop.f32.mrb[0].mxu0
    %v1826 = vadd.f32 %v1617, %v1825
    %v1827 = vpop.f32.mrb[0].mxu0
    %v1828 = vadd.f32 %v1619, %v1827
    %1829 = vdwg.mxu0
    %v1830 = vand.u32 %v73, 4294901760
    %1831 = vmatprep.subr.mxu0 %v1830
    %v1832 = vand.u32 %v72, 4294901760
    %1833 = vmatpush1.msra.mxu0 %v1832
    %v1834 = vand.u32 %v81, 4294901760
    %1835 = vmatprep.subr.mxu0 %v1834
    %v1836 = vand.u32 %v80, 4294901760
    %1837 = vmatpush1.msra.mxu0 %v1836
    %v1838 = vand.u32 %v89, 4294901760
    %1839 = vmatprep.subr.mxu0 %v1838
    %v1840 = vand.u32 %v88, 4294901760
    %1841 = vmatpush1.msra.mxu0 %v1840
    %v1842 = vand.u32 %v97, 4294901760
    %1843 = vmatprep.subr.mxu0 %v1842
    %v1844 = vand.u32 %v96, 4294901760
    %1845 = vmatpush1.msra.mxu0 %v1844
    %v1846 = vand.u32 %v105, 4294901760
    %1847 = vmatprep.subr.mxu0 %v1846
    %v1848 = vand.u32 %v104, 4294901760
    %1849 = vmatpush1.msra.mxu0 %v1848
    %v1850 = vand.u32 %v113, 4294901760
    %1851 = vmatprep.subr.mxu0 %v1850
    %v1852 = vand.u32 %v112, 4294901760
    %1853 = vmatpush1.msra.mxu0 %v1852
    %v1854 = vand.u32 %v121, 4294901760
    %1855 = vmatprep.subr.mxu0 %v1854
    %v1856 = vand.u32 %v120, 4294901760
    %1857 = vmatpush1.msra.mxu0 %v1856
    %v1858 = vand.u32 %v129, 4294901760
    %1859 = vmatprep.subr.mxu0 %v1858
    %v1860 = vand.u32 %v128, 4294901760
    %1861 = vmatpush1.msra.mxu0 %v1860
    %v1862 = vand.u32 %v137, 4294901760
    %1863 = vmatprep.subr.mxu0 %v1862
    %v1864 = vand.u32 %v136, 4294901760
    %1865 = vmatpush1.msra.mxu0 %v1864
    %v1866 = vand.u32 %v145, 4294901760
    %1867 = vmatprep.subr.mxu0 %v1866
    %v1868 = vand.u32 %v144, 4294901760
    %1869 = vmatpush1.msra.mxu0 %v1868
    %v1870 = vand.u32 %v153, 4294901760
    %1871 = vmatprep.subr.mxu0 %v1870
    %v1872 = vand.u32 %v152, 4294901760
    %1873 = vmatpush1.msra.mxu0 %v1872
    %v1874 = vand.u32 %v161, 4294901760
    %1875 = vmatprep.subr.mxu0 %v1874
    %v1876 = vand.u32 %v160, 4294901760
    %1877 = vmatpush1.msra.mxu0 %v1876
    %v1878 = vand.u32 %v169, 4294901760
    %1879 = vmatprep.subr.mxu0 %v1878
    %v1880 = vand.u32 %v168, 4294901760
    %1881 = vmatpush1.msra.mxu0 %v1880
    %v1882 = vand.u32 %v177, 4294901760
    %1883 = vmatprep.subr.mxu0 %v1882
    %v1884 = vand.u32 %v176, 4294901760
    %1885 = vmatpush1.msra.mxu0 %v1884
    %v1886 = vand.u32 %v185, 4294901760
    %1887 = vmatprep.subr.mxu0 %v1886
    %v1888 = vand.u32 %v184, 4294901760
    %1889 = vmatpush1.msra.mxu0 %v1888
    %v1890 = vand.u32 %v193, 4294901760
    %1891 = vmatprep.subr.mxu0 %v1890
    %v1892 = vand.u32 %v192, 4294901760
    %1893 = vmatpush1.msra.mxu0 %v1892
    %1894 = vmatprep.subr.mxu0 0.0
    %1895 = vmatpush1.msra.mxu0 0.0
    %1896 = vmatprep.subr.mxu0 0.0
    %1897 = vmatpush1.msra.mxu0 0.0
    %1898 = vmatprep.subr.mxu0 0.0
    %1899 = vmatpush1.msra.mxu0 0.0
    %1900 = vmatprep.subr.mxu0 0.0
    %1901 = vmatpush1.msra.mxu0 0.0
    %1902 = vmatprep.subr.mxu0 0.0
    %1903 = vmatpush1.msra.mxu0 0.0
    %1904 = vmatprep.subr.mxu0 0.0
    %1905 = vmatpush1.msra.mxu0 0.0
    %1906 = vmatprep.subr.mxu0 0.0
    %1907 = vmatpush1.msra.mxu0 0.0
    %1908 = vmatprep.subr.mxu0 0.0
    %1909 = vmatpush1.msra.mxu0 0.0
    %1910 = vmatprep.subr.mxu0 0.0
    %1911 = vmatpush1.msra.mxu0 0.0
    %1912 = vmatprep.subr.mxu0 0.0
    %1913 = vmatpush1.msra.mxu0 0.0
    %1914 = vmatprep.subr.mxu0 0.0
    %1915 = vmatpush1.msra.mxu0 0.0
    %1916 = vmatprep.subr.mxu0 0.0
    %1917 = vmatpush1.msra.mxu0 0.0
    %1918 = vmatprep.subr.mxu0 0.0
    %1919 = vmatpush1.msra.mxu0 0.0
    %1920 = vmatprep.subr.mxu0 0.0
    %1921 = vmatpush1.msra.mxu0 0.0
    %1922 = vmatprep.subr.mxu0 0.0
    %1923 = vmatpush1.msra.mxu0 0.0
    %1924 = vmatprep.subr.mxu0 0.0
    %1925 = vmatpush1.msra.mxu0 0.0
    %1926 = vmatprep.mubr.f32.mxu0 0.0
    %v1927 = vand.u32 %v54, 4294901760
    %v1928 = vsub.f32 %v54, %v1927
    %v1929 = vand.u32 %v1928, 4294901760
    %v1930 = vsub.f32 %v1928, %v1929
    %v1931 = vand.u32 %v1930, 4294901760
    %1932 = vmatmul.mubr.f32.gmra.mrb[0].mxu0 %v1931
    %v1933 = vpop.f32.mrb[0].mxu0
    %v1934 = vadd.f32 %v211, %v1933
    %v1935 = vpop.f32.mrb[0].mxu0
    %v1936 = vadd.f32 %v215, %v1935
    %1937 = vmatprep.mubr.f32.mxu0 0.0
    %v1938 = vand.u32 %v55, 4294901760
    %v1939 = vsub.f32 %v55, %v1938
    %v1940 = vand.u32 %v1939, 4294901760
    %v1941 = vsub.f32 %v1939, %v1940
    %v1942 = vand.u32 %v1941, 4294901760
    %1943 = vmatmul.mubr.f32.gmra.mrb[0].mxu0 %v1942
    %v1944 = vpop.f32.mrb[0].mxu0
    %v1945 = vadd.f32 %v211, %v1944
    %v1946 = vpop.f32.mrb[0].mxu0
    %v1947 = vadd.f32 %v215, %v1946
    %1948 = vmatprep.mubr.f32.mxu0 0.0
    %v1949 = vand.u32 %v56, 4294901760
    %v1950 = vsub.f32 %v56, %v1949
    %v1951 = vand.u32 %v1950, 4294901760
    %v1952 = vsub.f32 %v1950, %v1951
    %v1953 = vand.u32 %v1952, 4294901760
    %1954 = vmatmul.mubr.f32.gmra.mrb[0].mxu0 %v1953
    %v1955 = vpop.f32.mrb[0].mxu0
    %v1956 = vadd.f32 %v211, %v1955
    %v1957 = vpop.f32.mrb[0].mxu0
    %v1958 = vadd.f32 %v215, %v1957
    %1959 = vmatprep.mubr.f32.mxu0 0.0
    %v1960 = vand.u32 %v57, 4294901760
    %v1961 = vsub.f32 %v57, %v1960
    %v1962 = vand.u32 %v1961, 4294901760
    %v1963 = vsub.f32 %v1961, %v1962
    %v1964 = vand.u32 %v1963, 4294901760
    %1965 = vmatmul.mubr.f32.gmra.mrb[0].mxu0 %v1964
    %v1966 = vpop.f32.mrb[0].mxu0
    %v1967 = vadd.f32 %v211, %v1966
    %v1968 = vpop.f32.mrb[0].mxu0
    %v1969 = vadd.f32 %v215, %v1968
    %1970 = vmatprep.mubr.f32.mxu0 0.0
    %v1971 = vand.u32 %v58, 4294901760
    %v1972 = vsub.f32 %v58, %v1971
    %v1973 = vand.u32 %v1972, 4294901760
    %v1974 = vsub.f32 %v1972, %v1973
    %v1975 = vand.u32 %v1974, 4294901760
    %1976 = vmatmul.mubr.f32.gmra.mrb[0].mxu0 %v1975
    %v1977 = vpop.f32.mrb[0].mxu0
    %v1978 = vadd.f32 %v211, %v1977
    %v1979 = vpop.f32.mrb[0].mxu0
    %v1980 = vadd.f32 %v215, %v1979
    %1981 = vmatprep.mubr.f32.mxu0 0.0
    %v1982 = vand.u32 %v59, 4294901760
    %v1983 = vsub.f32 %v59, %v1982
    %v1984 = vand.u32 %v1983, 4294901760
    %v1985 = vsub.f32 %v1983, %v1984
    %v1986 = vand.u32 %v1985, 4294901760
    %1987 = vmatmul.mubr.f32.gmra.mrb[0].mxu0 %v1986
    %v1988 = vpop.f32.mrb[0].mxu0
    %v1989 = vadd.f32 %v211, %v1988
    %v1990 = vpop.f32.mrb[0].mxu0
    %v1991 = vadd.f32 %v215, %v1990
    %1992 = vmatprep.mubr.f32.mxu0 0.0
    %v1993 = vand.u32 %v60, 4294901760
    %v1994 = vsub.f32 %v60, %v1993
    %v1995 = vand.u32 %v1994, 4294901760
    %v1996 = vsub.f32 %v1994, %v1995
    %v1997 = vand.u32 %v1996, 4294901760
    %1998 = vmatmul.mubr.f32.gmra.mrb[0].mxu0 %v1997
    %v1999 = vpop.f32.mrb[0].mxu0
    %v2000 = vadd.f32 %v211, %v1999
    %v2001 = vpop.f32.mrb[0].mxu0
    %v2002 = vadd.f32 %v215, %v2001
    %2003 = vmatprep.mubr.f32.mxu0 0.0
    %v2004 = vand.u32 %v61, 4294901760
    %v2005 = vsub.f32 %v61, %v2004
    %v2006 = vand.u32 %v2005, 4294901760
    %v2007 = vsub.f32 %v2005, %v2006
    %v2008 = vand.u32 %v2007, 4294901760
    %2009 = vmatmul.mubr.f32.gmra.mrb[0].mxu0 %v2008
    %v2010 = vpop.f32.mrb[0].mxu0
    %v2011 = vadd.f32 %v211, %v2010
    %v2012 = vpop.f32.mrb[0].mxu0
    %v2013 = vadd.f32 %v215, %v2012
    %2014 = vmatprep.mubr.f32.mxu0 0.0
    %v2015 = vand.u32 %v62, 4294901760
    %v2016 = vsub.f32 %v62, %v2015
    %v2017 = vand.u32 %v2016, 4294901760
    %v2018 = vsub.f32 %v2016, %v2017
    %v2019 = vand.u32 %v2018, 4294901760
    %2020 = vmatmul.mubr.f32.gmra.mrb[0].mxu0 %v2019
    %v2021 = vpop.f32.mrb[0].mxu0
    %v2022 = vadd.f32 %v211, %v2021
    %v2023 = vpop.f32.mrb[0].mxu0
    %v2024 = vadd.f32 %v215, %v2023
    %2025 = vmatprep.mubr.f32.mxu0 0.0
    %v2026 = vand.u32 %v63, 4294901760
    %v2027 = vsub.f32 %v63, %v2026
    %v2028 = vand.u32 %v2027, 4294901760
    %v2029 = vsub.f32 %v2027, %v2028
    %v2030 = vand.u32 %v2029, 4294901760
    %2031 = vmatmul.mubr.f32.gmra.mrb[0].mxu0 %v2030
    %v2032 = vpop.f32.mrb[0].mxu0
    %v2033 = vadd.f32 %v211, %v2032
    %v2034 = vpop.f32.mrb[0].mxu0
    %v2035 = vadd.f32 %v215, %v2034
    %2036 = vmatprep.mubr.f32.mxu0 0.0
    %v2037 = vand.u32 %v64, 4294901760
    %v2038 = vsub.f32 %v64, %v2037
    %v2039 = vand.u32 %v2038, 4294901760
    %v2040 = vsub.f32 %v2038, %v2039
    %v2041 = vand.u32 %v2040, 4294901760
    %2042 = vmatmul.mubr.f32.gmra.mrb[0].mxu0 %v2041
    %v2043 = vpop.f32.mrb[0].mxu0
    %v2044 = vadd.f32 %v211, %v2043
    %v2045 = vpop.f32.mrb[0].mxu0
    %v2046 = vadd.f32 %v215, %v2045
    %2047 = vmatprep.mubr.f32.mxu0 0.0
    %v2048 = vand.u32 %v65, 4294901760
    %v2049 = vsub.f32 %v65, %v2048
    %v2050 = vand.u32 %v2049, 4294901760
    %v2051 = vsub.f32 %v2049, %v2050
    %v2052 = vand.u32 %v2051, 4294901760
    %2053 = vmatmul.mubr.f32.gmra.mrb[0].mxu0 %v2052
    %v2054 = vpop.f32.mrb[0].mxu0
    %v2055 = vadd.f32 %v211, %v2054
    %v2056 = vpop.f32.mrb[0].mxu0
    %v2057 = vadd.f32 %v215, %v2056
    %2058 = vmatprep.mubr.f32.mxu0 0.0
    %v2059 = vand.u32 %v66, 4294901760
    %v2060 = vsub.f32 %v66, %v2059
    %v2061 = vand.u32 %v2060, 4294901760
    %v2062 = vsub.f32 %v2060, %v2061
    %v2063 = vand.u32 %v2062, 4294901760
    %2064 = vmatmul.mubr.f32.gmra.mrb[0].mxu0 %v2063
    %v2065 = vpop.f32.mrb[0].mxu0
    %v2066 = vadd.f32 %v211, %v2065
    %v2067 = vpop.f32.mrb[0].mxu0
    %v2068 = vadd.f32 %v215, %v2067
    %2069 = vmatprep.mubr.f32.mxu0 0.0
    %v2070 = vand.u32 %v67, 4294901760
    %v2071 = vsub.f32 %v67, %v2070
    %v2072 = vand.u32 %v2071, 4294901760
    %v2073 = vsub.f32 %v2071, %v2072
    %v2074 = vand.u32 %v2073, 4294901760
    %2075 = vmatmul.mubr.f32.gmra.mrb[0].mxu0 %v2074
    %v2076 = vpop.f32.mrb[0].mxu0
    %v2077 = vadd.f32 %v211, %v2076
    %v2078 = vpop.f32.mrb[0].mxu0
    %v2079 = vadd.f32 %v215, %v2078
    %2080 = vmatprep.mubr.f32.mxu0 0.0
    %v2081 = vand.u32 %v68, 4294901760
    %v2082 = vsub.f32 %v68, %v2081
    %v2083 = vand.u32 %v2082, 4294901760
    %v2084 = vsub.f32 %v2082, %v2083
    %v2085 = vand.u32 %v2084, 4294901760
    %2086 = vmatmul.mubr.f32.gmra.mrb[0].mxu0 %v2085
    %v2087 = vpop.f32.mrb[0].mxu0
    %v2088 = vadd.f32 %v211, %v2087
    %v2089 = vpop.f32.mrb[0].mxu0
    %v2090 = vadd.f32 %v215, %v2089
    %2091 = vmatprep.mubr.f32.mxu0 0.0
    %v2092 = vand.u32 %v69, 4294901760
    %v2093 = vsub.f32 %v69, %v2092
    %v2094 = vand.u32 %v2093, 4294901760
    %v2095 = vsub.f32 %v2093, %v2094
    %v2096 = vand.u32 %v2095, 4294901760
    %2097 = vmatmul.mubr.f32.gmra.mrb[0].mxu0 %v2096
    %v2098 = vpop.f32.mrb[0].mxu0
    %v2099 = vadd.f32 %v211, %v2098
    %v2100 = vpop.f32.mrb[0].mxu0
    %v2101 = vadd.f32 %v215, %v2100
    %2102 = vdwg.mxu0
    %v2103 = vand.u32 %v73, 4294901760
    %v2104 = vsub.f32 %v73, %v2103
    %v2105 = vand.u32 %v2104, 4294901760
    %v2106 = vsub.f32 %v2104, %v2105
    %v2107 = vand.u32 %v2106, 4294901760
    %2108 = vmatprep.subr.mxu0 %v2107
    %v2109 = vand.u32 %v72, 4294901760
    %v2110 = vsub.f32 %v72, %v2109
    %v2111 = vand.u32 %v2110, 4294901760
    %v2112 = vsub.f32 %v2110, %v2111
    %v2113 = vand.u32 %v2112, 4294901760
    %2114 = vmatpush1.msra.mxu0 %v2113
    %v2115 = vand.u32 %v81, 4294901760
    %v2116 = vsub.f32 %v81, %v2115
    %v2117 = vand.u32 %v2116, 4294901760
    %v2118 = vsub.f32 %v2116, %v2117
    %v2119 = vand.u32 %v2118, 4294901760
    %2120 = vmatprep.subr.mxu0 %v2119
    %v2121 = vand.u32 %v80, 4294901760
    %v2122 = vsub.f32 %v80, %v2121
    %v2123 = vand.u32 %v2122, 4294901760
    %v2124 = vsub.f32 %v2122, %v2123
    %v2125 = vand.u32 %v2124, 4294901760
    %2126 = vmatpush1.msra.mxu0 %v2125
    %v2127 = vand.u32 %v89, 4294901760
    %v2128 = vsub.f32 %v89, %v2127
    %v2129 = vand.u32 %v2128, 4294901760
    %v2130 = vsub.f32 %v2128, %v2129
    %v2131 = vand.u32 %v2130, 4294901760
    %2132 = vmatprep.subr.mxu0 %v2131
    %v2133 = vand.u32 %v88, 4294901760
    %v2134 = vsub.f32 %v88, %v2133
    %v2135 = vand.u32 %v2134, 4294901760
    %v2136 = vsub.f32 %v2134, %v2135
    %v2137 = vand.u32 %v2136, 4294901760
    %2138 = vmatpush1.msra.mxu0 %v2137
    %v2139 = vand.u32 %v97, 4294901760
    %v2140 = vsub.f32 %v97, %v2139
    %v2141 = vand.u32 %v2140, 4294901760
    %v2142 = vsub.f32 %v2140, %v2141
    %v2143 = vand.u32 %v2142, 4294901760
    %2144 = vmatprep.subr.mxu0 %v2143
    %v2145 = vand.u32 %v96, 4294901760
    %v2146 = vsub.f32 %v96, %v2145
    %v2147 = vand.u32 %v2146, 4294901760
    %v2148 = vsub.f32 %v2146, %v2147
    %v2149 = vand.u32 %v2148, 4294901760
    %2150 = vmatpush1.msra.mxu0 %v2149
    %v2151 = vand.u32 %v105, 4294901760
    %v2152 = vsub.f32 %v105, %v2151
    %v2153 = vand.u32 %v2152, 4294901760
    %v2154 = vsub.f32 %v2152, %v2153
    %v2155 = vand.u32 %v2154, 4294901760
    %2156 = vmatprep.subr.mxu0 %v2155
    %v2157 = vand.u32 %v104, 4294901760
    %v2158 = vsub.f32 %v104, %v2157
    %v2159 = vand.u32 %v2158, 4294901760
    %v2160 = vsub.f32 %v2158, %v2159
    %v2161 = vand.u32 %v2160, 4294901760
    %2162 = vmatpush1.msra.mxu0 %v2161
    %v2163 = vand.u32 %v113, 4294901760
    %v2164 = vsub.f32 %v113, %v2163
    %v2165 = vand.u32 %v2164, 4294901760
    %v2166 = vsub.f32 %v2164, %v2165
    %v2167 = vand.u32 %v2166, 4294901760
    %2168 = vmatprep.subr.mxu0 %v2167
    %v2169 = vand.u32 %v112, 4294901760
    %v2170 = vsub.f32 %v112, %v2169
    %v2171 = vand.u32 %v2170, 4294901760
    %v2172 = vsub.f32 %v2170, %v2171
    %v2173 = vand.u32 %v2172, 4294901760
    %2174 = vmatpush1.msra.mxu0 %v2173
    %v2175 = vand.u32 %v121, 4294901760
    %v2176 = vsub.f32 %v121, %v2175
    %v2177 = vand.u32 %v2176, 4294901760
    %v2178 = vsub.f32 %v2176, %v2177
    %v2179 = vand.u32 %v2178, 4294901760
    %2180 = vmatprep.subr.mxu0 %v2179
    %v2181 = vand.u32 %v120, 4294901760
    %v2182 = vsub.f32 %v120, %v2181
    %v2183 = vand.u32 %v2182, 4294901760
    %v2184 = vsub.f32 %v2182, %v2183
    %v2185 = vand.u32 %v2184, 4294901760
    %2186 = vmatpush1.msra.mxu0 %v2185
    %v2187 = vand.u32 %v129, 4294901760
    %v2188 = vsub.f32 %v129, %v2187
    %v2189 = vand.u32 %v2188, 4294901760
    %v2190 = vsub.f32 %v2188, %v2189
    %v2191 = vand.u32 %v2190, 4294901760
    %2192 = vmatprep.subr.mxu0 %v2191
    %v2193 = vand.u32 %v128, 4294901760
    %v2194 = vsub.f32 %v128, %v2193
    %v2195 = vand.u32 %v2194, 4294901760
    %v2196 = vsub.f32 %v2194, %v2195
    %v2197 = vand.u32 %v2196, 4294901760
    %2198 = vmatpush1.msra.mxu0 %v2197
    %v2199 = vand.u32 %v137, 4294901760
    %v2200 = vsub.f32 %v137, %v2199
    %v2201 = vand.u32 %v2200, 4294901760
    %v2202 = vsub.f32 %v2200, %v2201
    %v2203 = vand.u32 %v2202, 4294901760
    %2204 = vmatprep.subr.mxu0 %v2203
    %v2205 = vand.u32 %v136, 4294901760
    %v2206 = vsub.f32 %v136, %v2205
    %v2207 = vand.u32 %v2206, 4294901760
    %v2208 = vsub.f32 %v2206, %v2207
    %v2209 = vand.u32 %v2208, 4294901760
    %2210 = vmatpush1.msra.mxu0 %v2209
    %v2211 = vand.u32 %v145, 4294901760
    %v2212 = vsub.f32 %v145, %v2211
    %v2213 = vand.u32 %v2212, 4294901760
    %v2214 = vsub.f32 %v2212, %v2213
    %v2215 = vand.u32 %v2214, 4294901760
    %2216 = vmatprep.subr.mxu0 %v2215
    %v2217 = vand.u32 %v144, 4294901760
    %v2218 = vsub.f32 %v144, %v2217
    %v2219 = vand.u32 %v2218, 4294901760
    %v2220 = vsub.f32 %v2218, %v2219
    %v2221 = vand.u32 %v2220, 4294901760
    %2222 = vmatpush1.msra.mxu0 %v2221
    %v2223 = vand.u32 %v153, 4294901760
    %v2224 = vsub.f32 %v153, %v2223
    %v2225 = vand.u32 %v2224, 4294901760
    %v2226 = vsub.f32 %v2224, %v2225
    %v2227 = vand.u32 %v2226, 4294901760
    %2228 = vmatprep.subr.mxu0 %v2227
    %v2229 = vand.u32 %v152, 4294901760
    %v2230 = vsub.f32 %v152, %v2229
    %v2231 = vand.u32 %v2230, 4294901760
    %v2232 = vsub.f32 %v2230, %v2231
    %v2233 = vand.u32 %v2232, 4294901760
    %2234 = vmatpush1.msra.mxu0 %v2233
    %v2235 = vand.u32 %v161, 4294901760
    %v2236 = vsub.f32 %v161, %v2235
    %v2237 = vand.u32 %v2236, 4294901760
    %v2238 = vsub.f32 %v2236, %v2237
    %v2239 = vand.u32 %v2238, 4294901760
    %2240 = vmatprep.subr.mxu0 %v2239
    %v2241 = vand.u32 %v160, 4294901760
    %v2242 = vsub.f32 %v160, %v2241
    %v2243 = vand.u32 %v2242, 4294901760
    %v2244 = vsub.f32 %v2242, %v2243
    %v2245 = vand.u32 %v2244, 4294901760
    %2246 = vmatpush1.msra.mxu0 %v2245
    %v2247 = vand.u32 %v169, 4294901760
    %v2248 = vsub.f32 %v169, %v2247
    %v2249 = vand.u32 %v2248, 4294901760
    %v2250 = vsub.f32 %v2248, %v2249
    %v2251 = vand.u32 %v2250, 4294901760
    %2252 = vmatprep.subr.mxu0 %v2251
    %v2253 = vand.u32 %v168, 4294901760
    %v2254 = vsub.f32 %v168, %v2253
    %v2255 = vand.u32 %v2254, 4294901760
    %v2256 = vsub.f32 %v2254, %v2255
    %v2257 = vand.u32 %v2256, 4294901760
    %2258 = vmatpush1.msra.mxu0 %v2257
    %v2259 = vand.u32 %v177, 4294901760
    %v2260 = vsub.f32 %v177, %v2259
    %v2261 = vand.u32 %v2260, 4294901760
    %v2262 = vsub.f32 %v2260, %v2261
    %v2263 = vand.u32 %v2262, 4294901760
    %2264 = vmatprep.subr.mxu0 %v2263
    %v2265 = vand.u32 %v176, 4294901760
    %v2266 = vsub.f32 %v176, %v2265
    %v2267 = vand.u32 %v2266, 4294901760
    %v2268 = vsub.f32 %v2266, %v2267
    %v2269 = vand.u32 %v2268, 4294901760
    %2270 = vmatpush1.msra.mxu0 %v2269
    %v2271 = vand.u32 %v185, 4294901760
    %v2272 = vsub.f32 %v185, %v2271
    %v2273 = vand.u32 %v2272, 4294901760
    %v2274 = vsub.f32 %v2272, %v2273
    %v2275 = vand.u32 %v2274, 4294901760
    %2276 = vmatprep.subr.mxu0 %v2275
    %v2277 = vand.u32 %v184, 4294901760
    %v2278 = vsub.f32 %v184, %v2277
    %v2279 = vand.u32 %v2278, 4294901760
    %v2280 = vsub.f32 %v2278, %v2279
    %v2281 = vand.u32 %v2280, 4294901760
    %2282 = vmatpush1.msra.mxu0 %v2281
    %v2283 = vand.u32 %v193, 4294901760
    %v2284 = vsub.f32 %v193, %v2283
    %v2285 = vand.u32 %v2284, 4294901760
    %v2286 = vsub.f32 %v2284, %v2285
    %v2287 = vand.u32 %v2286, 4294901760
    %2288 = vmatprep.subr.mxu0 %v2287
    %v2289 = vand.u32 %v192, 4294901760
    %v2290 = vsub.f32 %v192, %v2289
    %v2291 = vand.u32 %v2290, 4294901760
    %v2292 = vsub.f32 %v2290, %v2291
    %v2293 = vand.u32 %v2292, 4294901760
    %2294 = vmatpush1.msra.mxu0 %v2293
    %2295 = vmatprep.subr.mxu0 0.0
    %2296 = vmatpush1.msra.mxu0 0.0
    %2297 = vmatprep.subr.mxu0 0.0
    %2298 = vmatpush1.msra.mxu0 0.0
    %2299 = vmatprep.subr.mxu0 0.0
    %2300 = vmatpush1.msra.mxu0 0.0
    %2301 = vmatprep.subr.mxu0 0.0
    %2302 = vmatpush1.msra.mxu0 0.0
    %2303 = vmatprep.subr.mxu0 0.0
    %2304 = vmatpush1.msra.mxu0 0.0
    %2305 = vmatprep.subr.mxu0 0.0
    %2306 = vmatpush1.msra.mxu0 0.0
    %2307 = vmatprep.subr.mxu0 0.0
    %2308 = vmatpush1.msra.mxu0 0.0
    %2309 = vmatprep.subr.mxu0 0.0
    %2310 = vmatpush1.msra.mxu0 0.0
    %2311 = vmatprep.subr.mxu0 0.0
    %2312 = vmatpush1.msra.mxu0 0.0
    %2313 = vmatprep.subr.mxu0 0.0
    %2314 = vmatpush1.msra.mxu0 0.0
    %2315 = vmatprep.subr.mxu0 0.0
    %2316 = vmatpush1.msra.mxu0 0.0
    %2317 = vmatprep.subr.mxu0 0.0
    %2318 = vmatpush1.msra.mxu0 0.0
    %2319 = vmatprep.subr.mxu0 0.0
    %2320 = vmatpush1.msra.mxu0 0.0
    %2321 = vmatprep.subr.mxu0 0.0
    %2322 = vmatpush1.msra.mxu0 0.0
    %2323 = vmatprep.subr.mxu0 0.0
    %2324 = vmatpush1.msra.mxu0 0.0
    %2325 = vmatprep.subr.mxu0 0.0
    %2326 = vmatpush1.msra.mxu0 0.0
    %2327 = vmatprep.mubr.f32.mxu0 0.0
    %v2328 = vand.u32 %v54, 4294901760
    %2329 = vmatmul.mubr.f32.gmra.mrb[0].mxu0 %v2328
    %v2330 = vpop.f32.mrb[0].mxu0
    %v2331 = vadd.f32 %v1934, %v2330
    %v2332 = vpop.f32.mrb[0].mxu0
    %v2333 = vadd.f32 %v1936, %v2332
    %2334 = vmatprep.mubr.f32.mxu0 0.0
    %v2335 = vand.u32 %v55, 4294901760
    %2336 = vmatmul.mubr.f32.gmra.mrb[0].mxu0 %v2335
    %v2337 = vpop.f32.mrb[0].mxu0
    %v2338 = vadd.f32 %v1945, %v2337
    %v2339 = vpop.f32.mrb[0].mxu0
    %v2340 = vadd.f32 %v1947, %v2339
    %2341 = vmatprep.mubr.f32.mxu0 0.0
    %v2342 = vand.u32 %v56, 4294901760
    %2343 = vmatmul.mubr.f32.gmra.mrb[0].mxu0 %v2342
    %v2344 = vpop.f32.mrb[0].mxu0
    %v2345 = vadd.f32 %v1956, %v2344
    %v2346 = vpop.f32.mrb[0].mxu0
    %v2347 = vadd.f32 %v1958, %v2346
    %2348 = vmatprep.mubr.f32.mxu0 0.0
    %v2349 = vand.u32 %v57, 4294901760
    %2350 = vmatmul.mubr.f32.gmra.mrb[0].mxu0 %v2349
    %v2351 = vpop.f32.mrb[0].mxu0
    %v2352 = vadd.f32 %v1967, %v2351
    %v2353 = vpop.f32.mrb[0].mxu0
    %v2354 = vadd.f32 %v1969, %v2353
    %2355 = vmatprep.mubr.f32.mxu0 0.0
    %v2356 = vand.u32 %v58, 4294901760
    %2357 = vmatmul.mubr.f32.gmra.mrb[0].mxu0 %v2356
    %v2358 = vpop.f32.mrb[0].mxu0
    %v2359 = vadd.f32 %v1978, %v2358
    %v2360 = vpop.f32.mrb[0].mxu0
    %v2361 = vadd.f32 %v1980, %v2360
    %2362 = vmatprep.mubr.f32.mxu0 0.0
    %v2363 = vand.u32 %v59, 4294901760
    %2364 = vmatmul.mubr.f32.gmra.mrb[0].mxu0 %v2363
    %v2365 = vpop.f32.mrb[0].mxu0
    %v2366 = vadd.f32 %v1989, %v2365
    %v2367 = vpop.f32.mrb[0].mxu0
    %v2368 = vadd.f32 %v1991, %v2367
    %2369 = vmatprep.mubr.f32.mxu0 0.0
    %v2370 = vand.u32 %v60, 4294901760
    %2371 = vmatmul.mubr.f32.gmra.mrb[0].mxu0 %v2370
    %v2372 = vpop.f32.mrb[0].mxu0
    %v2373 = vadd.f32 %v2000, %v2372
    %v2374 = vpop.f32.mrb[0].mxu0
    %v2375 = vadd.f32 %v2002, %v2374
    %2376 = vmatprep.mubr.f32.mxu0 0.0
    %v2377 = vand.u32 %v61, 4294901760
    %2378 = vmatmul.mubr.f32.gmra.mrb[0].mxu0 %v2377
    %v2379 = vpop.f32.mrb[0].mxu0
    %v2380 = vadd.f32 %v2011, %v2379
    %v2381 = vpop.f32.mrb[0].mxu0
    %v2382 = vadd.f32 %v2013, %v2381
    %2383 = vmatprep.mubr.f32.mxu0 0.0
    %v2384 = vand.u32 %v62, 4294901760
    %2385 = vmatmul.mubr.f32.gmra.mrb[0].mxu0 %v2384
    %v2386 = vpop.f32.mrb[0].mxu0
    %v2387 = vadd.f32 %v2022, %v2386
    %v2388 = vpop.f32.mrb[0].mxu0
    %v2389 = vadd.f32 %v2024, %v2388
    %2390 = vmatprep.mubr.f32.mxu0 0.0
    %v2391 = vand.u32 %v63, 4294901760
    %2392 = vmatmul.mubr.f32.gmra.mrb[0].mxu0 %v2391
    %v2393 = vpop.f32.mrb[0].mxu0
    %v2394 = vadd.f32 %v2033, %v2393
    %v2395 = vpop.f32.mrb[0].mxu0
    %v2396 = vadd.f32 %v2035, %v2395
    %2397 = vmatprep.mubr.f32.mxu0 0.0
    %v2398 = vand.u32 %v64, 4294901760
    %2399 = vmatmul.mubr.f32.gmra.mrb[0].mxu0 %v2398
    %v2400 = vpop.f32.mrb[0].mxu0
    %v2401 = vadd.f32 %v2044, %v2400
    %v2402 = vpop.f32.mrb[0].mxu0
    %v2403 = vadd.f32 %v2046, %v2402
    %2404 = vmatprep.mubr.f32.mxu0 0.0
    %v2405 = vand.u32 %v65, 4294901760
    %2406 = vmatmul.mubr.f32.gmra.mrb[0].mxu0 %v2405
    %v2407 = vpop.f32.mrb[0].mxu0
    %v2408 = vadd.f32 %v2055, %v2407
    %v2409 = vpop.f32.mrb[0].mxu0
    %v2410 = vadd.f32 %v2057, %v2409
    %2411 = vmatprep.mubr.f32.mxu0 0.0
    %v2412 = vand.u32 %v66, 4294901760
    %2413 = vmatmul.mubr.f32.gmra.mrb[0].mxu0 %v2412
    %v2414 = vpop.f32.mrb[0].mxu0
    %v2415 = vadd.f32 %v2066, %v2414
    %v2416 = vpop.f32.mrb[0].mxu0
    %v2417 = vadd.f32 %v2068, %v2416
    %2418 = vmatprep.mubr.f32.mxu0 0.0
    %v2419 = vand.u32 %v67, 4294901760
    %2420 = vmatmul.mubr.f32.gmra.mrb[0].mxu0 %v2419
    %v2421 = vpop.f32.mrb[0].mxu0
    %v2422 = vadd.f32 %v2077, %v2421
    %v2423 = vpop.f32.mrb[0].mxu0
    %v2424 = vadd.f32 %v2079, %v2423
    %2425 = vmatprep.mubr.f32.mxu0 0.0
    %v2426 = vand.u32 %v68, 4294901760
    %2427 = vmatmul.mubr.f32.gmra.mrb[0].mxu0 %v2426
    %v2428 = vpop.f32.mrb[0].mxu0
    %v2429 = vadd.f32 %v2088, %v2428
    %v2430 = vpop.f32.mrb[0].mxu0
    %v2431 = vadd.f32 %v2090, %v2430
    %2432 = vmatprep.mubr.f32.mxu0 0.0
    %v2433 = vand.u32 %v69, 4294901760
    %2434 = vmatmul.mubr.f32.gmra.mrb[0].mxu0 %v2433
    %v2435 = vpop.f32.mrb[0].mxu0
    %v2436 = vadd.f32 %v2099, %v2435
    %v2437 = vpop.f32.mrb[0].mxu0
    %v2438 = vadd.f32 %v2101, %v2437
    %2439 = vdwg.mxu0
    %v2440 = vand.u32 %v73, 4294901760
    %v2441 = vsub.f32 %v73, %v2440
    %2442 = vmatprep.subr.mxu0 %v2441
    %v2443 = vand.u32 %v72, 4294901760
    %v2444 = vsub.f32 %v72, %v2443
    %2445 = vmatpush1.msra.mxu0 %v2444
    %v2446 = vand.u32 %v81, 4294901760
    %v2447 = vsub.f32 %v81, %v2446
    %2448 = vmatprep.subr.mxu0 %v2447
    %v2449 = vand.u32 %v80, 4294901760
    %v2450 = vsub.f32 %v80, %v2449
    %2451 = vmatpush1.msra.mxu0 %v2450
    %v2452 = vand.u32 %v89, 4294901760
    %v2453 = vsub.f32 %v89, %v2452
    %2454 = vmatprep.subr.mxu0 %v2453
    %v2455 = vand.u32 %v88, 4294901760
    %v2456 = vsub.f32 %v88, %v2455
    %2457 = vmatpush1.msra.mxu0 %v2456
    %v2458 = vand.u32 %v97, 4294901760
    %v2459 = vsub.f32 %v97, %v2458
    %2460 = vmatprep.subr.mxu0 %v2459
    %v2461 = vand.u32 %v96, 4294901760
    %v2462 = vsub.f32 %v96, %v2461
    %2463 = vmatpush1.msra.mxu0 %v2462
    %v2464 = vand.u32 %v105, 4294901760
    %v2465 = vsub.f32 %v105, %v2464
    %2466 = vmatprep.subr.mxu0 %v2465
    %v2467 = vand.u32 %v104, 4294901760
    %v2468 = vsub.f32 %v104, %v2467
    %2469 = vmatpush1.msra.mxu0 %v2468
    %v2470 = vand.u32 %v113, 4294901760
    %v2471 = vsub.f32 %v113, %v2470
    %2472 = vmatprep.subr.mxu0 %v2471
    %v2473 = vand.u32 %v112, 4294901760
    %v2474 = vsub.f32 %v112, %v2473
    %2475 = vmatpush1.msra.mxu0 %v2474
    %v2476 = vand.u32 %v121, 4294901760
    %v2477 = vsub.f32 %v121, %v2476
    %2478 = vmatprep.subr.mxu0 %v2477
    %v2479 = vand.u32 %v120, 4294901760
    %v2480 = vsub.f32 %v120, %v2479
    %2481 = vmatpush1.msra.mxu0 %v2480
    %v2482 = vand.u32 %v129, 4294901760
    %v2483 = vsub.f32 %v129, %v2482
    %2484 = vmatprep.subr.mxu0 %v2483
    %v2485 = vand.u32 %v128, 4294901760
    %v2486 = vsub.f32 %v128, %v2485
    %2487 = vmatpush1.msra.mxu0 %v2486
    %v2488 = vand.u32 %v137, 4294901760
    %v2489 = vsub.f32 %v137, %v2488
    %2490 = vmatprep.subr.mxu0 %v2489
    %v2491 = vand.u32 %v136, 4294901760
    %v2492 = vsub.f32 %v136, %v2491
    %2493 = vmatpush1.msra.mxu0 %v2492
    %v2494 = vand.u32 %v145, 4294901760
    %v2495 = vsub.f32 %v145, %v2494
    %2496 = vmatprep.subr.mxu0 %v2495
    %v2497 = vand.u32 %v144, 4294901760
    %v2498 = vsub.f32 %v144, %v2497
    %2499 = vmatpush1.msra.mxu0 %v2498
    %v2500 = vand.u32 %v153, 4294901760
    %v2501 = vsub.f32 %v153, %v2500
    %2502 = vmatprep.subr.mxu0 %v2501
    %v2503 = vand.u32 %v152, 4294901760
    %v2504 = vsub.f32 %v152, %v2503
    %2505 = vmatpush1.msra.mxu0 %v2504
    %v2506 = vand.u32 %v161, 4294901760
    %v2507 = vsub.f32 %v161, %v2506
    %2508 = vmatprep.subr.mxu0 %v2507
    %v2509 = vand.u32 %v160, 4294901760
    %v2510 = vsub.f32 %v160, %v2509
    %2511 = vmatpush1.msra.mxu0 %v2510
    %v2512 = vand.u32 %v169, 4294901760
    %v2513 = vsub.f32 %v169, %v2512
    %2514 = vmatprep.subr.mxu0 %v2513
    %v2515 = vand.u32 %v168, 4294901760
    %v2516 = vsub.f32 %v168, %v2515
    %2517 = vmatpush1.msra.mxu0 %v2516
    %v2518 = vand.u32 %v177, 4294901760
    %v2519 = vsub.f32 %v177, %v2518
    %2520 = vmatprep.subr.mxu0 %v2519
    %v2521 = vand.u32 %v176, 4294901760
    %v2522 = vsub.f32 %v176, %v2521
    %2523 = vmatpush1.msra.mxu0 %v2522
    %v2524 = vand.u32 %v185, 4294901760
    %v2525 = vsub.f32 %v185, %v2524
    %2526 = vmatprep.subr.mxu0 %v2525
    %v2527 = vand.u32 %v184, 4294901760
    %v2528 = vsub.f32 %v184, %v2527
    %2529 = vmatpush1.msra.mxu0 %v2528
    %v2530 = vand.u32 %v193, 4294901760
    %v2531 = vsub.f32 %v193, %v2530
    %2532 = vmatprep.subr.mxu0 %v2531
    %v2533 = vand.u32 %v192, 4294901760
    %v2534 = vsub.f32 %v192, %v2533
    %2535 = vmatpush1.msra.mxu0 %v2534
    %2536 = vmatprep.subr.mxu0 0.0
    %2537 = vmatpush1.msra.mxu0 0.0
    %2538 = vmatprep.subr.mxu0 0.0
    %2539 = vmatpush1.msra.mxu0 0.0
    %2540 = vmatprep.subr.mxu0 0.0
    %2541 = vmatpush1.msra.mxu0 0.0
    %2542 = vmatprep.subr.mxu0 0.0
    %2543 = vmatpush1.msra.mxu0 0.0
    %2544 = vmatprep.subr.mxu0 0.0
    %2545 = vmatpush1.msra.mxu0 0.0
    %2546 = vmatprep.subr.mxu0 0.0
    %2547 = vmatpush1.msra.mxu0 0.0
    %2548 = vmatprep.subr.mxu0 0.0
    %2549 = vmatpush1.msra.mxu0 0.0
    %2550 = vmatprep.subr.mxu0 0.0
    %2551 = vmatpush1.msra.mxu0 0.0
    %2552 = vmatprep.subr.mxu0 0.0
    %2553 = vmatpush1.msra.mxu0 0.0
    %2554 = vmatprep.subr.mxu0 0.0
    %2555 = vmatpush1.msra.mxu0 0.0
    %2556 = vmatprep.subr.mxu0 0.0
    %2557 = vmatpush1.msra.mxu0 0.0
    %2558 = vmatprep.subr.mxu0 0.0
    %2559 = vmatpush1.msra.mxu0 0.0
    %2560 = vmatprep.subr.mxu0 0.0
    %2561 = vmatpush1.msra.mxu0 0.0
    %2562 = vmatprep.subr.mxu0 0.0
    %2563 = vmatpush1.msra.mxu0 0.0
    %2564 = vmatprep.subr.mxu0 0.0
    %2565 = vmatpush1.msra.mxu0 0.0
    %2566 = vmatprep.subr.mxu0 0.0
    %2567 = vmatpush1.msra.mxu0 0.0
    %2568 = vmatprep.mubr.f32.mxu0 0.0
    %v2569 = vand.u32 %v54, 4294901760
    %v2570 = vsub.f32 %v54, %v2569
    %2571 = vmatmul.mubr.f32.gmra.mrb[0].mxu0 %v2570
    %v2572 = vpop.f32.mrb[0].mxu0
    %v2573 = vadd.f32 %v2331, %v2572
    %v2574 = vpop.f32.mrb[0].mxu0
    %v2575 = vadd.f32 %v2333, %v2574
    %2576 = vmatprep.mubr.f32.mxu0 0.0
    %v2577 = vand.u32 %v55, 4294901760
    %v2578 = vsub.f32 %v55, %v2577
    %2579 = vmatmul.mubr.f32.gmra.mrb[0].mxu0 %v2578
    %v2580 = vpop.f32.mrb[0].mxu0
    %v2581 = vadd.f32 %v2338, %v2580
    %v2582 = vpop.f32.mrb[0].mxu0
    %v2583 = vadd.f32 %v2340, %v2582
    %2584 = vmatprep.mubr.f32.mxu0 0.0
    %v2585 = vand.u32 %v56, 4294901760
    %v2586 = vsub.f32 %v56, %v2585
    %2587 = vmatmul.mubr.f32.gmra.mrb[0].mxu0 %v2586
    %v2588 = vpop.f32.mrb[0].mxu0
    %v2589 = vadd.f32 %v2345, %v2588
    %v2590 = vpop.f32.mrb[0].mxu0
    %v2591 = vadd.f32 %v2347, %v2590
    %2592 = vmatprep.mubr.f32.mxu0 0.0
    %v2593 = vand.u32 %v57, 4294901760
    %v2594 = vsub.f32 %v57, %v2593
    %2595 = vmatmul.mubr.f32.gmra.mrb[0].mxu0 %v2594
    %v2596 = vpop.f32.mrb[0].mxu0
    %v2597 = vadd.f32 %v2352, %v2596
    %v2598 = vpop.f32.mrb[0].mxu0
    %v2599 = vadd.f32 %v2354, %v2598
    %2600 = vmatprep.mubr.f32.mxu0 0.0
    %v2601 = vand.u32 %v58, 4294901760
    %v2602 = vsub.f32 %v58, %v2601
    %2603 = vmatmul.mubr.f32.gmra.mrb[0].mxu0 %v2602
    %v2604 = vpop.f32.mrb[0].mxu0
    %v2605 = vadd.f32 %v2359, %v2604
    %v2606 = vpop.f32.mrb[0].mxu0
    %v2607 = vadd.f32 %v2361, %v2606
    %2608 = vmatprep.mubr.f32.mxu0 0.0
    %v2609 = vand.u32 %v59, 4294901760
    %v2610 = vsub.f32 %v59, %v2609
    %2611 = vmatmul.mubr.f32.gmra.mrb[0].mxu0 %v2610
    %v2612 = vpop.f32.mrb[0].mxu0
    %v2613 = vadd.f32 %v2366, %v2612
    %v2614 = vpop.f32.mrb[0].mxu0
    %v2615 = vadd.f32 %v2368, %v2614
    %2616 = vmatprep.mubr.f32.mxu0 0.0
    %v2617 = vand.u32 %v60, 4294901760
    %v2618 = vsub.f32 %v60, %v2617
    %2619 = vmatmul.mubr.f32.gmra.mrb[0].mxu0 %v2618
    %v2620 = vpop.f32.mrb[0].mxu0
    %v2621 = vadd.f32 %v2373, %v2620
    %v2622 = vpop.f32.mrb[0].mxu0
    %v2623 = vadd.f32 %v2375, %v2622
    %2624 = vmatprep.mubr.f32.mxu0 0.0
    %v2625 = vand.u32 %v61, 4294901760
    %v2626 = vsub.f32 %v61, %v2625
    %2627 = vmatmul.mubr.f32.gmra.mrb[0].mxu0 %v2626
    %v2628 = vpop.f32.mrb[0].mxu0
    %v2629 = vadd.f32 %v2380, %v2628
    %v2630 = vpop.f32.mrb[0].mxu0
    %v2631 = vadd.f32 %v2382, %v2630
    %2632 = vmatprep.mubr.f32.mxu0 0.0
    %v2633 = vand.u32 %v62, 4294901760
    %v2634 = vsub.f32 %v62, %v2633
    %2635 = vmatmul.mubr.f32.gmra.mrb[0].mxu0 %v2634
    %v2636 = vpop.f32.mrb[0].mxu0
    %v2637 = vadd.f32 %v2387, %v2636
    %v2638 = vpop.f32.mrb[0].mxu0
    %v2639 = vadd.f32 %v2389, %v2638
    %2640 = vmatprep.mubr.f32.mxu0 0.0
    %v2641 = vand.u32 %v63, 4294901760
    %v2642 = vsub.f32 %v63, %v2641
    %2643 = vmatmul.mubr.f32.gmra.mrb[0].mxu0 %v2642
    %v2644 = vpop.f32.mrb[0].mxu0
    %v2645 = vadd.f32 %v2394, %v2644
    %v2646 = vpop.f32.mrb[0].mxu0
    %v2647 = vadd.f32 %v2396, %v2646
    %2648 = vmatprep.mubr.f32.mxu0 0.0
    %v2649 = vand.u32 %v64, 4294901760
    %v2650 = vsub.f32 %v64, %v2649
    %2651 = vmatmul.mubr.f32.gmra.mrb[0].mxu0 %v2650
    %v2652 = vpop.f32.mrb[0].mxu0
    %v2653 = vadd.f32 %v2401, %v2652
    %v2654 = vpop.f32.mrb[0].mxu0
    %v2655 = vadd.f32 %v2403, %v2654
    %2656 = vmatprep.mubr.f32.mxu0 0.0
    %v2657 = vand.u32 %v65, 4294901760
    %v2658 = vsub.f32 %v65, %v2657
    %2659 = vmatmul.mubr.f32.gmra.mrb[0].mxu0 %v2658
    %v2660 = vpop.f32.mrb[0].mxu0
    %v2661 = vadd.f32 %v2408, %v2660
    %v2662 = vpop.f32.mrb[0].mxu0
    %v2663 = vadd.f32 %v2410, %v2662
    %2664 = vmatprep.mubr.f32.mxu0 0.0
    %v2665 = vand.u32 %v66, 4294901760
    %v2666 = vsub.f32 %v66, %v2665
    %2667 = vmatmul.mubr.f32.gmra.mrb[0].mxu0 %v2666
    %v2668 = vpop.f32.mrb[0].mxu0
    %v2669 = vadd.f32 %v2415, %v2668
    %v2670 = vpop.f32.mrb[0].mxu0
    %v2671 = vadd.f32 %v2417, %v2670
    %2672 = vmatprep.mubr.f32.mxu0 0.0
    %v2673 = vand.u32 %v67, 4294901760
    %v2674 = vsub.f32 %v67, %v2673
    %2675 = vmatmul.mubr.f32.gmra.mrb[0].mxu0 %v2674
    %v2676 = vpop.f32.mrb[0].mxu0
    %v2677 = vadd.f32 %v2422, %v2676
    %v2678 = vpop.f32.mrb[0].mxu0
    %v2679 = vadd.f32 %v2424, %v2678
    %2680 = vmatprep.mubr.f32.mxu0 0.0
    %v2681 = vand.u32 %v68, 4294901760
    %v2682 = vsub.f32 %v68, %v2681
    %2683 = vmatmul.mubr.f32.gmra.mrb[0].mxu0 %v2682
    %v2684 = vpop.f32.mrb[0].mxu0
    %v2685 = vadd.f32 %v2429, %v2684
    %v2686 = vpop.f32.mrb[0].mxu0
    %v2687 = vadd.f32 %v2431, %v2686
    %2688 = vmatprep.mubr.f32.mxu0 0.0
    %v2689 = vand.u32 %v69, 4294901760
    %v2690 = vsub.f32 %v69, %v2689
    %2691 = vmatmul.mubr.f32.gmra.mrb[0].mxu0 %v2690
    %v2692 = vpop.f32.mrb[0].mxu0
    %v2693 = vadd.f32 %v2436, %v2692
    %v2694 = vpop.f32.mrb[0].mxu0
    %v2695 = vadd.f32 %v2438, %v2694
    %2696 = vdwg.mxu0
    %v2697 = vand.u32 %v73, 4294901760
    %2698 = vmatprep.subr.mxu0 %v2697
    %v2699 = vand.u32 %v72, 4294901760
    %2700 = vmatpush1.msra.mxu0 %v2699
    %v2701 = vand.u32 %v81, 4294901760
    %2702 = vmatprep.subr.mxu0 %v2701
    %v2703 = vand.u32 %v80, 4294901760
    %2704 = vmatpush1.msra.mxu0 %v2703
    %v2705 = vand.u32 %v89, 4294901760
    %2706 = vmatprep.subr.mxu0 %v2705
    %v2707 = vand.u32 %v88, 4294901760
    %2708 = vmatpush1.msra.mxu0 %v2707
    %v2709 = vand.u32 %v97, 4294901760
    %2710 = vmatprep.subr.mxu0 %v2709
    %v2711 = vand.u32 %v96, 4294901760
    %2712 = vmatpush1.msra.mxu0 %v2711
    %v2713 = vand.u32 %v105, 4294901760
    %2714 = vmatprep.subr.mxu0 %v2713
    %v2715 = vand.u32 %v104, 4294901760
    %2716 = vmatpush1.msra.mxu0 %v2715
    %v2717 = vand.u32 %v113, 4294901760
    %2718 = vmatprep.subr.mxu0 %v2717
    %v2719 = vand.u32 %v112, 4294901760
    %2720 = vmatpush1.msra.mxu0 %v2719
    %v2721 = vand.u32 %v121, 4294901760
    %2722 = vmatprep.subr.mxu0 %v2721
    %v2723 = vand.u32 %v120, 4294901760
    %2724 = vmatpush1.msra.mxu0 %v2723
    %v2725 = vand.u32 %v129, 4294901760
    %2726 = vmatprep.subr.mxu0 %v2725
    %v2727 = vand.u32 %v128, 4294901760
    %2728 = vmatpush1.msra.mxu0 %v2727
    %v2729 = vand.u32 %v137, 4294901760
    %2730 = vmatprep.subr.mxu0 %v2729
    %v2731 = vand.u32 %v136, 4294901760
    %2732 = vmatpush1.msra.mxu0 %v2731
    %v2733 = vand.u32 %v145, 4294901760
    %2734 = vmatprep.subr.mxu0 %v2733
    %v2735 = vand.u32 %v144, 4294901760
    %2736 = vmatpush1.msra.mxu0 %v2735
    %v2737 = vand.u32 %v153, 4294901760
    %2738 = vmatprep.subr.mxu0 %v2737
    %v2739 = vand.u32 %v152, 4294901760
    %2740 = vmatpush1.msra.mxu0 %v2739
    %v2741 = vand.u32 %v161, 4294901760
    %2742 = vmatprep.subr.mxu0 %v2741
    %v2743 = vand.u32 %v160, 4294901760
    %2744 = vmatpush1.msra.mxu0 %v2743
    %v2745 = vand.u32 %v169, 4294901760
    %2746 = vmatprep.subr.mxu0 %v2745
    %v2747 = vand.u32 %v168, 4294901760
    %2748 = vmatpush1.msra.mxu0 %v2747
    %v2749 = vand.u32 %v177, 4294901760
    %2750 = vmatprep.subr.mxu0 %v2749
    %v2751 = vand.u32 %v176, 4294901760
    %2752 = vmatpush1.msra.mxu0 %v2751
    %v2753 = vand.u32 %v185, 4294901760
    %2754 = vmatprep.subr.mxu0 %v2753
    %v2755 = vand.u32 %v184, 4294901760
    %2756 = vmatpush1.msra.mxu0 %v2755
    %v2757 = vand.u32 %v193, 4294901760
    %2758 = vmatprep.subr.mxu0 %v2757
    %v2759 = vand.u32 %v192, 4294901760
    %2760 = vmatpush1.msra.mxu0 %v2759
    %2761 = vmatprep.subr.mxu0 0.0
    %2762 = vmatpush1.msra.mxu0 0.0
    %2763 = vmatprep.subr.mxu0 0.0
    %2764 = vmatpush1.msra.mxu0 0.0
    %2765 = vmatprep.subr.mxu0 0.0
    %2766 = vmatpush1.msra.mxu0 0.0
    %2767 = vmatprep.subr.mxu0 0.0
    %2768 = vmatpush1.msra.mxu0 0.0
    %2769 = vmatprep.subr.mxu0 0.0
    %2770 = vmatpush1.msra.mxu0 0.0
    %2771 = vmatprep.subr.mxu0 0.0
    %2772 = vmatpush1.msra.mxu0 0.0
    %2773 = vmatprep.subr.mxu0 0.0
    %2774 = vmatpush1.msra.mxu0 0.0
    %2775 = vmatprep.subr.mxu0 0.0
    %2776 = vmatpush1.msra.mxu0 0.0
    %2777 = vmatprep.subr.mxu0 0.0
    %2778 = vmatpush1.msra.mxu0 0.0
    %2779 = vmatprep.subr.mxu0 0.0
    %2780 = vmatpush1.msra.mxu0 0.0
    %2781 = vmatprep.subr.mxu0 0.0
    %2782 = vmatpush1.msra.mxu0 0.0
    %2783 = vmatprep.subr.mxu0 0.0
    %2784 = vmatpush1.msra.mxu0 0.0
    %2785 = vmatprep.subr.mxu0 0.0
    %2786 = vmatpush1.msra.mxu0 0.0
    %2787 = vmatprep.subr.mxu0 0.0
    %2788 = vmatpush1.msra.mxu0 0.0
    %2789 = vmatprep.subr.mxu0 0.0
    %2790 = vmatpush1.msra.mxu0 0.0
    %2791 = vmatprep.subr.mxu0 0.0
    %2792 = vmatpush1.msra.mxu0 0.0
    %2793 = vmatprep.mubr.f32.mxu0 0.0
    %v2794 = vand.u32 %v54, 4294901760
    %v2795 = vsub.f32 %v54, %v2794
    %v2796 = vand.u32 %v2795, 4294901760
    %2797 = vmatmul.mubr.f32.gmra.mrb[0].mxu0 %v2796
    %v2798 = vpop.f32.mrb[0].mxu0
    %v2799 = vadd.f32 %v2573, %v2798
    %v2800 = vpop.f32.mrb[0].mxu0
    %v2801 = vadd.f32 %v2575, %v2800
    %2802 = vmatprep.mubr.f32.mxu0 0.0
    %v2803 = vand.u32 %v55, 4294901760
    %v2804 = vsub.f32 %v55, %v2803
    %v2805 = vand.u32 %v2804, 4294901760
    %2806 = vmatmul.mubr.f32.gmra.mrb[0].mxu0 %v2805
    %v2807 = vpop.f32.mrb[0].mxu0
    %v2808 = vadd.f32 %v2581, %v2807
    %v2809 = vpop.f32.mrb[0].mxu0
    %v2810 = vadd.f32 %v2583, %v2809
    %2811 = vmatprep.mubr.f32.mxu0 0.0
    %v2812 = vand.u32 %v56, 4294901760
    %v2813 = vsub.f32 %v56, %v2812
    %v2814 = vand.u32 %v2813, 4294901760
    %2815 = vmatmul.mubr.f32.gmra.mrb[0].mxu0 %v2814
    %v2816 = vpop.f32.mrb[0].mxu0
    %v2817 = vadd.f32 %v2589, %v2816
    %v2818 = vpop.f32.mrb[0].mxu0
    %v2819 = vadd.f32 %v2591, %v2818
    %2820 = vmatprep.mubr.f32.mxu0 0.0
    %v2821 = vand.u32 %v57, 4294901760
    %v2822 = vsub.f32 %v57, %v2821
    %v2823 = vand.u32 %v2822, 4294901760
    %2824 = vmatmul.mubr.f32.gmra.mrb[0].mxu0 %v2823
    %v2825 = vpop.f32.mrb[0].mxu0
    %v2826 = vadd.f32 %v2597, %v2825
    %v2827 = vpop.f32.mrb[0].mxu0
    %v2828 = vadd.f32 %v2599, %v2827
    %2829 = vmatprep.mubr.f32.mxu0 0.0
    %v2830 = vand.u32 %v58, 4294901760
    %v2831 = vsub.f32 %v58, %v2830
    %v2832 = vand.u32 %v2831, 4294901760
    %2833 = vmatmul.mubr.f32.gmra.mrb[0].mxu0 %v2832
    %v2834 = vpop.f32.mrb[0].mxu0
    %v2835 = vadd.f32 %v2605, %v2834
    %v2836 = vpop.f32.mrb[0].mxu0
    %v2837 = vadd.f32 %v2607, %v2836
    %2838 = vmatprep.mubr.f32.mxu0 0.0
    %v2839 = vand.u32 %v59, 4294901760
    %v2840 = vsub.f32 %v59, %v2839
    %v2841 = vand.u32 %v2840, 4294901760
    %2842 = vmatmul.mubr.f32.gmra.mrb[0].mxu0 %v2841
    %v2843 = vpop.f32.mrb[0].mxu0
    %v2844 = vadd.f32 %v2613, %v2843
    %v2845 = vpop.f32.mrb[0].mxu0
    %v2846 = vadd.f32 %v2615, %v2845
    %2847 = vmatprep.mubr.f32.mxu0 0.0
    %v2848 = vand.u32 %v60, 4294901760
    %v2849 = vsub.f32 %v60, %v2848
    %v2850 = vand.u32 %v2849, 4294901760
    %2851 = vmatmul.mubr.f32.gmra.mrb[0].mxu0 %v2850
    %v2852 = vpop.f32.mrb[0].mxu0
    %v2853 = vadd.f32 %v2621, %v2852
    %v2854 = vpop.f32.mrb[0].mxu0
    %v2855 = vadd.f32 %v2623, %v2854
    %2856 = vmatprep.mubr.f32.mxu0 0.0
    %v2857 = vand.u32 %v61, 4294901760
    %v2858 = vsub.f32 %v61, %v2857
    %v2859 = vand.u32 %v2858, 4294901760
    %2860 = vmatmul.mubr.f32.gmra.mrb[0].mxu0 %v2859
    %v2861 = vpop.f32.mrb[0].mxu0
    %v2862 = vadd.f32 %v2629, %v2861
    %v2863 = vpop.f32.mrb[0].mxu0
    %v2864 = vadd.f32 %v2631, %v2863
    %2865 = vmatprep.mubr.f32.mxu0 0.0
    %v2866 = vand.u32 %v62, 4294901760
    %v2867 = vsub.f32 %v62, %v2866
    %v2868 = vand.u32 %v2867, 4294901760
    %2869 = vmatmul.mubr.f32.gmra.mrb[0].mxu0 %v2868
    %v2870 = vpop.f32.mrb[0].mxu0
    %v2871 = vadd.f32 %v2637, %v2870
    %v2872 = vpop.f32.mrb[0].mxu0
    %v2873 = vadd.f32 %v2639, %v2872
    %2874 = vmatprep.mubr.f32.mxu0 0.0
    %v2875 = vand.u32 %v63, 4294901760
    %v2876 = vsub.f32 %v63, %v2875
    %v2877 = vand.u32 %v2876, 4294901760
    %2878 = vmatmul.mubr.f32.gmra.mrb[0].mxu0 %v2877
    %v2879 = vpop.f32.mrb[0].mxu0
    %v2880 = vadd.f32 %v2645, %v2879
    %v2881 = vpop.f32.mrb[0].mxu0
    %v2882 = vadd.f32 %v2647, %v2881
    %2883 = vmatprep.mubr.f32.mxu0 0.0
    %v2884 = vand.u32 %v64, 4294901760
    %v2885 = vsub.f32 %v64, %v2884
    %v2886 = vand.u32 %v2885, 4294901760
    %2887 = vmatmul.mubr.f32.gmra.mrb[0].mxu0 %v2886
    %v2888 = vpop.f32.mrb[0].mxu0
    %v2889 = vadd.f32 %v2653, %v2888
    %v2890 = vpop.f32.mrb[0].mxu0
    %v2891 = vadd.f32 %v2655, %v2890
    %2892 = vmatprep.mubr.f32.mxu0 0.0
    %v2893 = vand.u32 %v65, 4294901760
    %v2894 = vsub.f32 %v65, %v2893
    %v2895 = vand.u32 %v2894, 4294901760
    %2896 = vmatmul.mubr.f32.gmra.mrb[0].mxu0 %v2895
    %v2897 = vpop.f32.mrb[0].mxu0
    %v2898 = vadd.f32 %v2661, %v2897
    %v2899 = vpop.f32.mrb[0].mxu0
    %v2900 = vadd.f32 %v2663, %v2899
    %2901 = vmatprep.mubr.f32.mxu0 0.0
    %v2902 = vand.u32 %v66, 4294901760
    %v2903 = vsub.f32 %v66, %v2902
    %v2904 = vand.u32 %v2903, 4294901760
    %2905 = vmatmul.mubr.f32.gmra.mrb[0].mxu0 %v2904
    %v2906 = vpop.f32.mrb[0].mxu0
    %v2907 = vadd.f32 %v2669, %v2906
    %v2908 = vpop.f32.mrb[0].mxu0
    %v2909 = vadd.f32 %v2671, %v2908
    %2910 = vmatprep.mubr.f32.mxu0 0.0
    %v2911 = vand.u32 %v67, 4294901760
    %v2912 = vsub.f32 %v67, %v2911
    %v2913 = vand.u32 %v2912, 4294901760
    %2914 = vmatmul.mubr.f32.gmra.mrb[0].mxu0 %v2913
    %v2915 = vpop.f32.mrb[0].mxu0
    %v2916 = vadd.f32 %v2677, %v2915
    %v2917 = vpop.f32.mrb[0].mxu0
    %v2918 = vadd.f32 %v2679, %v2917
    %2919 = vmatprep.mubr.f32.mxu0 0.0
    %v2920 = vand.u32 %v68, 4294901760
    %v2921 = vsub.f32 %v68, %v2920
    %v2922 = vand.u32 %v2921, 4294901760
    %2923 = vmatmul.mubr.f32.gmra.mrb[0].mxu0 %v2922
    %v2924 = vpop.f32.mrb[0].mxu0
    %v2925 = vadd.f32 %v2685, %v2924
    %v2926 = vpop.f32.mrb[0].mxu0
    %v2927 = vadd.f32 %v2687, %v2926
    %2928 = vmatprep.mubr.f32.mxu0 0.0
    %v2929 = vand.u32 %v69, 4294901760
    %v2930 = vsub.f32 %v69, %v2929
    %v2931 = vand.u32 %v2930, 4294901760
    %2932 = vmatmul.mubr.f32.gmra.mrb[0].mxu0 %v2931
    %v2933 = vpop.f32.mrb[0].mxu0
    %v2934 = vadd.f32 %v2693, %v2933
    %v2935 = vpop.f32.mrb[0].mxu0
    %v2936 = vadd.f32 %v2695, %v2935
    %2937 = vdwg.mxu0
    %v2938 = vand.u32 %v73, 4294901760
    %v2939 = vsub.f32 %v73, %v2938
    %v2940 = vand.u32 %v2939, 4294901760
    %2941 = vmatprep.subr.mxu0 %v2940
    %v2942 = vand.u32 %v72, 4294901760
    %v2943 = vsub.f32 %v72, %v2942
    %v2944 = vand.u32 %v2943, 4294901760
    %2945 = vmatpush1.msra.mxu0 %v2944
    %v2946 = vand.u32 %v81, 4294901760
    %v2947 = vsub.f32 %v81, %v2946
    %v2948 = vand.u32 %v2947, 4294901760
    %2949 = vmatprep.subr.mxu0 %v2948
    %v2950 = vand.u32 %v80, 4294901760
    %v2951 = vsub.f32 %v80, %v2950
    %v2952 = vand.u32 %v2951, 4294901760
    %2953 = vmatpush1.msra.mxu0 %v2952
    %v2954 = vand.u32 %v89, 4294901760
    %v2955 = vsub.f32 %v89, %v2954
    %v2956 = vand.u32 %v2955, 4294901760
    %2957 = vmatprep.subr.mxu0 %v2956
    %v2958 = vand.u32 %v88, 4294901760
    %v2959 = vsub.f32 %v88, %v2958
    %v2960 = vand.u32 %v2959, 4294901760
    %2961 = vmatpush1.msra.mxu0 %v2960
    %v2962 = vand.u32 %v97, 4294901760
    %v2963 = vsub.f32 %v97, %v2962
    %v2964 = vand.u32 %v2963, 4294901760
    %2965 = vmatprep.subr.mxu0 %v2964
    %v2966 = vand.u32 %v96, 4294901760
    %v2967 = vsub.f32 %v96, %v2966
    %v2968 = vand.u32 %v2967, 4294901760
    %2969 = vmatpush1.msra.mxu0 %v2968
    %v2970 = vand.u32 %v105, 4294901760
    %v2971 = vsub.f32 %v105, %v2970
    %v2972 = vand.u32 %v2971, 4294901760
    %2973 = vmatprep.subr.mxu0 %v2972
    %v2974 = vand.u32 %v104, 4294901760
    %v2975 = vsub.f32 %v104, %v2974
    %v2976 = vand.u32 %v2975, 4294901760
    %2977 = vmatpush1.msra.mxu0 %v2976
    %v2978 = vand.u32 %v113, 4294901760
    %v2979 = vsub.f32 %v113, %v2978
    %v2980 = vand.u32 %v2979, 4294901760
    %2981 = vmatprep.subr.mxu0 %v2980
    %v2982 = vand.u32 %v112, 4294901760
    %v2983 = vsub.f32 %v112, %v2982
    %v2984 = vand.u32 %v2983, 4294901760
    %2985 = vmatpush1.msra.mxu0 %v2984
    %v2986 = vand.u32 %v121, 4294901760
    %v2987 = vsub.f32 %v121, %v2986
    %v2988 = vand.u32 %v2987, 4294901760
    %2989 = vmatprep.subr.mxu0 %v2988
    %v2990 = vand.u32 %v120, 4294901760
    %v2991 = vsub.f32 %v120, %v2990
    %v2992 = vand.u32 %v2991, 4294901760
    %2993 = vmatpush1.msra.mxu0 %v2992
    %v2994 = vand.u32 %v129, 4294901760
    %v2995 = vsub.f32 %v129, %v2994
    %v2996 = vand.u32 %v2995, 4294901760
    %2997 = vmatprep.subr.mxu0 %v2996
    %v2998 = vand.u32 %v128, 4294901760
    %v2999 = vsub.f32 %v128, %v2998
    %v3000 = vand.u32 %v2999, 4294901760
    %3001 = vmatpush1.msra.mxu0 %v3000
    %v3002 = vand.u32 %v137, 4294901760
    %v3003 = vsub.f32 %v137, %v3002
    %v3004 = vand.u32 %v3003, 4294901760
    %3005 = vmatprep.subr.mxu0 %v3004
    %v3006 = vand.u32 %v136, 4294901760
    %v3007 = vsub.f32 %v136, %v3006
    %v3008 = vand.u32 %v3007, 4294901760
    %3009 = vmatpush1.msra.mxu0 %v3008
    %v3010 = vand.u32 %v145, 4294901760
    %v3011 = vsub.f32 %v145, %v3010
    %v3012 = vand.u32 %v3011, 4294901760
    %3013 = vmatprep.subr.mxu0 %v3012
    %v3014 = vand.u32 %v144, 4294901760
    %v3015 = vsub.f32 %v144, %v3014
    %v3016 = vand.u32 %v3015, 4294901760
    %3017 = vmatpush1.msra.mxu0 %v3016
    %v3018 = vand.u32 %v153, 4294901760
    %v3019 = vsub.f32 %v153, %v3018
    %v3020 = vand.u32 %v3019, 4294901760
    %3021 = vmatprep.subr.mxu0 %v3020
    %v3022 = vand.u32 %v152, 4294901760
    %v3023 = vsub.f32 %v152, %v3022
    %v3024 = vand.u32 %v3023, 4294901760
    %3025 = vmatpush1.msra.mxu0 %v3024
    %v3026 = vand.u32 %v161, 4294901760
    %v3027 = vsub.f32 %v161, %v3026
    %v3028 = vand.u32 %v3027, 4294901760
    %3029 = vmatprep.subr.mxu0 %v3028
    %v3030 = vand.u32 %v160, 4294901760
    %v3031 = vsub.f32 %v160, %v3030
    %v3032 = vand.u32 %v3031, 4294901760
    %3033 = vmatpush1.msra.mxu0 %v3032
    %v3034 = vand.u32 %v169, 4294901760
    %v3035 = vsub.f32 %v169, %v3034
    %v3036 = vand.u32 %v3035, 4294901760
    %3037 = vmatprep.subr.mxu0 %v3036
    %v3038 = vand.u32 %v168, 4294901760
    %v3039 = vsub.f32 %v168, %v3038
    %v3040 = vand.u32 %v3039, 4294901760
    %3041 = vmatpush1.msra.mxu0 %v3040
    %v3042 = vand.u32 %v177, 4294901760
    %v3043 = vsub.f32 %v177, %v3042
    %v3044 = vand.u32 %v3043, 4294901760
    %3045 = vmatprep.subr.mxu0 %v3044
    %v3046 = vand.u32 %v176, 4294901760
    %v3047 = vsub.f32 %v176, %v3046
    %v3048 = vand.u32 %v3047, 4294901760
    %3049 = vmatpush1.msra.mxu0 %v3048
    %v3050 = vand.u32 %v185, 4294901760
    %v3051 = vsub.f32 %v185, %v3050
    %v3052 = vand.u32 %v3051, 4294901760
    %3053 = vmatprep.subr.mxu0 %v3052
    %v3054 = vand.u32 %v184, 4294901760
    %v3055 = vsub.f32 %v184, %v3054
    %v3056 = vand.u32 %v3055, 4294901760
    %3057 = vmatpush1.msra.mxu0 %v3056
    %v3058 = vand.u32 %v193, 4294901760
    %v3059 = vsub.f32 %v193, %v3058
    %v3060 = vand.u32 %v3059, 4294901760
    %3061 = vmatprep.subr.mxu0 %v3060
    %v3062 = vand.u32 %v192, 4294901760
    %v3063 = vsub.f32 %v192, %v3062
    %v3064 = vand.u32 %v3063, 4294901760
    %3065 = vmatpush1.msra.mxu0 %v3064
    %3066 = vmatprep.subr.mxu0 0.0
    %3067 = vmatpush1.msra.mxu0 0.0
    %3068 = vmatprep.subr.mxu0 0.0
    %3069 = vmatpush1.msra.mxu0 0.0
    %3070 = vmatprep.subr.mxu0 0.0
    %3071 = vmatpush1.msra.mxu0 0.0
    %3072 = vmatprep.subr.mxu0 0.0
    %3073 = vmatpush1.msra.mxu0 0.0
    %3074 = vmatprep.subr.mxu0 0.0
    %3075 = vmatpush1.msra.mxu0 0.0
    %3076 = vmatprep.subr.mxu0 0.0
    %3077 = vmatpush1.msra.mxu0 0.0
    %3078 = vmatprep.subr.mxu0 0.0
    %3079 = vmatpush1.msra.mxu0 0.0
    %3080 = vmatprep.subr.mxu0 0.0
    %3081 = vmatpush1.msra.mxu0 0.0
    %3082 = vmatprep.subr.mxu0 0.0
    %3083 = vmatpush1.msra.mxu0 0.0
    %3084 = vmatprep.subr.mxu0 0.0
    %3085 = vmatpush1.msra.mxu0 0.0
    %3086 = vmatprep.subr.mxu0 0.0
    %3087 = vmatpush1.msra.mxu0 0.0
    %3088 = vmatprep.subr.mxu0 0.0
    %3089 = vmatpush1.msra.mxu0 0.0
    %3090 = vmatprep.subr.mxu0 0.0
    %3091 = vmatpush1.msra.mxu0 0.0
    %3092 = vmatprep.subr.mxu0 0.0
    %3093 = vmatpush1.msra.mxu0 0.0
    %3094 = vmatprep.subr.mxu0 0.0
    %3095 = vmatpush1.msra.mxu0 0.0
    %3096 = vmatprep.subr.mxu0 0.0
    %3097 = vmatpush1.msra.mxu0 0.0
    %3098 = vmatprep.mubr.f32.mxu0 0.0
    %v3099 = vand.u32 %v54, 4294901760
    %3100 = vmatmul.mubr.f32.gmra.mrb[0].mxu0 %v3099
    %v3101 = vpop.f32.mrb[0].mxu0
    %v3102 = vadd.f32 %v2799, %v3101
    %v3103 = vpop.f32.mrb[0].mxu0
    %v3104 = vadd.f32 %v2801, %v3103
    %3105 = vmatprep.mubr.f32.mxu0 0.0
    %v3106 = vand.u32 %v55, 4294901760
    %3107 = vmatmul.mubr.f32.gmra.mrb[0].mxu0 %v3106
    %v3108 = vpop.f32.mrb[0].mxu0
    %v3109 = vadd.f32 %v2808, %v3108
    %v3110 = vpop.f32.mrb[0].mxu0
    %v3111 = vadd.f32 %v2810, %v3110
    %3112 = vmatprep.mubr.f32.mxu0 0.0
    %v3113 = vand.u32 %v56, 4294901760
    %3114 = vmatmul.mubr.f32.gmra.mrb[0].mxu0 %v3113
    %v3115 = vpop.f32.mrb[0].mxu0
    %v3116 = vadd.f32 %v2817, %v3115
    %v3117 = vpop.f32.mrb[0].mxu0
    %v3118 = vadd.f32 %v2819, %v3117
    %3119 = vmatprep.mubr.f32.mxu0 0.0
    %v3120 = vand.u32 %v57, 4294901760
    %3121 = vmatmul.mubr.f32.gmra.mrb[0].mxu0 %v3120
    %v3122 = vpop.f32.mrb[0].mxu0
    %v3123 = vadd.f32 %v2826, %v3122
    %v3124 = vpop.f32.mrb[0].mxu0
    %v3125 = vadd.f32 %v2828, %v3124
    %3126 = vmatprep.mubr.f32.mxu0 0.0
    %v3127 = vand.u32 %v58, 4294901760
    %3128 = vmatmul.mubr.f32.gmra.mrb[0].mxu0 %v3127
    %v3129 = vpop.f32.mrb[0].mxu0
    %v3130 = vadd.f32 %v2835, %v3129
    %v3131 = vpop.f32.mrb[0].mxu0
    %v3132 = vadd.f32 %v2837, %v3131
    %3133 = vmatprep.mubr.f32.mxu0 0.0
    %v3134 = vand.u32 %v59, 4294901760
    %3135 = vmatmul.mubr.f32.gmra.mrb[0].mxu0 %v3134
    %v3136 = vpop.f32.mrb[0].mxu0
    %v3137 = vadd.f32 %v2844, %v3136
    %v3138 = vpop.f32.mrb[0].mxu0
    %v3139 = vadd.f32 %v2846, %v3138
    %3140 = vmatprep.mubr.f32.mxu0 0.0
    %v3141 = vand.u32 %v60, 4294901760
    %3142 = vmatmul.mubr.f32.gmra.mrb[0].mxu0 %v3141
    %v3143 = vpop.f32.mrb[0].mxu0
    %v3144 = vadd.f32 %v2853, %v3143
    %v3145 = vpop.f32.mrb[0].mxu0
    %v3146 = vadd.f32 %v2855, %v3145
    %3147 = vmatprep.mubr.f32.mxu0 0.0
    %v3148 = vand.u32 %v61, 4294901760
    %3149 = vmatmul.mubr.f32.gmra.mrb[0].mxu0 %v3148
    %v3150 = vpop.f32.mrb[0].mxu0
    %v3151 = vadd.f32 %v2862, %v3150
    %v3152 = vpop.f32.mrb[0].mxu0
    %v3153 = vadd.f32 %v2864, %v3152
    %3154 = vmatprep.mubr.f32.mxu0 0.0
    %v3155 = vand.u32 %v62, 4294901760
    %3156 = vmatmul.mubr.f32.gmra.mrb[0].mxu0 %v3155
    %v3157 = vpop.f32.mrb[0].mxu0
    %v3158 = vadd.f32 %v2871, %v3157
    %v3159 = vpop.f32.mrb[0].mxu0
    %v3160 = vadd.f32 %v2873, %v3159
    %3161 = vmatprep.mubr.f32.mxu0 0.0
    %v3162 = vand.u32 %v63, 4294901760
    %3163 = vmatmul.mubr.f32.gmra.mrb[0].mxu0 %v3162
    %v3164 = vpop.f32.mrb[0].mxu0
    %v3165 = vadd.f32 %v2880, %v3164
    %v3166 = vpop.f32.mrb[0].mxu0
    %v3167 = vadd.f32 %v2882, %v3166
    %3168 = vmatprep.mubr.f32.mxu0 0.0
    %v3169 = vand.u32 %v64, 4294901760
    %3170 = vmatmul.mubr.f32.gmra.mrb[0].mxu0 %v3169
    %v3171 = vpop.f32.mrb[0].mxu0
    %v3172 = vadd.f32 %v2889, %v3171
    %v3173 = vpop.f32.mrb[0].mxu0
    %v3174 = vadd.f32 %v2891, %v3173
    %3175 = vmatprep.mubr.f32.mxu0 0.0
    %v3176 = vand.u32 %v65, 4294901760
    %3177 = vmatmul.mubr.f32.gmra.mrb[0].mxu0 %v3176
    %v3178 = vpop.f32.mrb[0].mxu0
    %v3179 = vadd.f32 %v2898, %v3178
    %v3180 = vpop.f32.mrb[0].mxu0
    %v3181 = vadd.f32 %v2900, %v3180
    %3182 = vmatprep.mubr.f32.mxu0 0.0
    %v3183 = vand.u32 %v66, 4294901760
    %3184 = vmatmul.mubr.f32.gmra.mrb[0].mxu0 %v3183
    %v3185 = vpop.f32.mrb[0].mxu0
    %v3186 = vadd.f32 %v2907, %v3185
    %v3187 = vpop.f32.mrb[0].mxu0
    %v3188 = vadd.f32 %v2909, %v3187
    %3189 = vmatprep.mubr.f32.mxu0 0.0
    %v3190 = vand.u32 %v67, 4294901760
    %3191 = vmatmul.mubr.f32.gmra.mrb[0].mxu0 %v3190
    %v3192 = vpop.f32.mrb[0].mxu0
    %v3193 = vadd.f32 %v2916, %v3192
    %v3194 = vpop.f32.mrb[0].mxu0
    %v3195 = vadd.f32 %v2918, %v3194
    %3196 = vmatprep.mubr.f32.mxu0 0.0
    %v3197 = vand.u32 %v68, 4294901760
    %3198 = vmatmul.mubr.f32.gmra.mrb[0].mxu0 %v3197
    %v3199 = vpop.f32.mrb[0].mxu0
    %v3200 = vadd.f32 %v2925, %v3199
    %v3201 = vpop.f32.mrb[0].mxu0
    %v3202 = vadd.f32 %v2927, %v3201
    %3203 = vmatprep.mubr.f32.mxu0 0.0
    %v3204 = vand.u32 %v69, 4294901760
    %3205 = vmatmul.mubr.f32.gmra.mrb[0].mxu0 %v3204
    %v3206 = vpop.f32.mrb[0].mxu0
    %v3207 = vadd.f32 %v2934, %v3206
    %v3208 = vpop.f32.mrb[0].mxu0
    %v3209 = vadd.f32 %v2936, %v3208
    %3210 = vdwg.mxu0
    %v3211 = vand.u32 %v73, 4294901760
    %3212 = vmatprep.subr.mxu0 %v3211
    %v3213 = vand.u32 %v72, 4294901760
    %3214 = vmatpush1.msra.mxu0 %v3213
    %v3215 = vand.u32 %v81, 4294901760
    %3216 = vmatprep.subr.mxu0 %v3215
    %v3217 = vand.u32 %v80, 4294901760
    %3218 = vmatpush1.msra.mxu0 %v3217
    %v3219 = vand.u32 %v89, 4294901760
    %3220 = vmatprep.subr.mxu0 %v3219
    %v3221 = vand.u32 %v88, 4294901760
    %3222 = vmatpush1.msra.mxu0 %v3221
    %v3223 = vand.u32 %v97, 4294901760
    %3224 = vmatprep.subr.mxu0 %v3223
    %v3225 = vand.u32 %v96, 4294901760
    %3226 = vmatpush1.msra.mxu0 %v3225
    %v3227 = vand.u32 %v105, 4294901760
    %3228 = vmatprep.subr.mxu0 %v3227
    %v3229 = vand.u32 %v104, 4294901760
    %3230 = vmatpush1.msra.mxu0 %v3229
    %v3231 = vand.u32 %v113, 4294901760
    %3232 = vmatprep.subr.mxu0 %v3231
    %v3233 = vand.u32 %v112, 4294901760
    %3234 = vmatpush1.msra.mxu0 %v3233
    %v3235 = vand.u32 %v121, 4294901760
    %3236 = vmatprep.subr.mxu0 %v3235
    %v3237 = vand.u32 %v120, 4294901760
    %3238 = vmatpush1.msra.mxu0 %v3237
    %v3239 = vand.u32 %v129, 4294901760
    %3240 = vmatprep.subr.mxu0 %v3239
    %v3241 = vand.u32 %v128, 4294901760
    %3242 = vmatpush1.msra.mxu0 %v3241
    %v3243 = vand.u32 %v137, 4294901760
    %3244 = vmatprep.subr.mxu0 %v3243
    %v3245 = vand.u32 %v136, 4294901760
    %3246 = vmatpush1.msra.mxu0 %v3245
    %v3247 = vand.u32 %v145, 4294901760
    %3248 = vmatprep.subr.mxu0 %v3247
    %v3249 = vand.u32 %v144, 4294901760
    %3250 = vmatpush1.msra.mxu0 %v3249
    %v3251 = vand.u32 %v153, 4294901760
    %3252 = vmatprep.subr.mxu0 %v3251
    %v3253 = vand.u32 %v152, 4294901760
    %3254 = vmatpush1.msra.mxu0 %v3253
    %v3255 = vand.u32 %v161, 4294901760
    %3256 = vmatprep.subr.mxu0 %v3255
    %v3257 = vand.u32 %v160, 4294901760
    %3258 = vmatpush1.msra.mxu0 %v3257
    %v3259 = vand.u32 %v169, 4294901760
    %3260 = vmatprep.subr.mxu0 %v3259
    %v3261 = vand.u32 %v168, 4294901760
    %3262 = vmatpush1.msra.mxu0 %v3261
    %v3263 = vand.u32 %v177, 4294901760
    %3264 = vmatprep.subr.mxu0 %v3263
    %v3265 = vand.u32 %v176, 4294901760
    %3266 = vmatpush1.msra.mxu0 %v3265
    %v3267 = vand.u32 %v185, 4294901760
    %3268 = vmatprep.subr.mxu0 %v3267
    %v3269 = vand.u32 %v184, 4294901760
    %3270 = vmatpush1.msra.mxu0 %v3269
    %v3271 = vand.u32 %v193, 4294901760
    %3272 = vmatprep.subr.mxu0 %v3271
    %v3273 = vand.u32 %v192, 4294901760
    %3274 = vmatpush1.msra.mxu0 %v3273
    %3275 = vmatprep.subr.mxu0 0.0
    %3276 = vmatpush1.msra.mxu0 0.0
    %3277 = vmatprep.subr.mxu0 0.0
    %3278 = vmatpush1.msra.mxu0 0.0
    %3279 = vmatprep.subr.mxu0 0.0
    %3280 = vmatpush1.msra.mxu0 0.0
    %3281 = vmatprep.subr.mxu0 0.0
    %3282 = vmatpush1.msra.mxu0 0.0
    %3283 = vmatprep.subr.mxu0 0.0
    %3284 = vmatpush1.msra.mxu0 0.0
    %3285 = vmatprep.subr.mxu0 0.0
    %3286 = vmatpush1.msra.mxu0 0.0
    %3287 = vmatprep.subr.mxu0 0.0
    %3288 = vmatpush1.msra.mxu0 0.0
    %3289 = vmatprep.subr.mxu0 0.0
    %3290 = vmatpush1.msra.mxu0 0.0
    %3291 = vmatprep.subr.mxu0 0.0
    %3292 = vmatpush1.msra.mxu0 0.0
    %3293 = vmatprep.subr.mxu0 0.0
    %3294 = vmatpush1.msra.mxu0 0.0
    %3295 = vmatprep.subr.mxu0 0.0
    %3296 = vmatpush1.msra.mxu0 0.0
    %3297 = vmatprep.subr.mxu0 0.0
    %3298 = vmatpush1.msra.mxu0 0.0
    %3299 = vmatprep.subr.mxu0 0.0
    %3300 = vmatpush1.msra.mxu0 0.0
    %3301 = vmatprep.subr.mxu0 0.0
    %3302 = vmatpush1.msra.mxu0 0.0
    %3303 = vmatprep.subr.mxu0 0.0
    %3304 = vmatpush1.msra.mxu0 0.0
    %3305 = vmatprep.subr.mxu0 0.0
    %3306 = vmatpush1.msra.mxu0 0.0
    %3307 = vmatprep.mubr.f32.mxu0 0.0
    %v3308 = vand.u32 %v54, 4294901760
    %3309 = vmatmul.mubr.f32.gmra.mrb[0].mxu0 %v3308
    %v3310 = vpop.f32.mrb[0].mxu0
    %v3311 = vadd.f32 %v3102, %v3310
    %v3312 = vpop.f32.mrb[0].mxu0
    %v3313 = vadd.f32 %v3104, %v3312
    %3314 = vmatprep.mubr.f32.mxu0 0.0
    %v3315 = vand.u32 %v55, 4294901760
    %3316 = vmatmul.mubr.f32.gmra.mrb[0].mxu0 %v3315
    %v3317 = vpop.f32.mrb[0].mxu0
    %v3318 = vadd.f32 %v3109, %v3317
    %v3319 = vpop.f32.mrb[0].mxu0
    %v3320 = vadd.f32 %v3111, %v3319
    %3321 = vmatprep.mubr.f32.mxu0 0.0
    %v3322 = vand.u32 %v56, 4294901760
    %3323 = vmatmul.mubr.f32.gmra.mrb[0].mxu0 %v3322
    %v3324 = vpop.f32.mrb[0].mxu0
    %v3325 = vadd.f32 %v3116, %v3324
    %v3326 = vpop.f32.mrb[0].mxu0
    %v3327 = vadd.f32 %v3118, %v3326
    %3328 = vmatprep.mubr.f32.mxu0 0.0
    %v3329 = vand.u32 %v57, 4294901760
    %3330 = vmatmul.mubr.f32.gmra.mrb[0].mxu0 %v3329
    %v3331 = vpop.f32.mrb[0].mxu0
    %v3332 = vadd.f32 %v3123, %v3331
    %v3333 = vpop.f32.mrb[0].mxu0
    %v3334 = vadd.f32 %v3125, %v3333
    %3335 = vmatprep.mubr.f32.mxu0 0.0
    %v3336 = vand.u32 %v58, 4294901760
    %3337 = vmatmul.mubr.f32.gmra.mrb[0].mxu0 %v3336
    %v3338 = vpop.f32.mrb[0].mxu0
    %v3339 = vadd.f32 %v3130, %v3338
    %v3340 = vpop.f32.mrb[0].mxu0
    %v3341 = vadd.f32 %v3132, %v3340
    %3342 = vmatprep.mubr.f32.mxu0 0.0
    %v3343 = vand.u32 %v59, 4294901760
    %3344 = vmatmul.mubr.f32.gmra.mrb[0].mxu0 %v3343
    %v3345 = vpop.f32.mrb[0].mxu0
    %v3346 = vadd.f32 %v3137, %v3345
    %v3347 = vpop.f32.mrb[0].mxu0
    %v3348 = vadd.f32 %v3139, %v3347
    %3349 = vmatprep.mubr.f32.mxu0 0.0
    %v3350 = vand.u32 %v60, 4294901760
    %3351 = vmatmul.mubr.f32.gmra.mrb[0].mxu0 %v3350
    %v3352 = vpop.f32.mrb[0].mxu0
    %v3353 = vadd.f32 %v3144, %v3352
    %v3354 = vpop.f32.mrb[0].mxu0
    %v3355 = vadd.f32 %v3146, %v3354
    %3356 = vmatprep.mubr.f32.mxu0 0.0
    %v3357 = vand.u32 %v61, 4294901760
    %3358 = vmatmul.mubr.f32.gmra.mrb[0].mxu0 %v3357
    %v3359 = vpop.f32.mrb[0].mxu0
    %v3360 = vadd.f32 %v3151, %v3359
    %v3361 = vpop.f32.mrb[0].mxu0
    %v3362 = vadd.f32 %v3153, %v3361
    %3363 = vmatprep.mubr.f32.mxu0 0.0
    %v3364 = vand.u32 %v62, 4294901760
    %3365 = vmatmul.mubr.f32.gmra.mrb[0].mxu0 %v3364
    %v3366 = vpop.f32.mrb[0].mxu0
    %v3367 = vadd.f32 %v3158, %v3366
    %v3368 = vpop.f32.mrb[0].mxu0
    %v3369 = vadd.f32 %v3160, %v3368
    %3370 = vmatprep.mubr.f32.mxu0 0.0
    %v3371 = vand.u32 %v63, 4294901760
    %3372 = vmatmul.mubr.f32.gmra.mrb[0].mxu0 %v3371
    %v3373 = vpop.f32.mrb[0].mxu0
    %v3374 = vadd.f32 %v3165, %v3373
    %v3375 = vpop.f32.mrb[0].mxu0
    %v3376 = vadd.f32 %v3167, %v3375
    %3377 = vmatprep.mubr.f32.mxu0 0.0
    %v3378 = vand.u32 %v64, 4294901760
    %3379 = vmatmul.mubr.f32.gmra.mrb[0].mxu0 %v3378
    %v3380 = vpop.f32.mrb[0].mxu0
    %v3381 = vadd.f32 %v3172, %v3380
    %v3382 = vpop.f32.mrb[0].mxu0
    %v3383 = vadd.f32 %v3174, %v3382
    %3384 = vmatprep.mubr.f32.mxu0 0.0
    %v3385 = vand.u32 %v65, 4294901760
    %3386 = vmatmul.mubr.f32.gmra.mrb[0].mxu0 %v3385
    %v3387 = vpop.f32.mrb[0].mxu0
    %v3388 = vadd.f32 %v3179, %v3387
    %v3389 = vpop.f32.mrb[0].mxu0
    %v3390 = vadd.f32 %v3181, %v3389
    %3391 = vmatprep.mubr.f32.mxu0 0.0
    %v3392 = vand.u32 %v66, 4294901760
    %3393 = vmatmul.mubr.f32.gmra.mrb[0].mxu0 %v3392
    %v3394 = vpop.f32.mrb[0].mxu0
    %v3395 = vadd.f32 %v3186, %v3394
    %v3396 = vpop.f32.mrb[0].mxu0
    %v3397 = vadd.f32 %v3188, %v3396
    %3398 = vmatprep.mubr.f32.mxu0 0.0
    %v3399 = vand.u32 %v67, 4294901760
    %3400 = vmatmul.mubr.f32.gmra.mrb[0].mxu0 %v3399
    %v3401 = vpop.f32.mrb[0].mxu0
    %v3402 = vadd.f32 %v3193, %v3401
    %v3403 = vpop.f32.mrb[0].mxu0
    %v3404 = vadd.f32 %v3195, %v3403
    %3405 = vmatprep.mubr.f32.mxu0 0.0
    %v3406 = vand.u32 %v68, 4294901760
    %3407 = vmatmul.mubr.f32.gmra.mrb[0].mxu0 %v3406
    %v3408 = vpop.f32.mrb[0].mxu0
    %v3409 = vadd.f32 %v3200, %v3408
    %v3410 = vpop.f32.mrb[0].mxu0
    %v3411 = vadd.f32 %v3202, %v3410
    %3412 = vmatprep.mubr.f32.mxu0 0.0
    %v3413 = vand.u32 %v69, 4294901760
    %3414 = vmatmul.mubr.f32.gmra.mrb[0].mxu0 %v3413
    %v3415 = vpop.f32.mrb[0].mxu0
    %v3416 = vadd.f32 %v3207, %v3415
    %v3417 = vpop.f32.mrb[0].mxu0
    %v3418 = vadd.f32 %v3209, %v3417
    %3419 = vdwg.mxu0
    %v3420 = vand.u32 %v75, 4294901760
    %3421 = vmatprep.subr.mxu0 %v3420
    %v3422 = vand.u32 %v74, 4294901760
    %3423 = vmatpush1.msra.mxu0 %v3422
    %v3424 = vand.u32 %v83, 4294901760
    %3425 = vmatprep.subr.mxu0 %v3424
    %v3426 = vand.u32 %v82, 4294901760
    %3427 = vmatpush1.msra.mxu0 %v3426
    %v3428 = vand.u32 %v91, 4294901760
    %3429 = vmatprep.subr.mxu0 %v3428
    %v3430 = vand.u32 %v90, 4294901760
    %3431 = vmatpush1.msra.mxu0 %v3430
    %v3432 = vand.u32 %v99, 4294901760
    %3433 = vmatprep.subr.mxu0 %v3432
    %v3434 = vand.u32 %v98, 4294901760
    %3435 = vmatpush1.msra.mxu0 %v3434
    %v3436 = vand.u32 %v107, 4294901760
    %3437 = vmatprep.subr.mxu0 %v3436
    %v3438 = vand.u32 %v106, 4294901760
    %3439 = vmatpush1.msra.mxu0 %v3438
    %v3440 = vand.u32 %v115, 4294901760
    %3441 = vmatprep.subr.mxu0 %v3440
    %v3442 = vand.u32 %v114, 4294901760
    %3443 = vmatpush1.msra.mxu0 %v3442
    %v3444 = vand.u32 %v123, 4294901760
    %3445 = vmatprep.subr.mxu0 %v3444
    %v3446 = vand.u32 %v122, 4294901760
    %3447 = vmatpush1.msra.mxu0 %v3446
    %v3448 = vand.u32 %v131, 4294901760
    %3449 = vmatprep.subr.mxu0 %v3448
    %v3450 = vand.u32 %v130, 4294901760
    %3451 = vmatpush1.msra.mxu0 %v3450
    %v3452 = vand.u32 %v139, 4294901760
    %3453 = vmatprep.subr.mxu0 %v3452
    %v3454 = vand.u32 %v138, 4294901760
    %3455 = vmatpush1.msra.mxu0 %v3454
    %v3456 = vand.u32 %v147, 4294901760
    %3457 = vmatprep.subr.mxu0 %v3456
    %v3458 = vand.u32 %v146, 4294901760
    %3459 = vmatpush1.msra.mxu0 %v3458
    %v3460 = vand.u32 %v155, 4294901760
    %3461 = vmatprep.subr.mxu0 %v3460
    %v3462 = vand.u32 %v154, 4294901760
    %3463 = vmatpush1.msra.mxu0 %v3462
    %v3464 = vand.u32 %v163, 4294901760
    %3465 = vmatprep.subr.mxu0 %v3464
    %v3466 = vand.u32 %v162, 4294901760
    %3467 = vmatpush1.msra.mxu0 %v3466
    %v3468 = vand.u32 %v171, 4294901760
    %3469 = vmatprep.subr.mxu0 %v3468
    %v3470 = vand.u32 %v170, 4294901760
    %3471 = vmatpush1.msra.mxu0 %v3470
    %v3472 = vand.u32 %v179, 4294901760
    %3473 = vmatprep.subr.mxu0 %v3472
    %v3474 = vand.u32 %v178, 4294901760
    %3475 = vmatpush1.msra.mxu0 %v3474
    %v3476 = vand.u32 %v187, 4294901760
    %3477 = vmatprep.subr.mxu0 %v3476
    %v3478 = vand.u32 %v186, 4294901760
    %3479 = vmatpush1.msra.mxu0 %v3478
    %v3480 = vand.u32 %v195, 4294901760
    %3481 = vmatprep.subr.mxu0 %v3480
    %v3482 = vand.u32 %v194, 4294901760
    %3483 = vmatpush1.msra.mxu0 %v3482
    %3484 = vmatprep.subr.mxu0 0.0
    %3485 = vmatpush1.msra.mxu0 0.0
    %3486 = vmatprep.subr.mxu0 0.0
    %3487 = vmatpush1.msra.mxu0 0.0
    %3488 = vmatprep.subr.mxu0 0.0
    %3489 = vmatpush1.msra.mxu0 0.0
    %3490 = vmatprep.subr.mxu0 0.0
    %3491 = vmatpush1.msra.mxu0 0.0
    %3492 = vmatprep.subr.mxu0 0.0
    %3493 = vmatpush1.msra.mxu0 0.0
    %3494 = vmatprep.subr.mxu0 0.0
    %3495 = vmatpush1.msra.mxu0 0.0
    %3496 = vmatprep.subr.mxu0 0.0
    %3497 = vmatpush1.msra.mxu0 0.0
    %3498 = vmatprep.subr.mxu0 0.0
    %3499 = vmatpush1.msra.mxu0 0.0
    %3500 = vmatprep.subr.mxu0 0.0
    %3501 = vmatpush1.msra.mxu0 0.0
    %3502 = vmatprep.subr.mxu0 0.0
    %3503 = vmatpush1.msra.mxu0 0.0
    %3504 = vmatprep.subr.mxu0 0.0
    %3505 = vmatpush1.msra.mxu0 0.0
    %3506 = vmatprep.subr.mxu0 0.0
    %3507 = vmatpush1.msra.mxu0 0.0
    %3508 = vmatprep.subr.mxu0 0.0
    %3509 = vmatpush1.msra.mxu0 0.0
    %3510 = vmatprep.subr.mxu0 0.0
    %3511 = vmatpush1.msra.mxu0 0.0
    %3512 = vmatprep.subr.mxu0 0.0
    %3513 = vmatpush1.msra.mxu0 0.0
    %3514 = vmatprep.subr.mxu0 0.0
    %3515 = vmatpush1.msra.mxu0 0.0
    %3516 = vmatprep.mubr.f32.mxu0 0.0
    %v3517 = vand.u32 %v54, 4294901760
    %v3518 = vsub.f32 %v54, %v3517
    %v3519 = vand.u32 %v3518, 4294901760
    %v3520 = vsub.f32 %v3518, %v3519
    %v3521 = vand.u32 %v3520, 4294901760
    %3522 = vmatmul.mubr.f32.gmra.mrb[0].mxu0 %v3521
    %v3523 = vpop.f32.mrb[0].mxu0
    %v3524 = vadd.f32 %v219, %v3523
    %v3525 = vpop.f32.mrb[0].mxu0
    %v3526 = vadd.f32 %v223, %v3525
    %3527 = vmatprep.mubr.f32.mxu0 0.0
    %v3528 = vand.u32 %v55, 4294901760
    %v3529 = vsub.f32 %v55, %v3528
    %v3530 = vand.u32 %v3529, 4294901760
    %v3531 = vsub.f32 %v3529, %v3530
    %v3532 = vand.u32 %v3531, 4294901760
    %3533 = vmatmul.mubr.f32.gmra.mrb[0].mxu0 %v3532
    %v3534 = vpop.f32.mrb[0].mxu0
    %v3535 = vadd.f32 %v219, %v3534
    %v3536 = vpop.f32.mrb[0].mxu0
    %v3537 = vadd.f32 %v223, %v3536
    %3538 = vmatprep.mubr.f32.mxu0 0.0
    %v3539 = vand.u32 %v56, 4294901760
    %v3540 = vsub.f32 %v56, %v3539
    %v3541 = vand.u32 %v3540, 4294901760
    %v3542 = vsub.f32 %v3540, %v3541
    %v3543 = vand.u32 %v3542, 4294901760
    %3544 = vmatmul.mubr.f32.gmra.mrb[0].mxu0 %v3543
    %v3545 = vpop.f32.mrb[0].mxu0
    %v3546 = vadd.f32 %v219, %v3545
    %v3547 = vpop.f32.mrb[0].mxu0
    %v3548 = vadd.f32 %v223, %v3547
    %3549 = vmatprep.mubr.f32.mxu0 0.0
    %v3550 = vand.u32 %v57, 4294901760
    %v3551 = vsub.f32 %v57, %v3550
    %v3552 = vand.u32 %v3551, 4294901760
    %v3553 = vsub.f32 %v3551, %v3552
    %v3554 = vand.u32 %v3553, 4294901760
    %3555 = vmatmul.mubr.f32.gmra.mrb[0].mxu0 %v3554
    %v3556 = vpop.f32.mrb[0].mxu0
    %v3557 = vadd.f32 %v219, %v3556
    %v3558 = vpop.f32.mrb[0].mxu0
    %v3559 = vadd.f32 %v223, %v3558
    %3560 = vmatprep.mubr.f32.mxu0 0.0
    %v3561 = vand.u32 %v58, 4294901760
    %v3562 = vsub.f32 %v58, %v3561
    %v3563 = vand.u32 %v3562, 4294901760
    %v3564 = vsub.f32 %v3562, %v3563
    %v3565 = vand.u32 %v3564, 4294901760
    %3566 = vmatmul.mubr.f32.gmra.mrb[0].mxu0 %v3565
    %v3567 = vpop.f32.mrb[0].mxu0
    %v3568 = vadd.f32 %v219, %v3567
    %v3569 = vpop.f32.mrb[0].mxu0
    %v3570 = vadd.f32 %v223, %v3569
    %3571 = vmatprep.mubr.f32.mxu0 0.0
    %v3572 = vand.u32 %v59, 4294901760
    %v3573 = vsub.f32 %v59, %v3572
    %v3574 = vand.u32 %v3573, 4294901760
    %v3575 = vsub.f32 %v3573, %v3574
    %v3576 = vand.u32 %v3575, 4294901760
    %3577 = vmatmul.mubr.f32.gmra.mrb[0].mxu0 %v3576
    %v3578 = vpop.f32.mrb[0].mxu0
    %v3579 = vadd.f32 %v219, %v3578
    %v3580 = vpop.f32.mrb[0].mxu0
    %v3581 = vadd.f32 %v223, %v3580
    %3582 = vmatprep.mubr.f32.mxu0 0.0
    %v3583 = vand.u32 %v60, 4294901760
    %v3584 = vsub.f32 %v60, %v3583
    %v3585 = vand.u32 %v3584, 4294901760
    %v3586 = vsub.f32 %v3584, %v3585
    %v3587 = vand.u32 %v3586, 4294901760
    %3588 = vmatmul.mubr.f32.gmra.mrb[0].mxu0 %v3587
    %v3589 = vpop.f32.mrb[0].mxu0
    %v3590 = vadd.f32 %v219, %v3589
    %v3591 = vpop.f32.mrb[0].mxu0
    %v3592 = vadd.f32 %v223, %v3591
    %3593 = vmatprep.mubr.f32.mxu0 0.0
    %v3594 = vand.u32 %v61, 4294901760
    %v3595 = vsub.f32 %v61, %v3594
    %v3596 = vand.u32 %v3595, 4294901760
    %v3597 = vsub.f32 %v3595, %v3596
    %v3598 = vand.u32 %v3597, 4294901760
    %3599 = vmatmul.mubr.f32.gmra.mrb[0].mxu0 %v3598
    %v3600 = vpop.f32.mrb[0].mxu0
    %v3601 = vadd.f32 %v219, %v3600
    %v3602 = vpop.f32.mrb[0].mxu0
    %v3603 = vadd.f32 %v223, %v3602
    %3604 = vmatprep.mubr.f32.mxu0 0.0
    %v3605 = vand.u32 %v62, 4294901760
    %v3606 = vsub.f32 %v62, %v3605
    %v3607 = vand.u32 %v3606, 4294901760
    %v3608 = vsub.f32 %v3606, %v3607
    %v3609 = vand.u32 %v3608, 4294901760
    %3610 = vmatmul.mubr.f32.gmra.mrb[0].mxu0 %v3609
    %v3611 = vpop.f32.mrb[0].mxu0
    %v3612 = vadd.f32 %v219, %v3611
    %v3613 = vpop.f32.mrb[0].mxu0
    %v3614 = vadd.f32 %v223, %v3613
    %3615 = vmatprep.mubr.f32.mxu0 0.0
    %v3616 = vand.u32 %v63, 4294901760
    %v3617 = vsub.f32 %v63, %v3616
    %v3618 = vand.u32 %v3617, 4294901760
    %v3619 = vsub.f32 %v3617, %v3618
    %v3620 = vand.u32 %v3619, 4294901760
    %3621 = vmatmul.mubr.f32.gmra.mrb[0].mxu0 %v3620
    %v3622 = vpop.f32.mrb[0].mxu0
    %v3623 = vadd.f32 %v219, %v3622
    %v3624 = vpop.f32.mrb[0].mxu0
    %v3625 = vadd.f32 %v223, %v3624
    %3626 = vmatprep.mubr.f32.mxu0 0.0
    %v3627 = vand.u32 %v64, 4294901760
    %v3628 = vsub.f32 %v64, %v3627
    %v3629 = vand.u32 %v3628, 4294901760
    %v3630 = vsub.f32 %v3628, %v3629
    %v3631 = vand.u32 %v3630, 4294901760
    %3632 = vmatmul.mubr.f32.gmra.mrb[0].mxu0 %v3631
    %v3633 = vpop.f32.mrb[0].mxu0
    %v3634 = vadd.f32 %v219, %v3633
    %v3635 = vpop.f32.mrb[0].mxu0
    %v3636 = vadd.f32 %v223, %v3635
    %3637 = vmatprep.mubr.f32.mxu0 0.0
    %v3638 = vand.u32 %v65, 4294901760
    %v3639 = vsub.f32 %v65, %v3638
    %v3640 = vand.u32 %v3639, 4294901760
    %v3641 = vsub.f32 %v3639, %v3640
    %v3642 = vand.u32 %v3641, 4294901760
    %3643 = vmatmul.mubr.f32.gmra.mrb[0].mxu0 %v3642
    %v3644 = vpop.f32.mrb[0].mxu0
    %v3645 = vadd.f32 %v219, %v3644
    %v3646 = vpop.f32.mrb[0].mxu0
    %v3647 = vadd.f32 %v223, %v3646
    %3648 = vmatprep.mubr.f32.mxu0 0.0
    %v3649 = vand.u32 %v66, 4294901760
    %v3650 = vsub.f32 %v66, %v3649
    %v3651 = vand.u32 %v3650, 4294901760
    %v3652 = vsub.f32 %v3650, %v3651
    %v3653 = vand.u32 %v3652, 4294901760
    %3654 = vmatmul.mubr.f32.gmra.mrb[0].mxu0 %v3653
    %v3655 = vpop.f32.mrb[0].mxu0
    %v3656 = vadd.f32 %v219, %v3655
    %v3657 = vpop.f32.mrb[0].mxu0
    %v3658 = vadd.f32 %v223, %v3657
    %3659 = vmatprep.mubr.f32.mxu0 0.0
    %v3660 = vand.u32 %v67, 4294901760
    %v3661 = vsub.f32 %v67, %v3660
    %v3662 = vand.u32 %v3661, 4294901760
    %v3663 = vsub.f32 %v3661, %v3662
    %v3664 = vand.u32 %v3663, 4294901760
    %3665 = vmatmul.mubr.f32.gmra.mrb[0].mxu0 %v3664
    %v3666 = vpop.f32.mrb[0].mxu0
    %v3667 = vadd.f32 %v219, %v3666
    %v3668 = vpop.f32.mrb[0].mxu0
    %v3669 = vadd.f32 %v223, %v3668
    %3670 = vmatprep.mubr.f32.mxu0 0.0
    %v3671 = vand.u32 %v68, 4294901760
    %v3672 = vsub.f32 %v68, %v3671
    %v3673 = vand.u32 %v3672, 4294901760
    %v3674 = vsub.f32 %v3672, %v3673
    %v3675 = vand.u32 %v3674, 4294901760
    %3676 = vmatmul.mubr.f32.gmra.mrb[0].mxu0 %v3675
    %v3677 = vpop.f32.mrb[0].mxu0
    %v3678 = vadd.f32 %v219, %v3677
    %v3679 = vpop.f32.mrb[0].mxu0
    %v3680 = vadd.f32 %v223, %v3679
    %3681 = vmatprep.mubr.f32.mxu0 0.0
    %v3682 = vand.u32 %v69, 4294901760
    %v3683 = vsub.f32 %v69, %v3682
    %v3684 = vand.u32 %v3683, 4294901760
    %v3685 = vsub.f32 %v3683, %v3684
    %v3686 = vand.u32 %v3685, 4294901760
    %3687 = vmatmul.mubr.f32.gmra.mrb[0].mxu0 %v3686
    %v3688 = vpop.f32.mrb[0].mxu0
    %v3689 = vadd.f32 %v219, %v3688
    %v3690 = vpop.f32.mrb[0].mxu0
    %v3691 = vadd.f32 %v223, %v3690
    %3692 = vdwg.mxu0
    %v3693 = vand.u32 %v75, 4294901760
    %v3694 = vsub.f32 %v75, %v3693
    %v3695 = vand.u32 %v3694, 4294901760
    %v3696 = vsub.f32 %v3694, %v3695
    %v3697 = vand.u32 %v3696, 4294901760
    %3698 = vmatprep.subr.mxu0 %v3697
    %v3699 = vand.u32 %v74, 4294901760
    %v3700 = vsub.f32 %v74, %v3699
    %v3701 = vand.u32 %v3700, 4294901760
    %v3702 = vsub.f32 %v3700, %v3701
    %v3703 = vand.u32 %v3702, 4294901760
    %3704 = vmatpush1.msra.mxu0 %v3703
    %v3705 = vand.u32 %v83, 4294901760
    %v3706 = vsub.f32 %v83, %v3705
    %v3707 = vand.u32 %v3706, 4294901760
    %v3708 = vsub.f32 %v3706, %v3707
    %v3709 = vand.u32 %v3708, 4294901760
    %3710 = vmatprep.subr.mxu0 %v3709
    %v3711 = vand.u32 %v82, 4294901760
    %v3712 = vsub.f32 %v82, %v3711
    %v3713 = vand.u32 %v3712, 4294901760
    %v3714 = vsub.f32 %v3712, %v3713
    %v3715 = vand.u32 %v3714, 4294901760
    %3716 = vmatpush1.msra.mxu0 %v3715
    %v3717 = vand.u32 %v91, 4294901760
    %v3718 = vsub.f32 %v91, %v3717
    %v3719 = vand.u32 %v3718, 4294901760
    %v3720 = vsub.f32 %v3718, %v3719
    %v3721 = vand.u32 %v3720, 4294901760
    %3722 = vmatprep.subr.mxu0 %v3721
    %v3723 = vand.u32 %v90, 4294901760
    %v3724 = vsub.f32 %v90, %v3723
    %v3725 = vand.u32 %v3724, 4294901760
    %v3726 = vsub.f32 %v3724, %v3725
    %v3727 = vand.u32 %v3726, 4294901760
    %3728 = vmatpush1.msra.mxu0 %v3727
    %v3729 = vand.u32 %v99, 4294901760
    %v3730 = vsub.f32 %v99, %v3729
    %v3731 = vand.u32 %v3730, 4294901760
    %v3732 = vsub.f32 %v3730, %v3731
    %v3733 = vand.u32 %v3732, 4294901760
    %3734 = vmatprep.subr.mxu0 %v3733
    %v3735 = vand.u32 %v98, 4294901760
    %v3736 = vsub.f32 %v98, %v3735
    %v3737 = vand.u32 %v3736, 4294901760
    %v3738 = vsub.f32 %v3736, %v3737
    %v3739 = vand.u32 %v3738, 4294901760
    %3740 = vmatpush1.msra.mxu0 %v3739
    %v3741 = vand.u32 %v107, 4294901760
    %v3742 = vsub.f32 %v107, %v3741
    %v3743 = vand.u32 %v3742, 4294901760
    %v3744 = vsub.f32 %v3742, %v3743
    %v3745 = vand.u32 %v3744, 4294901760
    %3746 = vmatprep.subr.mxu0 %v3745
    %v3747 = vand.u32 %v106, 4294901760
    %v3748 = vsub.f32 %v106, %v3747
    %v3749 = vand.u32 %v3748, 4294901760
    %v3750 = vsub.f32 %v3748, %v3749
    %v3751 = vand.u32 %v3750, 4294901760
    %3752 = vmatpush1.msra.mxu0 %v3751
    %v3753 = vand.u32 %v115, 4294901760
    %v3754 = vsub.f32 %v115, %v3753
    %v3755 = vand.u32 %v3754, 4294901760
    %v3756 = vsub.f32 %v3754, %v3755
    %v3757 = vand.u32 %v3756, 4294901760
    %3758 = vmatprep.subr.mxu0 %v3757
    %v3759 = vand.u32 %v114, 4294901760
    %v3760 = vsub.f32 %v114, %v3759
    %v3761 = vand.u32 %v3760, 4294901760
    %v3762 = vsub.f32 %v3760, %v3761
    %v3763 = vand.u32 %v3762, 4294901760
    %3764 = vmatpush1.msra.mxu0 %v3763
    %v3765 = vand.u32 %v123, 4294901760
    %v3766 = vsub.f32 %v123, %v3765
    %v3767 = vand.u32 %v3766, 4294901760
    %v3768 = vsub.f32 %v3766, %v3767
    %v3769 = vand.u32 %v3768, 4294901760
    %3770 = vmatprep.subr.mxu0 %v3769
    %v3771 = vand.u32 %v122, 4294901760
    %v3772 = vsub.f32 %v122, %v3771
    %v3773 = vand.u32 %v3772, 4294901760
    %v3774 = vsub.f32 %v3772, %v3773
    %v3775 = vand.u32 %v3774, 4294901760
    %3776 = vmatpush1.msra.mxu0 %v3775
    %v3777 = vand.u32 %v131, 4294901760
    %v3778 = vsub.f32 %v131, %v3777
    %v3779 = vand.u32 %v3778, 4294901760
    %v3780 = vsub.f32 %v3778, %v3779
    %v3781 = vand.u32 %v3780, 4294901760
    %3782 = vmatprep.subr.mxu0 %v3781
    %v3783 = vand.u32 %v130, 4294901760
    %v3784 = vsub.f32 %v130, %v3783
    %v3785 = vand.u32 %v3784, 4294901760
    %v3786 = vsub.f32 %v3784, %v3785
    %v3787 = vand.u32 %v3786, 4294901760
    %3788 = vmatpush1.msra.mxu0 %v3787
    %v3789 = vand.u32 %v139, 4294901760
    %v3790 = vsub.f32 %v139, %v3789
    %v3791 = vand.u32 %v3790, 4294901760
    %v3792 = vsub.f32 %v3790, %v3791
    %v3793 = vand.u32 %v3792, 4294901760
    %3794 = vmatprep.subr.mxu0 %v3793
    %v3795 = vand.u32 %v138, 4294901760
    %v3796 = vsub.f32 %v138, %v3795
    %v3797 = vand.u32 %v3796, 4294901760
    %v3798 = vsub.f32 %v3796, %v3797
    %v3799 = vand.u32 %v3798, 4294901760
    %3800 = vmatpush1.msra.mxu0 %v3799
    %v3801 = vand.u32 %v147, 4294901760
    %v3802 = vsub.f32 %v147, %v3801
    %v3803 = vand.u32 %v3802, 4294901760
    %v3804 = vsub.f32 %v3802, %v3803
    %v3805 = vand.u32 %v3804, 4294901760
    %3806 = vmatprep.subr.mxu0 %v3805
    %v3807 = vand.u32 %v146, 4294901760
    %v3808 = vsub.f32 %v146, %v3807
    %v3809 = vand.u32 %v3808, 4294901760
    %v3810 = vsub.f32 %v3808, %v3809
    %v3811 = vand.u32 %v3810, 4294901760
    %3812 = vmatpush1.msra.mxu0 %v3811
    %v3813 = vand.u32 %v155, 4294901760
    %v3814 = vsub.f32 %v155, %v3813
    %v3815 = vand.u32 %v3814, 4294901760
    %v3816 = vsub.f32 %v3814, %v3815
    %v3817 = vand.u32 %v3816, 4294901760
    %3818 = vmatprep.subr.mxu0 %v3817
    %v3819 = vand.u32 %v154, 4294901760
    %v3820 = vsub.f32 %v154, %v3819
    %v3821 = vand.u32 %v3820, 4294901760
    %v3822 = vsub.f32 %v3820, %v3821
    %v3823 = vand.u32 %v3822, 4294901760
    %3824 = vmatpush1.msra.mxu0 %v3823
    %v3825 = vand.u32 %v163, 4294901760
    %v3826 = vsub.f32 %v163, %v3825
    %v3827 = vand.u32 %v3826, 4294901760
    %v3828 = vsub.f32 %v3826, %v3827
    %v3829 = vand.u32 %v3828, 4294901760
    %3830 = vmatprep.subr.mxu0 %v3829
    %v3831 = vand.u32 %v162, 4294901760
    %v3832 = vsub.f32 %v162, %v3831
    %v3833 = vand.u32 %v3832, 4294901760
    %v3834 = vsub.f32 %v3832, %v3833
    %v3835 = vand.u32 %v3834, 4294901760
    %3836 = vmatpush1.msra.mxu0 %v3835
    %v3837 = vand.u32 %v171, 4294901760
    %v3838 = vsub.f32 %v171, %v3837
    %v3839 = vand.u32 %v3838, 4294901760
    %v3840 = vsub.f32 %v3838, %v3839
    %v3841 = vand.u32 %v3840, 4294901760
    %3842 = vmatprep.subr.mxu0 %v3841
    %v3843 = vand.u32 %v170, 4294901760
    %v3844 = vsub.f32 %v170, %v3843
    %v3845 = vand.u32 %v3844, 4294901760
    %v3846 = vsub.f32 %v3844, %v3845
    %v3847 = vand.u32 %v3846, 4294901760
    %3848 = vmatpush1.msra.mxu0 %v3847
    %v3849 = vand.u32 %v179, 4294901760
    %v3850 = vsub.f32 %v179, %v3849
    %v3851 = vand.u32 %v3850, 4294901760
    %v3852 = vsub.f32 %v3850, %v3851
    %v3853 = vand.u32 %v3852, 4294901760
    %3854 = vmatprep.subr.mxu0 %v3853
    %v3855 = vand.u32 %v178, 4294901760
    %v3856 = vsub.f32 %v178, %v3855
    %v3857 = vand.u32 %v3856, 4294901760
    %v3858 = vsub.f32 %v3856, %v3857
    %v3859 = vand.u32 %v3858, 4294901760
    %3860 = vmatpush1.msra.mxu0 %v3859
    %v3861 = vand.u32 %v187, 4294901760
    %v3862 = vsub.f32 %v187, %v3861
    %v3863 = vand.u32 %v3862, 4294901760
    %v3864 = vsub.f32 %v3862, %v3863
    %v3865 = vand.u32 %v3864, 4294901760
    %3866 = vmatprep.subr.mxu0 %v3865
    %v3867 = vand.u32 %v186, 4294901760
    %v3868 = vsub.f32 %v186, %v3867
    %v3869 = vand.u32 %v3868, 4294901760
    %v3870 = vsub.f32 %v3868, %v3869
    %v3871 = vand.u32 %v3870, 4294901760
    %3872 = vmatpush1.msra.mxu0 %v3871
    %v3873 = vand.u32 %v195, 4294901760
    %v3874 = vsub.f32 %v195, %v3873
    %v3875 = vand.u32 %v3874, 4294901760
    %v3876 = vsub.f32 %v3874, %v3875
    %v3877 = vand.u32 %v3876, 4294901760
    %3878 = vmatprep.subr.mxu0 %v3877
    %v3879 = vand.u32 %v194, 4294901760
    %v3880 = vsub.f32 %v194, %v3879
    %v3881 = vand.u32 %v3880, 4294901760
    %v3882 = vsub.f32 %v3880, %v3881
    %v3883 = vand.u32 %v3882, 4294901760
    %3884 = vmatpush1.msra.mxu0 %v3883
    %3885 = vmatprep.subr.mxu0 0.0
    %3886 = vmatpush1.msra.mxu0 0.0
    %3887 = vmatprep.subr.mxu0 0.0
    %3888 = vmatpush1.msra.mxu0 0.0
    %3889 = vmatprep.subr.mxu0 0.0
    %3890 = vmatpush1.msra.mxu0 0.0
    %3891 = vmatprep.subr.mxu0 0.0
    %3892 = vmatpush1.msra.mxu0 0.0
    %3893 = vmatprep.subr.mxu0 0.0
    %3894 = vmatpush1.msra.mxu0 0.0
    %3895 = vmatprep.subr.mxu0 0.0
    %3896 = vmatpush1.msra.mxu0 0.0
    %3897 = vmatprep.subr.mxu0 0.0
    %3898 = vmatpush1.msra.mxu0 0.0
    %3899 = vmatprep.subr.mxu0 0.0
    %3900 = vmatpush1.msra.mxu0 0.0
    %3901 = vmatprep.subr.mxu0 0.0
    %3902 = vmatpush1.msra.mxu0 0.0
    %3903 = vmatprep.subr.mxu0 0.0
    %3904 = vmatpush1.msra.mxu0 0.0
    %3905 = vmatprep.subr.mxu0 0.0
    %3906 = vmatpush1.msra.mxu0 0.0
    %3907 = vmatprep.subr.mxu0 0.0
    %3908 = vmatpush1.msra.mxu0 0.0
    %3909 = vmatprep.subr.mxu0 0.0
    %3910 = vmatpush1.msra.mxu0 0.0
    %3911 = vmatprep.subr.mxu0 0.0
    %3912 = vmatpush1.msra.mxu0 0.0
    %3913 = vmatprep.subr.mxu0 0.0
    %3914 = vmatpush1.msra.mxu0 0.0
    %3915 = vmatprep.subr.mxu0 0.0
    %3916 = vmatpush1.msra.mxu0 0.0
    %3917 = vmatprep.mubr.f32.mxu0 0.0
    %v3918 = vand.u32 %v54, 4294901760
    %3919 = vmatmul.mubr.f32.gmra.mrb[0].mxu0 %v3918
    %v3920 = vpop.f32.mrb[0].mxu0
    %v3921 = vadd.f32 %v3524, %v3920
    %v3922 = vpop.f32.mrb[0].mxu0
    %v3923 = vadd.f32 %v3526, %v3922
    %3924 = vmatprep.mubr.f32.mxu0 0.0
    %v3925 = vand.u32 %v55, 4294901760
    %3926 = vmatmul.mubr.f32.gmra.mrb[0].mxu0 %v3925
    %v3927 = vpop.f32.mrb[0].mxu0
    %v3928 = vadd.f32 %v3535, %v3927
    %v3929 = vpop.f32.mrb[0].mxu0
    %v3930 = vadd.f32 %v3537, %v3929
    %3931 = vmatprep.mubr.f32.mxu0 0.0
    %v3932 = vand.u32 %v56, 4294901760
    %3933 = vmatmul.mubr.f32.gmra.mrb[0].mxu0 %v3932
    %v3934 = vpop.f32.mrb[0].mxu0
    %v3935 = vadd.f32 %v3546, %v3934
    %v3936 = vpop.f32.mrb[0].mxu0
    %v3937 = vadd.f32 %v3548, %v3936
    %3938 = vmatprep.mubr.f32.mxu0 0.0
    %v3939 = vand.u32 %v57, 4294901760
    %3940 = vmatmul.mubr.f32.gmra.mrb[0].mxu0 %v3939
    %v3941 = vpop.f32.mrb[0].mxu0
    %v3942 = vadd.f32 %v3557, %v3941
    %v3943 = vpop.f32.mrb[0].mxu0
    %v3944 = vadd.f32 %v3559, %v3943
    %3945 = vmatprep.mubr.f32.mxu0 0.0
    %v3946 = vand.u32 %v58, 4294901760
    %3947 = vmatmul.mubr.f32.gmra.mrb[0].mxu0 %v3946
    %v3948 = vpop.f32.mrb[0].mxu0
    %v3949 = vadd.f32 %v3568, %v3948
    %v3950 = vpop.f32.mrb[0].mxu0
    %v3951 = vadd.f32 %v3570, %v3950
    %3952 = vmatprep.mubr.f32.mxu0 0.0
    %v3953 = vand.u32 %v59, 4294901760
    %3954 = vmatmul.mubr.f32.gmra.mrb[0].mxu0 %v3953
    %v3955 = vpop.f32.mrb[0].mxu0
    %v3956 = vadd.f32 %v3579, %v3955
    %v3957 = vpop.f32.mrb[0].mxu0
    %v3958 = vadd.f32 %v3581, %v3957
    %3959 = vmatprep.mubr.f32.mxu0 0.0
    %v3960 = vand.u32 %v60, 4294901760
    %3961 = vmatmul.mubr.f32.gmra.mrb[0].mxu0 %v3960
    %v3962 = vpop.f32.mrb[0].mxu0
    %v3963 = vadd.f32 %v3590, %v3962
    %v3964 = vpop.f32.mrb[0].mxu0
    %v3965 = vadd.f32 %v3592, %v3964
    %3966 = vmatprep.mubr.f32.mxu0 0.0
    %v3967 = vand.u32 %v61, 4294901760
    %3968 = vmatmul.mubr.f32.gmra.mrb[0].mxu0 %v3967
    %v3969 = vpop.f32.mrb[0].mxu0
    %v3970 = vadd.f32 %v3601, %v3969
    %v3971 = vpop.f32.mrb[0].mxu0
    %v3972 = vadd.f32 %v3603, %v3971
    %3973 = vmatprep.mubr.f32.mxu0 0.0
    %v3974 = vand.u32 %v62, 4294901760
    %3975 = vmatmul.mubr.f32.gmra.mrb[0].mxu0 %v3974
    %v3976 = vpop.f32.mrb[0].mxu0
    %v3977 = vadd.f32 %v3612, %v3976
    %v3978 = vpop.f32.mrb[0].mxu0
    %v3979 = vadd.f32 %v3614, %v3978
    %3980 = vmatprep.mubr.f32.mxu0 0.0
    %v3981 = vand.u32 %v63, 4294901760
    %3982 = vmatmul.mubr.f32.gmra.mrb[0].mxu0 %v3981
    %v3983 = vpop.f32.mrb[0].mxu0
    %v3984 = vadd.f32 %v3623, %v3983
    %v3985 = vpop.f32.mrb[0].mxu0
    %v3986 = vadd.f32 %v3625, %v3985
    %3987 = vmatprep.mubr.f32.mxu0 0.0
    %v3988 = vand.u32 %v64, 4294901760
    %3989 = vmatmul.mubr.f32.gmra.mrb[0].mxu0 %v3988
    %v3990 = vpop.f32.mrb[0].mxu0
    %v3991 = vadd.f32 %v3634, %v3990
    %v3992 = vpop.f32.mrb[0].mxu0
    %v3993 = vadd.f32 %v3636, %v3992
    %3994 = vmatprep.mubr.f32.mxu0 0.0
    %v3995 = vand.u32 %v65, 4294901760
    %3996 = vmatmul.mubr.f32.gmra.mrb[0].mxu0 %v3995
    %v3997 = vpop.f32.mrb[0].mxu0
    %v3998 = vadd.f32 %v3645, %v3997
    %v3999 = vpop.f32.mrb[0].mxu0
    %v4000 = vadd.f32 %v3647, %v3999
    %4001 = vmatprep.mubr.f32.mxu0 0.0
    %v4002 = vand.u32 %v66, 4294901760
    %4003 = vmatmul.mubr.f32.gmra.mrb[0].mxu0 %v4002
    %v4004 = vpop.f32.mrb[0].mxu0
    %v4005 = vadd.f32 %v3656, %v4004
    %v4006 = vpop.f32.mrb[0].mxu0
    %v4007 = vadd.f32 %v3658, %v4006
    %4008 = vmatprep.mubr.f32.mxu0 0.0
    %v4009 = vand.u32 %v67, 4294901760
    %4010 = vmatmul.mubr.f32.gmra.mrb[0].mxu0 %v4009
    %v4011 = vpop.f32.mrb[0].mxu0
    %v4012 = vadd.f32 %v3667, %v4011
    %v4013 = vpop.f32.mrb[0].mxu0
    %v4014 = vadd.f32 %v3669, %v4013
    %4015 = vmatprep.mubr.f32.mxu0 0.0
    %v4016 = vand.u32 %v68, 4294901760
    %4017 = vmatmul.mubr.f32.gmra.mrb[0].mxu0 %v4016
    %v4018 = vpop.f32.mrb[0].mxu0
    %v4019 = vadd.f32 %v3678, %v4018
    %v4020 = vpop.f32.mrb[0].mxu0
    %v4021 = vadd.f32 %v3680, %v4020
    %4022 = vmatprep.mubr.f32.mxu0 0.0
    %v4023 = vand.u32 %v69, 4294901760
    %4024 = vmatmul.mubr.f32.gmra.mrb[0].mxu0 %v4023
    %v4025 = vpop.f32.mrb[0].mxu0
    %v4026 = vadd.f32 %v3689, %v4025
    %v4027 = vpop.f32.mrb[0].mxu0
    %v4028 = vadd.f32 %v3691, %v4027
    %4029 = vdwg.mxu0
    %v4030 = vand.u32 %v75, 4294901760
    %v4031 = vsub.f32 %v75, %v4030
    %4032 = vmatprep.subr.mxu0 %v4031
    %v4033 = vand.u32 %v74, 4294901760
    %v4034 = vsub.f32 %v74, %v4033
    %4035 = vmatpush1.msra.mxu0 %v4034
    %v4036 = vand.u32 %v83, 4294901760
    %v4037 = vsub.f32 %v83, %v4036
    %4038 = vmatprep.subr.mxu0 %v4037
    %v4039 = vand.u32 %v82, 4294901760
    %v4040 = vsub.f32 %v82, %v4039
    %4041 = vmatpush1.msra.mxu0 %v4040
    %v4042 = vand.u32 %v91, 4294901760
    %v4043 = vsub.f32 %v91, %v4042
    %4044 = vmatprep.subr.mxu0 %v4043
    %v4045 = vand.u32 %v90, 4294901760
    %v4046 = vsub.f32 %v90, %v4045
    %4047 = vmatpush1.msra.mxu0 %v4046
    %v4048 = vand.u32 %v99, 4294901760
    %v4049 = vsub.f32 %v99, %v4048
    %4050 = vmatprep.subr.mxu0 %v4049
    %v4051 = vand.u32 %v98, 4294901760
    %v4052 = vsub.f32 %v98, %v4051
    %4053 = vmatpush1.msra.mxu0 %v4052
    %v4054 = vand.u32 %v107, 4294901760
    %v4055 = vsub.f32 %v107, %v4054
    %4056 = vmatprep.subr.mxu0 %v4055
    %v4057 = vand.u32 %v106, 4294901760
    %v4058 = vsub.f32 %v106, %v4057
    %4059 = vmatpush1.msra.mxu0 %v4058
    %v4060 = vand.u32 %v115, 4294901760
    %v4061 = vsub.f32 %v115, %v4060
    %4062 = vmatprep.subr.mxu0 %v4061
    %v4063 = vand.u32 %v114, 4294901760
    %v4064 = vsub.f32 %v114, %v4063
    %4065 = vmatpush1.msra.mxu0 %v4064
    %v4066 = vand.u32 %v123, 4294901760
    %v4067 = vsub.f32 %v123, %v4066
    %4068 = vmatprep.subr.mxu0 %v4067
    %v4069 = vand.u32 %v122, 4294901760
    %v4070 = vsub.f32 %v122, %v4069
    %4071 = vmatpush1.msra.mxu0 %v4070
    %v4072 = vand.u32 %v131, 4294901760
    %v4073 = vsub.f32 %v131, %v4072
    %4074 = vmatprep.subr.mxu0 %v4073
    %v4075 = vand.u32 %v130, 4294901760
    %v4076 = vsub.f32 %v130, %v4075
    %4077 = vmatpush1.msra.mxu0 %v4076
    %v4078 = vand.u32 %v139, 4294901760
    %v4079 = vsub.f32 %v139, %v4078
    %4080 = vmatprep.subr.mxu0 %v4079
    %v4081 = vand.u32 %v138, 4294901760
    %v4082 = vsub.f32 %v138, %v4081
    %4083 = vmatpush1.msra.mxu0 %v4082
    %v4084 = vand.u32 %v147, 4294901760
    %v4085 = vsub.f32 %v147, %v4084
    %4086 = vmatprep.subr.mxu0 %v4085
    %v4087 = vand.u32 %v146, 4294901760
    %v4088 = vsub.f32 %v146, %v4087
    %4089 = vmatpush1.msra.mxu0 %v4088
    %v4090 = vand.u32 %v155, 4294901760
    %v4091 = vsub.f32 %v155, %v4090
    %4092 = vmatprep.subr.mxu0 %v4091
    %v4093 = vand.u32 %v154, 4294901760
    %v4094 = vsub.f32 %v154, %v4093
    %4095 = vmatpush1.msra.mxu0 %v4094
    %v4096 = vand.u32 %v163, 4294901760
    %v4097 = vsub.f32 %v163, %v4096
    %4098 = vmatprep.subr.mxu0 %v4097
    %v4099 = vand.u32 %v162, 4294901760
    %v4100 = vsub.f32 %v162, %v4099
    %4101 = vmatpush1.msra.mxu0 %v4100
    %v4102 = vand.u32 %v171, 4294901760
    %v4103 = vsub.f32 %v171, %v4102
    %4104 = vmatprep.subr.mxu0 %v4103
    %v4105 = vand.u32 %v170, 4294901760
    %v4106 = vsub.f32 %v170, %v4105
    %4107 = vmatpush1.msra.mxu0 %v4106
    %v4108 = vand.u32 %v179, 4294901760
    %v4109 = vsub.f32 %v179, %v4108
    %4110 = vmatprep.subr.mxu0 %v4109
    %v4111 = vand.u32 %v178, 4294901760
    %v4112 = vsub.f32 %v178, %v4111
    %4113 = vmatpush1.msra.mxu0 %v4112
    %v4114 = vand.u32 %v187, 4294901760
    %v4115 = vsub.f32 %v187, %v4114
    %4116 = vmatprep.subr.mxu0 %v4115
    %v4117 = vand.u32 %v186, 4294901760
    %v4118 = vsub.f32 %v186, %v4117
    %4119 = vmatpush1.msra.mxu0 %v4118
    %v4120 = vand.u32 %v195, 4294901760
    %v4121 = vsub.f32 %v195, %v4120
    %4122 = vmatprep.subr.mxu0 %v4121
    %v4123 = vand.u32 %v194, 4294901760
    %v4124 = vsub.f32 %v194, %v4123
    %4125 = vmatpush1.msra.mxu0 %v4124
    %4126 = vmatprep.subr.mxu0 0.0
    %4127 = vmatpush1.msra.mxu0 0.0
    %4128 = vmatprep.subr.mxu0 0.0
    %4129 = vmatpush1.msra.mxu0 0.0
    %4130 = vmatprep.subr.mxu0 0.0
    %4131 = vmatpush1.msra.mxu0 0.0
    %4132 = vmatprep.subr.mxu0 0.0
    %4133 = vmatpush1.msra.mxu0 0.0
    %4134 = vmatprep.subr.mxu0 0.0
    %4135 = vmatpush1.msra.mxu0 0.0
    %4136 = vmatprep.subr.mxu0 0.0
    %4137 = vmatpush1.msra.mxu0 0.0
    %4138 = vmatprep.subr.mxu0 0.0
    %4139 = vmatpush1.msra.mxu0 0.0
    %4140 = vmatprep.subr.mxu0 0.0
    %4141 = vmatpush1.msra.mxu0 0.0
    %4142 = vmatprep.subr.mxu0 0.0
    %4143 = vmatpush1.msra.mxu0 0.0
    %4144 = vmatprep.subr.mxu0 0.0
    %4145 = vmatpush1.msra.mxu0 0.0
    %4146 = vmatprep.subr.mxu0 0.0
    %4147 = vmatpush1.msra.mxu0 0.0
    %4148 = vmatprep.subr.mxu0 0.0
    %4149 = vmatpush1.msra.mxu0 0.0
    %4150 = vmatprep.subr.mxu0 0.0
    %4151 = vmatpush1.msra.mxu0 0.0
    %4152 = vmatprep.subr.mxu0 0.0
    %4153 = vmatpush1.msra.mxu0 0.0
    %4154 = vmatprep.subr.mxu0 0.0
    %4155 = vmatpush1.msra.mxu0 0.0
    %4156 = vmatprep.subr.mxu0 0.0
    %4157 = vmatpush1.msra.mxu0 0.0
    %4158 = vmatprep.mubr.f32.mxu0 0.0
    %v4159 = vand.u32 %v54, 4294901760
    %v4160 = vsub.f32 %v54, %v4159
    %4161 = vmatmul.mubr.f32.gmra.mrb[0].mxu0 %v4160
    %v4162 = vpop.f32.mrb[0].mxu0
    %v4163 = vadd.f32 %v3921, %v4162
    %v4164 = vpop.f32.mrb[0].mxu0
    %v4165 = vadd.f32 %v3923, %v4164
    %4166 = vmatprep.mubr.f32.mxu0 0.0
    %v4167 = vand.u32 %v55, 4294901760
    %v4168 = vsub.f32 %v55, %v4167
    %4169 = vmatmul.mubr.f32.gmra.mrb[0].mxu0 %v4168
    %v4170 = vpop.f32.mrb[0].mxu0
    %v4171 = vadd.f32 %v3928, %v4170
    %v4172 = vpop.f32.mrb[0].mxu0
    %v4173 = vadd.f32 %v3930, %v4172
    %4174 = vmatprep.mubr.f32.mxu0 0.0
    %v4175 = vand.u32 %v56, 4294901760
    %v4176 = vsub.f32 %v56, %v4175
    %4177 = vmatmul.mubr.f32.gmra.mrb[0].mxu0 %v4176
    %v4178 = vpop.f32.mrb[0].mxu0
    %v4179 = vadd.f32 %v3935, %v4178
    %v4180 = vpop.f32.mrb[0].mxu0
    %v4181 = vadd.f32 %v3937, %v4180
    %4182 = vmatprep.mubr.f32.mxu0 0.0
    %v4183 = vand.u32 %v57, 4294901760
    %v4184 = vsub.f32 %v57, %v4183
    %4185 = vmatmul.mubr.f32.gmra.mrb[0].mxu0 %v4184
    %v4186 = vpop.f32.mrb[0].mxu0
    %v4187 = vadd.f32 %v3942, %v4186
    %v4188 = vpop.f32.mrb[0].mxu0
    %v4189 = vadd.f32 %v3944, %v4188
    %4190 = vmatprep.mubr.f32.mxu0 0.0
    %v4191 = vand.u32 %v58, 4294901760
    %v4192 = vsub.f32 %v58, %v4191
    %4193 = vmatmul.mubr.f32.gmra.mrb[0].mxu0 %v4192
    %v4194 = vpop.f32.mrb[0].mxu0
    %v4195 = vadd.f32 %v3949, %v4194
    %v4196 = vpop.f32.mrb[0].mxu0
    %v4197 = vadd.f32 %v3951, %v4196
    %4198 = vmatprep.mubr.f32.mxu0 0.0
    %v4199 = vand.u32 %v59, 4294901760
    %v4200 = vsub.f32 %v59, %v4199
    %4201 = vmatmul.mubr.f32.gmra.mrb[0].mxu0 %v4200
    %v4202 = vpop.f32.mrb[0].mxu0
    %v4203 = vadd.f32 %v3956, %v4202
    %v4204 = vpop.f32.mrb[0].mxu0
    %v4205 = vadd.f32 %v3958, %v4204
    %4206 = vmatprep.mubr.f32.mxu0 0.0
    %v4207 = vand.u32 %v60, 4294901760
    %v4208 = vsub.f32 %v60, %v4207
    %4209 = vmatmul.mubr.f32.gmra.mrb[0].mxu0 %v4208
    %v4210 = vpop.f32.mrb[0].mxu0
    %v4211 = vadd.f32 %v3963, %v4210
    %v4212 = vpop.f32.mrb[0].mxu0
    %v4213 = vadd.f32 %v3965, %v4212
    %4214 = vmatprep.mubr.f32.mxu0 0.0
    %v4215 = vand.u32 %v61, 4294901760
    %v4216 = vsub.f32 %v61, %v4215
    %4217 = vmatmul.mubr.f32.gmra.mrb[0].mxu0 %v4216
    %v4218 = vpop.f32.mrb[0].mxu0
    %v4219 = vadd.f32 %v3970, %v4218
    %v4220 = vpop.f32.mrb[0].mxu0
    %v4221 = vadd.f32 %v3972, %v4220
    %4222 = vmatprep.mubr.f32.mxu0 0.0
    %v4223 = vand.u32 %v62, 4294901760
    %v4224 = vsub.f32 %v62, %v4223
    %4225 = vmatmul.mubr.f32.gmra.mrb[0].mxu0 %v4224
    %v4226 = vpop.f32.mrb[0].mxu0
    %v4227 = vadd.f32 %v3977, %v4226
    %v4228 = vpop.f32.mrb[0].mxu0
    %v4229 = vadd.f32 %v3979, %v4228
    %4230 = vmatprep.mubr.f32.mxu0 0.0
    %v4231 = vand.u32 %v63, 4294901760
    %v4232 = vsub.f32 %v63, %v4231
    %4233 = vmatmul.mubr.f32.gmra.mrb[0].mxu0 %v4232
    %v4234 = vpop.f32.mrb[0].mxu0
    %v4235 = vadd.f32 %v3984, %v4234
    %v4236 = vpop.f32.mrb[0].mxu0
    %v4237 = vadd.f32 %v3986, %v4236
    %4238 = vmatprep.mubr.f32.mxu0 0.0
    %v4239 = vand.u32 %v64, 4294901760
    %v4240 = vsub.f32 %v64, %v4239
    %4241 = vmatmul.mubr.f32.gmra.mrb[0].mxu0 %v4240
    %v4242 = vpop.f32.mrb[0].mxu0
    %v4243 = vadd.f32 %v3991, %v4242
    %v4244 = vpop.f32.mrb[0].mxu0
    %v4245 = vadd.f32 %v3993, %v4244
    %4246 = vmatprep.mubr.f32.mxu0 0.0
    %v4247 = vand.u32 %v65, 4294901760
    %v4248 = vsub.f32 %v65, %v4247
    %4249 = vmatmul.mubr.f32.gmra.mrb[0].mxu0 %v4248
    %v4250 = vpop.f32.mrb[0].mxu0
    %v4251 = vadd.f32 %v3998, %v4250
    %v4252 = vpop.f32.mrb[0].mxu0
    %v4253 = vadd.f32 %v4000, %v4252
    %4254 = vmatprep.mubr.f32.mxu0 0.0
    %v4255 = vand.u32 %v66, 4294901760
    %v4256 = vsub.f32 %v66, %v4255
    %4257 = vmatmul.mubr.f32.gmra.mrb[0].mxu0 %v4256
    %v4258 = vpop.f32.mrb[0].mxu0
    %v4259 = vadd.f32 %v4005, %v4258
    %v4260 = vpop.f32.mrb[0].mxu0
    %v4261 = vadd.f32 %v4007, %v4260
    %4262 = vmatprep.mubr.f32.mxu0 0.0
    %v4263 = vand.u32 %v67, 4294901760
    %v4264 = vsub.f32 %v67, %v4263
    %4265 = vmatmul.mubr.f32.gmra.mrb[0].mxu0 %v4264
    %v4266 = vpop.f32.mrb[0].mxu0
    %v4267 = vadd.f32 %v4012, %v4266
    %v4268 = vpop.f32.mrb[0].mxu0
    %v4269 = vadd.f32 %v4014, %v4268
    %4270 = vmatprep.mubr.f32.mxu0 0.0
    %v4271 = vand.u32 %v68, 4294901760
    %v4272 = vsub.f32 %v68, %v4271
    %4273 = vmatmul.mubr.f32.gmra.mrb[0].mxu0 %v4272
    %v4274 = vpop.f32.mrb[0].mxu0
    %v4275 = vadd.f32 %v4019, %v4274
    %v4276 = vpop.f32.mrb[0].mxu0
    %v4277 = vadd.f32 %v4021, %v4276
    %4278 = vmatprep.mubr.f32.mxu0 0.0
    %v4279 = vand.u32 %v69, 4294901760
    %v4280 = vsub.f32 %v69, %v4279
    %4281 = vmatmul.mubr.f32.gmra.mrb[0].mxu0 %v4280
    %v4282 = vpop.f32.mrb[0].mxu0
    %v4283 = vadd.f32 %v4026, %v4282
    %v4284 = vpop.f32.mrb[0].mxu0
    %v4285 = vadd.f32 %v4028, %v4284
    %4286 = vdwg.mxu0
    %v4287 = vand.u32 %v75, 4294901760
    %4288 = vmatprep.subr.mxu0 %v4287
    %v4289 = vand.u32 %v74, 4294901760
    %4290 = vmatpush1.msra.mxu0 %v4289
    %v4291 = vand.u32 %v83, 4294901760
    %4292 = vmatprep.subr.mxu0 %v4291
    %v4293 = vand.u32 %v82, 4294901760
    %4294 = vmatpush1.msra.mxu0 %v4293
    %v4295 = vand.u32 %v91, 4294901760
    %4296 = vmatprep.subr.mxu0 %v4295
    %v4297 = vand.u32 %v90, 4294901760
    %4298 = vmatpush1.msra.mxu0 %v4297
    %v4299 = vand.u32 %v99, 4294901760
    %4300 = vmatprep.subr.mxu0 %v4299
    %v4301 = vand.u32 %v98, 4294901760
    %4302 = vmatpush1.msra.mxu0 %v4301
    %v4303 = vand.u32 %v107, 4294901760
    %4304 = vmatprep.subr.mxu0 %v4303
    %v4305 = vand.u32 %v106, 4294901760
    %4306 = vmatpush1.msra.mxu0 %v4305
    %v4307 = vand.u32 %v115, 4294901760
    %4308 = vmatprep.subr.mxu0 %v4307
    %v4309 = vand.u32 %v114, 4294901760
    %4310 = vmatpush1.msra.mxu0 %v4309
    %v4311 = vand.u32 %v123, 4294901760
    %4312 = vmatprep.subr.mxu0 %v4311
    %v4313 = vand.u32 %v122, 4294901760
    %4314 = vmatpush1.msra.mxu0 %v4313
    %v4315 = vand.u32 %v131, 4294901760
    %4316 = vmatprep.subr.mxu0 %v4315
    %v4317 = vand.u32 %v130, 4294901760
    %4318 = vmatpush1.msra.mxu0 %v4317
    %v4319 = vand.u32 %v139, 4294901760
    %4320 = vmatprep.subr.mxu0 %v4319
    %v4321 = vand.u32 %v138, 4294901760
    %4322 = vmatpush1.msra.mxu0 %v4321
    %v4323 = vand.u32 %v147, 4294901760
    %4324 = vmatprep.subr.mxu0 %v4323
    %v4325 = vand.u32 %v146, 4294901760
    %4326 = vmatpush1.msra.mxu0 %v4325
    %v4327 = vand.u32 %v155, 4294901760
    %4328 = vmatprep.subr.mxu0 %v4327
    %v4329 = vand.u32 %v154, 4294901760
    %4330 = vmatpush1.msra.mxu0 %v4329
    %v4331 = vand.u32 %v163, 4294901760
    %4332 = vmatprep.subr.mxu0 %v4331
    %v4333 = vand.u32 %v162, 4294901760
    %4334 = vmatpush1.msra.mxu0 %v4333
    %v4335 = vand.u32 %v171, 4294901760
    %4336 = vmatprep.subr.mxu0 %v4335
    %v4337 = vand.u32 %v170, 4294901760
    %4338 = vmatpush1.msra.mxu0 %v4337
    %v4339 = vand.u32 %v179, 4294901760
    %4340 = vmatprep.subr.mxu0 %v4339
    %v4341 = vand.u32 %v178, 4294901760
    %4342 = vmatpush1.msra.mxu0 %v4341
    %v4343 = vand.u32 %v187, 4294901760
    %4344 = vmatprep.subr.mxu0 %v4343
    %v4345 = vand.u32 %v186, 4294901760
    %4346 = vmatpush1.msra.mxu0 %v4345
    %v4347 = vand.u32 %v195, 4294901760
    %4348 = vmatprep.subr.mxu0 %v4347
    %v4349 = vand.u32 %v194, 4294901760
    %4350 = vmatpush1.msra.mxu0 %v4349
    %4351 = vmatprep.subr.mxu0 0.0
    %4352 = vmatpush1.msra.mxu0 0.0
    %4353 = vmatprep.subr.mxu0 0.0
    %4354 = vmatpush1.msra.mxu0 0.0
    %4355 = vmatprep.subr.mxu0 0.0
    %4356 = vmatpush1.msra.mxu0 0.0
    %4357 = vmatprep.subr.mxu0 0.0
    %4358 = vmatpush1.msra.mxu0 0.0
    %4359 = vmatprep.subr.mxu0 0.0
    %4360 = vmatpush1.msra.mxu0 0.0
    %4361 = vmatprep.subr.mxu0 0.0
    %4362 = vmatpush1.msra.mxu0 0.0
    %4363 = vmatprep.subr.mxu0 0.0
    %4364 = vmatpush1.msra.mxu0 0.0
    %4365 = vmatprep.subr.mxu0 0.0
    %4366 = vmatpush1.msra.mxu0 0.0
    %4367 = vmatprep.subr.mxu0 0.0
    %4368 = vmatpush1.msra.mxu0 0.0
    %4369 = vmatprep.subr.mxu0 0.0
    %4370 = vmatpush1.msra.mxu0 0.0
    %4371 = vmatprep.subr.mxu0 0.0
    %4372 = vmatpush1.msra.mxu0 0.0
    %4373 = vmatprep.subr.mxu0 0.0
    %4374 = vmatpush1.msra.mxu0 0.0
    %4375 = vmatprep.subr.mxu0 0.0
    %4376 = vmatpush1.msra.mxu0 0.0
    %4377 = vmatprep.subr.mxu0 0.0
    %4378 = vmatpush1.msra.mxu0 0.0
    %4379 = vmatprep.subr.mxu0 0.0
    %4380 = vmatpush1.msra.mxu0 0.0
    %4381 = vmatprep.subr.mxu0 0.0
    %4382 = vmatpush1.msra.mxu0 0.0
    %4383 = vmatprep.mubr.f32.mxu0 0.0
    %v4384 = vand.u32 %v54, 4294901760
    %v4385 = vsub.f32 %v54, %v4384
    %v4386 = vand.u32 %v4385, 4294901760
    %4387 = vmatmul.mubr.f32.gmra.mrb[0].mxu0 %v4386
    %v4388 = vpop.f32.mrb[0].mxu0
    %v4389 = vadd.f32 %v4163, %v4388
    %v4390 = vpop.f32.mrb[0].mxu0
    %v4391 = vadd.f32 %v4165, %v4390
    %4392 = vmatprep.mubr.f32.mxu0 0.0
    %v4393 = vand.u32 %v55, 4294901760
    %v4394 = vsub.f32 %v55, %v4393
    %v4395 = vand.u32 %v4394, 4294901760
    %4396 = vmatmul.mubr.f32.gmra.mrb[0].mxu0 %v4395
    %v4397 = vpop.f32.mrb[0].mxu0
    %v4398 = vadd.f32 %v4171, %v4397
    %v4399 = vpop.f32.mrb[0].mxu0
    %v4400 = vadd.f32 %v4173, %v4399
    %4401 = vmatprep.mubr.f32.mxu0 0.0
    %v4402 = vand.u32 %v56, 4294901760
    %v4403 = vsub.f32 %v56, %v4402
    %v4404 = vand.u32 %v4403, 4294901760
    %4405 = vmatmul.mubr.f32.gmra.mrb[0].mxu0 %v4404
    %v4406 = vpop.f32.mrb[0].mxu0
    %v4407 = vadd.f32 %v4179, %v4406
    %v4408 = vpop.f32.mrb[0].mxu0
    %v4409 = vadd.f32 %v4181, %v4408
    %4410 = vmatprep.mubr.f32.mxu0 0.0
    %v4411 = vand.u32 %v57, 4294901760
    %v4412 = vsub.f32 %v57, %v4411
    %v4413 = vand.u32 %v4412, 4294901760
    %4414 = vmatmul.mubr.f32.gmra.mrb[0].mxu0 %v4413
    %v4415 = vpop.f32.mrb[0].mxu0
    %v4416 = vadd.f32 %v4187, %v4415
    %v4417 = vpop.f32.mrb[0].mxu0
    %v4418 = vadd.f32 %v4189, %v4417
    %4419 = vmatprep.mubr.f32.mxu0 0.0
    %v4420 = vand.u32 %v58, 4294901760
    %v4421 = vsub.f32 %v58, %v4420
    %v4422 = vand.u32 %v4421, 4294901760
    %4423 = vmatmul.mubr.f32.gmra.mrb[0].mxu0 %v4422
    %v4424 = vpop.f32.mrb[0].mxu0
    %v4425 = vadd.f32 %v4195, %v4424
    %v4426 = vpop.f32.mrb[0].mxu0
    %v4427 = vadd.f32 %v4197, %v4426
    %4428 = vmatprep.mubr.f32.mxu0 0.0
    %v4429 = vand.u32 %v59, 4294901760
    %v4430 = vsub.f32 %v59, %v4429
    %v4431 = vand.u32 %v4430, 4294901760
    %4432 = vmatmul.mubr.f32.gmra.mrb[0].mxu0 %v4431
    %v4433 = vpop.f32.mrb[0].mxu0
    %v4434 = vadd.f32 %v4203, %v4433
    %v4435 = vpop.f32.mrb[0].mxu0
    %v4436 = vadd.f32 %v4205, %v4435
    %4437 = vmatprep.mubr.f32.mxu0 0.0
    %v4438 = vand.u32 %v60, 4294901760
    %v4439 = vsub.f32 %v60, %v4438
    %v4440 = vand.u32 %v4439, 4294901760
    %4441 = vmatmul.mubr.f32.gmra.mrb[0].mxu0 %v4440
    %v4442 = vpop.f32.mrb[0].mxu0
    %v4443 = vadd.f32 %v4211, %v4442
    %v4444 = vpop.f32.mrb[0].mxu0
    %v4445 = vadd.f32 %v4213, %v4444
    %4446 = vmatprep.mubr.f32.mxu0 0.0
    %v4447 = vand.u32 %v61, 4294901760
    %v4448 = vsub.f32 %v61, %v4447
    %v4449 = vand.u32 %v4448, 4294901760
    %4450 = vmatmul.mubr.f32.gmra.mrb[0].mxu0 %v4449
    %v4451 = vpop.f32.mrb[0].mxu0
    %v4452 = vadd.f32 %v4219, %v4451
    %v4453 = vpop.f32.mrb[0].mxu0
    %v4454 = vadd.f32 %v4221, %v4453
    %4455 = vmatprep.mubr.f32.mxu0 0.0
    %v4456 = vand.u32 %v62, 4294901760
    %v4457 = vsub.f32 %v62, %v4456
    %v4458 = vand.u32 %v4457, 4294901760
    %4459 = vmatmul.mubr.f32.gmra.mrb[0].mxu0 %v4458
    %v4460 = vpop.f32.mrb[0].mxu0
    %v4461 = vadd.f32 %v4227, %v4460
    %v4462 = vpop.f32.mrb[0].mxu0
    %v4463 = vadd.f32 %v4229, %v4462
    %4464 = vmatprep.mubr.f32.mxu0 0.0
    %v4465 = vand.u32 %v63, 4294901760
    %v4466 = vsub.f32 %v63, %v4465
    %v4467 = vand.u32 %v4466, 4294901760
    %4468 = vmatmul.mubr.f32.gmra.mrb[0].mxu0 %v4467
    %v4469 = vpop.f32.mrb[0].mxu0
    %v4470 = vadd.f32 %v4235, %v4469
    %v4471 = vpop.f32.mrb[0].mxu0
    %v4472 = vadd.f32 %v4237, %v4471
    %4473 = vmatprep.mubr.f32.mxu0 0.0
    %v4474 = vand.u32 %v64, 4294901760
    %v4475 = vsub.f32 %v64, %v4474
    %v4476 = vand.u32 %v4475, 4294901760
    %4477 = vmatmul.mubr.f32.gmra.mrb[0].mxu0 %v4476
    %v4478 = vpop.f32.mrb[0].mxu0
    %v4479 = vadd.f32 %v4243, %v4478
    %v4480 = vpop.f32.mrb[0].mxu0
    %v4481 = vadd.f32 %v4245, %v4480
    %4482 = vmatprep.mubr.f32.mxu0 0.0
    %v4483 = vand.u32 %v65, 4294901760
    %v4484 = vsub.f32 %v65, %v4483
    %v4485 = vand.u32 %v4484, 4294901760
    %4486 = vmatmul.mubr.f32.gmra.mrb[0].mxu0 %v4485
    %v4487 = vpop.f32.mrb[0].mxu0
    %v4488 = vadd.f32 %v4251, %v4487
    %v4489 = vpop.f32.mrb[0].mxu0
    %v4490 = vadd.f32 %v4253, %v4489
    %4491 = vmatprep.mubr.f32.mxu0 0.0
    %v4492 = vand.u32 %v66, 4294901760
    %v4493 = vsub.f32 %v66, %v4492
    %v4494 = vand.u32 %v4493, 4294901760
    %4495 = vmatmul.mubr.f32.gmra.mrb[0].mxu0 %v4494
    %v4496 = vpop.f32.mrb[0].mxu0
    %v4497 = vadd.f32 %v4259, %v4496
    %v4498 = vpop.f32.mrb[0].mxu0
    %v4499 = vadd.f32 %v4261, %v4498
    %4500 = vmatprep.mubr.f32.mxu0 0.0
    %v4501 = vand.u32 %v67, 4294901760
    %v4502 = vsub.f32 %v67, %v4501
    %v4503 = vand.u32 %v4502, 4294901760
    %4504 = vmatmul.mubr.f32.gmra.mrb[0].mxu0 %v4503
    %v4505 = vpop.f32.mrb[0].mxu0
    %v4506 = vadd.f32 %v4267, %v4505
    %v4507 = vpop.f32.mrb[0].mxu0
    %v4508 = vadd.f32 %v4269, %v4507
    %4509 = vmatprep.mubr.f32.mxu0 0.0
    %v4510 = vand.u32 %v68, 4294901760
    %v4511 = vsub.f32 %v68, %v4510
    %v4512 = vand.u32 %v4511, 4294901760
    %4513 = vmatmul.mubr.f32.gmra.mrb[0].mxu0 %v4512
    %v4514 = vpop.f32.mrb[0].mxu0
    %v4515 = vadd.f32 %v4275, %v4514
    %v4516 = vpop.f32.mrb[0].mxu0
    %v4517 = vadd.f32 %v4277, %v4516
    %4518 = vmatprep.mubr.f32.mxu0 0.0
    %v4519 = vand.u32 %v69, 4294901760
    %v4520 = vsub.f32 %v69, %v4519
    %v4521 = vand.u32 %v4520, 4294901760
    %4522 = vmatmul.mubr.f32.gmra.mrb[0].mxu0 %v4521
    %v4523 = vpop.f32.mrb[0].mxu0
    %v4524 = vadd.f32 %v4283, %v4523
    %v4525 = vpop.f32.mrb[0].mxu0
    %v4526 = vadd.f32 %v4285, %v4525
    %4527 = vdwg.mxu0
    %v4528 = vand.u32 %v75, 4294901760
    %v4529 = vsub.f32 %v75, %v4528
    %v4530 = vand.u32 %v4529, 4294901760
    %4531 = vmatprep.subr.mxu0 %v4530
    %v4532 = vand.u32 %v74, 4294901760
    %v4533 = vsub.f32 %v74, %v4532
    %v4534 = vand.u32 %v4533, 4294901760
    %4535 = vmatpush1.msra.mxu0 %v4534
    %v4536 = vand.u32 %v83, 4294901760
    %v4537 = vsub.f32 %v83, %v4536
    %v4538 = vand.u32 %v4537, 4294901760
    %4539 = vmatprep.subr.mxu0 %v4538
    %v4540 = vand.u32 %v82, 4294901760
    %v4541 = vsub.f32 %v82, %v4540
    %v4542 = vand.u32 %v4541, 4294901760
    %4543 = vmatpush1.msra.mxu0 %v4542
    %v4544 = vand.u32 %v91, 4294901760
    %v4545 = vsub.f32 %v91, %v4544
    %v4546 = vand.u32 %v4545, 4294901760
    %4547 = vmatprep.subr.mxu0 %v4546
    %v4548 = vand.u32 %v90, 4294901760
    %v4549 = vsub.f32 %v90, %v4548
    %v4550 = vand.u32 %v4549, 4294901760
    %4551 = vmatpush1.msra.mxu0 %v4550
    %v4552 = vand.u32 %v99, 4294901760
    %v4553 = vsub.f32 %v99, %v4552
    %v4554 = vand.u32 %v4553, 4294901760
    %4555 = vmatprep.subr.mxu0 %v4554
    %v4556 = vand.u32 %v98, 4294901760
    %v4557 = vsub.f32 %v98, %v4556
    %v4558 = vand.u32 %v4557, 4294901760
    %4559 = vmatpush1.msra.mxu0 %v4558
    %v4560 = vand.u32 %v107, 4294901760
    %v4561 = vsub.f32 %v107, %v4560
    %v4562 = vand.u32 %v4561, 4294901760
    %4563 = vmatprep.subr.mxu0 %v4562
    %v4564 = vand.u32 %v106, 4294901760
    %v4565 = vsub.f32 %v106, %v4564
    %v4566 = vand.u32 %v4565, 4294901760
    %4567 = vmatpush1.msra.mxu0 %v4566
    %v4568 = vand.u32 %v115, 4294901760
    %v4569 = vsub.f32 %v115, %v4568
    %v4570 = vand.u32 %v4569, 4294901760
    %4571 = vmatprep.subr.mxu0 %v4570
    %v4572 = vand.u32 %v114, 4294901760
    %v4573 = vsub.f32 %v114, %v4572
    %v4574 = vand.u32 %v4573, 4294901760
    %4575 = vmatpush1.msra.mxu0 %v4574
    %v4576 = vand.u32 %v123, 4294901760
    %v4577 = vsub.f32 %v123, %v4576
    %v4578 = vand.u32 %v4577, 4294901760
    %4579 = vmatprep.subr.mxu0 %v4578
    %v4580 = vand.u32 %v122, 4294901760
    %v4581 = vsub.f32 %v122, %v4580
    %v4582 = vand.u32 %v4581, 4294901760
    %4583 = vmatpush1.msra.mxu0 %v4582
    %v4584 = vand.u32 %v131, 4294901760
    %v4585 = vsub.f32 %v131, %v4584
    %v4586 = vand.u32 %v4585, 4294901760
    %4587 = vmatprep.subr.mxu0 %v4586
    %v4588 = vand.u32 %v130, 4294901760
    %v4589 = vsub.f32 %v130, %v4588
    %v4590 = vand.u32 %v4589, 4294901760
    %4591 = vmatpush1.msra.mxu0 %v4590
    %v4592 = vand.u32 %v139, 4294901760
    %v4593 = vsub.f32 %v139, %v4592
    %v4594 = vand.u32 %v4593, 4294901760
    %4595 = vmatprep.subr.mxu0 %v4594
    %v4596 = vand.u32 %v138, 4294901760
    %v4597 = vsub.f32 %v138, %v4596
    %v4598 = vand.u32 %v4597, 4294901760
    %4599 = vmatpush1.msra.mxu0 %v4598
    %v4600 = vand.u32 %v147, 4294901760
    %v4601 = vsub.f32 %v147, %v4600
    %v4602 = vand.u32 %v4601, 4294901760
    %4603 = vmatprep.subr.mxu0 %v4602
    %v4604 = vand.u32 %v146, 4294901760
    %v4605 = vsub.f32 %v146, %v4604
    %v4606 = vand.u32 %v4605, 4294901760
    %4607 = vmatpush1.msra.mxu0 %v4606
    %v4608 = vand.u32 %v155, 4294901760
    %v4609 = vsub.f32 %v155, %v4608
    %v4610 = vand.u32 %v4609, 4294901760
    %4611 = vmatprep.subr.mxu0 %v4610
    %v4612 = vand.u32 %v154, 4294901760
    %v4613 = vsub.f32 %v154, %v4612
    %v4614 = vand.u32 %v4613, 4294901760
    %4615 = vmatpush1.msra.mxu0 %v4614
    %v4616 = vand.u32 %v163, 4294901760
    %v4617 = vsub.f32 %v163, %v4616
    %v4618 = vand.u32 %v4617, 4294901760
    %4619 = vmatprep.subr.mxu0 %v4618
    %v4620 = vand.u32 %v162, 4294901760
    %v4621 = vsub.f32 %v162, %v4620
    %v4622 = vand.u32 %v4621, 4294901760
    %4623 = vmatpush1.msra.mxu0 %v4622
    %v4624 = vand.u32 %v171, 4294901760
    %v4625 = vsub.f32 %v171, %v4624
    %v4626 = vand.u32 %v4625, 4294901760
    %4627 = vmatprep.subr.mxu0 %v4626
    %v4628 = vand.u32 %v170, 4294901760
    %v4629 = vsub.f32 %v170, %v4628
    %v4630 = vand.u32 %v4629, 4294901760
    %4631 = vmatpush1.msra.mxu0 %v4630
    %v4632 = vand.u32 %v179, 4294901760
    %v4633 = vsub.f32 %v179, %v4632
    %v4634 = vand.u32 %v4633, 4294901760
    %4635 = vmatprep.subr.mxu0 %v4634
    %v4636 = vand.u32 %v178, 4294901760
    %v4637 = vsub.f32 %v178, %v4636
    %v4638 = vand.u32 %v4637, 4294901760
    %4639 = vmatpush1.msra.mxu0 %v4638
    %v4640 = vand.u32 %v187, 4294901760
    %v4641 = vsub.f32 %v187, %v4640
    %v4642 = vand.u32 %v4641, 4294901760
    %4643 = vmatprep.subr.mxu0 %v4642
    %v4644 = vand.u32 %v186, 4294901760
    %v4645 = vsub.f32 %v186, %v4644
    %v4646 = vand.u32 %v4645, 4294901760
    %4647 = vmatpush1.msra.mxu0 %v4646
    %v4648 = vand.u32 %v195, 4294901760
    %v4649 = vsub.f32 %v195, %v4648
    %v4650 = vand.u32 %v4649, 4294901760
    %4651 = vmatprep.subr.mxu0 %v4650
    %v4652 = vand.u32 %v194, 4294901760
    %v4653 = vsub.f32 %v194, %v4652
    %v4654 = vand.u32 %v4653, 4294901760
    %4655 = vmatpush1.msra.mxu0 %v4654
    %4656 = vmatprep.subr.mxu0 0.0
    %4657 = vmatpush1.msra.mxu0 0.0
    %4658 = vmatprep.subr.mxu0 0.0
    %4659 = vmatpush1.msra.mxu0 0.0
    %4660 = vmatprep.subr.mxu0 0.0
    %4661 = vmatpush1.msra.mxu0 0.0
    %4662 = vmatprep.subr.mxu0 0.0
    %4663 = vmatpush1.msra.mxu0 0.0
    %4664 = vmatprep.subr.mxu0 0.0
    %4665 = vmatpush1.msra.mxu0 0.0
    %4666 = vmatprep.subr.mxu0 0.0
    %4667 = vmatpush1.msra.mxu0 0.0
    %4668 = vmatprep.subr.mxu0 0.0
    %4669 = vmatpush1.msra.mxu0 0.0
    %4670 = vmatprep.subr.mxu0 0.0
    %4671 = vmatpush1.msra.mxu0 0.0
    %4672 = vmatprep.subr.mxu0 0.0
    %4673 = vmatpush1.msra.mxu0 0.0
    %4674 = vmatprep.subr.mxu0 0.0
    %4675 = vmatpush1.msra.mxu0 0.0
    %4676 = vmatprep.subr.mxu0 0.0
    %4677 = vmatpush1.msra.mxu0 0.0
    %4678 = vmatprep.subr.mxu0 0.0
    %4679 = vmatpush1.msra.mxu0 0.0
    %4680 = vmatprep.subr.mxu0 0.0
    %4681 = vmatpush1.msra.mxu0 0.0
    %4682 = vmatprep.subr.mxu0 0.0
    %4683 = vmatpush1.msra.mxu0 0.0
    %4684 = vmatprep.subr.mxu0 0.0
    %4685 = vmatpush1.msra.mxu0 0.0
    %4686 = vmatprep.subr.mxu0 0.0
    %4687 = vmatpush1.msra.mxu0 0.0
    %4688 = vmatprep.mubr.f32.mxu0 0.0
    %v4689 = vand.u32 %v54, 4294901760
    %4690 = vmatmul.mubr.f32.gmra.mrb[0].mxu0 %v4689
    %v4691 = vpop.f32.mrb[0].mxu0
    %v4692 = vadd.f32 %v4389, %v4691
    %v4693 = vpop.f32.mrb[0].mxu0
    %v4694 = vadd.f32 %v4391, %v4693
    %4695 = vmatprep.mubr.f32.mxu0 0.0
    %v4696 = vand.u32 %v55, 4294901760
    %4697 = vmatmul.mubr.f32.gmra.mrb[0].mxu0 %v4696
    %v4698 = vpop.f32.mrb[0].mxu0
    %v4699 = vadd.f32 %v4398, %v4698
    %v4700 = vpop.f32.mrb[0].mxu0
    %v4701 = vadd.f32 %v4400, %v4700
    %4702 = vmatprep.mubr.f32.mxu0 0.0
    %v4703 = vand.u32 %v56, 4294901760
    %4704 = vmatmul.mubr.f32.gmra.mrb[0].mxu0 %v4703
    %v4705 = vpop.f32.mrb[0].mxu0
    %v4706 = vadd.f32 %v4407, %v4705
    %v4707 = vpop.f32.mrb[0].mxu0
    %v4708 = vadd.f32 %v4409, %v4707
    %4709 = vmatprep.mubr.f32.mxu0 0.0
    %v4710 = vand.u32 %v57, 4294901760
    %4711 = vmatmul.mubr.f32.gmra.mrb[0].mxu0 %v4710
    %v4712 = vpop.f32.mrb[0].mxu0
    %v4713 = vadd.f32 %v4416, %v4712
    %v4714 = vpop.f32.mrb[0].mxu0
    %v4715 = vadd.f32 %v4418, %v4714
    %4716 = vmatprep.mubr.f32.mxu0 0.0
    %v4717 = vand.u32 %v58, 4294901760
    %4718 = vmatmul.mubr.f32.gmra.mrb[0].mxu0 %v4717
    %v4719 = vpop.f32.mrb[0].mxu0
    %v4720 = vadd.f32 %v4425, %v4719
    %v4721 = vpop.f32.mrb[0].mxu0
    %v4722 = vadd.f32 %v4427, %v4721
    %4723 = vmatprep.mubr.f32.mxu0 0.0
    %v4724 = vand.u32 %v59, 4294901760
    %4725 = vmatmul.mubr.f32.gmra.mrb[0].mxu0 %v4724
    %v4726 = vpop.f32.mrb[0].mxu0
    %v4727 = vadd.f32 %v4434, %v4726
    %v4728 = vpop.f32.mrb[0].mxu0
    %v4729 = vadd.f32 %v4436, %v4728
    %4730 = vmatprep.mubr.f32.mxu0 0.0
    %v4731 = vand.u32 %v60, 4294901760
    %4732 = vmatmul.mubr.f32.gmra.mrb[0].mxu0 %v4731
    %v4733 = vpop.f32.mrb[0].mxu0
    %v4734 = vadd.f32 %v4443, %v4733
    %v4735 = vpop.f32.mrb[0].mxu0
    %v4736 = vadd.f32 %v4445, %v4735
    %4737 = vmatprep.mubr.f32.mxu0 0.0
    %v4738 = vand.u32 %v61, 4294901760
    %4739 = vmatmul.mubr.f32.gmra.mrb[0].mxu0 %v4738
    %v4740 = vpop.f32.mrb[0].mxu0
    %v4741 = vadd.f32 %v4452, %v4740
    %v4742 = vpop.f32.mrb[0].mxu0
    %v4743 = vadd.f32 %v4454, %v4742
    %4744 = vmatprep.mubr.f32.mxu0 0.0
    %v4745 = vand.u32 %v62, 4294901760
    %4746 = vmatmul.mubr.f32.gmra.mrb[0].mxu0 %v4745
    %v4747 = vpop.f32.mrb[0].mxu0
    %v4748 = vadd.f32 %v4461, %v4747
    %v4749 = vpop.f32.mrb[0].mxu0
    %v4750 = vadd.f32 %v4463, %v4749
    %4751 = vmatprep.mubr.f32.mxu0 0.0
    %v4752 = vand.u32 %v63, 4294901760
    %4753 = vmatmul.mubr.f32.gmra.mrb[0].mxu0 %v4752
    %v4754 = vpop.f32.mrb[0].mxu0
    %v4755 = vadd.f32 %v4470, %v4754
    %v4756 = vpop.f32.mrb[0].mxu0
    %v4757 = vadd.f32 %v4472, %v4756
    %4758 = vmatprep.mubr.f32.mxu0 0.0
    %v4759 = vand.u32 %v64, 4294901760
    %4760 = vmatmul.mubr.f32.gmra.mrb[0].mxu0 %v4759
    %v4761 = vpop.f32.mrb[0].mxu0
    %v4762 = vadd.f32 %v4479, %v4761
    %v4763 = vpop.f32.mrb[0].mxu0
    %v4764 = vadd.f32 %v4481, %v4763
    %4765 = vmatprep.mubr.f32.mxu0 0.0
    %v4766 = vand.u32 %v65, 4294901760
    %4767 = vmatmul.mubr.f32.gmra.mrb[0].mxu0 %v4766
    %v4768 = vpop.f32.mrb[0].mxu0
    %v4769 = vadd.f32 %v4488, %v4768
    %v4770 = vpop.f32.mrb[0].mxu0
    %v4771 = vadd.f32 %v4490, %v4770
    %4772 = vmatprep.mubr.f32.mxu0 0.0
    %v4773 = vand.u32 %v66, 4294901760
    %4774 = vmatmul.mubr.f32.gmra.mrb[0].mxu0 %v4773
    %v4775 = vpop.f32.mrb[0].mxu0
    %v4776 = vadd.f32 %v4497, %v4775
    %v4777 = vpop.f32.mrb[0].mxu0
    %v4778 = vadd.f32 %v4499, %v4777
    %4779 = vmatprep.mubr.f32.mxu0 0.0
    %v4780 = vand.u32 %v67, 4294901760
    %4781 = vmatmul.mubr.f32.gmra.mrb[0].mxu0 %v4780
    %v4782 = vpop.f32.mrb[0].mxu0
    %v4783 = vadd.f32 %v4506, %v4782
    %v4784 = vpop.f32.mrb[0].mxu0
    %v4785 = vadd.f32 %v4508, %v4784
    %4786 = vmatprep.mubr.f32.mxu0 0.0
    %v4787 = vand.u32 %v68, 4294901760
    %4788 = vmatmul.mubr.f32.gmra.mrb[0].mxu0 %v4787
    %v4789 = vpop.f32.mrb[0].mxu0
    %v4790 = vadd.f32 %v4515, %v4789
    %v4791 = vpop.f32.mrb[0].mxu0
    %v4792 = vadd.f32 %v4517, %v4791
    %4793 = vmatprep.mubr.f32.mxu0 0.0
    %v4794 = vand.u32 %v69, 4294901760
    %4795 = vmatmul.mubr.f32.gmra.mrb[0].mxu0 %v4794
    %v4796 = vpop.f32.mrb[0].mxu0
    %v4797 = vadd.f32 %v4524, %v4796
    %v4798 = vpop.f32.mrb[0].mxu0
    %v4799 = vadd.f32 %v4526, %v4798
    %4800 = vdwg.mxu0
    %v4801 = vand.u32 %v75, 4294901760
    %4802 = vmatprep.subr.mxu0 %v4801
    %v4803 = vand.u32 %v74, 4294901760
    %4804 = vmatpush1.msra.mxu0 %v4803
    %v4805 = vand.u32 %v83, 4294901760
    %4806 = vmatprep.subr.mxu0 %v4805
    %v4807 = vand.u32 %v82, 4294901760
    %4808 = vmatpush1.msra.mxu0 %v4807
    %v4809 = vand.u32 %v91, 4294901760
    %4810 = vmatprep.subr.mxu0 %v4809
    %v4811 = vand.u32 %v90, 4294901760
    %4812 = vmatpush1.msra.mxu0 %v4811
    %v4813 = vand.u32 %v99, 4294901760
    %4814 = vmatprep.subr.mxu0 %v4813
    %v4815 = vand.u32 %v98, 4294901760
    %4816 = vmatpush1.msra.mxu0 %v4815
    %v4817 = vand.u32 %v107, 4294901760
    %4818 = vmatprep.subr.mxu0 %v4817
    %v4819 = vand.u32 %v106, 4294901760
    %4820 = vmatpush1.msra.mxu0 %v4819
    %v4821 = vand.u32 %v115, 4294901760
    %4822 = vmatprep.subr.mxu0 %v4821
    %v4823 = vand.u32 %v114, 4294901760
    %4824 = vmatpush1.msra.mxu0 %v4823
    %v4825 = vand.u32 %v123, 4294901760
    %4826 = vmatprep.subr.mxu0 %v4825
    %v4827 = vand.u32 %v122, 4294901760
    %4828 = vmatpush1.msra.mxu0 %v4827
    %v4829 = vand.u32 %v131, 4294901760
    %4830 = vmatprep.subr.mxu0 %v4829
    %v4831 = vand.u32 %v130, 4294901760
    %4832 = vmatpush1.msra.mxu0 %v4831
    %v4833 = vand.u32 %v139, 4294901760
    %4834 = vmatprep.subr.mxu0 %v4833
    %v4835 = vand.u32 %v138, 4294901760
    %4836 = vmatpush1.msra.mxu0 %v4835
    %v4837 = vand.u32 %v147, 4294901760
    %4838 = vmatprep.subr.mxu0 %v4837
    %v4839 = vand.u32 %v146, 4294901760
    %4840 = vmatpush1.msra.mxu0 %v4839
    %v4841 = vand.u32 %v155, 4294901760
    %4842 = vmatprep.subr.mxu0 %v4841
    %v4843 = vand.u32 %v154, 4294901760
    %4844 = vmatpush1.msra.mxu0 %v4843
    %v4845 = vand.u32 %v163, 4294901760
    %4846 = vmatprep.subr.mxu0 %v4845
    %v4847 = vand.u32 %v162, 4294901760
    %4848 = vmatpush1.msra.mxu0 %v4847
    %v4849 = vand.u32 %v171, 4294901760
    %4850 = vmatprep.subr.mxu0 %v4849
    %v4851 = vand.u32 %v170, 4294901760
    %4852 = vmatpush1.msra.mxu0 %v4851
    %v4853 = vand.u32 %v179, 4294901760
    %4854 = vmatprep.subr.mxu0 %v4853
    %v4855 = vand.u32 %v178, 4294901760
    %4856 = vmatpush1.msra.mxu0 %v4855
    %v4857 = vand.u32 %v187, 4294901760
    %4858 = vmatprep.subr.mxu0 %v4857
    %v4859 = vand.u32 %v186, 4294901760
    %4860 = vmatpush1.msra.mxu0 %v4859
    %v4861 = vand.u32 %v195, 4294901760
    %4862 = vmatprep.subr.mxu0 %v4861
    %v4863 = vand.u32 %v194, 4294901760
    %4864 = vmatpush1.msra.mxu0 %v4863
    %4865 = vmatprep.subr.mxu0 0.0
    %4866 = vmatpush1.msra.mxu0 0.0
    %4867 = vmatprep.subr.mxu0 0.0
    %4868 = vmatpush1.msra.mxu0 0.0
    %4869 = vmatprep.subr.mxu0 0.0
    %4870 = vmatpush1.msra.mxu0 0.0
    %4871 = vmatprep.subr.mxu0 0.0
    %4872 = vmatpush1.msra.mxu0 0.0
    %4873 = vmatprep.subr.mxu0 0.0
    %4874 = vmatpush1.msra.mxu0 0.0
    %4875 = vmatprep.subr.mxu0 0.0
    %4876 = vmatpush1.msra.mxu0 0.0
    %4877 = vmatprep.subr.mxu0 0.0
    %4878 = vmatpush1.msra.mxu0 0.0
    %4879 = vmatprep.subr.mxu0 0.0
    %4880 = vmatpush1.msra.mxu0 0.0
    %4881 = vmatprep.subr.mxu0 0.0
    %4882 = vmatpush1.msra.mxu0 0.0
    %4883 = vmatprep.subr.mxu0 0.0
    %4884 = vmatpush1.msra.mxu0 0.0
    %4885 = vmatprep.subr.mxu0 0.0
    %4886 = vmatpush1.msra.mxu0 0.0
    %4887 = vmatprep.subr.mxu0 0.0
    %4888 = vmatpush1.msra.mxu0 0.0
    %4889 = vmatprep.subr.mxu0 0.0
    %4890 = vmatpush1.msra.mxu0 0.0
    %4891 = vmatprep.subr.mxu0 0.0
    %4892 = vmatpush1.msra.mxu0 0.0
    %4893 = vmatprep.subr.mxu0 0.0
    %4894 = vmatpush1.msra.mxu0 0.0
    %4895 = vmatprep.subr.mxu0 0.0
    %4896 = vmatpush1.msra.mxu0 0.0
    %4897 = vmatprep.mubr.f32.mxu0 0.0
    %v4898 = vand.u32 %v54, 4294901760
    %4899 = vmatmul.mubr.f32.gmra.mrb[0].mxu0 %v4898
    %v4900 = vpop.f32.mrb[0].mxu0
    %v4901 = vadd.f32 %v4692, %v4900
    %v4902 = vpop.f32.mrb[0].mxu0
    %v4903 = vadd.f32 %v4694, %v4902
    %4904 = vmatprep.mubr.f32.mxu0 0.0
    %v4905 = vand.u32 %v55, 4294901760
    %4906 = vmatmul.mubr.f32.gmra.mrb[0].mxu0 %v4905
    %v4907 = vpop.f32.mrb[0].mxu0
    %v4908 = vadd.f32 %v4699, %v4907
    %v4909 = vpop.f32.mrb[0].mxu0
    %v4910 = vadd.f32 %v4701, %v4909
    %4911 = vmatprep.mubr.f32.mxu0 0.0
    %v4912 = vand.u32 %v56, 4294901760
    %4913 = vmatmul.mubr.f32.gmra.mrb[0].mxu0 %v4912
    %v4914 = vpop.f32.mrb[0].mxu0
    %v4915 = vadd.f32 %v4706, %v4914
    %v4916 = vpop.f32.mrb[0].mxu0
    %v4917 = vadd.f32 %v4708, %v4916
    %4918 = vmatprep.mubr.f32.mxu0 0.0
    %v4919 = vand.u32 %v57, 4294901760
    %4920 = vmatmul.mubr.f32.gmra.mrb[0].mxu0 %v4919
    %v4921 = vpop.f32.mrb[0].mxu0
    %v4922 = vadd.f32 %v4713, %v4921
    %v4923 = vpop.f32.mrb[0].mxu0
    %v4924 = vadd.f32 %v4715, %v4923
    %4925 = vmatprep.mubr.f32.mxu0 0.0
    %v4926 = vand.u32 %v58, 4294901760
    %4927 = vmatmul.mubr.f32.gmra.mrb[0].mxu0 %v4926
    %v4928 = vpop.f32.mrb[0].mxu0
    %v4929 = vadd.f32 %v4720, %v4928
    %v4930 = vpop.f32.mrb[0].mxu0
    %v4931 = vadd.f32 %v4722, %v4930
    %4932 = vmatprep.mubr.f32.mxu0 0.0
    %v4933 = vand.u32 %v59, 4294901760
    %4934 = vmatmul.mubr.f32.gmra.mrb[0].mxu0 %v4933
    %v4935 = vpop.f32.mrb[0].mxu0
    %v4936 = vadd.f32 %v4727, %v4935
    %v4937 = vpop.f32.mrb[0].mxu0
    %v4938 = vadd.f32 %v4729, %v4937
    %4939 = vmatprep.mubr.f32.mxu0 0.0
    %v4940 = vand.u32 %v60, 4294901760
    %4941 = vmatmul.mubr.f32.gmra.mrb[0].mxu0 %v4940
    %v4942 = vpop.f32.mrb[0].mxu0
    %v4943 = vadd.f32 %v4734, %v4942
    %v4944 = vpop.f32.mrb[0].mxu0
    %v4945 = vadd.f32 %v4736, %v4944
    %4946 = vmatprep.mubr.f32.mxu0 0.0
    %v4947 = vand.u32 %v61, 4294901760
    %4948 = vmatmul.mubr.f32.gmra.mrb[0].mxu0 %v4947
    %v4949 = vpop.f32.mrb[0].mxu0
    %v4950 = vadd.f32 %v4741, %v4949
    %v4951 = vpop.f32.mrb[0].mxu0
    %v4952 = vadd.f32 %v4743, %v4951
    %4953 = vmatprep.mubr.f32.mxu0 0.0
    %v4954 = vand.u32 %v62, 4294901760
    %4955 = vmatmul.mubr.f32.gmra.mrb[0].mxu0 %v4954
    %v4956 = vpop.f32.mrb[0].mxu0
    %v4957 = vadd.f32 %v4748, %v4956
    %v4958 = vpop.f32.mrb[0].mxu0
    %v4959 = vadd.f32 %v4750, %v4958
    %4960 = vmatprep.mubr.f32.mxu0 0.0
    %v4961 = vand.u32 %v63, 4294901760
    %4962 = vmatmul.mubr.f32.gmra.mrb[0].mxu0 %v4961
    %v4963 = vpop.f32.mrb[0].mxu0
    %v4964 = vadd.f32 %v4755, %v4963
    %v4965 = vpop.f32.mrb[0].mxu0
    %v4966 = vadd.f32 %v4757, %v4965
    %4967 = vmatprep.mubr.f32.mxu0 0.0
    %v4968 = vand.u32 %v64, 4294901760
    %4969 = vmatmul.mubr.f32.gmra.mrb[0].mxu0 %v4968
    %v4970 = vpop.f32.mrb[0].mxu0
    %v4971 = vadd.f32 %v4762, %v4970
    %v4972 = vpop.f32.mrb[0].mxu0
    %v4973 = vadd.f32 %v4764, %v4972
    %4974 = vmatprep.mubr.f32.mxu0 0.0
    %v4975 = vand.u32 %v65, 4294901760
    %4976 = vmatmul.mubr.f32.gmra.mrb[0].mxu0 %v4975
    %v4977 = vpop.f32.mrb[0].mxu0
    %v4978 = vadd.f32 %v4769, %v4977
    %v4979 = vpop.f32.mrb[0].mxu0
    %v4980 = vadd.f32 %v4771, %v4979
    %4981 = vmatprep.mubr.f32.mxu0 0.0
    %v4982 = vand.u32 %v66, 4294901760
    %4983 = vmatmul.mubr.f32.gmra.mrb[0].mxu0 %v4982
    %v4984 = vpop.f32.mrb[0].mxu0
    %v4985 = vadd.f32 %v4776, %v4984
    %v4986 = vpop.f32.mrb[0].mxu0
    %v4987 = vadd.f32 %v4778, %v4986
    %4988 = vmatprep.mubr.f32.mxu0 0.0
    %v4989 = vand.u32 %v67, 4294901760
    %4990 = vmatmul.mubr.f32.gmra.mrb[0].mxu0 %v4989
    %v4991 = vpop.f32.mrb[0].mxu0
    %v4992 = vadd.f32 %v4783, %v4991
    %v4993 = vpop.f32.mrb[0].mxu0
    %v4994 = vadd.f32 %v4785, %v4993
    %4995 = vmatprep.mubr.f32.mxu0 0.0
    %v4996 = vand.u32 %v68, 4294901760
    %4997 = vmatmul.mubr.f32.gmra.mrb[0].mxu0 %v4996
    %v4998 = vpop.f32.mrb[0].mxu0
    %v4999 = vadd.f32 %v4790, %v4998
    %v5000 = vpop.f32.mrb[0].mxu0
    %v5001 = vadd.f32 %v4792, %v5000
    %5002 = vmatprep.mubr.f32.mxu0 0.0
    %v5003 = vand.u32 %v69, 4294901760
    %5004 = vmatmul.mubr.f32.gmra.mrb[0].mxu0 %v5003
    %v5005 = vpop.f32.mrb[0].mxu0
    %v5006 = vadd.f32 %v4797, %v5005
    %v5007 = vpop.f32.mrb[0].mxu0
    %v5008 = vadd.f32 %v4799, %v5007
    %5009 = vdwg.mxu0
    %v5010 = vand.u32 %v77, 4294901760
    %5011 = vmatprep.subr.mxu0 %v5010
    %v5012 = vand.u32 %v76, 4294901760
    %5013 = vmatpush1.msra.mxu0 %v5012
    %v5014 = vand.u32 %v85, 4294901760
    %5015 = vmatprep.subr.mxu0 %v5014
    %v5016 = vand.u32 %v84, 4294901760
    %5017 = vmatpush1.msra.mxu0 %v5016
    %v5018 = vand.u32 %v93, 4294901760
    %5019 = vmatprep.subr.mxu0 %v5018
    %v5020 = vand.u32 %v92, 4294901760
    %5021 = vmatpush1.msra.mxu0 %v5020
    %v5022 = vand.u32 %v101, 4294901760
    %5023 = vmatprep.subr.mxu0 %v5022
    %v5024 = vand.u32 %v100, 4294901760
    %5025 = vmatpush1.msra.mxu0 %v5024
    %v5026 = vand.u32 %v109, 4294901760
    %5027 = vmatprep.subr.mxu0 %v5026
    %v5028 = vand.u32 %v108, 4294901760
    %5029 = vmatpush1.msra.mxu0 %v5028
    %v5030 = vand.u32 %v117, 4294901760
    %5031 = vmatprep.subr.mxu0 %v5030
    %v5032 = vand.u32 %v116, 4294901760
    %5033 = vmatpush1.msra.mxu0 %v5032
    %v5034 = vand.u32 %v125, 4294901760
    %5035 = vmatprep.subr.mxu0 %v5034
    %v5036 = vand.u32 %v124, 4294901760
    %5037 = vmatpush1.msra.mxu0 %v5036
    %v5038 = vand.u32 %v133, 4294901760
    %5039 = vmatprep.subr.mxu0 %v5038
    %v5040 = vand.u32 %v132, 4294901760
    %5041 = vmatpush1.msra.mxu0 %v5040
    %v5042 = vand.u32 %v141, 4294901760
    %5043 = vmatprep.subr.mxu0 %v5042
    %v5044 = vand.u32 %v140, 4294901760
    %5045 = vmatpush1.msra.mxu0 %v5044
    %v5046 = vand.u32 %v149, 4294901760
    %5047 = vmatprep.subr.mxu0 %v5046
    %v5048 = vand.u32 %v148, 4294901760
    %5049 = vmatpush1.msra.mxu0 %v5048
    %v5050 = vand.u32 %v157, 4294901760
    %5051 = vmatprep.subr.mxu0 %v5050
    %v5052 = vand.u32 %v156, 4294901760
    %5053 = vmatpush1.msra.mxu0 %v5052
    %v5054 = vand.u32 %v165, 4294901760
    %5055 = vmatprep.subr.mxu0 %v5054
    %v5056 = vand.u32 %v164, 4294901760
    %5057 = vmatpush1.msra.mxu0 %v5056
    %v5058 = vand.u32 %v173, 4294901760
    %5059 = vmatprep.subr.mxu0 %v5058
    %v5060 = vand.u32 %v172, 4294901760
    %5061 = vmatpush1.msra.mxu0 %v5060
    %v5062 = vand.u32 %v181, 4294901760
    %5063 = vmatprep.subr.mxu0 %v5062
    %v5064 = vand.u32 %v180, 4294901760
    %5065 = vmatpush1.msra.mxu0 %v5064
    %v5066 = vand.u32 %v189, 4294901760
    %5067 = vmatprep.subr.mxu0 %v5066
    %v5068 = vand.u32 %v188, 4294901760
    %5069 = vmatpush1.msra.mxu0 %v5068
    %v5070 = vand.u32 %v197, 4294901760
    %5071 = vmatprep.subr.mxu0 %v5070
    %v5072 = vand.u32 %v196, 4294901760
    %5073 = vmatpush1.msra.mxu0 %v5072
    %5074 = vmatprep.subr.mxu0 0.0
    %5075 = vmatpush1.msra.mxu0 0.0
    %5076 = vmatprep.subr.mxu0 0.0
    %5077 = vmatpush1.msra.mxu0 0.0
    %5078 = vmatprep.subr.mxu0 0.0
    %5079 = vmatpush1.msra.mxu0 0.0
    %5080 = vmatprep.subr.mxu0 0.0
    %5081 = vmatpush1.msra.mxu0 0.0
    %5082 = vmatprep.subr.mxu0 0.0
    %5083 = vmatpush1.msra.mxu0 0.0
    %5084 = vmatprep.subr.mxu0 0.0
    %5085 = vmatpush1.msra.mxu0 0.0
    %5086 = vmatprep.subr.mxu0 0.0
    %5087 = vmatpush1.msra.mxu0 0.0
    %5088 = vmatprep.subr.mxu0 0.0
    %5089 = vmatpush1.msra.mxu0 0.0
    %5090 = vmatprep.subr.mxu0 0.0
    %5091 = vmatpush1.msra.mxu0 0.0
    %5092 = vmatprep.subr.mxu0 0.0
    %5093 = vmatpush1.msra.mxu0 0.0
    %5094 = vmatprep.subr.mxu0 0.0
    %5095 = vmatpush1.msra.mxu0 0.0
    %5096 = vmatprep.subr.mxu0 0.0
    %5097 = vmatpush1.msra.mxu0 0.0
    %5098 = vmatprep.subr.mxu0 0.0
    %5099 = vmatpush1.msra.mxu0 0.0
    %5100 = vmatprep.subr.mxu0 0.0
    %5101 = vmatpush1.msra.mxu0 0.0
    %5102 = vmatprep.subr.mxu0 0.0
    %5103 = vmatpush1.msra.mxu0 0.0
    %5104 = vmatprep.subr.mxu0 0.0
    %5105 = vmatpush1.msra.mxu0 0.0
    %5106 = vmatprep.mubr.f32.mxu0 0.0
    %v5107 = vand.u32 %v54, 4294901760
    %v5108 = vsub.f32 %v54, %v5107
    %v5109 = vand.u32 %v5108, 4294901760
    %v5110 = vsub.f32 %v5108, %v5109
    %v5111 = vand.u32 %v5110, 4294901760
    %5112 = vmatmul.mubr.f32.gmra.mrb[0].mxu0 %v5111
    %v5113 = vpop.f32.mrb[0].mxu0
    %v5114 = vadd.f32 %v227, %v5113
    %v5115 = vpop.f32.mrb[0].mxu0
    %v5116 = vadd.f32 %v231, %v5115
    %5117 = vmatprep.mubr.f32.mxu0 0.0
    %v5118 = vand.u32 %v55, 4294901760
    %v5119 = vsub.f32 %v55, %v5118
    %v5120 = vand.u32 %v5119, 4294901760
    %v5121 = vsub.f32 %v5119, %v5120
    %v5122 = vand.u32 %v5121, 4294901760
    %5123 = vmatmul.mubr.f32.gmra.mrb[0].mxu0 %v5122
    %v5124 = vpop.f32.mrb[0].mxu0
    %v5125 = vadd.f32 %v227, %v5124
    %v5126 = vpop.f32.mrb[0].mxu0
    %v5127 = vadd.f32 %v231, %v5126
    %5128 = vmatprep.mubr.f32.mxu0 0.0
    %v5129 = vand.u32 %v56, 4294901760
    %v5130 = vsub.f32 %v56, %v5129
    %v5131 = vand.u32 %v5130, 4294901760
    %v5132 = vsub.f32 %v5130, %v5131
    %v5133 = vand.u32 %v5132, 4294901760
    %5134 = vmatmul.mubr.f32.gmra.mrb[0].mxu0 %v5133
    %v5135 = vpop.f32.mrb[0].mxu0
    %v5136 = vadd.f32 %v227, %v5135
    %v5137 = vpop.f32.mrb[0].mxu0
    %v5138 = vadd.f32 %v231, %v5137
    %5139 = vmatprep.mubr.f32.mxu0 0.0
    %v5140 = vand.u32 %v57, 4294901760
    %v5141 = vsub.f32 %v57, %v5140
    %v5142 = vand.u32 %v5141, 4294901760
    %v5143 = vsub.f32 %v5141, %v5142
    %v5144 = vand.u32 %v5143, 4294901760
    %5145 = vmatmul.mubr.f32.gmra.mrb[0].mxu0 %v5144
    %v5146 = vpop.f32.mrb[0].mxu0
    %v5147 = vadd.f32 %v227, %v5146
    %v5148 = vpop.f32.mrb[0].mxu0
    %v5149 = vadd.f32 %v231, %v5148
    %5150 = vmatprep.mubr.f32.mxu0 0.0
    %v5151 = vand.u32 %v58, 4294901760
    %v5152 = vsub.f32 %v58, %v5151
    %v5153 = vand.u32 %v5152, 4294901760
    %v5154 = vsub.f32 %v5152, %v5153
    %v5155 = vand.u32 %v5154, 4294901760
    %5156 = vmatmul.mubr.f32.gmra.mrb[0].mxu0 %v5155
    %v5157 = vpop.f32.mrb[0].mxu0
    %v5158 = vadd.f32 %v227, %v5157
    %v5159 = vpop.f32.mrb[0].mxu0
    %v5160 = vadd.f32 %v231, %v5159
    %5161 = vmatprep.mubr.f32.mxu0 0.0
    %v5162 = vand.u32 %v59, 4294901760
    %v5163 = vsub.f32 %v59, %v5162
    %v5164 = vand.u32 %v5163, 4294901760
    %v5165 = vsub.f32 %v5163, %v5164
    %v5166 = vand.u32 %v5165, 4294901760
    %5167 = vmatmul.mubr.f32.gmra.mrb[0].mxu0 %v5166
    %v5168 = vpop.f32.mrb[0].mxu0
    %v5169 = vadd.f32 %v227, %v5168
    %v5170 = vpop.f32.mrb[0].mxu0
    %v5171 = vadd.f32 %v231, %v5170
    %5172 = vmatprep.mubr.f32.mxu0 0.0
    %v5173 = vand.u32 %v60, 4294901760
    %v5174 = vsub.f32 %v60, %v5173
    %v5175 = vand.u32 %v5174, 4294901760
    %v5176 = vsub.f32 %v5174, %v5175
    %v5177 = vand.u32 %v5176, 4294901760
    %5178 = vmatmul.mubr.f32.gmra.mrb[0].mxu0 %v5177
    %v5179 = vpop.f32.mrb[0].mxu0
    %v5180 = vadd.f32 %v227, %v5179
    %v5181 = vpop.f32.mrb[0].mxu0
    %v5182 = vadd.f32 %v231, %v5181
    %5183 = vmatprep.mubr.f32.mxu0 0.0
    %v5184 = vand.u32 %v61, 4294901760
    %v5185 = vsub.f32 %v61, %v5184
    %v5186 = vand.u32 %v5185, 4294901760
    %v5187 = vsub.f32 %v5185, %v5186
    %v5188 = vand.u32 %v5187, 4294901760
    %5189 = vmatmul.mubr.f32.gmra.mrb[0].mxu0 %v5188
    %v5190 = vpop.f32.mrb[0].mxu0
    %v5191 = vadd.f32 %v227, %v5190
    %v5192 = vpop.f32.mrb[0].mxu0
    %v5193 = vadd.f32 %v231, %v5192
    %5194 = vmatprep.mubr.f32.mxu0 0.0
    %v5195 = vand.u32 %v62, 4294901760
    %v5196 = vsub.f32 %v62, %v5195
    %v5197 = vand.u32 %v5196, 4294901760
    %v5198 = vsub.f32 %v5196, %v5197
    %v5199 = vand.u32 %v5198, 4294901760
    %5200 = vmatmul.mubr.f32.gmra.mrb[0].mxu0 %v5199
    %v5201 = vpop.f32.mrb[0].mxu0
    %v5202 = vadd.f32 %v227, %v5201
    %v5203 = vpop.f32.mrb[0].mxu0
    %v5204 = vadd.f32 %v231, %v5203
    %5205 = vmatprep.mubr.f32.mxu0 0.0
    %v5206 = vand.u32 %v63, 4294901760
    %v5207 = vsub.f32 %v63, %v5206
    %v5208 = vand.u32 %v5207, 4294901760
    %v5209 = vsub.f32 %v5207, %v5208
    %v5210 = vand.u32 %v5209, 4294901760
    %5211 = vmatmul.mubr.f32.gmra.mrb[0].mxu0 %v5210
    %v5212 = vpop.f32.mrb[0].mxu0
    %v5213 = vadd.f32 %v227, %v5212
    %v5214 = vpop.f32.mrb[0].mxu0
    %v5215 = vadd.f32 %v231, %v5214
    %5216 = vmatprep.mubr.f32.mxu0 0.0
    %v5217 = vand.u32 %v64, 4294901760
    %v5218 = vsub.f32 %v64, %v5217
    %v5219 = vand.u32 %v5218, 4294901760
    %v5220 = vsub.f32 %v5218, %v5219
    %v5221 = vand.u32 %v5220, 4294901760
    %5222 = vmatmul.mubr.f32.gmra.mrb[0].mxu0 %v5221
    %v5223 = vpop.f32.mrb[0].mxu0
    %v5224 = vadd.f32 %v227, %v5223
    %v5225 = vpop.f32.mrb[0].mxu0
    %v5226 = vadd.f32 %v231, %v5225
    %5227 = vmatprep.mubr.f32.mxu0 0.0
    %v5228 = vand.u32 %v65, 4294901760
    %v5229 = vsub.f32 %v65, %v5228
    %v5230 = vand.u32 %v5229, 4294901760
    %v5231 = vsub.f32 %v5229, %v5230
    %v5232 = vand.u32 %v5231, 4294901760
    %5233 = vmatmul.mubr.f32.gmra.mrb[0].mxu0 %v5232
    %v5234 = vpop.f32.mrb[0].mxu0
    %v5235 = vadd.f32 %v227, %v5234
    %v5236 = vpop.f32.mrb[0].mxu0
    %v5237 = vadd.f32 %v231, %v5236
    %5238 = vmatprep.mubr.f32.mxu0 0.0
    %v5239 = vand.u32 %v66, 4294901760
    %v5240 = vsub.f32 %v66, %v5239
    %v5241 = vand.u32 %v5240, 4294901760
    %v5242 = vsub.f32 %v5240, %v5241
    %v5243 = vand.u32 %v5242, 4294901760
    %5244 = vmatmul.mubr.f32.gmra.mrb[0].mxu0 %v5243
    %v5245 = vpop.f32.mrb[0].mxu0
    %v5246 = vadd.f32 %v227, %v5245
    %v5247 = vpop.f32.mrb[0].mxu0
    %v5248 = vadd.f32 %v231, %v5247
    %5249 = vmatprep.mubr.f32.mxu0 0.0
    %v5250 = vand.u32 %v67, 4294901760
    %v5251 = vsub.f32 %v67, %v5250
    %v5252 = vand.u32 %v5251, 4294901760
    %v5253 = vsub.f32 %v5251, %v5252
    %v5254 = vand.u32 %v5253, 4294901760
    %5255 = vmatmul.mubr.f32.gmra.mrb[0].mxu0 %v5254
    %v5256 = vpop.f32.mrb[0].mxu0
    %v5257 = vadd.f32 %v227, %v5256
    %v5258 = vpop.f32.mrb[0].mxu0
    %v5259 = vadd.f32 %v231, %v5258
    %5260 = vmatprep.mubr.f32.mxu0 0.0
    %v5261 = vand.u32 %v68, 4294901760
    %v5262 = vsub.f32 %v68, %v5261
    %v5263 = vand.u32 %v5262, 4294901760
    %v5264 = vsub.f32 %v5262, %v5263
    %v5265 = vand.u32 %v5264, 4294901760
    %5266 = vmatmul.mubr.f32.gmra.mrb[0].mxu0 %v5265
    %v5267 = vpop.f32.mrb[0].mxu0
    %v5268 = vadd.f32 %v227, %v5267
    %v5269 = vpop.f32.mrb[0].mxu0
    %v5270 = vadd.f32 %v231, %v5269
    %5271 = vmatprep.mubr.f32.mxu0 0.0
    %v5272 = vand.u32 %v69, 4294901760
    %v5273 = vsub.f32 %v69, %v5272
    %v5274 = vand.u32 %v5273, 4294901760
    %v5275 = vsub.f32 %v5273, %v5274
    %v5276 = vand.u32 %v5275, 4294901760
    %5277 = vmatmul.mubr.f32.gmra.mrb[0].mxu0 %v5276
    %v5278 = vpop.f32.mrb[0].mxu0
    %v5279 = vadd.f32 %v227, %v5278
    %v5280 = vpop.f32.mrb[0].mxu0
    %v5281 = vadd.f32 %v231, %v5280
    %5282 = vdwg.mxu0
    %v5283 = vand.u32 %v77, 4294901760
    %v5284 = vsub.f32 %v77, %v5283
    %v5285 = vand.u32 %v5284, 4294901760
    %v5286 = vsub.f32 %v5284, %v5285
    %v5287 = vand.u32 %v5286, 4294901760
    %5288 = vmatprep.subr.mxu0 %v5287
    %v5289 = vand.u32 %v76, 4294901760
    %v5290 = vsub.f32 %v76, %v5289
    %v5291 = vand.u32 %v5290, 4294901760
    %v5292 = vsub.f32 %v5290, %v5291
    %v5293 = vand.u32 %v5292, 4294901760
    %5294 = vmatpush1.msra.mxu0 %v5293
    %v5295 = vand.u32 %v85, 4294901760
    %v5296 = vsub.f32 %v85, %v5295
    %v5297 = vand.u32 %v5296, 4294901760
    %v5298 = vsub.f32 %v5296, %v5297
    %v5299 = vand.u32 %v5298, 4294901760
    %5300 = vmatprep.subr.mxu0 %v5299
    %v5301 = vand.u32 %v84, 4294901760
    %v5302 = vsub.f32 %v84, %v5301
    %v5303 = vand.u32 %v5302, 4294901760
    %v5304 = vsub.f32 %v5302, %v5303
    %v5305 = vand.u32 %v5304, 4294901760
    %5306 = vmatpush1.msra.mxu0 %v5305
    %v5307 = vand.u32 %v93, 4294901760
    %v5308 = vsub.f32 %v93, %v5307
    %v5309 = vand.u32 %v5308, 4294901760
    %v5310 = vsub.f32 %v5308, %v5309
    %v5311 = vand.u32 %v5310, 4294901760
    %5312 = vmatprep.subr.mxu0 %v5311
    %v5313 = vand.u32 %v92, 4294901760
    %v5314 = vsub.f32 %v92, %v5313
    %v5315 = vand.u32 %v5314, 4294901760
    %v5316 = vsub.f32 %v5314, %v5315
    %v5317 = vand.u32 %v5316, 4294901760
    %5318 = vmatpush1.msra.mxu0 %v5317
    %v5319 = vand.u32 %v101, 4294901760
    %v5320 = vsub.f32 %v101, %v5319
    %v5321 = vand.u32 %v5320, 4294901760
    %v5322 = vsub.f32 %v5320, %v5321
    %v5323 = vand.u32 %v5322, 4294901760
    %5324 = vmatprep.subr.mxu0 %v5323
    %v5325 = vand.u32 %v100, 4294901760
    %v5326 = vsub.f32 %v100, %v5325
    %v5327 = vand.u32 %v5326, 4294901760
    %v5328 = vsub.f32 %v5326, %v5327
    %v5329 = vand.u32 %v5328, 4294901760
    %5330 = vmatpush1.msra.mxu0 %v5329
    %v5331 = vand.u32 %v109, 4294901760
    %v5332 = vsub.f32 %v109, %v5331
    %v5333 = vand.u32 %v5332, 4294901760
    %v5334 = vsub.f32 %v5332, %v5333
    %v5335 = vand.u32 %v5334, 4294901760
    %5336 = vmatprep.subr.mxu0 %v5335
    %v5337 = vand.u32 %v108, 4294901760
    %v5338 = vsub.f32 %v108, %v5337
    %v5339 = vand.u32 %v5338, 4294901760
    %v5340 = vsub.f32 %v5338, %v5339
    %v5341 = vand.u32 %v5340, 4294901760
    %5342 = vmatpush1.msra.mxu0 %v5341
    %v5343 = vand.u32 %v117, 4294901760
    %v5344 = vsub.f32 %v117, %v5343
    %v5345 = vand.u32 %v5344, 4294901760
    %v5346 = vsub.f32 %v5344, %v5345
    %v5347 = vand.u32 %v5346, 4294901760
    %5348 = vmatprep.subr.mxu0 %v5347
    %v5349 = vand.u32 %v116, 4294901760
    %v5350 = vsub.f32 %v116, %v5349
    %v5351 = vand.u32 %v5350, 4294901760
    %v5352 = vsub.f32 %v5350, %v5351
    %v5353 = vand.u32 %v5352, 4294901760
    %5354 = vmatpush1.msra.mxu0 %v5353
    %v5355 = vand.u32 %v125, 4294901760
    %v5356 = vsub.f32 %v125, %v5355
    %v5357 = vand.u32 %v5356, 4294901760
    %v5358 = vsub.f32 %v5356, %v5357
    %v5359 = vand.u32 %v5358, 4294901760
    %5360 = vmatprep.subr.mxu0 %v5359
    %v5361 = vand.u32 %v124, 4294901760
    %v5362 = vsub.f32 %v124, %v5361
    %v5363 = vand.u32 %v5362, 4294901760
    %v5364 = vsub.f32 %v5362, %v5363
    %v5365 = vand.u32 %v5364, 4294901760
    %5366 = vmatpush1.msra.mxu0 %v5365
    %v5367 = vand.u32 %v133, 4294901760
    %v5368 = vsub.f32 %v133, %v5367
    %v5369 = vand.u32 %v5368, 4294901760
    %v5370 = vsub.f32 %v5368, %v5369
    %v5371 = vand.u32 %v5370, 4294901760
    %5372 = vmatprep.subr.mxu0 %v5371
    %v5373 = vand.u32 %v132, 4294901760
    %v5374 = vsub.f32 %v132, %v5373
    %v5375 = vand.u32 %v5374, 4294901760
    %v5376 = vsub.f32 %v5374, %v5375
    %v5377 = vand.u32 %v5376, 4294901760
    %5378 = vmatpush1.msra.mxu0 %v5377
    %v5379 = vand.u32 %v141, 4294901760
    %v5380 = vsub.f32 %v141, %v5379
    %v5381 = vand.u32 %v5380, 4294901760
    %v5382 = vsub.f32 %v5380, %v5381
    %v5383 = vand.u32 %v5382, 4294901760
    %5384 = vmatprep.subr.mxu0 %v5383
    %v5385 = vand.u32 %v140, 4294901760
    %v5386 = vsub.f32 %v140, %v5385
    %v5387 = vand.u32 %v5386, 4294901760
    %v5388 = vsub.f32 %v5386, %v5387
    %v5389 = vand.u32 %v5388, 4294901760
    %5390 = vmatpush1.msra.mxu0 %v5389
    %v5391 = vand.u32 %v149, 4294901760
    %v5392 = vsub.f32 %v149, %v5391
    %v5393 = vand.u32 %v5392, 4294901760
    %v5394 = vsub.f32 %v5392, %v5393
    %v5395 = vand.u32 %v5394, 4294901760
    %5396 = vmatprep.subr.mxu0 %v5395
    %v5397 = vand.u32 %v148, 4294901760
    %v5398 = vsub.f32 %v148, %v5397
    %v5399 = vand.u32 %v5398, 4294901760
    %v5400 = vsub.f32 %v5398, %v5399
    %v5401 = vand.u32 %v5400, 4294901760
    %5402 = vmatpush1.msra.mxu0 %v5401
    %v5403 = vand.u32 %v157, 4294901760
    %v5404 = vsub.f32 %v157, %v5403
    %v5405 = vand.u32 %v5404, 4294901760
    %v5406 = vsub.f32 %v5404, %v5405
    %v5407 = vand.u32 %v5406, 4294901760
    %5408 = vmatprep.subr.mxu0 %v5407
    %v5409 = vand.u32 %v156, 4294901760
    %v5410 = vsub.f32 %v156, %v5409
    %v5411 = vand.u32 %v5410, 4294901760
    %v5412 = vsub.f32 %v5410, %v5411
    %v5413 = vand.u32 %v5412, 4294901760
    %5414 = vmatpush1.msra.mxu0 %v5413
    %v5415 = vand.u32 %v165, 4294901760
    %v5416 = vsub.f32 %v165, %v5415
    %v5417 = vand.u32 %v5416, 4294901760
    %v5418 = vsub.f32 %v5416, %v5417
    %v5419 = vand.u32 %v5418, 4294901760
    %5420 = vmatprep.subr.mxu0 %v5419
    %v5421 = vand.u32 %v164, 4294901760
    %v5422 = vsub.f32 %v164, %v5421
    %v5423 = vand.u32 %v5422, 4294901760
    %v5424 = vsub.f32 %v5422, %v5423
    %v5425 = vand.u32 %v5424, 4294901760
    %5426 = vmatpush1.msra.mxu0 %v5425
    %v5427 = vand.u32 %v173, 4294901760
    %v5428 = vsub.f32 %v173, %v5427
    %v5429 = vand.u32 %v5428, 4294901760
    %v5430 = vsub.f32 %v5428, %v5429
    %v5431 = vand.u32 %v5430, 4294901760
    %5432 = vmatprep.subr.mxu0 %v5431
    %v5433 = vand.u32 %v172, 4294901760
    %v5434 = vsub.f32 %v172, %v5433
    %v5435 = vand.u32 %v5434, 4294901760
    %v5436 = vsub.f32 %v5434, %v5435
    %v5437 = vand.u32 %v5436, 4294901760
    %5438 = vmatpush1.msra.mxu0 %v5437
    %v5439 = vand.u32 %v181, 4294901760
    %v5440 = vsub.f32 %v181, %v5439
    %v5441 = vand.u32 %v5440, 4294901760
    %v5442 = vsub.f32 %v5440, %v5441
    %v5443 = vand.u32 %v5442, 4294901760
    %5444 = vmatprep.subr.mxu0 %v5443
    %v5445 = vand.u32 %v180, 4294901760
    %v5446 = vsub.f32 %v180, %v5445
    %v5447 = vand.u32 %v5446, 4294901760
    %v5448 = vsub.f32 %v5446, %v5447
    %v5449 = vand.u32 %v5448, 4294901760
    %5450 = vmatpush1.msra.mxu0 %v5449
    %v5451 = vand.u32 %v189, 4294901760
    %v5452 = vsub.f32 %v189, %v5451
    %v5453 = vand.u32 %v5452, 4294901760
    %v5454 = vsub.f32 %v5452, %v5453
    %v5455 = vand.u32 %v5454, 4294901760
    %5456 = vmatprep.subr.mxu0 %v5455
    %v5457 = vand.u32 %v188, 4294901760
    %v5458 = vsub.f32 %v188, %v5457
    %v5459 = vand.u32 %v5458, 4294901760
    %v5460 = vsub.f32 %v5458, %v5459
    %v5461 = vand.u32 %v5460, 4294901760
    %5462 = vmatpush1.msra.mxu0 %v5461
    %v5463 = vand.u32 %v197, 4294901760
    %v5464 = vsub.f32 %v197, %v5463
    %v5465 = vand.u32 %v5464, 4294901760
    %v5466 = vsub.f32 %v5464, %v5465
    %v5467 = vand.u32 %v5466, 4294901760
    %5468 = vmatprep.subr.mxu0 %v5467
    %v5469 = vand.u32 %v196, 4294901760
    %v5470 = vsub.f32 %v196, %v5469
    %v5471 = vand.u32 %v5470, 4294901760
    %v5472 = vsub.f32 %v5470, %v5471
    %v5473 = vand.u32 %v5472, 4294901760
    %5474 = vmatpush1.msra.mxu0 %v5473
    %5475 = vmatprep.subr.mxu0 0.0
    %5476 = vmatpush1.msra.mxu0 0.0
    %5477 = vmatprep.subr.mxu0 0.0
    %5478 = vmatpush1.msra.mxu0 0.0
    %5479 = vmatprep.subr.mxu0 0.0
    %5480 = vmatpush1.msra.mxu0 0.0
    %5481 = vmatprep.subr.mxu0 0.0
    %5482 = vmatpush1.msra.mxu0 0.0
    %5483 = vmatprep.subr.mxu0 0.0
    %5484 = vmatpush1.msra.mxu0 0.0
    %5485 = vmatprep.subr.mxu0 0.0
    %5486 = vmatpush1.msra.mxu0 0.0
    %5487 = vmatprep.subr.mxu0 0.0
    %5488 = vmatpush1.msra.mxu0 0.0
    %5489 = vmatprep.subr.mxu0 0.0
    %5490 = vmatpush1.msra.mxu0 0.0
    %5491 = vmatprep.subr.mxu0 0.0
    %5492 = vmatpush1.msra.mxu0 0.0
    %5493 = vmatprep.subr.mxu0 0.0
    %5494 = vmatpush1.msra.mxu0 0.0
    %5495 = vmatprep.subr.mxu0 0.0
    %5496 = vmatpush1.msra.mxu0 0.0
    %5497 = vmatprep.subr.mxu0 0.0
    %5498 = vmatpush1.msra.mxu0 0.0
    %5499 = vmatprep.subr.mxu0 0.0
    %5500 = vmatpush1.msra.mxu0 0.0
    %5501 = vmatprep.subr.mxu0 0.0
    %5502 = vmatpush1.msra.mxu0 0.0
    %5503 = vmatprep.subr.mxu0 0.0
    %5504 = vmatpush1.msra.mxu0 0.0
    %5505 = vmatprep.subr.mxu0 0.0
    %5506 = vmatpush1.msra.mxu0 0.0
    %5507 = vmatprep.mubr.f32.mxu0 0.0
    %v5508 = vand.u32 %v54, 4294901760
    %5509 = vmatmul.mubr.f32.gmra.mrb[0].mxu0 %v5508
    %v5510 = vpop.f32.mrb[0].mxu0
    %v5511 = vadd.f32 %v5114, %v5510
    %v5512 = vpop.f32.mrb[0].mxu0
    %v5513 = vadd.f32 %v5116, %v5512
    %5514 = vmatprep.mubr.f32.mxu0 0.0
    %v5515 = vand.u32 %v55, 4294901760
    %5516 = vmatmul.mubr.f32.gmra.mrb[0].mxu0 %v5515
    %v5517 = vpop.f32.mrb[0].mxu0
    %v5518 = vadd.f32 %v5125, %v5517
    %v5519 = vpop.f32.mrb[0].mxu0
    %v5520 = vadd.f32 %v5127, %v5519
    %5521 = vmatprep.mubr.f32.mxu0 0.0
    %v5522 = vand.u32 %v56, 4294901760
    %5523 = vmatmul.mubr.f32.gmra.mrb[0].mxu0 %v5522
    %v5524 = vpop.f32.mrb[0].mxu0
    %v5525 = vadd.f32 %v5136, %v5524
    %v5526 = vpop.f32.mrb[0].mxu0
    %v5527 = vadd.f32 %v5138, %v5526
    %5528 = vmatprep.mubr.f32.mxu0 0.0
    %v5529 = vand.u32 %v57, 4294901760
    %5530 = vmatmul.mubr.f32.gmra.mrb[0].mxu0 %v5529
    %v5531 = vpop.f32.mrb[0].mxu0
    %v5532 = vadd.f32 %v5147, %v5531
    %v5533 = vpop.f32.mrb[0].mxu0
    %v5534 = vadd.f32 %v5149, %v5533
    %5535 = vmatprep.mubr.f32.mxu0 0.0
    %v5536 = vand.u32 %v58, 4294901760
    %5537 = vmatmul.mubr.f32.gmra.mrb[0].mxu0 %v5536
    %v5538 = vpop.f32.mrb[0].mxu0
    %v5539 = vadd.f32 %v5158, %v5538
    %v5540 = vpop.f32.mrb[0].mxu0
    %v5541 = vadd.f32 %v5160, %v5540
    %5542 = vmatprep.mubr.f32.mxu0 0.0
    %v5543 = vand.u32 %v59, 4294901760
    %5544 = vmatmul.mubr.f32.gmra.mrb[0].mxu0 %v5543
    %v5545 = vpop.f32.mrb[0].mxu0
    %v5546 = vadd.f32 %v5169, %v5545
    %v5547 = vpop.f32.mrb[0].mxu0
    %v5548 = vadd.f32 %v5171, %v5547
    %5549 = vmatprep.mubr.f32.mxu0 0.0
    %v5550 = vand.u32 %v60, 4294901760
    %5551 = vmatmul.mubr.f32.gmra.mrb[0].mxu0 %v5550
    %v5552 = vpop.f32.mrb[0].mxu0
    %v5553 = vadd.f32 %v5180, %v5552
    %v5554 = vpop.f32.mrb[0].mxu0
    %v5555 = vadd.f32 %v5182, %v5554
    %5556 = vmatprep.mubr.f32.mxu0 0.0
    %v5557 = vand.u32 %v61, 4294901760
    %5558 = vmatmul.mubr.f32.gmra.mrb[0].mxu0 %v5557
    %v5559 = vpop.f32.mrb[0].mxu0
    %v5560 = vadd.f32 %v5191, %v5559
    %v5561 = vpop.f32.mrb[0].mxu0
    %v5562 = vadd.f32 %v5193, %v5561
    %5563 = vmatprep.mubr.f32.mxu0 0.0
    %v5564 = vand.u32 %v62, 4294901760
    %5565 = vmatmul.mubr.f32.gmra.mrb[0].mxu0 %v5564
    %v5566 = vpop.f32.mrb[0].mxu0
    %v5567 = vadd.f32 %v5202, %v5566
    %v5568 = vpop.f32.mrb[0].mxu0
    %v5569 = vadd.f32 %v5204, %v5568
    %5570 = vmatprep.mubr.f32.mxu0 0.0
    %v5571 = vand.u32 %v63, 4294901760
    %5572 = vmatmul.mubr.f32.gmra.mrb[0].mxu0 %v5571
    %v5573 = vpop.f32.mrb[0].mxu0
    %v5574 = vadd.f32 %v5213, %v5573
    %v5575 = vpop.f32.mrb[0].mxu0
    %v5576 = vadd.f32 %v5215, %v5575
    %5577 = vmatprep.mubr.f32.mxu0 0.0
    %v5578 = vand.u32 %v64, 4294901760
    %5579 = vmatmul.mubr.f32.gmra.mrb[0].mxu0 %v5578
    %v5580 = vpop.f32.mrb[0].mxu0
    %v5581 = vadd.f32 %v5224, %v5580
    %v5582 = vpop.f32.mrb[0].mxu0
    %v5583 = vadd.f32 %v5226, %v5582
    %5584 = vmatprep.mubr.f32.mxu0 0.0
    %v5585 = vand.u32 %v65, 4294901760
    %5586 = vmatmul.mubr.f32.gmra.mrb[0].mxu0 %v5585
    %v5587 = vpop.f32.mrb[0].mxu0
    %v5588 = vadd.f32 %v5235, %v5587
    %v5589 = vpop.f32.mrb[0].mxu0
    %v5590 = vadd.f32 %v5237, %v5589
    %5591 = vmatprep.mubr.f32.mxu0 0.0
    %v5592 = vand.u32 %v66, 4294901760
    %5593 = vmatmul.mubr.f32.gmra.mrb[0].mxu0 %v5592
    %v5594 = vpop.f32.mrb[0].mxu0
    %v5595 = vadd.f32 %v5246, %v5594
    %v5596 = vpop.f32.mrb[0].mxu0
    %v5597 = vadd.f32 %v5248, %v5596
    %5598 = vmatprep.mubr.f32.mxu0 0.0
    %v5599 = vand.u32 %v67, 4294901760
    %5600 = vmatmul.mubr.f32.gmra.mrb[0].mxu0 %v5599
    %v5601 = vpop.f32.mrb[0].mxu0
    %v5602 = vadd.f32 %v5257, %v5601
    %v5603 = vpop.f32.mrb[0].mxu0
    %v5604 = vadd.f32 %v5259, %v5603
    %5605 = vmatprep.mubr.f32.mxu0 0.0
    %v5606 = vand.u32 %v68, 4294901760
    %5607 = vmatmul.mubr.f32.gmra.mrb[0].mxu0 %v5606
    %v5608 = vpop.f32.mrb[0].mxu0
    %v5609 = vadd.f32 %v5268, %v5608
    %v5610 = vpop.f32.mrb[0].mxu0
    %v5611 = vadd.f32 %v5270, %v5610
    %5612 = vmatprep.mubr.f32.mxu0 0.0
    %v5613 = vand.u32 %v69, 4294901760
    %5614 = vmatmul.mubr.f32.gmra.mrb[0].mxu0 %v5613
    %v5615 = vpop.f32.mrb[0].mxu0
    %v5616 = vadd.f32 %v5279, %v5615
    %v5617 = vpop.f32.mrb[0].mxu0
    %v5618 = vadd.f32 %v5281, %v5617
    %5619 = vdwg.mxu0
    %v5620 = vand.u32 %v77, 4294901760
    %v5621 = vsub.f32 %v77, %v5620
    %5622 = vmatprep.subr.mxu0 %v5621
    %v5623 = vand.u32 %v76, 4294901760
    %v5624 = vsub.f32 %v76, %v5623
    %5625 = vmatpush1.msra.mxu0 %v5624
    %v5626 = vand.u32 %v85, 4294901760
    %v5627 = vsub.f32 %v85, %v5626
    %5628 = vmatprep.subr.mxu0 %v5627
    %v5629 = vand.u32 %v84, 4294901760
    %v5630 = vsub.f32 %v84, %v5629
    %5631 = vmatpush1.msra.mxu0 %v5630
    %v5632 = vand.u32 %v93, 4294901760
    %v5633 = vsub.f32 %v93, %v5632
    %5634 = vmatprep.subr.mxu0 %v5633
    %v5635 = vand.u32 %v92, 4294901760
    %v5636 = vsub.f32 %v92, %v5635
    %5637 = vmatpush1.msra.mxu0 %v5636
    %v5638 = vand.u32 %v101, 4294901760
    %v5639 = vsub.f32 %v101, %v5638
    %5640 = vmatprep.subr.mxu0 %v5639
    %v5641 = vand.u32 %v100, 4294901760
    %v5642 = vsub.f32 %v100, %v5641
    %5643 = vmatpush1.msra.mxu0 %v5642
    %v5644 = vand.u32 %v109, 4294901760
    %v5645 = vsub.f32 %v109, %v5644
    %5646 = vmatprep.subr.mxu0 %v5645
    %v5647 = vand.u32 %v108, 4294901760
    %v5648 = vsub.f32 %v108, %v5647
    %5649 = vmatpush1.msra.mxu0 %v5648
    %v5650 = vand.u32 %v117, 4294901760
    %v5651 = vsub.f32 %v117, %v5650
    %5652 = vmatprep.subr.mxu0 %v5651
    %v5653 = vand.u32 %v116, 4294901760
    %v5654 = vsub.f32 %v116, %v5653
    %5655 = vmatpush1.msra.mxu0 %v5654
    %v5656 = vand.u32 %v125, 4294901760
    %v5657 = vsub.f32 %v125, %v5656
    %5658 = vmatprep.subr.mxu0 %v5657
    %v5659 = vand.u32 %v124, 4294901760
    %v5660 = vsub.f32 %v124, %v5659
    %5661 = vmatpush1.msra.mxu0 %v5660
    %v5662 = vand.u32 %v133, 4294901760
    %v5663 = vsub.f32 %v133, %v5662
    %5664 = vmatprep.subr.mxu0 %v5663
    %v5665 = vand.u32 %v132, 4294901760
    %v5666 = vsub.f32 %v132, %v5665
    %5667 = vmatpush1.msra.mxu0 %v5666
    %v5668 = vand.u32 %v141, 4294901760
    %v5669 = vsub.f32 %v141, %v5668
    %5670 = vmatprep.subr.mxu0 %v5669
    %v5671 = vand.u32 %v140, 4294901760
    %v5672 = vsub.f32 %v140, %v5671
    %5673 = vmatpush1.msra.mxu0 %v5672
    %v5674 = vand.u32 %v149, 4294901760
    %v5675 = vsub.f32 %v149, %v5674
    %5676 = vmatprep.subr.mxu0 %v5675
    %v5677 = vand.u32 %v148, 4294901760
    %v5678 = vsub.f32 %v148, %v5677
    %5679 = vmatpush1.msra.mxu0 %v5678
    %v5680 = vand.u32 %v157, 4294901760
    %v5681 = vsub.f32 %v157, %v5680
    %5682 = vmatprep.subr.mxu0 %v5681
    %v5683 = vand.u32 %v156, 4294901760
    %v5684 = vsub.f32 %v156, %v5683
    %5685 = vmatpush1.msra.mxu0 %v5684
    %v5686 = vand.u32 %v165, 4294901760
    %v5687 = vsub.f32 %v165, %v5686
    %5688 = vmatprep.subr.mxu0 %v5687
    %v5689 = vand.u32 %v164, 4294901760
    %v5690 = vsub.f32 %v164, %v5689
    %5691 = vmatpush1.msra.mxu0 %v5690
    %v5692 = vand.u32 %v173, 4294901760
    %v5693 = vsub.f32 %v173, %v5692
    %5694 = vmatprep.subr.mxu0 %v5693
    %v5695 = vand.u32 %v172, 4294901760
    %v5696 = vsub.f32 %v172, %v5695
    %5697 = vmatpush1.msra.mxu0 %v5696
    %v5698 = vand.u32 %v181, 4294901760
    %v5699 = vsub.f32 %v181, %v5698
    %5700 = vmatprep.subr.mxu0 %v5699
    %v5701 = vand.u32 %v180, 4294901760
    %v5702 = vsub.f32 %v180, %v5701
    %5703 = vmatpush1.msra.mxu0 %v5702
    %v5704 = vand.u32 %v189, 4294901760
    %v5705 = vsub.f32 %v189, %v5704
    %5706 = vmatprep.subr.mxu0 %v5705
    %v5707 = vand.u32 %v188, 4294901760
    %v5708 = vsub.f32 %v188, %v5707
    %5709 = vmatpush1.msra.mxu0 %v5708
    %v5710 = vand.u32 %v197, 4294901760
    %v5711 = vsub.f32 %v197, %v5710
    %5712 = vmatprep.subr.mxu0 %v5711
    %v5713 = vand.u32 %v196, 4294901760
    %v5714 = vsub.f32 %v196, %v5713
    %5715 = vmatpush1.msra.mxu0 %v5714
    %5716 = vmatprep.subr.mxu0 0.0
    %5717 = vmatpush1.msra.mxu0 0.0
    %5718 = vmatprep.subr.mxu0 0.0
    %5719 = vmatpush1.msra.mxu0 0.0
    %5720 = vmatprep.subr.mxu0 0.0
    %5721 = vmatpush1.msra.mxu0 0.0
    %5722 = vmatprep.subr.mxu0 0.0
    %5723 = vmatpush1.msra.mxu0 0.0
    %5724 = vmatprep.subr.mxu0 0.0
    %5725 = vmatpush1.msra.mxu0 0.0
    %5726 = vmatprep.subr.mxu0 0.0
    %5727 = vmatpush1.msra.mxu0 0.0
    %5728 = vmatprep.subr.mxu0 0.0
    %5729 = vmatpush1.msra.mxu0 0.0
    %5730 = vmatprep.subr.mxu0 0.0
    %5731 = vmatpush1.msra.mxu0 0.0
    %5732 = vmatprep.subr.mxu0 0.0
    %5733 = vmatpush1.msra.mxu0 0.0
    %5734 = vmatprep.subr.mxu0 0.0
    %5735 = vmatpush1.msra.mxu0 0.0
    %5736 = vmatprep.subr.mxu0 0.0
    %5737 = vmatpush1.msra.mxu0 0.0
    %5738 = vmatprep.subr.mxu0 0.0
    %5739 = vmatpush1.msra.mxu0 0.0
    %5740 = vmatprep.subr.mxu0 0.0
    %5741 = vmatpush1.msra.mxu0 0.0
    %5742 = vmatprep.subr.mxu0 0.0
    %5743 = vmatpush1.msra.mxu0 0.0
    %5744 = vmatprep.subr.mxu0 0.0
    %5745 = vmatpush1.msra.mxu0 0.0
    %5746 = vmatprep.subr.mxu0 0.0
    %5747 = vmatpush1.msra.mxu0 0.0
    %5748 = vmatprep.mubr.f32.mxu0 0.0
    %v5749 = vand.u32 %v54, 4294901760
    %v5750 = vsub.f32 %v54, %v5749
    %5751 = vmatmul.mubr.f32.gmra.mrb[0].mxu0 %v5750
    %v5752 = vpop.f32.mrb[0].mxu0
    %v5753 = vadd.f32 %v5511, %v5752
    %v5754 = vpop.f32.mrb[0].mxu0
    %v5755 = vadd.f32 %v5513, %v5754
    %5756 = vmatprep.mubr.f32.mxu0 0.0
    %v5757 = vand.u32 %v55, 4294901760
    %v5758 = vsub.f32 %v55, %v5757
    %5759 = vmatmul.mubr.f32.gmra.mrb[0].mxu0 %v5758
    %v5760 = vpop.f32.mrb[0].mxu0
    %v5761 = vadd.f32 %v5518, %v5760
    %v5762 = vpop.f32.mrb[0].mxu0
    %v5763 = vadd.f32 %v5520, %v5762
    %5764 = vmatprep.mubr.f32.mxu0 0.0
    %v5765 = vand.u32 %v56, 4294901760
    %v5766 = vsub.f32 %v56, %v5765
    %5767 = vmatmul.mubr.f32.gmra.mrb[0].mxu0 %v5766
    %v5768 = vpop.f32.mrb[0].mxu0
    %v5769 = vadd.f32 %v5525, %v5768
    %v5770 = vpop.f32.mrb[0].mxu0
    %v5771 = vadd.f32 %v5527, %v5770
    %5772 = vmatprep.mubr.f32.mxu0 0.0
    %v5773 = vand.u32 %v57, 4294901760
    %v5774 = vsub.f32 %v57, %v5773
    %5775 = vmatmul.mubr.f32.gmra.mrb[0].mxu0 %v5774
    %v5776 = vpop.f32.mrb[0].mxu0
    %v5777 = vadd.f32 %v5532, %v5776
    %v5778 = vpop.f32.mrb[0].mxu0
    %v5779 = vadd.f32 %v5534, %v5778
    %5780 = vmatprep.mubr.f32.mxu0 0.0
    %v5781 = vand.u32 %v58, 4294901760
    %v5782 = vsub.f32 %v58, %v5781
    %5783 = vmatmul.mubr.f32.gmra.mrb[0].mxu0 %v5782
    %v5784 = vpop.f32.mrb[0].mxu0
    %v5785 = vadd.f32 %v5539, %v5784
    %v5786 = vpop.f32.mrb[0].mxu0
    %v5787 = vadd.f32 %v5541, %v5786
    %5788 = vmatprep.mubr.f32.mxu0 0.0
    %v5789 = vand.u32 %v59, 4294901760
    %v5790 = vsub.f32 %v59, %v5789
    %5791 = vmatmul.mubr.f32.gmra.mrb[0].mxu0 %v5790
    %v5792 = vpop.f32.mrb[0].mxu0
    %v5793 = vadd.f32 %v5546, %v5792
    %v5794 = vpop.f32.mrb[0].mxu0
    %v5795 = vadd.f32 %v5548, %v5794
    %5796 = vmatprep.mubr.f32.mxu0 0.0
    %v5797 = vand.u32 %v60, 4294901760
    %v5798 = vsub.f32 %v60, %v5797
    %5799 = vmatmul.mubr.f32.gmra.mrb[0].mxu0 %v5798
    %v5800 = vpop.f32.mrb[0].mxu0
    %v5801 = vadd.f32 %v5553, %v5800
    %v5802 = vpop.f32.mrb[0].mxu0
    %v5803 = vadd.f32 %v5555, %v5802
    %5804 = vmatprep.mubr.f32.mxu0 0.0
    %v5805 = vand.u32 %v61, 4294901760
    %v5806 = vsub.f32 %v61, %v5805
    %5807 = vmatmul.mubr.f32.gmra.mrb[0].mxu0 %v5806
    %v5808 = vpop.f32.mrb[0].mxu0
    %v5809 = vadd.f32 %v5560, %v5808
    %v5810 = vpop.f32.mrb[0].mxu0
    %v5811 = vadd.f32 %v5562, %v5810
    %5812 = vmatprep.mubr.f32.mxu0 0.0
    %v5813 = vand.u32 %v62, 4294901760
    %v5814 = vsub.f32 %v62, %v5813
    %5815 = vmatmul.mubr.f32.gmra.mrb[0].mxu0 %v5814
    %v5816 = vpop.f32.mrb[0].mxu0
    %v5817 = vadd.f32 %v5567, %v5816
    %v5818 = vpop.f32.mrb[0].mxu0
    %v5819 = vadd.f32 %v5569, %v5818
    %5820 = vmatprep.mubr.f32.mxu0 0.0
    %v5821 = vand.u32 %v63, 4294901760
    %v5822 = vsub.f32 %v63, %v5821
    %5823 = vmatmul.mubr.f32.gmra.mrb[0].mxu0 %v5822
    %v5824 = vpop.f32.mrb[0].mxu0
    %v5825 = vadd.f32 %v5574, %v5824
    %v5826 = vpop.f32.mrb[0].mxu0
    %v5827 = vadd.f32 %v5576, %v5826
    %5828 = vmatprep.mubr.f32.mxu0 0.0
    %v5829 = vand.u32 %v64, 4294901760
    %v5830 = vsub.f32 %v64, %v5829
    %5831 = vmatmul.mubr.f32.gmra.mrb[0].mxu0 %v5830
    %v5832 = vpop.f32.mrb[0].mxu0
    %v5833 = vadd.f32 %v5581, %v5832
    %v5834 = vpop.f32.mrb[0].mxu0
    %v5835 = vadd.f32 %v5583, %v5834
    %5836 = vmatprep.mubr.f32.mxu0 0.0
    %v5837 = vand.u32 %v65, 4294901760
    %v5838 = vsub.f32 %v65, %v5837
    %5839 = vmatmul.mubr.f32.gmra.mrb[0].mxu0 %v5838
    %v5840 = vpop.f32.mrb[0].mxu0
    %v5841 = vadd.f32 %v5588, %v5840
    %v5842 = vpop.f32.mrb[0].mxu0
    %v5843 = vadd.f32 %v5590, %v5842
    %5844 = vmatprep.mubr.f32.mxu0 0.0
    %v5845 = vand.u32 %v66, 4294901760
    %v5846 = vsub.f32 %v66, %v5845
    %5847 = vmatmul.mubr.f32.gmra.mrb[0].mxu0 %v5846
    %v5848 = vpop.f32.mrb[0].mxu0
    %v5849 = vadd.f32 %v5595, %v5848
    %v5850 = vpop.f32.mrb[0].mxu0
    %v5851 = vadd.f32 %v5597, %v5850
    %5852 = vmatprep.mubr.f32.mxu0 0.0
    %v5853 = vand.u32 %v67, 4294901760
    %v5854 = vsub.f32 %v67, %v5853
    %5855 = vmatmul.mubr.f32.gmra.mrb[0].mxu0 %v5854
    %v5856 = vpop.f32.mrb[0].mxu0
    %v5857 = vadd.f32 %v5602, %v5856
    %v5858 = vpop.f32.mrb[0].mxu0
    %v5859 = vadd.f32 %v5604, %v5858
    %5860 = vmatprep.mubr.f32.mxu0 0.0
    %v5861 = vand.u32 %v68, 4294901760
    %v5862 = vsub.f32 %v68, %v5861
    %5863 = vmatmul.mubr.f32.gmra.mrb[0].mxu0 %v5862
    %v5864 = vpop.f32.mrb[0].mxu0
    %v5865 = vadd.f32 %v5609, %v5864
    %v5866 = vpop.f32.mrb[0].mxu0
    %v5867 = vadd.f32 %v5611, %v5866
    %5868 = vmatprep.mubr.f32.mxu0 0.0
    %v5869 = vand.u32 %v69, 4294901760
    %v5870 = vsub.f32 %v69, %v5869
    %5871 = vmatmul.mubr.f32.gmra.mrb[0].mxu0 %v5870
    %v5872 = vpop.f32.mrb[0].mxu0
    %v5873 = vadd.f32 %v5616, %v5872
    %v5874 = vpop.f32.mrb[0].mxu0
    %v5875 = vadd.f32 %v5618, %v5874
    %5876 = vdwg.mxu0
    %v5877 = vand.u32 %v77, 4294901760
    %5878 = vmatprep.subr.mxu0 %v5877
    %v5879 = vand.u32 %v76, 4294901760
    %5880 = vmatpush1.msra.mxu0 %v5879
    %v5881 = vand.u32 %v85, 4294901760
    %5882 = vmatprep.subr.mxu0 %v5881
    %v5883 = vand.u32 %v84, 4294901760
    %5884 = vmatpush1.msra.mxu0 %v5883
    %v5885 = vand.u32 %v93, 4294901760
    %5886 = vmatprep.subr.mxu0 %v5885
    %v5887 = vand.u32 %v92, 4294901760
    %5888 = vmatpush1.msra.mxu0 %v5887
    %v5889 = vand.u32 %v101, 4294901760
    %5890 = vmatprep.subr.mxu0 %v5889
    %v5891 = vand.u32 %v100, 4294901760
    %5892 = vmatpush1.msra.mxu0 %v5891
    %v5893 = vand.u32 %v109, 4294901760
    %5894 = vmatprep.subr.mxu0 %v5893
    %v5895 = vand.u32 %v108, 4294901760
    %5896 = vmatpush1.msra.mxu0 %v5895
    %v5897 = vand.u32 %v117, 4294901760
    %5898 = vmatprep.subr.mxu0 %v5897
    %v5899 = vand.u32 %v116, 4294901760
    %5900 = vmatpush1.msra.mxu0 %v5899
    %v5901 = vand.u32 %v125, 4294901760
    %5902 = vmatprep.subr.mxu0 %v5901
    %v5903 = vand.u32 %v124, 4294901760
    %5904 = vmatpush1.msra.mxu0 %v5903
    %v5905 = vand.u32 %v133, 4294901760
    %5906 = vmatprep.subr.mxu0 %v5905
    %v5907 = vand.u32 %v132, 4294901760
    %5908 = vmatpush1.msra.mxu0 %v5907
    %v5909 = vand.u32 %v141, 4294901760
    %5910 = vmatprep.subr.mxu0 %v5909
    %v5911 = vand.u32 %v140, 4294901760
    %5912 = vmatpush1.msra.mxu0 %v5911
    %v5913 = vand.u32 %v149, 4294901760
    %5914 = vmatprep.subr.mxu0 %v5913
    %v5915 = vand.u32 %v148, 4294901760
    %5916 = vmatpush1.msra.mxu0 %v5915
    %v5917 = vand.u32 %v157, 4294901760
    %5918 = vmatprep.subr.mxu0 %v5917
    %v5919 = vand.u32 %v156, 4294901760
    %5920 = vmatpush1.msra.mxu0 %v5919
    %v5921 = vand.u32 %v165, 4294901760
    %5922 = vmatprep.subr.mxu0 %v5921
    %v5923 = vand.u32 %v164, 4294901760
    %5924 = vmatpush1.msra.mxu0 %v5923
    %v5925 = vand.u32 %v173, 4294901760
    %5926 = vmatprep.subr.mxu0 %v5925
    %v5927 = vand.u32 %v172, 4294901760
    %5928 = vmatpush1.msra.mxu0 %v5927
    %v5929 = vand.u32 %v181, 4294901760
    %5930 = vmatprep.subr.mxu0 %v5929
    %v5931 = vand.u32 %v180, 4294901760
    %5932 = vmatpush1.msra.mxu0 %v5931
    %v5933 = vand.u32 %v189, 4294901760
    %5934 = vmatprep.subr.mxu0 %v5933
    %v5935 = vand.u32 %v188, 4294901760
    %5936 = vmatpush1.msra.mxu0 %v5935
    %v5937 = vand.u32 %v197, 4294901760
    %5938 = vmatprep.subr.mxu0 %v5937
    %v5939 = vand.u32 %v196, 4294901760
    %5940 = vmatpush1.msra.mxu0 %v5939
    %5941 = vmatprep.subr.mxu0 0.0
    %5942 = vmatpush1.msra.mxu0 0.0
    %5943 = vmatprep.subr.mxu0 0.0
    %5944 = vmatpush1.msra.mxu0 0.0
    %5945 = vmatprep.subr.mxu0 0.0
    %5946 = vmatpush1.msra.mxu0 0.0
    %5947 = vmatprep.subr.mxu0 0.0
    %5948 = vmatpush1.msra.mxu0 0.0
    %5949 = vmatprep.subr.mxu0 0.0
    %5950 = vmatpush1.msra.mxu0 0.0
    %5951 = vmatprep.subr.mxu0 0.0
    %5952 = vmatpush1.msra.mxu0 0.0
    %5953 = vmatprep.subr.mxu0 0.0
    %5954 = vmatpush1.msra.mxu0 0.0
    %5955 = vmatprep.subr.mxu0 0.0
    %5956 = vmatpush1.msra.mxu0 0.0
    %5957 = vmatprep.subr.mxu0 0.0
    %5958 = vmatpush1.msra.mxu0 0.0
    %5959 = vmatprep.subr.mxu0 0.0
    %5960 = vmatpush1.msra.mxu0 0.0
    %5961 = vmatprep.subr.mxu0 0.0
    %5962 = vmatpush1.msra.mxu0 0.0
    %5963 = vmatprep.subr.mxu0 0.0
    %5964 = vmatpush1.msra.mxu0 0.0
    %5965 = vmatprep.subr.mxu0 0.0
    %5966 = vmatpush1.msra.mxu0 0.0
    %5967 = vmatprep.subr.mxu0 0.0
    %5968 = vmatpush1.msra.mxu0 0.0
    %5969 = vmatprep.subr.mxu0 0.0
    %5970 = vmatpush1.msra.mxu0 0.0
    %5971 = vmatprep.subr.mxu0 0.0
    %5972 = vmatpush1.msra.mxu0 0.0
    %5973 = vmatprep.mubr.f32.mxu0 0.0
    %v5974 = vand.u32 %v54, 4294901760
    %v5975 = vsub.f32 %v54, %v5974
    %v5976 = vand.u32 %v5975, 4294901760
    %5977 = vmatmul.mubr.f32.gmra.mrb[0].mxu0 %v5976
    %v5978 = vpop.f32.mrb[0].mxu0
    %v5979 = vadd.f32 %v5753, %v5978
    %v5980 = vpop.f32.mrb[0].mxu0
    %v5981 = vadd.f32 %v5755, %v5980
    %5982 = vmatprep.mubr.f32.mxu0 0.0
    %v5983 = vand.u32 %v55, 4294901760
    %v5984 = vsub.f32 %v55, %v5983
    %v5985 = vand.u32 %v5984, 4294901760
    %5986 = vmatmul.mubr.f32.gmra.mrb[0].mxu0 %v5985
    %v5987 = vpop.f32.mrb[0].mxu0
    %v5988 = vadd.f32 %v5761, %v5987
    %v5989 = vpop.f32.mrb[0].mxu0
    %v5990 = vadd.f32 %v5763, %v5989
    %5991 = vmatprep.mubr.f32.mxu0 0.0
    %v5992 = vand.u32 %v56, 4294901760
    %v5993 = vsub.f32 %v56, %v5992
    %v5994 = vand.u32 %v5993, 4294901760
    %5995 = vmatmul.mubr.f32.gmra.mrb[0].mxu0 %v5994
    %v5996 = vpop.f32.mrb[0].mxu0
    %v5997 = vadd.f32 %v5769, %v5996
    %v5998 = vpop.f32.mrb[0].mxu0
    %v5999 = vadd.f32 %v5771, %v5998
    %6000 = vmatprep.mubr.f32.mxu0 0.0
    %v6001 = vand.u32 %v57, 4294901760
    %v6002 = vsub.f32 %v57, %v6001
    %v6003 = vand.u32 %v6002, 4294901760
    %6004 = vmatmul.mubr.f32.gmra.mrb[0].mxu0 %v6003
    %v6005 = vpop.f32.mrb[0].mxu0
    %v6006 = vadd.f32 %v5777, %v6005
    %v6007 = vpop.f32.mrb[0].mxu0
    %v6008 = vadd.f32 %v5779, %v6007
    %6009 = vmatprep.mubr.f32.mxu0 0.0
    %v6010 = vand.u32 %v58, 4294901760
    %v6011 = vsub.f32 %v58, %v6010
    %v6012 = vand.u32 %v6011, 4294901760
    %6013 = vmatmul.mubr.f32.gmra.mrb[0].mxu0 %v6012
    %v6014 = vpop.f32.mrb[0].mxu0
    %v6015 = vadd.f32 %v5785, %v6014
    %v6016 = vpop.f32.mrb[0].mxu0
    %v6017 = vadd.f32 %v5787, %v6016
    %6018 = vmatprep.mubr.f32.mxu0 0.0
    %v6019 = vand.u32 %v59, 4294901760
    %v6020 = vsub.f32 %v59, %v6019
    %v6021 = vand.u32 %v6020, 4294901760
    %6022 = vmatmul.mubr.f32.gmra.mrb[0].mxu0 %v6021
    %v6023 = vpop.f32.mrb[0].mxu0
    %v6024 = vadd.f32 %v5793, %v6023
    %v6025 = vpop.f32.mrb[0].mxu0
    %v6026 = vadd.f32 %v5795, %v6025
    %6027 = vmatprep.mubr.f32.mxu0 0.0
    %v6028 = vand.u32 %v60, 4294901760
    %v6029 = vsub.f32 %v60, %v6028
    %v6030 = vand.u32 %v6029, 4294901760
    %6031 = vmatmul.mubr.f32.gmra.mrb[0].mxu0 %v6030
    %v6032 = vpop.f32.mrb[0].mxu0
    %v6033 = vadd.f32 %v5801, %v6032
    %v6034 = vpop.f32.mrb[0].mxu0
    %v6035 = vadd.f32 %v5803, %v6034
    %6036 = vmatprep.mubr.f32.mxu0 0.0
    %v6037 = vand.u32 %v61, 4294901760
    %v6038 = vsub.f32 %v61, %v6037
    %v6039 = vand.u32 %v6038, 4294901760
    %6040 = vmatmul.mubr.f32.gmra.mrb[0].mxu0 %v6039
    %v6041 = vpop.f32.mrb[0].mxu0
    %v6042 = vadd.f32 %v5809, %v6041
    %v6043 = vpop.f32.mrb[0].mxu0
    %v6044 = vadd.f32 %v5811, %v6043
    %6045 = vmatprep.mubr.f32.mxu0 0.0
    %v6046 = vand.u32 %v62, 4294901760
    %v6047 = vsub.f32 %v62, %v6046
    %v6048 = vand.u32 %v6047, 4294901760
    %6049 = vmatmul.mubr.f32.gmra.mrb[0].mxu0 %v6048
    %v6050 = vpop.f32.mrb[0].mxu0
    %v6051 = vadd.f32 %v5817, %v6050
    %v6052 = vpop.f32.mrb[0].mxu0
    %v6053 = vadd.f32 %v5819, %v6052
    %6054 = vmatprep.mubr.f32.mxu0 0.0
    %v6055 = vand.u32 %v63, 4294901760
    %v6056 = vsub.f32 %v63, %v6055
    %v6057 = vand.u32 %v6056, 4294901760
    %6058 = vmatmul.mubr.f32.gmra.mrb[0].mxu0 %v6057
    %v6059 = vpop.f32.mrb[0].mxu0
    %v6060 = vadd.f32 %v5825, %v6059
    %v6061 = vpop.f32.mrb[0].mxu0
    %v6062 = vadd.f32 %v5827, %v6061
    %6063 = vmatprep.mubr.f32.mxu0 0.0
    %v6064 = vand.u32 %v64, 4294901760
    %v6065 = vsub.f32 %v64, %v6064
    %v6066 = vand.u32 %v6065, 4294901760
    %6067 = vmatmul.mubr.f32.gmra.mrb[0].mxu0 %v6066
    %v6068 = vpop.f32.mrb[0].mxu0
    %v6069 = vadd.f32 %v5833, %v6068
    %v6070 = vpop.f32.mrb[0].mxu0
    %v6071 = vadd.f32 %v5835, %v6070
    %6072 = vmatprep.mubr.f32.mxu0 0.0
    %v6073 = vand.u32 %v65, 4294901760
    %v6074 = vsub.f32 %v65, %v6073
    %v6075 = vand.u32 %v6074, 4294901760
    %6076 = vmatmul.mubr.f32.gmra.mrb[0].mxu0 %v6075
    %v6077 = vpop.f32.mrb[0].mxu0
    %v6078 = vadd.f32 %v5841, %v6077
    %v6079 = vpop.f32.mrb[0].mxu0
    %v6080 = vadd.f32 %v5843, %v6079
    %6081 = vmatprep.mubr.f32.mxu0 0.0
    %v6082 = vand.u32 %v66, 4294901760
    %v6083 = vsub.f32 %v66, %v6082
    %v6084 = vand.u32 %v6083, 4294901760
    %6085 = vmatmul.mubr.f32.gmra.mrb[0].mxu0 %v6084
    %v6086 = vpop.f32.mrb[0].mxu0
    %v6087 = vadd.f32 %v5849, %v6086
    %v6088 = vpop.f32.mrb[0].mxu0
    %v6089 = vadd.f32 %v5851, %v6088
    %6090 = vmatprep.mubr.f32.mxu0 0.0
    %v6091 = vand.u32 %v67, 4294901760
    %v6092 = vsub.f32 %v67, %v6091
    %v6093 = vand.u32 %v6092, 4294901760
    %6094 = vmatmul.mubr.f32.gmra.mrb[0].mxu0 %v6093
    %v6095 = vpop.f32.mrb[0].mxu0
    %v6096 = vadd.f32 %v5857, %v6095
    %v6097 = vpop.f32.mrb[0].mxu0
    %v6098 = vadd.f32 %v5859, %v6097
    %6099 = vmatprep.mubr.f32.mxu0 0.0
    %v6100 = vand.u32 %v68, 4294901760
    %v6101 = vsub.f32 %v68, %v6100
    %v6102 = vand.u32 %v6101, 4294901760
    %6103 = vmatmul.mubr.f32.gmra.mrb[0].mxu0 %v6102
    %v6104 = vpop.f32.mrb[0].mxu0
    %v6105 = vadd.f32 %v5865, %v6104
    %v6106 = vpop.f32.mrb[0].mxu0
    %v6107 = vadd.f32 %v5867, %v6106
    %6108 = vmatprep.mubr.f32.mxu0 0.0
    %v6109 = vand.u32 %v69, 4294901760
    %v6110 = vsub.f32 %v69, %v6109
    %v6111 = vand.u32 %v6110, 4294901760
    %6112 = vmatmul.mubr.f32.gmra.mrb[0].mxu0 %v6111
    %v6113 = vpop.f32.mrb[0].mxu0
    %v6114 = vadd.f32 %v5873, %v6113
    %v6115 = vpop.f32.mrb[0].mxu0
    %v6116 = vadd.f32 %v5875, %v6115
    %6117 = vdwg.mxu0
    %v6118 = vand.u32 %v77, 4294901760
    %v6119 = vsub.f32 %v77, %v6118
    %v6120 = vand.u32 %v6119, 4294901760
    %6121 = vmatprep.subr.mxu0 %v6120
    %v6122 = vand.u32 %v76, 4294901760
    %v6123 = vsub.f32 %v76, %v6122
    %v6124 = vand.u32 %v6123, 4294901760
    %6125 = vmatpush1.msra.mxu0 %v6124
    %v6126 = vand.u32 %v85, 4294901760
    %v6127 = vsub.f32 %v85, %v6126
    %v6128 = vand.u32 %v6127, 4294901760
    %6129 = vmatprep.subr.mxu0 %v6128
    %v6130 = vand.u32 %v84, 4294901760
    %v6131 = vsub.f32 %v84, %v6130
    %v6132 = vand.u32 %v6131, 4294901760
    %6133 = vmatpush1.msra.mxu0 %v6132
    %v6134 = vand.u32 %v93, 4294901760
    %v6135 = vsub.f32 %v93, %v6134
    %v6136 = vand.u32 %v6135, 4294901760
    %6137 = vmatprep.subr.mxu0 %v6136
    %v6138 = vand.u32 %v92, 4294901760
    %v6139 = vsub.f32 %v92, %v6138
    %v6140 = vand.u32 %v6139, 4294901760
    %6141 = vmatpush1.msra.mxu0 %v6140
    %v6142 = vand.u32 %v101, 4294901760
    %v6143 = vsub.f32 %v101, %v6142
    %v6144 = vand.u32 %v6143, 4294901760
    %6145 = vmatprep.subr.mxu0 %v6144
    %v6146 = vand.u32 %v100, 4294901760
    %v6147 = vsub.f32 %v100, %v6146
    %v6148 = vand.u32 %v6147, 4294901760
    %6149 = vmatpush1.msra.mxu0 %v6148
    %v6150 = vand.u32 %v109, 4294901760
    %v6151 = vsub.f32 %v109, %v6150
    %v6152 = vand.u32 %v6151, 4294901760
    %6153 = vmatprep.subr.mxu0 %v6152
    %v6154 = vand.u32 %v108, 4294901760
    %v6155 = vsub.f32 %v108, %v6154
    %v6156 = vand.u32 %v6155, 4294901760
    %6157 = vmatpush1.msra.mxu0 %v6156
    %v6158 = vand.u32 %v117, 4294901760
    %v6159 = vsub.f32 %v117, %v6158
    %v6160 = vand.u32 %v6159, 4294901760
    %6161 = vmatprep.subr.mxu0 %v6160
    %v6162 = vand.u32 %v116, 4294901760
    %v6163 = vsub.f32 %v116, %v6162
    %v6164 = vand.u32 %v6163, 4294901760
    %6165 = vmatpush1.msra.mxu0 %v6164
    %v6166 = vand.u32 %v125, 4294901760
    %v6167 = vsub.f32 %v125, %v6166
    %v6168 = vand.u32 %v6167, 4294901760
    %6169 = vmatprep.subr.mxu0 %v6168
    %v6170 = vand.u32 %v124, 4294901760
    %v6171 = vsub.f32 %v124, %v6170
    %v6172 = vand.u32 %v6171, 4294901760
    %6173 = vmatpush1.msra.mxu0 %v6172
    %v6174 = vand.u32 %v133, 4294901760
    %v6175 = vsub.f32 %v133, %v6174
    %v6176 = vand.u32 %v6175, 4294901760
    %6177 = vmatprep.subr.mxu0 %v6176
    %v6178 = vand.u32 %v132, 4294901760
    %v6179 = vsub.f32 %v132, %v6178
    %v6180 = vand.u32 %v6179, 4294901760
    %6181 = vmatpush1.msra.mxu0 %v6180
    %v6182 = vand.u32 %v141, 4294901760
    %v6183 = vsub.f32 %v141, %v6182
    %v6184 = vand.u32 %v6183, 4294901760
    %6185 = vmatprep.subr.mxu0 %v6184
    %v6186 = vand.u32 %v140, 4294901760
    %v6187 = vsub.f32 %v140, %v6186
    %v6188 = vand.u32 %v6187, 4294901760
    %6189 = vmatpush1.msra.mxu0 %v6188
    %v6190 = vand.u32 %v149, 4294901760
    %v6191 = vsub.f32 %v149, %v6190
    %v6192 = vand.u32 %v6191, 4294901760
    %6193 = vmatprep.subr.mxu0 %v6192
    %v6194 = vand.u32 %v148, 4294901760
    %v6195 = vsub.f32 %v148, %v6194
    %v6196 = vand.u32 %v6195, 4294901760
    %6197 = vmatpush1.msra.mxu0 %v6196
    %v6198 = vand.u32 %v157, 4294901760
    %v6199 = vsub.f32 %v157, %v6198
    %v6200 = vand.u32 %v6199, 4294901760
    %6201 = vmatprep.subr.mxu0 %v6200
    %v6202 = vand.u32 %v156, 4294901760
    %v6203 = vsub.f32 %v156, %v6202
    %v6204 = vand.u32 %v6203, 4294901760
    %6205 = vmatpush1.msra.mxu0 %v6204
    %v6206 = vand.u32 %v165, 4294901760
    %v6207 = vsub.f32 %v165, %v6206
    %v6208 = vand.u32 %v6207, 4294901760
    %6209 = vmatprep.subr.mxu0 %v6208
    %v6210 = vand.u32 %v164, 4294901760
    %v6211 = vsub.f32 %v164, %v6210
    %v6212 = vand.u32 %v6211, 4294901760
    %6213 = vmatpush1.msra.mxu0 %v6212
    %v6214 = vand.u32 %v173, 4294901760
    %v6215 = vsub.f32 %v173, %v6214
    %v6216 = vand.u32 %v6215, 4294901760
    %6217 = vmatprep.subr.mxu0 %v6216
    %v6218 = vand.u32 %v172, 4294901760
    %v6219 = vsub.f32 %v172, %v6218
    %v6220 = vand.u32 %v6219, 4294901760
    %6221 = vmatpush1.msra.mxu0 %v6220
    %v6222 = vand.u32 %v181, 4294901760
    %v6223 = vsub.f32 %v181, %v6222
    %v6224 = vand.u32 %v6223, 4294901760
    %6225 = vmatprep.subr.mxu0 %v6224
    %v6226 = vand.u32 %v180, 4294901760
    %v6227 = vsub.f32 %v180, %v6226
    %v6228 = vand.u32 %v6227, 4294901760
    %6229 = vmatpush1.msra.mxu0 %v6228
    %v6230 = vand.u32 %v189, 4294901760
    %v6231 = vsub.f32 %v189, %v6230
    %v6232 = vand.u32 %v6231, 4294901760
    %6233 = vmatprep.subr.mxu0 %v6232
    %v6234 = vand.u32 %v188, 4294901760
    %v6235 = vsub.f32 %v188, %v6234
    %v6236 = vand.u32 %v6235, 4294901760
    %6237 = vmatpush1.msra.mxu0 %v6236
    %v6238 = vand.u32 %v197, 4294901760
    %v6239 = vsub.f32 %v197, %v6238
    %v6240 = vand.u32 %v6239, 4294901760
    %6241 = vmatprep.subr.mxu0 %v6240
    %v6242 = vand.u32 %v196, 4294901760
    %v6243 = vsub.f32 %v196, %v6242
    %v6244 = vand.u32 %v6243, 4294901760
    %6245 = vmatpush1.msra.mxu0 %v6244
    %6246 = vmatprep.subr.mxu0 0.0
    %6247 = vmatpush1.msra.mxu0 0.0
    %6248 = vmatprep.subr.mxu0 0.0
    %6249 = vmatpush1.msra.mxu0 0.0
    %6250 = vmatprep.subr.mxu0 0.0
    %6251 = vmatpush1.msra.mxu0 0.0
    %6252 = vmatprep.subr.mxu0 0.0
    %6253 = vmatpush1.msra.mxu0 0.0
    %6254 = vmatprep.subr.mxu0 0.0
    %6255 = vmatpush1.msra.mxu0 0.0
    %6256 = vmatprep.subr.mxu0 0.0
    %6257 = vmatpush1.msra.mxu0 0.0
    %6258 = vmatprep.subr.mxu0 0.0
    %6259 = vmatpush1.msra.mxu0 0.0
    %6260 = vmatprep.subr.mxu0 0.0
    %6261 = vmatpush1.msra.mxu0 0.0
    %6262 = vmatprep.subr.mxu0 0.0
    %6263 = vmatpush1.msra.mxu0 0.0
    %6264 = vmatprep.subr.mxu0 0.0
    %6265 = vmatpush1.msra.mxu0 0.0
    %6266 = vmatprep.subr.mxu0 0.0
    %6267 = vmatpush1.msra.mxu0 0.0
    %6268 = vmatprep.subr.mxu0 0.0
    %6269 = vmatpush1.msra.mxu0 0.0
    %6270 = vmatprep.subr.mxu0 0.0
    %6271 = vmatpush1.msra.mxu0 0.0
    %6272 = vmatprep.subr.mxu0 0.0
    %6273 = vmatpush1.msra.mxu0 0.0
    %6274 = vmatprep.subr.mxu0 0.0
    %6275 = vmatpush1.msra.mxu0 0.0
    %6276 = vmatprep.subr.mxu0 0.0
    %6277 = vmatpush1.msra.mxu0 0.0
    %6278 = vmatprep.mubr.f32.mxu0 0.0
    %v6279 = vand.u32 %v54, 4294901760
    %6280 = vmatmul.mubr.f32.gmra.mrb[0].mxu0 %v6279
    %v6281 = vpop.f32.mrb[0].mxu0
    %v6282 = vadd.f32 %v5979, %v6281
    %v6283 = vpop.f32.mrb[0].mxu0
    %v6284 = vadd.f32 %v5981, %v6283
    %6285 = vmatprep.mubr.f32.mxu0 0.0
    %v6286 = vand.u32 %v55, 4294901760
    %6287 = vmatmul.mubr.f32.gmra.mrb[0].mxu0 %v6286
    %v6288 = vpop.f32.mrb[0].mxu0
    %v6289 = vadd.f32 %v5988, %v6288
    %v6290 = vpop.f32.mrb[0].mxu0
    %v6291 = vadd.f32 %v5990, %v6290
    %6292 = vmatprep.mubr.f32.mxu0 0.0
    %v6293 = vand.u32 %v56, 4294901760
    %6294 = vmatmul.mubr.f32.gmra.mrb[0].mxu0 %v6293
    %v6295 = vpop.f32.mrb[0].mxu0
    %v6296 = vadd.f32 %v5997, %v6295
    %v6297 = vpop.f32.mrb[0].mxu0
    %v6298 = vadd.f32 %v5999, %v6297
    %6299 = vmatprep.mubr.f32.mxu0 0.0
    %v6300 = vand.u32 %v57, 4294901760
    %6301 = vmatmul.mubr.f32.gmra.mrb[0].mxu0 %v6300
    %v6302 = vpop.f32.mrb[0].mxu0
    %v6303 = vadd.f32 %v6006, %v6302
    %v6304 = vpop.f32.mrb[0].mxu0
    %v6305 = vadd.f32 %v6008, %v6304
    %6306 = vmatprep.mubr.f32.mxu0 0.0
    %v6307 = vand.u32 %v58, 4294901760
    %6308 = vmatmul.mubr.f32.gmra.mrb[0].mxu0 %v6307
    %v6309 = vpop.f32.mrb[0].mxu0
    %v6310 = vadd.f32 %v6015, %v6309
    %v6311 = vpop.f32.mrb[0].mxu0
    %v6312 = vadd.f32 %v6017, %v6311
    %6313 = vmatprep.mubr.f32.mxu0 0.0
    %v6314 = vand.u32 %v59, 4294901760
    %6315 = vmatmul.mubr.f32.gmra.mrb[0].mxu0 %v6314
    %v6316 = vpop.f32.mrb[0].mxu0
    %v6317 = vadd.f32 %v6024, %v6316
    %v6318 = vpop.f32.mrb[0].mxu0
    %v6319 = vadd.f32 %v6026, %v6318
    %6320 = vmatprep.mubr.f32.mxu0 0.0
    %v6321 = vand.u32 %v60, 4294901760
    %6322 = vmatmul.mubr.f32.gmra.mrb[0].mxu0 %v6321
    %v6323 = vpop.f32.mrb[0].mxu0
    %v6324 = vadd.f32 %v6033, %v6323
    %v6325 = vpop.f32.mrb[0].mxu0
    %v6326 = vadd.f32 %v6035, %v6325
    %6327 = vmatprep.mubr.f32.mxu0 0.0
    %v6328 = vand.u32 %v61, 4294901760
    %6329 = vmatmul.mubr.f32.gmra.mrb[0].mxu0 %v6328
    %v6330 = vpop.f32.mrb[0].mxu0
    %v6331 = vadd.f32 %v6042, %v6330
    %v6332 = vpop.f32.mrb[0].mxu0
    %v6333 = vadd.f32 %v6044, %v6332
    %6334 = vmatprep.mubr.f32.mxu0 0.0
    %v6335 = vand.u32 %v62, 4294901760
    %6336 = vmatmul.mubr.f32.gmra.mrb[0].mxu0 %v6335
    %v6337 = vpop.f32.mrb[0].mxu0
    %v6338 = vadd.f32 %v6051, %v6337
    %v6339 = vpop.f32.mrb[0].mxu0
    %v6340 = vadd.f32 %v6053, %v6339
    %6341 = vmatprep.mubr.f32.mxu0 0.0
    %v6342 = vand.u32 %v63, 4294901760
    %6343 = vmatmul.mubr.f32.gmra.mrb[0].mxu0 %v6342
    %v6344 = vpop.f32.mrb[0].mxu0
    %v6345 = vadd.f32 %v6060, %v6344
    %v6346 = vpop.f32.mrb[0].mxu0
    %v6347 = vadd.f32 %v6062, %v6346
    %6348 = vmatprep.mubr.f32.mxu0 0.0
    %v6349 = vand.u32 %v64, 4294901760
    %6350 = vmatmul.mubr.f32.gmra.mrb[0].mxu0 %v6349
    %v6351 = vpop.f32.mrb[0].mxu0
    %v6352 = vadd.f32 %v6069, %v6351
    %v6353 = vpop.f32.mrb[0].mxu0
    %v6354 = vadd.f32 %v6071, %v6353
    %6355 = vmatprep.mubr.f32.mxu0 0.0
    %v6356 = vand.u32 %v65, 4294901760
    %6357 = vmatmul.mubr.f32.gmra.mrb[0].mxu0 %v6356
    %v6358 = vpop.f32.mrb[0].mxu0
    %v6359 = vadd.f32 %v6078, %v6358
    %v6360 = vpop.f32.mrb[0].mxu0
    %v6361 = vadd.f32 %v6080, %v6360
    %6362 = vmatprep.mubr.f32.mxu0 0.0
    %v6363 = vand.u32 %v66, 4294901760
    %6364 = vmatmul.mubr.f32.gmra.mrb[0].mxu0 %v6363
    %v6365 = vpop.f32.mrb[0].mxu0
    %v6366 = vadd.f32 %v6087, %v6365
    %v6367 = vpop.f32.mrb[0].mxu0
    %v6368 = vadd.f32 %v6089, %v6367
    %6369 = vmatprep.mubr.f32.mxu0 0.0
    %v6370 = vand.u32 %v67, 4294901760
    %6371 = vmatmul.mubr.f32.gmra.mrb[0].mxu0 %v6370
    %v6372 = vpop.f32.mrb[0].mxu0
    %v6373 = vadd.f32 %v6096, %v6372
    %v6374 = vpop.f32.mrb[0].mxu0
    %v6375 = vadd.f32 %v6098, %v6374
    %6376 = vmatprep.mubr.f32.mxu0 0.0
    %v6377 = vand.u32 %v68, 4294901760
    %6378 = vmatmul.mubr.f32.gmra.mrb[0].mxu0 %v6377
    %v6379 = vpop.f32.mrb[0].mxu0
    %v6380 = vadd.f32 %v6105, %v6379
    %v6381 = vpop.f32.mrb[0].mxu0
    %v6382 = vadd.f32 %v6107, %v6381
    %6383 = vmatprep.mubr.f32.mxu0 0.0
    %v6384 = vand.u32 %v69, 4294901760
    %6385 = vmatmul.mubr.f32.gmra.mrb[0].mxu0 %v6384
    %v6386 = vpop.f32.mrb[0].mxu0
    %v6387 = vadd.f32 %v6114, %v6386
    %v6388 = vpop.f32.mrb[0].mxu0
    %v6389 = vadd.f32 %v6116, %v6388
    %6390 = vdwg.mxu0
    %v6391 = vand.u32 %v77, 4294901760
    %6392 = vmatprep.subr.mxu0 %v6391
    %v6393 = vand.u32 %v76, 4294901760
    %6394 = vmatpush1.msra.mxu0 %v6393
    %v6395 = vand.u32 %v85, 4294901760
    %6396 = vmatprep.subr.mxu0 %v6395
    %v6397 = vand.u32 %v84, 4294901760
    %6398 = vmatpush1.msra.mxu0 %v6397
    %v6399 = vand.u32 %v93, 4294901760
    %6400 = vmatprep.subr.mxu0 %v6399
    %v6401 = vand.u32 %v92, 4294901760
    %6402 = vmatpush1.msra.mxu0 %v6401
    %v6403 = vand.u32 %v101, 4294901760
    %6404 = vmatprep.subr.mxu0 %v6403
    %v6405 = vand.u32 %v100, 4294901760
    %6406 = vmatpush1.msra.mxu0 %v6405
    %v6407 = vand.u32 %v109, 4294901760
    %6408 = vmatprep.subr.mxu0 %v6407
    %v6409 = vand.u32 %v108, 4294901760
    %6410 = vmatpush1.msra.mxu0 %v6409
    %v6411 = vand.u32 %v117, 4294901760
    %6412 = vmatprep.subr.mxu0 %v6411
    %v6413 = vand.u32 %v116, 4294901760
    %6414 = vmatpush1.msra.mxu0 %v6413
    %v6415 = vand.u32 %v125, 4294901760
    %6416 = vmatprep.subr.mxu0 %v6415
    %v6417 = vand.u32 %v124, 4294901760
    %6418 = vmatpush1.msra.mxu0 %v6417
    %v6419 = vand.u32 %v133, 4294901760
    %6420 = vmatprep.subr.mxu0 %v6419
    %v6421 = vand.u32 %v132, 4294901760
    %6422 = vmatpush1.msra.mxu0 %v6421
    %v6423 = vand.u32 %v141, 4294901760
    %6424 = vmatprep.subr.mxu0 %v6423
    %v6425 = vand.u32 %v140, 4294901760
    %6426 = vmatpush1.msra.mxu0 %v6425
    %v6427 = vand.u32 %v149, 4294901760
    %6428 = vmatprep.subr.mxu0 %v6427
    %v6429 = vand.u32 %v148, 4294901760
    %6430 = vmatpush1.msra.mxu0 %v6429
    %v6431 = vand.u32 %v157, 4294901760
    %6432 = vmatprep.subr.mxu0 %v6431
    %v6433 = vand.u32 %v156, 4294901760
    %6434 = vmatpush1.msra.mxu0 %v6433
    %v6435 = vand.u32 %v165, 4294901760
    %6436 = vmatprep.subr.mxu0 %v6435
    %v6437 = vand.u32 %v164, 4294901760
    %6438 = vmatpush1.msra.mxu0 %v6437
    %v6439 = vand.u32 %v173, 4294901760
    %6440 = vmatprep.subr.mxu0 %v6439
    %v6441 = vand.u32 %v172, 4294901760
    %6442 = vmatpush1.msra.mxu0 %v6441
    %v6443 = vand.u32 %v181, 4294901760
    %6444 = vmatprep.subr.mxu0 %v6443
    %v6445 = vand.u32 %v180, 4294901760
    %6446 = vmatpush1.msra.mxu0 %v6445
    %v6447 = vand.u32 %v189, 4294901760
    %6448 = vmatprep.subr.mxu0 %v6447
    %v6449 = vand.u32 %v188, 4294901760
    %6450 = vmatpush1.msra.mxu0 %v6449
    %v6451 = vand.u32 %v197, 4294901760
    %6452 = vmatprep.subr.mxu0 %v6451
    %v6453 = vand.u32 %v196, 4294901760
    %6454 = vmatpush1.msra.mxu0 %v6453
    %6455 = vmatprep.subr.mxu0 0.0
    %6456 = vmatpush1.msra.mxu0 0.0
    %6457 = vmatprep.subr.mxu0 0.0
    %6458 = vmatpush1.msra.mxu0 0.0
    %6459 = vmatprep.subr.mxu0 0.0
    %6460 = vmatpush1.msra.mxu0 0.0
    %6461 = vmatprep.subr.mxu0 0.0
    %6462 = vmatpush1.msra.mxu0 0.0
    %6463 = vmatprep.subr.mxu0 0.0
    %6464 = vmatpush1.msra.mxu0 0.0
    %6465 = vmatprep.subr.mxu0 0.0
    %6466 = vmatpush1.msra.mxu0 0.0
    %6467 = vmatprep.subr.mxu0 0.0
    %6468 = vmatpush1.msra.mxu0 0.0
    %6469 = vmatprep.subr.mxu0 0.0
    %6470 = vmatpush1.msra.mxu0 0.0
    %6471 = vmatprep.subr.mxu0 0.0
    %6472 = vmatpush1.msra.mxu0 0.0
    %6473 = vmatprep.subr.mxu0 0.0
    %6474 = vmatpush1.msra.mxu0 0.0
    %6475 = vmatprep.subr.mxu0 0.0
    %6476 = vmatpush1.msra.mxu0 0.0
    %6477 = vmatprep.subr.mxu0 0.0
    %6478 = vmatpush1.msra.mxu0 0.0
    %6479 = vmatprep.subr.mxu0 0.0
    %6480 = vmatpush1.msra.mxu0 0.0
    %6481 = vmatprep.subr.mxu0 0.0
    %6482 = vmatpush1.msra.mxu0 0.0
    %6483 = vmatprep.subr.mxu0 0.0
    %6484 = vmatpush1.msra.mxu0 0.0
    %6485 = vmatprep.subr.mxu0 0.0
    %6486 = vmatpush1.msra.mxu0 0.0
    %6487 = vmatprep.mubr.f32.mxu0 0.0
    %v6488 = vand.u32 %v54, 4294901760
    %6489 = vmatmul.mubr.f32.gmra.mrb[0].mxu0 %v6488
    %v6490 = vpop.f32.mrb[0].mxu0
    %v6491 = vadd.f32 %v6282, %v6490
    %v6492 = vpop.f32.mrb[0].mxu0
    %v6493 = vadd.f32 %v6284, %v6492
    %6494 = vmatprep.mubr.f32.mxu0 0.0
    %v6495 = vand.u32 %v55, 4294901760
    %6496 = vmatmul.mubr.f32.gmra.mrb[0].mxu0 %v6495
    %v6497 = vpop.f32.mrb[0].mxu0
    %v6498 = vadd.f32 %v6289, %v6497
    %v6499 = vpop.f32.mrb[0].mxu0
    %v6500 = vadd.f32 %v6291, %v6499
    %6501 = vmatprep.mubr.f32.mxu0 0.0
    %v6502 = vand.u32 %v56, 4294901760
    %6503 = vmatmul.mubr.f32.gmra.mrb[0].mxu0 %v6502
    %v6504 = vpop.f32.mrb[0].mxu0
    %v6505 = vadd.f32 %v6296, %v6504
    %v6506 = vpop.f32.mrb[0].mxu0
    %v6507 = vadd.f32 %v6298, %v6506
    %6508 = vmatprep.mubr.f32.mxu0 0.0
    %v6509 = vand.u32 %v57, 4294901760
    %6510 = vmatmul.mubr.f32.gmra.mrb[0].mxu0 %v6509
    %v6511 = vpop.f32.mrb[0].mxu0
    %v6512 = vadd.f32 %v6303, %v6511
    %v6513 = vpop.f32.mrb[0].mxu0
    %v6514 = vadd.f32 %v6305, %v6513
    %6515 = vmatprep.mubr.f32.mxu0 0.0
    %v6516 = vand.u32 %v58, 4294901760
    %6517 = vmatmul.mubr.f32.gmra.mrb[0].mxu0 %v6516
    %v6518 = vpop.f32.mrb[0].mxu0
    %v6519 = vadd.f32 %v6310, %v6518
    %v6520 = vpop.f32.mrb[0].mxu0
    %v6521 = vadd.f32 %v6312, %v6520
    %6522 = vmatprep.mubr.f32.mxu0 0.0
    %v6523 = vand.u32 %v59, 4294901760
    %6524 = vmatmul.mubr.f32.gmra.mrb[0].mxu0 %v6523
    %v6525 = vpop.f32.mrb[0].mxu0
    %v6526 = vadd.f32 %v6317, %v6525
    %v6527 = vpop.f32.mrb[0].mxu0
    %v6528 = vadd.f32 %v6319, %v6527
    %6529 = vmatprep.mubr.f32.mxu0 0.0
    %v6530 = vand.u32 %v60, 4294901760
    %6531 = vmatmul.mubr.f32.gmra.mrb[0].mxu0 %v6530
    %v6532 = vpop.f32.mrb[0].mxu0
    %v6533 = vadd.f32 %v6324, %v6532
    %v6534 = vpop.f32.mrb[0].mxu0
    %v6535 = vadd.f32 %v6326, %v6534
    %6536 = vmatprep.mubr.f32.mxu0 0.0
    %v6537 = vand.u32 %v61, 4294901760
    %6538 = vmatmul.mubr.f32.gmra.mrb[0].mxu0 %v6537
    %v6539 = vpop.f32.mrb[0].mxu0
    %v6540 = vadd.f32 %v6331, %v6539
    %v6541 = vpop.f32.mrb[0].mxu0
    %v6542 = vadd.f32 %v6333, %v6541
    %6543 = vmatprep.mubr.f32.mxu0 0.0
    %v6544 = vand.u32 %v62, 4294901760
    %6545 = vmatmul.mubr.f32.gmra.mrb[0].mxu0 %v6544
    %v6546 = vpop.f32.mrb[0].mxu0
    %v6547 = vadd.f32 %v6338, %v6546
    %v6548 = vpop.f32.mrb[0].mxu0
    %v6549 = vadd.f32 %v6340, %v6548
    %6550 = vmatprep.mubr.f32.mxu0 0.0
    %v6551 = vand.u32 %v63, 4294901760
    %6552 = vmatmul.mubr.f32.gmra.mrb[0].mxu0 %v6551
    %v6553 = vpop.f32.mrb[0].mxu0
    %v6554 = vadd.f32 %v6345, %v6553
    %v6555 = vpop.f32.mrb[0].mxu0
    %v6556 = vadd.f32 %v6347, %v6555
    %6557 = vmatprep.mubr.f32.mxu0 0.0
    %v6558 = vand.u32 %v64, 4294901760
    %6559 = vmatmul.mubr.f32.gmra.mrb[0].mxu0 %v6558
    %v6560 = vpop.f32.mrb[0].mxu0
    %v6561 = vadd.f32 %v6352, %v6560
    %v6562 = vpop.f32.mrb[0].mxu0
    %v6563 = vadd.f32 %v6354, %v6562
    %6564 = vmatprep.mubr.f32.mxu0 0.0
    %v6565 = vand.u32 %v65, 4294901760
    %6566 = vmatmul.mubr.f32.gmra.mrb[0].mxu0 %v6565
    %v6567 = vpop.f32.mrb[0].mxu0
    %v6568 = vadd.f32 %v6359, %v6567
    %v6569 = vpop.f32.mrb[0].mxu0
    %v6570 = vadd.f32 %v6361, %v6569
    %6571 = vmatprep.mubr.f32.mxu0 0.0
    %v6572 = vand.u32 %v66, 4294901760
    %6573 = vmatmul.mubr.f32.gmra.mrb[0].mxu0 %v6572
    %v6574 = vpop.f32.mrb[0].mxu0
    %v6575 = vadd.f32 %v6366, %v6574
    %v6576 = vpop.f32.mrb[0].mxu0
    %v6577 = vadd.f32 %v6368, %v6576
    %6578 = vmatprep.mubr.f32.mxu0 0.0
    %v6579 = vand.u32 %v67, 4294901760
    %6580 = vmatmul.mubr.f32.gmra.mrb[0].mxu0 %v6579
    %v6581 = vpop.f32.mrb[0].mxu0
    %v6582 = vadd.f32 %v6373, %v6581
    %v6583 = vpop.f32.mrb[0].mxu0
    %v6584 = vadd.f32 %v6375, %v6583
    %6585 = vmatprep.mubr.f32.mxu0 0.0
    %v6586 = vand.u32 %v68, 4294901760
    %6587 = vmatmul.mubr.f32.gmra.mrb[0].mxu0 %v6586
    %v6588 = vpop.f32.mrb[0].mxu0
    %v6589 = vadd.f32 %v6380, %v6588
    %v6590 = vpop.f32.mrb[0].mxu0
    %v6591 = vadd.f32 %v6382, %v6590
    %6592 = vmatprep.mubr.f32.mxu0 0.0
    %v6593 = vand.u32 %v69, 4294901760
    %6594 = vmatmul.mubr.f32.gmra.mrb[0].mxu0 %v6593
    %v6595 = vpop.f32.mrb[0].mxu0
    %v6596 = vadd.f32 %v6387, %v6595
    %v6597 = vpop.f32.mrb[0].mxu0
    %v6598 = vadd.f32 %v6389, %v6597
    %6599 = vdwg.mxu0
    %v6600 = vmax.f32 %v4901, %v4903
    %v6601 = vmax.f32 %v4908, %v4910
    %v6602 = vmax.f32 %v4915, %v4917
    %v6603 = vmax.f32 %v4922, %v4924
    %v6604 = vmax.f32 %v4929, %v4931
    %v6605 = vmax.f32 %v4936, %v4938
    %v6606 = vmax.f32 %v4943, %v4945
    %v6607 = vmax.f32 %v4950, %v4952
    %v6608 = vmax.f32 %v4957, %v4959
    %v6609 = vmax.f32 %v4964, %v4966
    %v6610 = vmax.f32 %v4971, %v4973
    %v6611 = vmax.f32 %v4978, %v4980
    %v6612 = vmax.f32 %v4985, %v4987
    %v6613 = vmax.f32 %v4992, %v4994
    %v6614 = vmax.f32 %v4999, %v5001
    %v6615 = vmax.f32 %v5006, %v5008
    %v6616 = vmax.f32 %v6600, %v6491
    %v6617 = vmax.f32 %v6601, %v6498
    %v6618 = vmax.f32 %v6602, %v6505
    %v6619 = vmax.f32 %v6603, %v6512
    %v6620 = vmax.f32 %v6604, %v6519
    %v6621 = vmax.f32 %v6605, %v6526
    %v6622 = vmax.f32 %v6606, %v6533
    %v6623 = vmax.f32 %v6607, %v6540
    %v6624 = vmax.f32 %v6608, %v6547
    %v6625 = vmax.f32 %v6609, %v6554
    %v6626 = vmax.f32 %v6610, %v6561
    %v6627 = vmax.f32 %v6611, %v6568
    %v6628 = vmax.f32 %v6612, %v6575
    %v6629 = vmax.f32 %v6613, %v6582
    %v6630 = vmax.f32 %v6614, %v6589
    %v6631 = vmax.f32 %v6615, %v6596
    %v6632 = vmax.f32 %v6616, %v6493
    %v6633 = vmax.f32 %v6617, %v6500
    %v6634 = vmax.f32 %v6618, %v6507
    %v6635 = vmax.f32 %v6619, %v6514
    %v6636 = vmax.f32 %v6620, %v6521
    %v6637 = vmax.f32 %v6621, %v6528
    %v6638 = vmax.f32 %v6622, %v6535
    %v6639 = vmax.f32 %v6623, %v6542
    %v6640 = vmax.f32 %v6624, %v6549
    %v6641 = vmax.f32 %v6625, %v6556
    %v6642 = vmax.f32 %v6626, %v6563
    %v6643 = vmax.f32 %v6627, %v6570
    %v6644 = vmax.f32 %v6628, %v6577
    %v6645 = vmax.f32 %v6629, %v6584
    %v6646 = vmax.f32 %v6630, %v6591
    %v6647 = vmax.f32 %v6631, %v6598
    %vm6648 = vcmp.eq.f32.partialorder %v4901, %v6632
    %vm6649 = vcmp.eq.f32.partialorder %v4908, %v6633
    %vm6650 = vcmp.eq.f32.partialorder %v4915, %v6634
    %vm6651 = vcmp.eq.f32.partialorder %v4922, %v6635
    %vm6652 = vcmp.eq.f32.partialorder %v4929, %v6636
    %vm6653 = vcmp.eq.f32.partialorder %v4936, %v6637
    %vm6654 = vcmp.eq.f32.partialorder %v4943, %v6638
    %vm6655 = vcmp.eq.f32.partialorder %v4950, %v6639
    %vm6656 = vcmp.eq.f32.partialorder %v4957, %v6640
    %vm6657 = vcmp.eq.f32.partialorder %v4964, %v6641
    %vm6658 = vcmp.eq.f32.partialorder %v4971, %v6642
    %vm6659 = vcmp.eq.f32.partialorder %v4978, %v6643
    %vm6660 = vcmp.eq.f32.partialorder %v4985, %v6644
    %vm6661 = vcmp.eq.f32.partialorder %v4992, %v6645
    %vm6662 = vcmp.eq.f32.partialorder %v4999, %v6646
    %vm6663 = vcmp.eq.f32.partialorder %v5006, %v6647
    %v6664 = vsel %vm6648, -1e+30, %v4901
    %v6665 = vsel %vm6649, -1e+30, %v4908
    %v6666 = vsel %vm6650, -1e+30, %v4915
    %v6667 = vsel %vm6651, -1e+30, %v4922
    %v6668 = vsel %vm6652, -1e+30, %v4929
    %v6669 = vsel %vm6653, -1e+30, %v4936
    %v6670 = vsel %vm6654, -1e+30, %v4943
    %v6671 = vsel %vm6655, -1e+30, %v4950
    %v6672 = vsel %vm6656, -1e+30, %v4957
    %v6673 = vsel %vm6657, -1e+30, %v4964
    %v6674 = vsel %vm6658, -1e+30, %v4971
    %v6675 = vsel %vm6659, -1e+30, %v4978
    %v6676 = vsel %vm6660, -1e+30, %v4985
    %v6677 = vsel %vm6661, -1e+30, %v4992
    %v6678 = vsel %vm6662, -1e+30, %v4999
    %v6679 = vsel %vm6663, -1e+30, %v5006
    %vm6680 = vcmp.eq.f32.partialorder %v4903, %v6632
    %vm6681 = vcmp.eq.f32.partialorder %v4910, %v6633
    %vm6682 = vcmp.eq.f32.partialorder %v4917, %v6634
    %vm6683 = vcmp.eq.f32.partialorder %v4924, %v6635
    %vm6684 = vcmp.eq.f32.partialorder %v4931, %v6636
    %vm6685 = vcmp.eq.f32.partialorder %v4938, %v6637
    %vm6686 = vcmp.eq.f32.partialorder %v4945, %v6638
    %vm6687 = vcmp.eq.f32.partialorder %v4952, %v6639
    %vm6688 = vcmp.eq.f32.partialorder %v4959, %v6640
    %vm6689 = vcmp.eq.f32.partialorder %v4966, %v6641
    %vm6690 = vcmp.eq.f32.partialorder %v4973, %v6642
    %vm6691 = vcmp.eq.f32.partialorder %v4980, %v6643
    %vm6692 = vcmp.eq.f32.partialorder %v4987, %v6644
    %vm6693 = vcmp.eq.f32.partialorder %v4994, %v6645
    %vm6694 = vcmp.eq.f32.partialorder %v5001, %v6646
    %vm6695 = vcmp.eq.f32.partialorder %v5008, %v6647
    %vm6696 = vmxor %vm6648, 1
    %vm6697 = vmxor %vm6649, 1
    %vm6698 = vmxor %vm6650, 1
    %vm6699 = vmxor %vm6651, 1
    %vm6700 = vmxor %vm6652, 1
    %vm6701 = vmxor %vm6653, 1
    %vm6702 = vmxor %vm6654, 1
    %vm6703 = vmxor %vm6655, 1
    %vm6704 = vmxor %vm6656, 1
    %vm6705 = vmxor %vm6657, 1
    %vm6706 = vmxor %vm6658, 1
    %vm6707 = vmxor %vm6659, 1
    %vm6708 = vmxor %vm6660, 1
    %vm6709 = vmxor %vm6661, 1
    %vm6710 = vmxor %vm6662, 1
    %vm6711 = vmxor %vm6663, 1
    %vm6712 = vmand %vm6680, %vm6696
    %vm6713 = vmand %vm6681, %vm6697
    %vm6714 = vmand %vm6682, %vm6698
    %vm6715 = vmand %vm6683, %vm6699
    %vm6716 = vmand %vm6684, %vm6700
    %vm6717 = vmand %vm6685, %vm6701
    %vm6718 = vmand %vm6686, %vm6702
    %vm6719 = vmand %vm6687, %vm6703
    %vm6720 = vmand %vm6688, %vm6704
    %vm6721 = vmand %vm6689, %vm6705
    %vm6722 = vmand %vm6690, %vm6706
    %vm6723 = vmand %vm6691, %vm6707
    %vm6724 = vmand %vm6692, %vm6708
    %vm6725 = vmand %vm6693, %vm6709
    %vm6726 = vmand %vm6694, %vm6710
    %vm6727 = vmand %vm6695, %vm6711
    %vm6728 = vmor %vm6648, %vm6712
    %vm6729 = vmor %vm6649, %vm6713
    %vm6730 = vmor %vm6650, %vm6714
    %vm6731 = vmor %vm6651, %vm6715
    %vm6732 = vmor %vm6652, %vm6716
    %vm6733 = vmor %vm6653, %vm6717
    %vm6734 = vmor %vm6654, %vm6718
    %vm6735 = vmor %vm6655, %vm6719
    %vm6736 = vmor %vm6656, %vm6720
    %vm6737 = vmor %vm6657, %vm6721
    %vm6738 = vmor %vm6658, %vm6722
    %vm6739 = vmor %vm6659, %vm6723
    %vm6740 = vmor %vm6660, %vm6724
    %vm6741 = vmor %vm6661, %vm6725
    %vm6742 = vmor %vm6662, %vm6726
    %vm6743 = vmor %vm6663, %vm6727
    %v6744 = vsel %vm6712, -1e+30, %v4903
    %v6745 = vsel %vm6713, -1e+30, %v4910
    %v6746 = vsel %vm6714, -1e+30, %v4917
    %v6747 = vsel %vm6715, -1e+30, %v4924
    %v6748 = vsel %vm6716, -1e+30, %v4931
    %v6749 = vsel %vm6717, -1e+30, %v4938
    %v6750 = vsel %vm6718, -1e+30, %v4945
    %v6751 = vsel %vm6719, -1e+30, %v4952
    %v6752 = vsel %vm6720, -1e+30, %v4959
    %v6753 = vsel %vm6721, -1e+30, %v4966
    %v6754 = vsel %vm6722, -1e+30, %v4973
    %v6755 = vsel %vm6723, -1e+30, %v4980
    %v6756 = vsel %vm6724, -1e+30, %v4987
    %v6757 = vsel %vm6725, -1e+30, %v4994
    %v6758 = vsel %vm6726, -1e+30, %v5001
    %v6759 = vsel %vm6727, -1e+30, %v5008
    %vm6760 = vcmp.eq.f32.partialorder %v6491, %v6632
    %vm6761 = vcmp.eq.f32.partialorder %v6498, %v6633
    %vm6762 = vcmp.eq.f32.partialorder %v6505, %v6634
    %vm6763 = vcmp.eq.f32.partialorder %v6512, %v6635
    %vm6764 = vcmp.eq.f32.partialorder %v6519, %v6636
    %vm6765 = vcmp.eq.f32.partialorder %v6526, %v6637
    %vm6766 = vcmp.eq.f32.partialorder %v6533, %v6638
    %vm6767 = vcmp.eq.f32.partialorder %v6540, %v6639
    %vm6768 = vcmp.eq.f32.partialorder %v6547, %v6640
    %vm6769 = vcmp.eq.f32.partialorder %v6554, %v6641
    %vm6770 = vcmp.eq.f32.partialorder %v6561, %v6642
    %vm6771 = vcmp.eq.f32.partialorder %v6568, %v6643
    %vm6772 = vcmp.eq.f32.partialorder %v6575, %v6644
    %vm6773 = vcmp.eq.f32.partialorder %v6582, %v6645
    %vm6774 = vcmp.eq.f32.partialorder %v6589, %v6646
    %vm6775 = vcmp.eq.f32.partialorder %v6596, %v6647
    %vm6776 = vmxor %vm6728, 1
    %vm6777 = vmxor %vm6729, 1
    %vm6778 = vmxor %vm6730, 1
    %vm6779 = vmxor %vm6731, 1
    %vm6780 = vmxor %vm6732, 1
    %vm6781 = vmxor %vm6733, 1
    %vm6782 = vmxor %vm6734, 1
    %vm6783 = vmxor %vm6735, 1
    %vm6784 = vmxor %vm6736, 1
    %vm6785 = vmxor %vm6737, 1
    %vm6786 = vmxor %vm6738, 1
    %vm6787 = vmxor %vm6739, 1
    %vm6788 = vmxor %vm6740, 1
    %vm6789 = vmxor %vm6741, 1
    %vm6790 = vmxor %vm6742, 1
    %vm6791 = vmxor %vm6743, 1
    %vm6792 = vmand %vm6760, %vm6776
    %vm6793 = vmand %vm6761, %vm6777
    %vm6794 = vmand %vm6762, %vm6778
    %vm6795 = vmand %vm6763, %vm6779
    %vm6796 = vmand %vm6764, %vm6780
    %vm6797 = vmand %vm6765, %vm6781
    %vm6798 = vmand %vm6766, %vm6782
    %vm6799 = vmand %vm6767, %vm6783
    %vm6800 = vmand %vm6768, %vm6784
    %vm6801 = vmand %vm6769, %vm6785
    %vm6802 = vmand %vm6770, %vm6786
    %vm6803 = vmand %vm6771, %vm6787
    %vm6804 = vmand %vm6772, %vm6788
    %vm6805 = vmand %vm6773, %vm6789
    %vm6806 = vmand %vm6774, %vm6790
    %vm6807 = vmand %vm6775, %vm6791
    %vm6808 = vmor %vm6728, %vm6792
    %vm6809 = vmor %vm6729, %vm6793
    %vm6810 = vmor %vm6730, %vm6794
    %vm6811 = vmor %vm6731, %vm6795
    %vm6812 = vmor %vm6732, %vm6796
    %vm6813 = vmor %vm6733, %vm6797
    %vm6814 = vmor %vm6734, %vm6798
    %vm6815 = vmor %vm6735, %vm6799
    %vm6816 = vmor %vm6736, %vm6800
    %vm6817 = vmor %vm6737, %vm6801
    %vm6818 = vmor %vm6738, %vm6802
    %vm6819 = vmor %vm6739, %vm6803
    %vm6820 = vmor %vm6740, %vm6804
    %vm6821 = vmor %vm6741, %vm6805
    %vm6822 = vmor %vm6742, %vm6806
    %vm6823 = vmor %vm6743, %vm6807
    %v6824 = vsel %vm6792, -1e+30, %v6491
    %v6825 = vsel %vm6793, -1e+30, %v6498
    %v6826 = vsel %vm6794, -1e+30, %v6505
    %v6827 = vsel %vm6795, -1e+30, %v6512
    %v6828 = vsel %vm6796, -1e+30, %v6519
    %v6829 = vsel %vm6797, -1e+30, %v6526
    %v6830 = vsel %vm6798, -1e+30, %v6533
    %v6831 = vsel %vm6799, -1e+30, %v6540
    %v6832 = vsel %vm6800, -1e+30, %v6547
    %v6833 = vsel %vm6801, -1e+30, %v6554
    %v6834 = vsel %vm6802, -1e+30, %v6561
    %v6835 = vsel %vm6803, -1e+30, %v6568
    %v6836 = vsel %vm6804, -1e+30, %v6575
    %v6837 = vsel %vm6805, -1e+30, %v6582
    %v6838 = vsel %vm6806, -1e+30, %v6589
    %v6839 = vsel %vm6807, -1e+30, %v6596
    %vm6840 = vcmp.eq.f32.partialorder %v6493, %v6632
    %vm6841 = vcmp.eq.f32.partialorder %v6500, %v6633
    %vm6842 = vcmp.eq.f32.partialorder %v6507, %v6634
    %vm6843 = vcmp.eq.f32.partialorder %v6514, %v6635
    %vm6844 = vcmp.eq.f32.partialorder %v6521, %v6636
    %vm6845 = vcmp.eq.f32.partialorder %v6528, %v6637
    %vm6846 = vcmp.eq.f32.partialorder %v6535, %v6638
    %vm6847 = vcmp.eq.f32.partialorder %v6542, %v6639
    %vm6848 = vcmp.eq.f32.partialorder %v6549, %v6640
    %vm6849 = vcmp.eq.f32.partialorder %v6556, %v6641
    %vm6850 = vcmp.eq.f32.partialorder %v6563, %v6642
    %vm6851 = vcmp.eq.f32.partialorder %v6570, %v6643
    %vm6852 = vcmp.eq.f32.partialorder %v6577, %v6644
    %vm6853 = vcmp.eq.f32.partialorder %v6584, %v6645
    %vm6854 = vcmp.eq.f32.partialorder %v6591, %v6646
    %vm6855 = vcmp.eq.f32.partialorder %v6598, %v6647
    %vm6856 = vmxor %vm6808, 1
    %vm6857 = vmxor %vm6809, 1
    %vm6858 = vmxor %vm6810, 1
    %vm6859 = vmxor %vm6811, 1
    %vm6860 = vmxor %vm6812, 1
    %vm6861 = vmxor %vm6813, 1
    %vm6862 = vmxor %vm6814, 1
    %vm6863 = vmxor %vm6815, 1
    %vm6864 = vmxor %vm6816, 1
    %vm6865 = vmxor %vm6817, 1
    %vm6866 = vmxor %vm6818, 1
    %vm6867 = vmxor %vm6819, 1
    %vm6868 = vmxor %vm6820, 1
    %vm6869 = vmxor %vm6821, 1
    %vm6870 = vmxor %vm6822, 1
    %vm6871 = vmxor %vm6823, 1
    %vm6872 = vmand %vm6840, %vm6856
    %vm6873 = vmand %vm6841, %vm6857
    %vm6874 = vmand %vm6842, %vm6858
    %vm6875 = vmand %vm6843, %vm6859
    %vm6876 = vmand %vm6844, %vm6860
    %vm6877 = vmand %vm6845, %vm6861
    %vm6878 = vmand %vm6846, %vm6862
    %vm6879 = vmand %vm6847, %vm6863
    %vm6880 = vmand %vm6848, %vm6864
    %vm6881 = vmand %vm6849, %vm6865
    %vm6882 = vmand %vm6850, %vm6866
    %vm6883 = vmand %vm6851, %vm6867
    %vm6884 = vmand %vm6852, %vm6868
    %vm6885 = vmand %vm6853, %vm6869
    %vm6886 = vmand %vm6854, %vm6870
    %vm6887 = vmand %vm6855, %vm6871
    %v6888 = vsel %vm6872, -1e+30, %v6493
    %v6889 = vsel %vm6873, -1e+30, %v6500
    %v6890 = vsel %vm6874, -1e+30, %v6507
    %v6891 = vsel %vm6875, -1e+30, %v6514
    %v6892 = vsel %vm6876, -1e+30, %v6521
    %v6893 = vsel %vm6877, -1e+30, %v6528
    %v6894 = vsel %vm6878, -1e+30, %v6535
    %v6895 = vsel %vm6879, -1e+30, %v6542
    %v6896 = vsel %vm6880, -1e+30, %v6549
    %v6897 = vsel %vm6881, -1e+30, %v6556
    %v6898 = vsel %vm6882, -1e+30, %v6563
    %v6899 = vsel %vm6883, -1e+30, %v6570
    %v6900 = vsel %vm6884, -1e+30, %v6577
    %v6901 = vsel %vm6885, -1e+30, %v6584
    %v6902 = vsel %vm6886, -1e+30, %v6591
    %v6903 = vsel %vm6887, -1e+30, %v6598
    %v6904 = vmax.f32 %v6664, %v6744
    %v6905 = vmax.f32 %v6665, %v6745
    %v6906 = vmax.f32 %v6666, %v6746
    %v6907 = vmax.f32 %v6667, %v6747
    %v6908 = vmax.f32 %v6668, %v6748
    %v6909 = vmax.f32 %v6669, %v6749
    %v6910 = vmax.f32 %v6670, %v6750
    %v6911 = vmax.f32 %v6671, %v6751
    %v6912 = vmax.f32 %v6672, %v6752
    %v6913 = vmax.f32 %v6673, %v6753
    %v6914 = vmax.f32 %v6674, %v6754
    %v6915 = vmax.f32 %v6675, %v6755
    %v6916 = vmax.f32 %v6676, %v6756
    %v6917 = vmax.f32 %v6677, %v6757
    %v6918 = vmax.f32 %v6678, %v6758
    %v6919 = vmax.f32 %v6679, %v6759
    %v6920 = vmax.f32 %v6904, %v6824
    %v6921 = vmax.f32 %v6905, %v6825
    %v6922 = vmax.f32 %v6906, %v6826
    %v6923 = vmax.f32 %v6907, %v6827
    %v6924 = vmax.f32 %v6908, %v6828
    %v6925 = vmax.f32 %v6909, %v6829
    %v6926 = vmax.f32 %v6910, %v6830
    %v6927 = vmax.f32 %v6911, %v6831
    %v6928 = vmax.f32 %v6912, %v6832
    %v6929 = vmax.f32 %v6913, %v6833
    %v6930 = vmax.f32 %v6914, %v6834
    %v6931 = vmax.f32 %v6915, %v6835
    %v6932 = vmax.f32 %v6916, %v6836
    %v6933 = vmax.f32 %v6917, %v6837
    %v6934 = vmax.f32 %v6918, %v6838
    %v6935 = vmax.f32 %v6919, %v6839
    %v6936 = vmax.f32 %v6920, %v6888
    %v6937 = vmax.f32 %v6921, %v6889
    %v6938 = vmax.f32 %v6922, %v6890
    %v6939 = vmax.f32 %v6923, %v6891
    %v6940 = vmax.f32 %v6924, %v6892
    %v6941 = vmax.f32 %v6925, %v6893
    %v6942 = vmax.f32 %v6926, %v6894
    %v6943 = vmax.f32 %v6927, %v6895
    %v6944 = vmax.f32 %v6928, %v6896
    %v6945 = vmax.f32 %v6929, %v6897
    %v6946 = vmax.f32 %v6930, %v6898
    %v6947 = vmax.f32 %v6931, %v6899
    %v6948 = vmax.f32 %v6932, %v6900
    %v6949 = vmax.f32 %v6933, %v6901
    %v6950 = vmax.f32 %v6934, %v6902
    %v6951 = vmax.f32 %v6935, %v6903
    %vm6952 = vcmp.eq.f32.partialorder %v6664, %v6936
    %vm6953 = vcmp.eq.f32.partialorder %v6665, %v6937
    %vm6954 = vcmp.eq.f32.partialorder %v6666, %v6938
    %vm6955 = vcmp.eq.f32.partialorder %v6667, %v6939
    %vm6956 = vcmp.eq.f32.partialorder %v6668, %v6940
    %vm6957 = vcmp.eq.f32.partialorder %v6669, %v6941
    %vm6958 = vcmp.eq.f32.partialorder %v6670, %v6942
    %vm6959 = vcmp.eq.f32.partialorder %v6671, %v6943
    %vm6960 = vcmp.eq.f32.partialorder %v6672, %v6944
    %vm6961 = vcmp.eq.f32.partialorder %v6673, %v6945
    %vm6962 = vcmp.eq.f32.partialorder %v6674, %v6946
    %vm6963 = vcmp.eq.f32.partialorder %v6675, %v6947
    %vm6964 = vcmp.eq.f32.partialorder %v6676, %v6948
    %vm6965 = vcmp.eq.f32.partialorder %v6677, %v6949
    %vm6966 = vcmp.eq.f32.partialorder %v6678, %v6950
    %vm6967 = vcmp.eq.f32.partialorder %v6679, %v6951
    %vm6968 = vcmp.eq.f32.partialorder %v6744, %v6936
    %vm6969 = vcmp.eq.f32.partialorder %v6745, %v6937
    %vm6970 = vcmp.eq.f32.partialorder %v6746, %v6938
    %vm6971 = vcmp.eq.f32.partialorder %v6747, %v6939
    %vm6972 = vcmp.eq.f32.partialorder %v6748, %v6940
    %vm6973 = vcmp.eq.f32.partialorder %v6749, %v6941
    %vm6974 = vcmp.eq.f32.partialorder %v6750, %v6942
    %vm6975 = vcmp.eq.f32.partialorder %v6751, %v6943
    %vm6976 = vcmp.eq.f32.partialorder %v6752, %v6944
    %vm6977 = vcmp.eq.f32.partialorder %v6753, %v6945
    %vm6978 = vcmp.eq.f32.partialorder %v6754, %v6946
    %vm6979 = vcmp.eq.f32.partialorder %v6755, %v6947
    %vm6980 = vcmp.eq.f32.partialorder %v6756, %v6948
    %vm6981 = vcmp.eq.f32.partialorder %v6757, %v6949
    %vm6982 = vcmp.eq.f32.partialorder %v6758, %v6950
    %vm6983 = vcmp.eq.f32.partialorder %v6759, %v6951
    %vm6984 = vmxor %vm6952, 1
    %vm6985 = vmxor %vm6953, 1
    %vm6986 = vmxor %vm6954, 1
    %vm6987 = vmxor %vm6955, 1
    %vm6988 = vmxor %vm6956, 1
    %vm6989 = vmxor %vm6957, 1
    %vm6990 = vmxor %vm6958, 1
    %vm6991 = vmxor %vm6959, 1
    %vm6992 = vmxor %vm6960, 1
    %vm6993 = vmxor %vm6961, 1
    %vm6994 = vmxor %vm6962, 1
    %vm6995 = vmxor %vm6963, 1
    %vm6996 = vmxor %vm6964, 1
    %vm6997 = vmxor %vm6965, 1
    %vm6998 = vmxor %vm6966, 1
    %vm6999 = vmxor %vm6967, 1
    %vm7000 = vmand %vm6968, %vm6984
    %vm7001 = vmand %vm6969, %vm6985
    %vm7002 = vmand %vm6970, %vm6986
    %vm7003 = vmand %vm6971, %vm6987
    %vm7004 = vmand %vm6972, %vm6988
    %vm7005 = vmand %vm6973, %vm6989
    %vm7006 = vmand %vm6974, %vm6990
    %vm7007 = vmand %vm6975, %vm6991
    %vm7008 = vmand %vm6976, %vm6992
    %vm7009 = vmand %vm6977, %vm6993
    %vm7010 = vmand %vm6978, %vm6994
    %vm7011 = vmand %vm6979, %vm6995
    %vm7012 = vmand %vm6980, %vm6996
    %vm7013 = vmand %vm6981, %vm6997
    %vm7014 = vmand %vm6982, %vm6998
    %vm7015 = vmand %vm6983, %vm6999
    %vm7016 = vmor %vm6952, %vm7000
    %vm7017 = vmor %vm6953, %vm7001
    %vm7018 = vmor %vm6954, %vm7002
    %vm7019 = vmor %vm6955, %vm7003
    %vm7020 = vmor %vm6956, %vm7004
    %vm7021 = vmor %vm6957, %vm7005
    %vm7022 = vmor %vm6958, %vm7006
    %vm7023 = vmor %vm6959, %vm7007
    %vm7024 = vmor %vm6960, %vm7008
    %vm7025 = vmor %vm6961, %vm7009
    %vm7026 = vmor %vm6962, %vm7010
    %vm7027 = vmor %vm6963, %vm7011
    %vm7028 = vmor %vm6964, %vm7012
    %vm7029 = vmor %vm6965, %vm7013
    %vm7030 = vmor %vm6966, %vm7014
    %vm7031 = vmor %vm6967, %vm7015
    %vm7032 = vcmp.eq.f32.partialorder %v6824, %v6936
    %vm7033 = vcmp.eq.f32.partialorder %v6825, %v6937
    %vm7034 = vcmp.eq.f32.partialorder %v6826, %v6938
    %vm7035 = vcmp.eq.f32.partialorder %v6827, %v6939
    %vm7036 = vcmp.eq.f32.partialorder %v6828, %v6940
    %vm7037 = vcmp.eq.f32.partialorder %v6829, %v6941
    %vm7038 = vcmp.eq.f32.partialorder %v6830, %v6942
    %vm7039 = vcmp.eq.f32.partialorder %v6831, %v6943
    %vm7040 = vcmp.eq.f32.partialorder %v6832, %v6944
    %vm7041 = vcmp.eq.f32.partialorder %v6833, %v6945
    %vm7042 = vcmp.eq.f32.partialorder %v6834, %v6946
    %vm7043 = vcmp.eq.f32.partialorder %v6835, %v6947
    %vm7044 = vcmp.eq.f32.partialorder %v6836, %v6948
    %vm7045 = vcmp.eq.f32.partialorder %v6837, %v6949
    %vm7046 = vcmp.eq.f32.partialorder %v6838, %v6950
    %vm7047 = vcmp.eq.f32.partialorder %v6839, %v6951
    %vm7048 = vmxor %vm7016, 1
    %vm7049 = vmxor %vm7017, 1
    %vm7050 = vmxor %vm7018, 1
    %vm7051 = vmxor %vm7019, 1
    %vm7052 = vmxor %vm7020, 1
    %vm7053 = vmxor %vm7021, 1
    %vm7054 = vmxor %vm7022, 1
    %vm7055 = vmxor %vm7023, 1
    %vm7056 = vmxor %vm7024, 1
    %vm7057 = vmxor %vm7025, 1
    %vm7058 = vmxor %vm7026, 1
    %vm7059 = vmxor %vm7027, 1
    %vm7060 = vmxor %vm7028, 1
    %vm7061 = vmxor %vm7029, 1
    %vm7062 = vmxor %vm7030, 1
    %vm7063 = vmxor %vm7031, 1
    %vm7064 = vmand %vm7032, %vm7048
    %vm7065 = vmand %vm7033, %vm7049
    %vm7066 = vmand %vm7034, %vm7050
    %vm7067 = vmand %vm7035, %vm7051
    %vm7068 = vmand %vm7036, %vm7052
    %vm7069 = vmand %vm7037, %vm7053
    %vm7070 = vmand %vm7038, %vm7054
    %vm7071 = vmand %vm7039, %vm7055
    %vm7072 = vmand %vm7040, %vm7056
    %vm7073 = vmand %vm7041, %vm7057
    %vm7074 = vmand %vm7042, %vm7058
    %vm7075 = vmand %vm7043, %vm7059
    %vm7076 = vmand %vm7044, %vm7060
    %vm7077 = vmand %vm7045, %vm7061
    %vm7078 = vmand %vm7046, %vm7062
    %vm7079 = vmand %vm7047, %vm7063
    %vm7080 = vmor %vm7016, %vm7064
    %vm7081 = vmor %vm7017, %vm7065
    %vm7082 = vmor %vm7018, %vm7066
    %vm7083 = vmor %vm7019, %vm7067
    %vm7084 = vmor %vm7020, %vm7068
    %vm7085 = vmor %vm7021, %vm7069
    %vm7086 = vmor %vm7022, %vm7070
    %vm7087 = vmor %vm7023, %vm7071
    %vm7088 = vmor %vm7024, %vm7072
    %vm7089 = vmor %vm7025, %vm7073
    %vm7090 = vmor %vm7026, %vm7074
    %vm7091 = vmor %vm7027, %vm7075
    %vm7092 = vmor %vm7028, %vm7076
    %vm7093 = vmor %vm7029, %vm7077
    %vm7094 = vmor %vm7030, %vm7078
    %vm7095 = vmor %vm7031, %vm7079
    %vm7096 = vcmp.eq.f32.partialorder %v6888, %v6936
    %vm7097 = vcmp.eq.f32.partialorder %v6889, %v6937
    %vm7098 = vcmp.eq.f32.partialorder %v6890, %v6938
    %vm7099 = vcmp.eq.f32.partialorder %v6891, %v6939
    %vm7100 = vcmp.eq.f32.partialorder %v6892, %v6940
    %vm7101 = vcmp.eq.f32.partialorder %v6893, %v6941
    %vm7102 = vcmp.eq.f32.partialorder %v6894, %v6942
    %vm7103 = vcmp.eq.f32.partialorder %v6895, %v6943
    %vm7104 = vcmp.eq.f32.partialorder %v6896, %v6944
    %vm7105 = vcmp.eq.f32.partialorder %v6897, %v6945
    %vm7106 = vcmp.eq.f32.partialorder %v6898, %v6946
    %vm7107 = vcmp.eq.f32.partialorder %v6899, %v6947
    %vm7108 = vcmp.eq.f32.partialorder %v6900, %v6948
    %vm7109 = vcmp.eq.f32.partialorder %v6901, %v6949
    %vm7110 = vcmp.eq.f32.partialorder %v6902, %v6950
    %vm7111 = vcmp.eq.f32.partialorder %v6903, %v6951
    %vm7112 = vmxor %vm7080, 1
    %vm7113 = vmxor %vm7081, 1
    %vm7114 = vmxor %vm7082, 1
    %vm7115 = vmxor %vm7083, 1
    %vm7116 = vmxor %vm7084, 1
    %vm7117 = vmxor %vm7085, 1
    %vm7118 = vmxor %vm7086, 1
    %vm7119 = vmxor %vm7087, 1
    %vm7120 = vmxor %vm7088, 1
    %vm7121 = vmxor %vm7089, 1
    %vm7122 = vmxor %vm7090, 1
    %vm7123 = vmxor %vm7091, 1
    %vm7124 = vmxor %vm7092, 1
    %vm7125 = vmxor %vm7093, 1
    %vm7126 = vmxor %vm7094, 1
    %vm7127 = vmxor %vm7095, 1
    %vm7128 = vmand %vm7096, %vm7112
    %vm7129 = vmand %vm7097, %vm7113
    %vm7130 = vmand %vm7098, %vm7114
    %vm7131 = vmand %vm7099, %vm7115
    %vm7132 = vmand %vm7100, %vm7116
    %vm7133 = vmand %vm7101, %vm7117
    %vm7134 = vmand %vm7102, %vm7118
    %vm7135 = vmand %vm7103, %vm7119
    %vm7136 = vmand %vm7104, %vm7120
    %vm7137 = vmand %vm7105, %vm7121
    %vm7138 = vmand %vm7106, %vm7122
    %vm7139 = vmand %vm7107, %vm7123
    %vm7140 = vmand %vm7108, %vm7124
    %vm7141 = vmand %vm7109, %vm7125
    %vm7142 = vmand %vm7110, %vm7126
    %vm7143 = vmand %vm7111, %vm7127
    %v7144 = vsub.f32 %v6632, %v6632
    %v7145 = vsub.f32 %v6633, %v6633
    %v7146 = vsub.f32 %v6634, %v6634
    %v7147 = vsub.f32 %v6635, %v6635
    %v7148 = vsub.f32 %v6636, %v6636
    %v7149 = vsub.f32 %v6637, %v6637
    %v7150 = vsub.f32 %v6638, %v6638
    %v7151 = vsub.f32 %v6639, %v6639
    %v7152 = vsub.f32 %v6640, %v6640
    %v7153 = vsub.f32 %v6641, %v6641
    %v7154 = vsub.f32 %v6642, %v6642
    %v7155 = vsub.f32 %v6643, %v6643
    %v7156 = vsub.f32 %v6644, %v6644
    %v7157 = vsub.f32 %v6645, %v6645
    %v7158 = vsub.f32 %v6646, %v6646
    %v7159 = vsub.f32 %v6647, %v6647
    %v7160 = vmul.f32 %v7144, 1.442695
    %v7161 = vpow.pop %v7160
    %v7162 = vmul.f32 %v7145, 1.442695
    %v7163 = vpow.pop %v7162
    %v7164 = vmul.f32 %v7146, 1.442695
    %v7165 = vpow.pop %v7164
    %v7166 = vmul.f32 %v7147, 1.442695
    %v7167 = vpow.pop %v7166
    %v7168 = vmul.f32 %v7148, 1.442695
    %v7169 = vpow.pop %v7168
    %v7170 = vmul.f32 %v7149, 1.442695
    %v7171 = vpow.pop %v7170
    %v7172 = vmul.f32 %v7150, 1.442695
    %v7173 = vpow.pop %v7172
    %v7174 = vmul.f32 %v7151, 1.442695
    %v7175 = vpow.pop %v7174
    %v7176 = vmul.f32 %v7152, 1.442695
    %v7177 = vpow.pop %v7176
    %v7178 = vmul.f32 %v7153, 1.442695
    %v7179 = vpow.pop %v7178
    %v7180 = vmul.f32 %v7154, 1.442695
    %v7181 = vpow.pop %v7180
    %v7182 = vmul.f32 %v7155, 1.442695
    %v7183 = vpow.pop %v7182
    %v7184 = vmul.f32 %v7156, 1.442695
    %v7185 = vpow.pop %v7184
    %v7186 = vmul.f32 %v7157, 1.442695
    %v7187 = vpow.pop %v7186
    %v7188 = vmul.f32 %v7158, 1.442695
    %v7189 = vpow.pop %v7188
    %v7190 = vmul.f32 %v7159, 1.442695
    %v7191 = vpow.pop %v7190
    %v7192 = vsub.f32 %v6936, %v6632
    %v7193 = vsub.f32 %v6937, %v6633
    %v7194 = vsub.f32 %v6938, %v6634
    %v7195 = vsub.f32 %v6939, %v6635
    %v7196 = vsub.f32 %v6940, %v6636
    %v7197 = vsub.f32 %v6941, %v6637
    %v7198 = vsub.f32 %v6942, %v6638
    %v7199 = vsub.f32 %v6943, %v6639
    %v7200 = vsub.f32 %v6944, %v6640
    %v7201 = vsub.f32 %v6945, %v6641
    %v7202 = vsub.f32 %v6946, %v6642
    %v7203 = vsub.f32 %v6947, %v6643
    %v7204 = vsub.f32 %v6948, %v6644
    %v7205 = vsub.f32 %v6949, %v6645
    %v7206 = vsub.f32 %v6950, %v6646
    %v7207 = vsub.f32 %v6951, %v6647
    %v7208 = vmul.f32 %v7192, 1.442695
    %v7209 = vpow.pop %v7208
    %v7210 = vmul.f32 %v7193, 1.442695
    %v7211 = vpow.pop %v7210
    %v7212 = vmul.f32 %v7194, 1.442695
    %v7213 = vpow.pop %v7212
    %v7214 = vmul.f32 %v7195, 1.442695
    %v7215 = vpow.pop %v7214
    %v7216 = vmul.f32 %v7196, 1.442695
    %v7217 = vpow.pop %v7216
    %v7218 = vmul.f32 %v7197, 1.442695
    %v7219 = vpow.pop %v7218
    %v7220 = vmul.f32 %v7198, 1.442695
    %v7221 = vpow.pop %v7220
    %v7222 = vmul.f32 %v7199, 1.442695
    %v7223 = vpow.pop %v7222
    %v7224 = vmul.f32 %v7200, 1.442695
    %v7225 = vpow.pop %v7224
    %v7226 = vmul.f32 %v7201, 1.442695
    %v7227 = vpow.pop %v7226
    %v7228 = vmul.f32 %v7202, 1.442695
    %v7229 = vpow.pop %v7228
    %v7230 = vmul.f32 %v7203, 1.442695
    %v7231 = vpow.pop %v7230
    %v7232 = vmul.f32 %v7204, 1.442695
    %v7233 = vpow.pop %v7232
    %v7234 = vmul.f32 %v7205, 1.442695
    %v7235 = vpow.pop %v7234
    %v7236 = vmul.f32 %v7206, 1.442695
    %v7237 = vpow.pop %v7236
    %v7238 = vmul.f32 %v7207, 1.442695
    %v7239 = vpow.pop %v7238
    %v7240 = vadd.f32 %v7161, %v7209
    %v7241 = vadd.f32 %v7163, %v7211
    %v7242 = vadd.f32 %v7165, %v7213
    %v7243 = vadd.f32 %v7167, %v7215
    %v7244 = vadd.f32 %v7169, %v7217
    %v7245 = vadd.f32 %v7171, %v7219
    %v7246 = vadd.f32 %v7173, %v7221
    %v7247 = vadd.f32 %v7175, %v7223
    %v7248 = vadd.f32 %v7177, %v7225
    %v7249 = vadd.f32 %v7179, %v7227
    %v7250 = vadd.f32 %v7181, %v7229
    %v7251 = vadd.f32 %v7183, %v7231
    %v7252 = vadd.f32 %v7185, %v7233
    %v7253 = vadd.f32 %v7187, %v7235
    %v7254 = vadd.f32 %v7189, %v7237
    %v7255 = vadd.f32 %v7191, %v7239
    %v7256 = vrcp.pop %v7240
    %v7257 = vrcp.pop %v7241
    %v7258 = vrcp.pop %v7242
    %v7259 = vrcp.pop %v7243
    %v7260 = vrcp.pop %v7244
    %v7261 = vrcp.pop %v7245
    %v7262 = vrcp.pop %v7246
    %v7263 = vrcp.pop %v7247
    %v7264 = vrcp.pop %v7248
    %v7265 = vrcp.pop %v7249
    %v7266 = vrcp.pop %v7250
    %v7267 = vrcp.pop %v7251
    %v7268 = vrcp.pop %v7252
    %v7269 = vrcp.pop %v7253
    %v7270 = vrcp.pop %v7254
    %v7271 = vrcp.pop %v7255
    %v7272 = vmul.f32 %v7161, %v7256
    %v7273 = vmul.f32 %v7163, %v7257
    %v7274 = vmul.f32 %v7165, %v7258
    %v7275 = vmul.f32 %v7167, %v7259
    %v7276 = vmul.f32 %v7169, %v7260
    %v7277 = vmul.f32 %v7171, %v7261
    %v7278 = vmul.f32 %v7173, %v7262
    %v7279 = vmul.f32 %v7175, %v7263
    %v7280 = vmul.f32 %v7177, %v7264
    %v7281 = vmul.f32 %v7179, %v7265
    %v7282 = vmul.f32 %v7181, %v7266
    %v7283 = vmul.f32 %v7183, %v7267
    %v7284 = vmul.f32 %v7185, %v7268
    %v7285 = vmul.f32 %v7187, %v7269
    %v7286 = vmul.f32 %v7189, %v7270
    %v7287 = vmul.f32 %v7191, %v7271
    %v7288 = vmul.f32 %v7209, %v7256
    %v7289 = vmul.f32 %v7211, %v7257
    %v7290 = vmul.f32 %v7213, %v7258
    %v7291 = vmul.f32 %v7215, %v7259
    %v7292 = vmul.f32 %v7217, %v7260
    %v7293 = vmul.f32 %v7219, %v7261
    %v7294 = vmul.f32 %v7221, %v7262
    %v7295 = vmul.f32 %v7223, %v7263
    %v7296 = vmul.f32 %v7225, %v7264
    %v7297 = vmul.f32 %v7227, %v7265
    %v7298 = vmul.f32 %v7229, %v7266
    %v7299 = vmul.f32 %v7231, %v7267
    %v7300 = vmul.f32 %v7233, %v7268
    %v7301 = vmul.f32 %v7235, %v7269
    %v7302 = vmul.f32 %v7237, %v7270
    %v7303 = vmul.f32 %v7239, %v7271
    %v7304 = vsel %vm6648, %v7272, 0.0
    %v7305 = vsel %vm6649, %v7273, 0.0
    %v7306 = vsel %vm6650, %v7274, 0.0
    %v7307 = vsel %vm6651, %v7275, 0.0
    %v7308 = vsel %vm6652, %v7276, 0.0
    %v7309 = vsel %vm6653, %v7277, 0.0
    %v7310 = vsel %vm6654, %v7278, 0.0
    %v7311 = vsel %vm6655, %v7279, 0.0
    %v7312 = vsel %vm6656, %v7280, 0.0
    %v7313 = vsel %vm6657, %v7281, 0.0
    %v7314 = vsel %vm6658, %v7282, 0.0
    %v7315 = vsel %vm6659, %v7283, 0.0
    %v7316 = vsel %vm6660, %v7284, 0.0
    %v7317 = vsel %vm6661, %v7285, 0.0
    %v7318 = vsel %vm6662, %v7286, 0.0
    %v7319 = vsel %vm6663, %v7287, 0.0
    %v7320 = vadd.f32 %v7304, 0.0
    %v7321 = vadd.f32 %v7305, 0.0
    %v7322 = vadd.f32 %v7306, 0.0
    %v7323 = vadd.f32 %v7307, 0.0
    %v7324 = vadd.f32 %v7308, 0.0
    %v7325 = vadd.f32 %v7309, 0.0
    %v7326 = vadd.f32 %v7310, 0.0
    %v7327 = vadd.f32 %v7311, 0.0
    %v7328 = vadd.f32 %v7312, 0.0
    %v7329 = vadd.f32 %v7313, 0.0
    %v7330 = vadd.f32 %v7314, 0.0
    %v7331 = vadd.f32 %v7315, 0.0
    %v7332 = vadd.f32 %v7316, 0.0
    %v7333 = vadd.f32 %v7317, 0.0
    %v7334 = vadd.f32 %v7318, 0.0
    %v7335 = vadd.f32 %v7319, 0.0
    %v7336 = vsel %vm6952, %v7288, 0.0
    %v7337 = vsel %vm6953, %v7289, 0.0
    %v7338 = vsel %vm6954, %v7290, 0.0
    %v7339 = vsel %vm6955, %v7291, 0.0
    %v7340 = vsel %vm6956, %v7292, 0.0
    %v7341 = vsel %vm6957, %v7293, 0.0
    %v7342 = vsel %vm6958, %v7294, 0.0
    %v7343 = vsel %vm6959, %v7295, 0.0
    %v7344 = vsel %vm6960, %v7296, 0.0
    %v7345 = vsel %vm6961, %v7297, 0.0
    %v7346 = vsel %vm6962, %v7298, 0.0
    %v7347 = vsel %vm6963, %v7299, 0.0
    %v7348 = vsel %vm6964, %v7300, 0.0
    %v7349 = vsel %vm6965, %v7301, 0.0
    %v7350 = vsel %vm6966, %v7302, 0.0
    %v7351 = vsel %vm6967, %v7303, 0.0
    %v7352 = vadd.f32 %v7320, %v7336
    %v7353 = vadd.f32 %v7321, %v7337
    %v7354 = vadd.f32 %v7322, %v7338
    %v7355 = vadd.f32 %v7323, %v7339
    %v7356 = vadd.f32 %v7324, %v7340
    %v7357 = vadd.f32 %v7325, %v7341
    %v7358 = vadd.f32 %v7326, %v7342
    %v7359 = vadd.f32 %v7327, %v7343
    %v7360 = vadd.f32 %v7328, %v7344
    %v7361 = vadd.f32 %v7329, %v7345
    %v7362 = vadd.f32 %v7330, %v7346
    %v7363 = vadd.f32 %v7331, %v7347
    %v7364 = vadd.f32 %v7332, %v7348
    %v7365 = vadd.f32 %v7333, %v7349
    %v7366 = vadd.f32 %v7334, %v7350
    %v7367 = vadd.f32 %v7335, %v7351
    %v7368 = vmul.f32 %v7352, %v1721
    %v7369 = vmul.f32 %v7353, %v1728
    %v7370 = vmul.f32 %v7354, %v1735
    %v7371 = vmul.f32 %v7355, %v1742
    %v7372 = vmul.f32 %v7356, %v1749
    %v7373 = vmul.f32 %v7357, %v1756
    %v7374 = vmul.f32 %v7358, %v1763
    %v7375 = vmul.f32 %v7359, %v1770
    %v7376 = vmul.f32 %v7360, %v1777
    %v7377 = vmul.f32 %v7361, %v1784
    %v7378 = vmul.f32 %v7362, %v1791
    %v7379 = vmul.f32 %v7363, %v1798
    %v7380 = vmul.f32 %v7364, %v1805
    %v7381 = vmul.f32 %v7365, %v1812
    %v7382 = vmul.f32 %v7366, %v1819
    %v7383 = vmul.f32 %v7367, %v1826
    %v7384 = vadd.f32 %v7368, 0.0
    %v7385 = vadd.f32 %v7369, 0.0
    %v7386 = vadd.f32 %v7370, 0.0
    %v7387 = vadd.f32 %v7371, 0.0
    %v7388 = vadd.f32 %v7372, 0.0
    %v7389 = vadd.f32 %v7373, 0.0
    %v7390 = vadd.f32 %v7374, 0.0
    %v7391 = vadd.f32 %v7375, 0.0
    %v7392 = vadd.f32 %v7376, 0.0
    %v7393 = vadd.f32 %v7377, 0.0
    %v7394 = vadd.f32 %v7378, 0.0
    %v7395 = vadd.f32 %v7379, 0.0
    %v7396 = vadd.f32 %v7380, 0.0
    %v7397 = vadd.f32 %v7381, 0.0
    %v7398 = vadd.f32 %v7382, 0.0
    %v7399 = vadd.f32 %v7383, 0.0
    %v7400 = vsel %vm6712, %v7272, 0.0
    %v7401 = vsel %vm6713, %v7273, 0.0
    %v7402 = vsel %vm6714, %v7274, 0.0
    %v7403 = vsel %vm6715, %v7275, 0.0
    %v7404 = vsel %vm6716, %v7276, 0.0
    %v7405 = vsel %vm6717, %v7277, 0.0
    %v7406 = vsel %vm6718, %v7278, 0.0
    %v7407 = vsel %vm6719, %v7279, 0.0
    %v7408 = vsel %vm6720, %v7280, 0.0
    %v7409 = vsel %vm6721, %v7281, 0.0
    %v7410 = vsel %vm6722, %v7282, 0.0
    %v7411 = vsel %vm6723, %v7283, 0.0
    %v7412 = vsel %vm6724, %v7284, 0.0
    %v7413 = vsel %vm6725, %v7285, 0.0
    %v7414 = vsel %vm6726, %v7286, 0.0
    %v7415 = vsel %vm6727, %v7287, 0.0
    %v7416 = vadd.f32 %v7400, 0.0
    %v7417 = vadd.f32 %v7401, 0.0
    %v7418 = vadd.f32 %v7402, 0.0
    %v7419 = vadd.f32 %v7403, 0.0
    %v7420 = vadd.f32 %v7404, 0.0
    %v7421 = vadd.f32 %v7405, 0.0
    %v7422 = vadd.f32 %v7406, 0.0
    %v7423 = vadd.f32 %v7407, 0.0
    %v7424 = vadd.f32 %v7408, 0.0
    %v7425 = vadd.f32 %v7409, 0.0
    %v7426 = vadd.f32 %v7410, 0.0
    %v7427 = vadd.f32 %v7411, 0.0
    %v7428 = vadd.f32 %v7412, 0.0
    %v7429 = vadd.f32 %v7413, 0.0
    %v7430 = vadd.f32 %v7414, 0.0
    %v7431 = vadd.f32 %v7415, 0.0
    %v7432 = vsel %vm7000, %v7288, 0.0
    %v7433 = vsel %vm7001, %v7289, 0.0
    %v7434 = vsel %vm7002, %v7290, 0.0
    %v7435 = vsel %vm7003, %v7291, 0.0
    %v7436 = vsel %vm7004, %v7292, 0.0
    %v7437 = vsel %vm7005, %v7293, 0.0
    %v7438 = vsel %vm7006, %v7294, 0.0
    %v7439 = vsel %vm7007, %v7295, 0.0
    %v7440 = vsel %vm7008, %v7296, 0.0
    %v7441 = vsel %vm7009, %v7297, 0.0
    %v7442 = vsel %vm7010, %v7298, 0.0
    %v7443 = vsel %vm7011, %v7299, 0.0
    %v7444 = vsel %vm7012, %v7300, 0.0
    %v7445 = vsel %vm7013, %v7301, 0.0
    %v7446 = vsel %vm7014, %v7302, 0.0
    %v7447 = vsel %vm7015, %v7303, 0.0
    %v7448 = vadd.f32 %v7416, %v7432
    %v7449 = vadd.f32 %v7417, %v7433
    %v7450 = vadd.f32 %v7418, %v7434
    %v7451 = vadd.f32 %v7419, %v7435
    %v7452 = vadd.f32 %v7420, %v7436
    %v7453 = vadd.f32 %v7421, %v7437
    %v7454 = vadd.f32 %v7422, %v7438
    %v7455 = vadd.f32 %v7423, %v7439
    %v7456 = vadd.f32 %v7424, %v7440
    %v7457 = vadd.f32 %v7425, %v7441
    %v7458 = vadd.f32 %v7426, %v7442
    %v7459 = vadd.f32 %v7427, %v7443
    %v7460 = vadd.f32 %v7428, %v7444
    %v7461 = vadd.f32 %v7429, %v7445
    %v7462 = vadd.f32 %v7430, %v7446
    %v7463 = vadd.f32 %v7431, %v7447
    %v7464 = vmul.f32 %v7448, %v1723
    %v7465 = vmul.f32 %v7449, %v1730
    %v7466 = vmul.f32 %v7450, %v1737
    %v7467 = vmul.f32 %v7451, %v1744
    %v7468 = vmul.f32 %v7452, %v1751
    %v7469 = vmul.f32 %v7453, %v1758
    %v7470 = vmul.f32 %v7454, %v1765
    %v7471 = vmul.f32 %v7455, %v1772
    %v7472 = vmul.f32 %v7456, %v1779
    %v7473 = vmul.f32 %v7457, %v1786
    %v7474 = vmul.f32 %v7458, %v1793
    %v7475 = vmul.f32 %v7459, %v1800
    %v7476 = vmul.f32 %v7460, %v1807
    %v7477 = vmul.f32 %v7461, %v1814
    %v7478 = vmul.f32 %v7462, %v1821
    %v7479 = vmul.f32 %v7463, %v1828
    %v7480 = vadd.f32 %v7384, %v7464
    %v7481 = vadd.f32 %v7385, %v7465
    %v7482 = vadd.f32 %v7386, %v7466
    %v7483 = vadd.f32 %v7387, %v7467
    %v7484 = vadd.f32 %v7388, %v7468
    %v7485 = vadd.f32 %v7389, %v7469
    %v7486 = vadd.f32 %v7390, %v7470
    %v7487 = vadd.f32 %v7391, %v7471
    %v7488 = vadd.f32 %v7392, %v7472
    %v7489 = vadd.f32 %v7393, %v7473
    %v7490 = vadd.f32 %v7394, %v7474
    %v7491 = vadd.f32 %v7395, %v7475
    %v7492 = vadd.f32 %v7396, %v7476
    %v7493 = vadd.f32 %v7397, %v7477
    %v7494 = vadd.f32 %v7398, %v7478
    %v7495 = vadd.f32 %v7399, %v7479
    %v7496 = vsel %vm6792, %v7272, 0.0
    %v7497 = vsel %vm6793, %v7273, 0.0
    %v7498 = vsel %vm6794, %v7274, 0.0
    %v7499 = vsel %vm6795, %v7275, 0.0
    %v7500 = vsel %vm6796, %v7276, 0.0
    %v7501 = vsel %vm6797, %v7277, 0.0
    %v7502 = vsel %vm6798, %v7278, 0.0
    %v7503 = vsel %vm6799, %v7279, 0.0
    %v7504 = vsel %vm6800, %v7280, 0.0
    %v7505 = vsel %vm6801, %v7281, 0.0
    %v7506 = vsel %vm6802, %v7282, 0.0
    %v7507 = vsel %vm6803, %v7283, 0.0
    %v7508 = vsel %vm6804, %v7284, 0.0
    %v7509 = vsel %vm6805, %v7285, 0.0
    %v7510 = vsel %vm6806, %v7286, 0.0
    %v7511 = vsel %vm6807, %v7287, 0.0
    %v7512 = vadd.f32 %v7496, 0.0
    %v7513 = vadd.f32 %v7497, 0.0
    %v7514 = vadd.f32 %v7498, 0.0
    %v7515 = vadd.f32 %v7499, 0.0
    %v7516 = vadd.f32 %v7500, 0.0
    %v7517 = vadd.f32 %v7501, 0.0
    %v7518 = vadd.f32 %v7502, 0.0
    %v7519 = vadd.f32 %v7503, 0.0
    %v7520 = vadd.f32 %v7504, 0.0
    %v7521 = vadd.f32 %v7505, 0.0
    %v7522 = vadd.f32 %v7506, 0.0
    %v7523 = vadd.f32 %v7507, 0.0
    %v7524 = vadd.f32 %v7508, 0.0
    %v7525 = vadd.f32 %v7509, 0.0
    %v7526 = vadd.f32 %v7510, 0.0
    %v7527 = vadd.f32 %v7511, 0.0
    %v7528 = vsel %vm7064, %v7288, 0.0
    %v7529 = vsel %vm7065, %v7289, 0.0
    %v7530 = vsel %vm7066, %v7290, 0.0
    %v7531 = vsel %vm7067, %v7291, 0.0
    %v7532 = vsel %vm7068, %v7292, 0.0
    %v7533 = vsel %vm7069, %v7293, 0.0
    %v7534 = vsel %vm7070, %v7294, 0.0
    %v7535 = vsel %vm7071, %v7295, 0.0
    %v7536 = vsel %vm7072, %v7296, 0.0
    %v7537 = vsel %vm7073, %v7297, 0.0
    %v7538 = vsel %vm7074, %v7298, 0.0
    %v7539 = vsel %vm7075, %v7299, 0.0
    %v7540 = vsel %vm7076, %v7300, 0.0
    %v7541 = vsel %vm7077, %v7301, 0.0
    %v7542 = vsel %vm7078, %v7302, 0.0
    %v7543 = vsel %vm7079, %v7303, 0.0
    %v7544 = vadd.f32 %v7512, %v7528
    %v7545 = vadd.f32 %v7513, %v7529
    %v7546 = vadd.f32 %v7514, %v7530
    %v7547 = vadd.f32 %v7515, %v7531
    %v7548 = vadd.f32 %v7516, %v7532
    %v7549 = vadd.f32 %v7517, %v7533
    %v7550 = vadd.f32 %v7518, %v7534
    %v7551 = vadd.f32 %v7519, %v7535
    %v7552 = vadd.f32 %v7520, %v7536
    %v7553 = vadd.f32 %v7521, %v7537
    %v7554 = vadd.f32 %v7522, %v7538
    %v7555 = vadd.f32 %v7523, %v7539
    %v7556 = vadd.f32 %v7524, %v7540
    %v7557 = vadd.f32 %v7525, %v7541
    %v7558 = vadd.f32 %v7526, %v7542
    %v7559 = vadd.f32 %v7527, %v7543
    %v7560 = vmul.f32 %v7544, %v3311
    %v7561 = vmul.f32 %v7545, %v3318
    %v7562 = vmul.f32 %v7546, %v3325
    %v7563 = vmul.f32 %v7547, %v3332
    %v7564 = vmul.f32 %v7548, %v3339
    %v7565 = vmul.f32 %v7549, %v3346
    %v7566 = vmul.f32 %v7550, %v3353
    %v7567 = vmul.f32 %v7551, %v3360
    %v7568 = vmul.f32 %v7552, %v3367
    %v7569 = vmul.f32 %v7553, %v3374
    %v7570 = vmul.f32 %v7554, %v3381
    %v7571 = vmul.f32 %v7555, %v3388
    %v7572 = vmul.f32 %v7556, %v3395
    %v7573 = vmul.f32 %v7557, %v3402
    %v7574 = vmul.f32 %v7558, %v3409
    %v7575 = vmul.f32 %v7559, %v3416
    %v7576 = vadd.f32 %v7480, %v7560
    %v7577 = vadd.f32 %v7481, %v7561
    %v7578 = vadd.f32 %v7482, %v7562
    %v7579 = vadd.f32 %v7483, %v7563
    %v7580 = vadd.f32 %v7484, %v7564
    %v7581 = vadd.f32 %v7485, %v7565
    %v7582 = vadd.f32 %v7486, %v7566
    %v7583 = vadd.f32 %v7487, %v7567
    %v7584 = vadd.f32 %v7488, %v7568
    %v7585 = vadd.f32 %v7489, %v7569
    %v7586 = vadd.f32 %v7490, %v7570
    %v7587 = vadd.f32 %v7491, %v7571
    %v7588 = vadd.f32 %v7492, %v7572
    %v7589 = vadd.f32 %v7493, %v7573
    %v7590 = vadd.f32 %v7494, %v7574
    %v7591 = vadd.f32 %v7495, %v7575
    %v7592 = vsel %vm6872, %v7272, 0.0
    %v7593 = vsel %vm6873, %v7273, 0.0
    %v7594 = vsel %vm6874, %v7274, 0.0
    %v7595 = vsel %vm6875, %v7275, 0.0
    %v7596 = vsel %vm6876, %v7276, 0.0
    %v7597 = vsel %vm6877, %v7277, 0.0
    %v7598 = vsel %vm6878, %v7278, 0.0
    %v7599 = vsel %vm6879, %v7279, 0.0
    %v7600 = vsel %vm6880, %v7280, 0.0
    %v7601 = vsel %vm6881, %v7281, 0.0
    %v7602 = vsel %vm6882, %v7282, 0.0
    %v7603 = vsel %vm6883, %v7283, 0.0
    %v7604 = vsel %vm6884, %v7284, 0.0
    %v7605 = vsel %vm6885, %v7285, 0.0
    %v7606 = vsel %vm6886, %v7286, 0.0
    %v7607 = vsel %vm6887, %v7287, 0.0
    %v7608 = vadd.f32 %v7592, 0.0
    %v7609 = vadd.f32 %v7593, 0.0
    %v7610 = vadd.f32 %v7594, 0.0
    %v7611 = vadd.f32 %v7595, 0.0
    %v7612 = vadd.f32 %v7596, 0.0
    %v7613 = vadd.f32 %v7597, 0.0
    %v7614 = vadd.f32 %v7598, 0.0
    %v7615 = vadd.f32 %v7599, 0.0
    %v7616 = vadd.f32 %v7600, 0.0
    %v7617 = vadd.f32 %v7601, 0.0
    %v7618 = vadd.f32 %v7602, 0.0
    %v7619 = vadd.f32 %v7603, 0.0
    %v7620 = vadd.f32 %v7604, 0.0
    %v7621 = vadd.f32 %v7605, 0.0
    %v7622 = vadd.f32 %v7606, 0.0
    %v7623 = vadd.f32 %v7607, 0.0
    %v7624 = vsel %vm7128, %v7288, 0.0
    %v7625 = vsel %vm7129, %v7289, 0.0
    %v7626 = vsel %vm7130, %v7290, 0.0
    %v7627 = vsel %vm7131, %v7291, 0.0
    %v7628 = vsel %vm7132, %v7292, 0.0
    %v7629 = vsel %vm7133, %v7293, 0.0
    %v7630 = vsel %vm7134, %v7294, 0.0
    %v7631 = vsel %vm7135, %v7295, 0.0
    %v7632 = vsel %vm7136, %v7296, 0.0
    %v7633 = vsel %vm7137, %v7297, 0.0
    %v7634 = vsel %vm7138, %v7298, 0.0
    %v7635 = vsel %vm7139, %v7299, 0.0
    %v7636 = vsel %vm7140, %v7300, 0.0
    %v7637 = vsel %vm7141, %v7301, 0.0
    %v7638 = vsel %vm7142, %v7302, 0.0
    %v7639 = vsel %vm7143, %v7303, 0.0
    %v7640 = vadd.f32 %v7608, %v7624
    %v7641 = vadd.f32 %v7609, %v7625
    %v7642 = vadd.f32 %v7610, %v7626
    %v7643 = vadd.f32 %v7611, %v7627
    %v7644 = vadd.f32 %v7612, %v7628
    %v7645 = vadd.f32 %v7613, %v7629
    %v7646 = vadd.f32 %v7614, %v7630
    %v7647 = vadd.f32 %v7615, %v7631
    %v7648 = vadd.f32 %v7616, %v7632
    %v7649 = vadd.f32 %v7617, %v7633
    %v7650 = vadd.f32 %v7618, %v7634
    %v7651 = vadd.f32 %v7619, %v7635
    %v7652 = vadd.f32 %v7620, %v7636
    %v7653 = vadd.f32 %v7621, %v7637
    %v7654 = vadd.f32 %v7622, %v7638
    %v7655 = vadd.f32 %v7623, %v7639
    %v7656 = vmul.f32 %v7640, %v3313
    %v7657 = vmul.f32 %v7641, %v3320
    %v7658 = vmul.f32 %v7642, %v3327
    %v7659 = vmul.f32 %v7643, %v3334
    %v7660 = vmul.f32 %v7644, %v3341
    %v7661 = vmul.f32 %v7645, %v3348
    %v7662 = vmul.f32 %v7646, %v3355
    %v7663 = vmul.f32 %v7647, %v3362
    %v7664 = vmul.f32 %v7648, %v3369
    %v7665 = vmul.f32 %v7649, %v3376
    %v7666 = vmul.f32 %v7650, %v3383
    %v7667 = vmul.f32 %v7651, %v3390
    %v7668 = vmul.f32 %v7652, %v3397
    %v7669 = vmul.f32 %v7653, %v3404
    %v7670 = vmul.f32 %v7654, %v3411
    %v7671 = vmul.f32 %v7655, %v3418
    %v7672 = vadd.f32 %v7576, %v7656
    %v7673 = vadd.f32 %v7577, %v7657
    %v7674 = vadd.f32 %v7578, %v7658
    %v7675 = vadd.f32 %v7579, %v7659
    %v7676 = vadd.f32 %v7580, %v7660
    %v7677 = vadd.f32 %v7581, %v7661
    %v7678 = vadd.f32 %v7582, %v7662
    %v7679 = vadd.f32 %v7583, %v7663
    %v7680 = vadd.f32 %v7584, %v7664
    %v7681 = vadd.f32 %v7585, %v7665
    %v7682 = vadd.f32 %v7586, %v7666
    %v7683 = vadd.f32 %v7587, %v7667
    %v7684 = vadd.f32 %v7588, %v7668
    %v7685 = vadd.f32 %v7589, %v7669
    %v7686 = vadd.f32 %v7590, %v7670
    %v7687 = vadd.f32 %v7591, %v7671
    %7688 = vst [vmem:[#allocation8] sm:$0xff] %v7672
    %7689 = vst [vmem:[#allocation8 + $0x8] sm:$0xff] %v7673
    %7690 = vst [vmem:[#allocation8 + $0x10] sm:$0xff] %v7674
    %7691 = vst [vmem:[#allocation8 + $0x18] sm:$0xff] %v7675
    %7692 = vst [vmem:[#allocation8 + $0x20] sm:$0xff] %v7676
    %7693 = vst [vmem:[#allocation8 + $0x28] sm:$0xff] %v7677
    %7694 = vst [vmem:[#allocation8 + $0x30] sm:$0xff] %v7678
    %7695 = vst [vmem:[#allocation8 + $0x38] sm:$0xff] %v7679
    %7696 = vst [vmem:[#allocation8 + $0x40] sm:$0xff] %v7680
    %7697 = vst [vmem:[#allocation8 + $0x48] sm:$0xff] %v7681
    %7698 = vst [vmem:[#allocation8 + $0x50] sm:$0xff] %v7682
    %7699 = vst [vmem:[#allocation8 + $0x58] sm:$0xff] %v7683
    %7700 = vst [vmem:[#allocation8 + $0x60] sm:$0xff] %v7684
    %7701 = vst [vmem:[#allocation8 + $0x68] sm:$0xff] %v7685
    %7702 = vst [vmem:[#allocation8 + $0x70] sm:$0xff] %v7686
    %7703 = vst [vmem:[#allocation8 + $0x78] sm:$0xff] %v7687
    // Predicated region
    $region26: #{tpu_custom_call.1} parent=1 // pred_check
      _
    $region27: #{tpu_custom_call.1} parent=1 // pred_check_branch
      %7705 = sbr.rel (0) target = $region29
    $region28: #{tpu_custom_call.1} parent=1 // pred_region
      %s7707 = ssub.s32 2048, 2048
      %7708 = vsyncadd [#allocation4], %s7707
      %s7709 = sshll.u32 [#allocation8], 4
      %s7710 = int_to_ptr.vmem [resolvable:$true] %s7709
      %7715 = dma.vmem_to_hbm [thread:$0]  %s7710, 2048, %s3, [#allocation4], 128, 128, 8
    $region29: #{tpu_custom_call.1} parent=1 // pred_fallthru
      _
    // Predicated region
    $region30: #{tpu_custom_call.1} parent=1 // pred_check
      _
    $region31: #{tpu_custom_call.1} parent=1 // pred_check_branch
      %7717 = sbr.rel (0) target = $region33
    $region32: #{tpu_custom_call.1} parent=1 // pred_region
      %7718 = dma.done [#allocation4], 2048
    $region33: #{tpu_custom_call.1} parent=1 // pred_fallthru
      _
    %7719 = vsyncpa [#allocation3], 1
    %7720 = vsyncpa [#allocation6], 1
    %7721 = vsyncpa [#allocation4], 1

</llo_original>
